<compile_context>
chip_gen: v6e
topology: v6e:2x2x1
jax: 0.10.0
libtpu: 0.0.40
codegen_flags: <defaults>
</compile_context>

<pallas_src>
import math

import jax
import jax.numpy as jnp
from jax.experimental import pallas as pl
from jax.experimental.pallas import tpu as pltpu


# ------------------------------ fused kernel --------------------------------

def _make_fused_kernel(*, B, N, S, C, E, H, L, V1, V2, num_classes):
    BE = B * N
    f32 = jnp.float32
    n_in = 4 + 8 * L + 16

    def sigmoid(z):
        return 1.0 / (1.0 + jnp.exp(-z))                    # exp -> EUP slot

    def lstm_cell(gates, c_prev):
        # PyTorch gate order: i, f, g, o
        i = sigmoid(gates[:, 0 * H:1 * H])
        f = sigmoid(gates[:, 1 * H:2 * H])
        g = jnp.tanh(gates[:, 2 * H:3 * H])
        o = sigmoid(gates[:, 3 * H:4 * H])
        c = f * c_prev + i * g
        h = o * jnp.tanh(c)
        return h, c

    def bilstm(x_flat, layer_refs, scr, Bb, T):
        """Bidirectional multi-layer LSTM (eval mode), batch-first.

        x_flat: (Bb*T, Din) batch-major-flattened layer-0 input (a value).
        scr:    (Bb, T, 2H) VMEM scratch; each layer's output is written here
                (fwd -> [..., :H], bwd -> [..., H:]).
        """
        for li, (w_cat_ref, b_cat_ref, whh_f_ref, whh_b_ref) in enumerate(layer_refs):
            if li > 0:
                x_flat = scr[...].reshape(Bb * T, 2 * H)
            # One lane-dense MXU pass for BOTH directions' input projections.
            g = (jnp.dot(x_flat, w_cat_ref[...], preferred_element_type=f32)
                 + b_cat_ref[...]).reshape(Bb, T, 8 * H)
            whh_f = whh_f_ref[...]
            whh_b = whh_b_ref[...]
            h_f = jnp.zeros((Bb, H), f32)
            c_f = jnp.zeros((Bb, H), f32)
            h_b = jnp.zeros((Bb, H), f32)
            c_b = jnp.zeros((Bb, H), f32)
            # T is tiny and static: fully unrolled, state stays in registers.
            for s in range(T):
                tb = T - 1 - s                               # backward position
                gf = g[:, s, 0:4 * H] + jnp.dot(h_f, whh_f,
                                                preferred_element_type=f32)
                gb = g[:, tb, 4 * H:8 * H] + jnp.dot(h_b, whh_b,
                                                     preferred_element_type=f32)
                h_f, c_f = lstm_cell(gf, c_f)
                h_b, c_b = lstm_cell(gb, c_b)
                scr[:, s, 0:H] = h_f
                scr[:, tb, H:2 * H] = h_b                    # already un-flipped
        return scr[...]                                      # (Bb, T, 2H)

    def self_attn_fc(x, fc_w, fc_b):
        """attn_net (query == x in eval) fused with the trailing fc.

        Uses ctx = (sum_q softmax(scores)) . x  (algebraically identical to
        matmul(p, x).sum(1)).
        """
        D = x.shape[-1]
        scores = jnp.einsum("bqd,bkd->bqk", x, x,
                            preferred_element_type=f32) * (1.0 / math.sqrt(D))
        m = jnp.max(scores, axis=-1, keepdims=True)
        e = jnp.exp(scores - m)
        p = e * pl.reciprocal(jnp.sum(e, axis=-1, keepdims=True), approx=True)
        pbar = jnp.sum(p, axis=1)                            # (Bb, T)
        ctx = jnp.sum(pbar[:, :, None] * x, axis=1)          # (Bb, D)  (VPU)
        return jnp.dot(ctx, fc_w, preferred_element_type=f32) + fc_b

    def global_attn(enc, w1, b1, w2_row, b2):
        """GlobalAttention over axis 1 of enc: (Bb, T, H) -> (Bb, H)."""
        Bb, T, Hh = enc.shape
        P = w1.shape[1]
        h = jnp.maximum(jnp.dot(enc.reshape(Bb * T, Hh), w1,
                                preferred_element_type=f32) + b1, 0.0)
        # Linear(P, 1) as a VPU multiply + lane reduce (no 1-lane MXU matmul).
        energy = jnp.sum(h.reshape(Bb, T, P) * w2_row.reshape(1, 1, P),
                         axis=-1) + b2                       # (Bb, T)
        m = jnp.max(energy, axis=1, keepdims=True)
        e = jnp.exp(energy - m)
        w = e * pl.reciprocal(jnp.sum(e, axis=1, keepdims=True), approx=True)
        return jnp.sum(enc * w[:, :, None], axis=1)          # (Bb, H)

    def kernel(*refs):
        dfs_ids_ref, const_ids_ref, vocab_emb_ref, const_emb_ref = refs[0:4]
        idx = 4
        dfs_lstm = [refs[idx + 4 * l: idx + 4 * (l + 1)] for l in range(L)]
        idx += 4 * L
        hier_lstm = [refs[idx + 4 * l: idx + 4 * (l + 1)] for l in range(L)]
        idx += 4 * L
        (dfs_fc_w, dfs_fc_b, hier_fc_w, hier_fc_b,
         cmap_w, cmap_b,
         gac_w1, gac_b1, gac_w2, gac_b2,
         ga_w1, ga_b1, ga_w2, ga_b2,
         lin_w, lin_b) = refs[idx: idx + 16]
        out_ref = refs[idx + 16]
        dfs_scr = refs[idx + 17]
        hier_scr = refs[idx + 18]

        # ------------------ DFS branch (all N sequences folded into batch) ---
        # Embedding gather as one-hot @ table (MXU), fully in-kernel.
        oh = (dfs_ids_ref[...] ==
              jax.lax.broadcasted_iota(jnp.int32, (BE * S, V1), 1)).astype(f32)
        x_flat = jnp.dot(oh, vocab_emb_ref[...],
                         preferred_element_type=f32)          # (BE*S, E)
        dfs_out = bilstm(x_flat, dfs_lstm, dfs_scr, BE, S)     # (BE, S, 2H)
        dfs_logit = self_attn_fc(dfs_out, dfs_fc_w[...], dfs_fc_b[...])  # (BE, H)

        # ------------------ Hierarchical branch ------------------------------
        # dfs_logit rows are already (B*N, H) batch-major -> direct LSTM input.
        hier_out = bilstm(dfs_logit, hier_lstm, hier_scr, B, N)          # (B, N, 2H)
        dfs_vec = self_attn_fc(hier_out, hier_fc_w[...], hier_fc_b[...])  # (B, H)

        # ------------------ Const branch --------------------------------------
        coh = (const_ids_ref[...] ==
               jax.lax.broadcasted_iota(jnp.int32, (B * C, V2), 1)).astype(f32)
        c_flat = jnp.dot(coh, const_emb_ref[...],
                         preferred_element_type=f32)           # (B*C, E)
        enc_flat = jnp.dot(c_flat, cmap_w[...],
                           preferred_element_type=f32) + cmap_b[...]      # (B*C, H)
        enc = enc_flat.reshape(B, C, H)
        const_vec = global_attn(enc, gac_w1[...], gac_b1[...],
                                gac_w2[...], gac_b2[...])      # (B, H)

        # --------- Final GlobalAttention over the (dfs, const) pair + linear --
        ga_w1v, ga_b1v = ga_w1[...], ga_b1[...]
        ga_w2v, ga_b2v = ga_w2[...], ga_b2[...]

        def pair_energy(v):                                    # v: (B, H)
            hh = jnp.maximum(jnp.dot(v, ga_w1v, preferred_element_type=f32)
                             + ga_b1v, 0.0)
            return jnp.sum(hh * ga_w2v, axis=-1, keepdims=True) + ga_b2v  # (B, 1)

        e0 = pair_energy(dfs_vec)
        e1 = pair_energy(const_vec)
        m = jnp.maximum(e0, e1)
        a0 = jnp.exp(e0 - m)
        a1 = jnp.exp(e1 - m)
        inv = pl.reciprocal(a0 + a1, approx=True)
        ctx = (a0 * inv) * dfs_vec + (a1 * inv) * const_vec    # (B, H)
        out_ref[...] = jnp.dot(ctx, lin_w[...],
                               preferred_element_type=f32) + lin_b[...]

    return kernel, n_in


# ------------------------------- model wrapper -------------------------------

def basic_type_classifier(params, dfs_seq, const_values):
    """dfs_seq: (B, N, S) int tokens; const_values: (B, C) int tokens."""
    B, N, S = dfs_seq.shape
    C = const_values.shape[1]
    V1, E = params["vocab_emb"].shape
    V2 = params["const_emb"].shape[0]
    H = params["dfs_fc_w"].shape[1]
    num_classes = params["lin_w"].shape[1]
    L = len(params["dfs_rnn"])
    BE = B * N

    # Only glue outside the kernel: flatten the (tiny, int32) token ids.
    dfs_ids = dfs_seq.reshape(BE * S, 1).astype(jnp.int32)
    const_ids = const_values.reshape(B * C, 1).astype(jnp.int32)

    args = [dfs_ids, const_ids, params["vocab_emb"], params["const_emb"]]
    for lyr in params["dfs_rnn"]:
        args += [lyr["w_i_cat"], lyr["b_cat"], lyr["w_hh_f"], lyr["w_hh_b"]]
    for lyr in params["hier_rnn"]:
        args += [lyr["w_i_cat"], lyr["b_cat"], lyr["w_hh_f"], lyr["w_hh_b"]]
    args += [params["dfs_fc_w"], params["dfs_fc_b"],
             params["hier_fc_w"], params["hier_fc_b"],
             params["const_map_w"], params["const_map_b"],
             params["attn_const"]["w1"], params["attn_const"]["b1"],
             params["attn_const"]["w2"], params["attn_const"]["b2"],
             params["attn"]["w1"], params["attn"]["b1"],
             params["attn"]["w2"], params["attn"]["b2"],
             params["lin_w"], params["lin_b"]]

    kernel, _ = _make_fused_kernel(B=B, N=N, S=S, C=C, E=E, H=H, L=L,
                                   V1=V1, V2=V2, num_classes=num_classes)

    return pl.pallas_call(
        kernel,
        out_shape=jax.ShapeDtypeStruct((B, num_classes), jnp.float32),
        scratch_shapes=[
            pltpu.VMEM((BE, S, 2 * H), jnp.float32),   # DFS LSTM layer output
            pltpu.VMEM((B, N, 2 * H), jnp.float32),    # hier LSTM layer output
        ],
    )(*args)


# ------------------------------- parameters ---------------------------------

def init_params(key, *, V1, V2, E, H, L, num_classes):
    P = H // 5
    kit = iter(jax.random.split(key, 256))

    def rn(shape, scale=0.1):
        return scale * jax.random.normal(next(kit), shape, jnp.float32)

    def uni(shape, s):
        return jax.random.uniform(next(kit), shape, jnp.float32, -s, s)

    def init_bilstm(input_size):
        s = 1.0 / math.sqrt(H)
        layers = []
        for l in range(L):
            din = input_size if l == 0 else 2 * H
            w_ih_f = uni((din, 4 * H), s)
            w_ih_b = uni((din, 4 * H), s)
            w_hh_f = uni((H, 4 * H), s)
            w_hh_b = uni((H, 4 * H), s)
            b_f = uni((4 * H,), s) + uni((4 * H,), s)        # b_ih + b_hh
            b_b = uni((4 * H,), s) + uni((4 * H,), s)
            layers.append(dict(
                w_i_cat=jnp.concatenate([w_ih_f, w_ih_b], axis=1),      # (din, 8H)
                b_cat=jnp.concatenate([b_f, b_b]).reshape(1, 8 * H),
                w_hh_f=w_hh_f, w_hh_b=w_hh_b))
        return layers

    # pretrained vocab2vec with row 1 zeroed (per DFSAttention.__init__)
    vocab2vec = rn((V1, E), 1.0).at[1].set(0.0)

    def ga():  # GlobalAttention: Linear(H, H//5) -> ReLU -> Linear(H//5, 1)
        return dict(w1=rn((H, P)), b1=rn((P,)).reshape(1, P),
                    w2=rn((P,)).reshape(1, P),               # Linear(P,1) weight row
                    b2=rn((1,)).reshape(1, 1))

    return dict(
        vocab_emb=vocab2vec,
        const_emb=rn((V2, E), 1.0 / math.sqrt(E)),           # normal_(0, 1/sqrt(E))
        dfs_rnn=init_bilstm(E),
        hier_rnn=init_bilstm(H),
        dfs_fc_w=rn((2 * H, H)), dfs_fc_b=rn((1, H)),
        hier_fc_w=rn((2 * H, H)), hier_fc_b=rn((1, H)),
        const_map_w=rn((E, H)), const_map_b=rn((1, H)),
        attn=ga(), attn_const=ga(),
        lin_w=rn((H, num_classes)), lin_b=rn((1, num_classes)),
    )


if __name__ == "__main__":
    # small shapes: batch=2, num_dfs_seqs=3, seq_len=8, n_const=6,
    # embedding_dim=16, hidden_size=32, rnn_layers=1, num_classes=5
    B, N, S, C = 2, 3, 8, 6
    E, H, L, num_classes = 16, 32, 1, 5
    V1, V2 = 50, 30

    key = jax.random.PRNGKey(0)
    kp, kd, kc = jax.random.split(key, 3)
    params = init_params(kp, V1=V1, V2=V2, E=E, H=H, L=L,
                         num_classes=num_classes)
    dfs_seq = jax.random.randint(kd, (B, N, S), 0, V1, dtype=jnp.int32)
    const_values = jax.random.randint(kc, (B, C), 0, V2, dtype=jnp.int32)

    fwd = jax.jit(basic_type_classifier)
    logits = fwd(params, dfs_seq, const_values)
    jax.block_until_ready(logits)
    assert logits.shape == (B, num_classes)
    assert bool(jnp.all(jnp.isfinite(logits)))
    print("KERNEL_OK")
</pallas_src>

<mosaic_0001>
module attributes {stable_mosaic.version = 11 : i64} {
  func.func @kernel(%arg0: memref<48x1xi32, #tpu.memory_space<vmem>>, %arg1: memref<12x1xi32, #tpu.memory_space<vmem>>, %arg2: memref<50x16xf32, #tpu.memory_space<vmem>>, %arg3: memref<30x16xf32, #tpu.memory_space<vmem>>, %arg4: memref<16x256xf32, #tpu.memory_space<vmem>>, %arg5: memref<1x256xf32, #tpu.memory_space<vmem>>, %arg6: memref<32x128xf32, #tpu.memory_space<vmem>>, %arg7: memref<32x128xf32, #tpu.memory_space<vmem>>, %arg8: memref<32x256xf32, #tpu.memory_space<vmem>>, %arg9: memref<1x256xf32, #tpu.memory_space<vmem>>, %arg10: memref<32x128xf32, #tpu.memory_space<vmem>>, %arg11: memref<32x128xf32, #tpu.memory_space<vmem>>, %arg12: memref<64x32xf32, #tpu.memory_space<vmem>>, %arg13: memref<1x32xf32, #tpu.memory_space<vmem>>, %arg14: memref<64x32xf32, #tpu.memory_space<vmem>>, %arg15: memref<1x32xf32, #tpu.memory_space<vmem>>, %arg16: memref<16x32xf32, #tpu.memory_space<vmem>>, %arg17: memref<1x32xf32, #tpu.memory_space<vmem>>, %arg18: memref<32x6xf32, #tpu.memory_space<vmem>>, %arg19: memref<1x6xf32, #tpu.memory_space<vmem>>, %arg20: memref<1x6xf32, #tpu.memory_space<vmem>>, %arg21: memref<1x1xf32, #tpu.memory_space<vmem>>, %arg22: memref<32x6xf32, #tpu.memory_space<vmem>>, %arg23: memref<1x6xf32, #tpu.memory_space<vmem>>, %arg24: memref<1x6xf32, #tpu.memory_space<vmem>>, %arg25: memref<1x1xf32, #tpu.memory_space<vmem>>, %arg26: memref<32x5xf32, #tpu.memory_space<vmem>>, %arg27: memref<1x5xf32, #tpu.memory_space<vmem>>, %arg28: memref<2x5xf32, #tpu.memory_space<vmem>>, %arg29: memref<6x8x64xf32, #tpu.memory_space<vmem>>, %arg30: memref<2x3x64xf32, #tpu.memory_space<vmem>>) attributes {dimension_semantics = [], scalar_prefetch = 0 : i64, scratch_operands = 2 : i64, tpu.core_type = #tpu.core_type<tc>} {
    %c0 = arith.constant 0 : index
    %c0_0 = arith.constant 0 : index
    %0 = vector.load %arg0[%c0, %c0_0] : memref<48x1xi32, #tpu.memory_space<vmem>>, vector<48x1xi32>
    %1 = tpu.iota {dimensions = array<i32: 1>} : vector<48x50xi32>
    %2 = vector.broadcast %0 : vector<48x1xi32> to vector<48x50xi32>
    %3 = arith.cmpi eq, %2, %1 : vector<48x50xi32>
    %4 = arith.extui %3 : vector<48x50xi1> to vector<48x50xi32>
    %5 = arith.sitofp %4 : vector<48x50xi32> to vector<48x50xf32>
    %c0_1 = arith.constant 0 : index
    %c0_2 = arith.constant 0 : index
    %6 = vector.load %arg2[%c0_1, %c0_2] : memref<50x16xf32, #tpu.memory_space<vmem>>, vector<50x16xf32>
    %cst = arith.constant dense<0.000000e+00> : vector<48x16xf32>
    %7 = tpu.matmul %5, %6, %cst {dimension_numbers = #tpu.dot_dimension_numbers<[1], [0], [0], [1], [0, 0, 1, 1], [], []>} : vector<48x50xf32>, vector<50x16xf32>, vector<48x16xf32> -> vector<48x16xf32>
    %c0_3 = arith.constant 0 : index
    %c0_4 = arith.constant 0 : index
    %8 = vector.load %arg4[%c0_3, %c0_4] : memref<16x256xf32, #tpu.memory_space<vmem>>, vector<16x256xf32>
    %cst_5 = arith.constant dense<0.000000e+00> : vector<48x256xf32>
    %9 = tpu.matmul %7, %8, %cst_5 {dimension_numbers = #tpu.dot_dimension_numbers<[1], [0], [0], [1], [0, 0, 1, 1], [], []>} : vector<48x16xf32>, vector<16x256xf32>, vector<48x256xf32> -> vector<48x256xf32>
    %c0_6 = arith.constant 0 : index
    %c0_7 = arith.constant 0 : index
    %10 = vector.load %arg5[%c0_6, %c0_7] : memref<1x256xf32, #tpu.memory_space<vmem>>, vector<1x256xf32>
    %11 = vector.broadcast %10 : vector<1x256xf32> to vector<48x256xf32>
    %12 = arith.addf %9, %11 : vector<48x256xf32>
    %13 = vector.shape_cast %12 : vector<48x256xf32> to vector<6x8x256xf32>
    %c0_8 = arith.constant 0 : index
    %c0_9 = arith.constant 0 : index
    %14 = vector.load %arg6[%c0_8, %c0_9] : memref<32x128xf32, #tpu.memory_space<vmem>>, vector<32x128xf32>
    %c0_10 = arith.constant 0 : index
    %c0_11 = arith.constant 0 : index
    %15 = vector.load %arg7[%c0_10, %c0_11] : memref<32x128xf32, #tpu.memory_space<vmem>>, vector<32x128xf32>
    %cst_12 = arith.constant 0.000000e+00 : f32
    %16 = vector.broadcast %cst_12 : f32 to vector<6x32xf32>
    %cst_13 = arith.constant 0.000000e+00 : f32
    %17 = vector.broadcast %cst_13 : f32 to vector<6x32xf32>
    %cst_14 = arith.constant 0.000000e+00 : f32
    %18 = vector.broadcast %cst_14 : f32 to vector<6x32xf32>
    %cst_15 = arith.constant 0.000000e+00 : f32
    %19 = vector.broadcast %cst_15 : f32 to vector<6x32xf32>
    %20 = vector.extract_strided_slice %13 {offsets = [0, 0, 0], sizes = [6, 1, 128], strides = [1, 1, 1]} : vector<6x8x256xf32> to vector<6x1x128xf32>
    %21 = vector.shape_cast %20 : vector<6x1x128xf32> to vector<6x128xf32>
    %cst_16 = arith.constant dense<0.000000e+00> : vector<6x128xf32>
    %22 = tpu.matmul %16, %14, %cst_16 {dimension_numbers = #tpu.dot_dimension_numbers<[1], [0], [0], [1], [0, 0, 1, 1], [], []>} : vector<6x32xf32>, vector<32x128xf32>, vector<6x128xf32> -> vector<6x128xf32>
    %23 = arith.addf %21, %22 : vector<6x128xf32>
    %24 = vector.extract_strided_slice %13 {offsets = [0, 7, 128], sizes = [6, 1, 128], strides = [1, 1, 1]} : vector<6x8x256xf32> to vector<6x1x128xf32>
    %25 = vector.shape_cast %24 : vector<6x1x128xf32> to vector<6x128xf32>
    %cst_17 = arith.constant dense<0.000000e+00> : vector<6x128xf32>
    %26 = tpu.matmul %18, %15, %cst_17 {dimension_numbers = #tpu.dot_dimension_numbers<[1], [0], [0], [1], [0, 0, 1, 1], [], []>} : vector<6x32xf32>, vector<32x128xf32>, vector<6x128xf32> -> vector<6x128xf32>
    %27 = arith.addf %25, %26 : vector<6x128xf32>
    %28 = vector.extract_strided_slice %23 {offsets = [0, 0], sizes = [6, 32], strides = [1, 1]} : vector<6x128xf32> to vector<6x32xf32>
    %cst_18 = arith.constant 0.000000e+00 : f32
    %29 = vector.broadcast %cst_18 : f32 to vector<6x32xf32>
    %30 = arith.subf %29, %28 : vector<6x32xf32>
    %31 = math.exp %30 : vector<6x32xf32>
    %cst_19 = arith.constant 1.000000e+00 : f32
    %32 = vector.broadcast %cst_19 : f32 to vector<6x32xf32>
    %33 = arith.addf %32, %31 : vector<6x32xf32>
    %cst_20 = arith.constant 1.000000e+00 : f32
    %34 = vector.broadcast %cst_20 : f32 to vector<6x32xf32>
    %35 = arith.divf %34, %33 : vector<6x32xf32>
    %36 = vector.extract_strided_slice %23 {offsets = [0, 32], sizes = [6, 32], strides = [1, 1]} : vector<6x128xf32> to vector<6x32xf32>
    %cst_21 = arith.constant 0.000000e+00 : f32
    %37 = vector.broadcast %cst_21 : f32 to vector<6x32xf32>
    %38 = arith.subf %37, %36 : vector<6x32xf32>
    %39 = math.exp %38 : vector<6x32xf32>
    %cst_22 = arith.constant 1.000000e+00 : f32
    %40 = vector.broadcast %cst_22 : f32 to vector<6x32xf32>
    %41 = arith.addf %40, %39 : vector<6x32xf32>
    %cst_23 = arith.constant 1.000000e+00 : f32
    %42 = vector.broadcast %cst_23 : f32 to vector<6x32xf32>
    %43 = arith.divf %42, %41 : vector<6x32xf32>
    %44 = vector.extract_strided_slice %23 {offsets = [0, 64], sizes = [6, 32], strides = [1, 1]} : vector<6x128xf32> to vector<6x32xf32>
    %45 = math.tanh %44 : vector<6x32xf32>
    %46 = vector.extract_strided_slice %23 {offsets = [0, 96], sizes = [6, 32], strides = [1, 1]} : vector<6x128xf32> to vector<6x32xf32>
    %cst_24 = arith.constant 0.000000e+00 : f32
    %47 = vector.broadcast %cst_24 : f32 to vector<6x32xf32>
    %48 = arith.subf %47, %46 : vector<6x32xf32>
    %49 = math.exp %48 : vector<6x32xf32>
    %cst_25 = arith.constant 1.000000e+00 : f32
    %50 = vector.broadcast %cst_25 : f32 to vector<6x32xf32>
    %51 = arith.addf %50, %49 : vector<6x32xf32>
    %cst_26 = arith.constant 1.000000e+00 : f32
    %52 = vector.broadcast %cst_26 : f32 to vector<6x32xf32>
    %53 = arith.divf %52, %51 : vector<6x32xf32>
    %54 = arith.mulf %43, %17 : vector<6x32xf32>
    %55 = arith.mulf %35, %45 : vector<6x32xf32>
    %56 = arith.addf %54, %55 : vector<6x32xf32>
    %57 = math.tanh %56 : vector<6x32xf32>
    %58 = arith.mulf %53, %57 : vector<6x32xf32>
    %59 = vector.extract_strided_slice %27 {offsets = [0, 0], sizes = [6, 32], strides = [1, 1]} : vector<6x128xf32> to vector<6x32xf32>
    %cst_27 = arith.constant 0.000000e+00 : f32
    %60 = vector.broadcast %cst_27 : f32 to vector<6x32xf32>
    %61 = arith.subf %60, %59 : vector<6x32xf32>
    %62 = math.exp %61 : vector<6x32xf32>
    %cst_28 = arith.constant 1.000000e+00 : f32
    %63 = vector.broadcast %cst_28 : f32 to vector<6x32xf32>
    %64 = arith.addf %63, %62 : vector<6x32xf32>
    %cst_29 = arith.constant 1.000000e+00 : f32
    %65 = vector.broadcast %cst_29 : f32 to vector<6x32xf32>
    %66 = arith.divf %65, %64 : vector<6x32xf32>
    %67 = vector.extract_strided_slice %27 {offsets = [0, 32], sizes = [6, 32], strides = [1, 1]} : vector<6x128xf32> to vector<6x32xf32>
    %cst_30 = arith.constant 0.000000e+00 : f32
    %68 = vector.broadcast %cst_30 : f32 to vector<6x32xf32>
    %69 = arith.subf %68, %67 : vector<6x32xf32>
    %70 = math.exp %69 : vector<6x32xf32>
    %cst_31 = arith.constant 1.000000e+00 : f32
    %71 = vector.broadcast %cst_31 : f32 to vector<6x32xf32>
    %72 = arith.addf %71, %70 : vector<6x32xf32>
    %cst_32 = arith.constant 1.000000e+00 : f32
    %73 = vector.broadcast %cst_32 : f32 to vector<6x32xf32>
    %74 = arith.divf %73, %72 : vector<6x32xf32>
    %75 = vector.extract_strided_slice %27 {offsets = [0, 64], sizes = [6, 32], strides = [1, 1]} : vector<6x128xf32> to vector<6x32xf32>
    %76 = math.tanh %75 : vector<6x32xf32>
    %77 = vector.extract_strided_slice %27 {offsets = [0, 96], sizes = [6, 32], strides = [1, 1]} : vector<6x128xf32> to vector<6x32xf32>
    %cst_33 = arith.constant 0.000000e+00 : f32
    %78 = vector.broadcast %cst_33 : f32 to vector<6x32xf32>
    %79 = arith.subf %78, %77 : vector<6x32xf32>
    %80 = math.exp %79 : vector<6x32xf32>
    %cst_34 = arith.constant 1.000000e+00 : f32
    %81 = vector.broadcast %cst_34 : f32 to vector<6x32xf32>
    %82 = arith.addf %81, %80 : vector<6x32xf32>
    %cst_35 = arith.constant 1.000000e+00 : f32
    %83 = vector.broadcast %cst_35 : f32 to vector<6x32xf32>
    %84 = arith.divf %83, %82 : vector<6x32xf32>
    %85 = arith.mulf %74, %19 : vector<6x32xf32>
    %86 = arith.mulf %66, %76 : vector<6x32xf32>
    %87 = arith.addf %85, %86 : vector<6x32xf32>
    %88 = math.tanh %87 : vector<6x32xf32>
    %89 = arith.mulf %84, %88 : vector<6x32xf32>
    %c0_36 = arith.constant 0 : index
    %c0_37 = arith.constant 0 : index
    %c0_38 = arith.constant 0 : index
    %90 = vector.load %arg29[%c0_36, %c0_37, %c0_38] : memref<6x8x64xf32, #tpu.memory_space<vmem>>, vector<6x1x32xf32>
    %91 = vector.shape_cast %90 : vector<6x1x32xf32> to vector<6x32xf32>
    %92 = vector.shape_cast %58 : vector<6x32xf32> to vector<6x1x32xf32>
    tpu.vector_store %arg29[%c0_36, %c0_37, %c0_38], %92 {strides = array<i32>} : memref<6x8x64xf32, #tpu.memory_space<vmem>>, vector<6x1x32xf32>,
    %c0_39 = arith.constant 0 : index
    %c7 = arith.constant 7 : index
    %c32 = arith.constant 32 : index
    %93 = vector.load %arg29[%c0_39, %c7, %c32] : memref<6x8x64xf32, #tpu.memory_space<vmem>>, vector<6x1x32xf32>
    %94 = vector.shape_cast %93 : vector<6x1x32xf32> to vector<6x32xf32>
    %95 = vector.shape_cast %89 : vector<6x32xf32> to vector<6x1x32xf32>
    tpu.vector_store %arg29[%c0_39, %c7, %c32], %95 {strides = array<i32>} : memref<6x8x64xf32, #tpu.memory_space<vmem>>, vector<6x1x32xf32>,
    %96 = vector.extract_strided_slice %13 {offsets = [0, 1, 0], sizes = [6, 1, 128], strides = [1, 1, 1]} : vector<6x8x256xf32> to vector<6x1x128xf32>
    %97 = vector.shape_cast %96 : vector<6x1x128xf32> to vector<6x128xf32>
    %cst_40 = arith.constant dense<0.000000e+00> : vector<6x128xf32>
    %98 = tpu.matmul %58, %14, %cst_40 {dimension_numbers = #tpu.dot_dimension_numbers<[1], [0], [0], [1], [0, 0, 1, 1], [], []>} : vector<6x32xf32>, vector<32x128xf32>, vector<6x128xf32> -> vector<6x128xf32>
    %99 = arith.addf %97, %98 : vector<6x128xf32>
    %100 = vector.extract_strided_slice %13 {offsets = [0, 6, 128], sizes = [6, 1, 128], strides = [1, 1, 1]} : vector<6x8x256xf32> to vector<6x1x128xf32>
    %101 = vector.shape_cast %100 : vector<6x1x128xf32> to vector<6x128xf32>
    %cst_41 = arith.constant dense<0.000000e+00> : vector<6x128xf32>
    %102 = tpu.matmul %89, %15, %cst_41 {dimension_numbers = #tpu.dot_dimension_numbers<[1], [0], [0], [1], [0, 0, 1, 1], [], []>} : vector<6x32xf32>, vector<32x128xf32>, vector<6x128xf32> -> vector<6x128xf32>
    %103 = arith.addf %101, %102 : vector<6x128xf32>
    %104 = vector.extract_strided_slice %99 {offsets = [0, 0], sizes = [6, 32], strides = [1, 1]} : vector<6x128xf32> to vector<6x32xf32>
    %cst_42 = arith.constant 0.000000e+00 : f32
    %105 = vector.broadcast %cst_42 : f32 to vector<6x32xf32>
    %106 = arith.subf %105, %104 : vector<6x32xf32>
    %107 = math.exp %106 : vector<6x32xf32>
    %cst_43 = arith.constant 1.000000e+00 : f32
    %108 = vector.broadcast %cst_43 : f32 to vector<6x32xf32>
    %109 = arith.addf %108, %107 : vector<6x32xf32>
    %cst_44 = arith.constant 1.000000e+00 : f32
    %110 = vector.broadcast %cst_44 : f32 to vector<6x32xf32>
    %111 = arith.divf %110, %109 : vector<6x32xf32>
    %112 = vector.extract_strided_slice %99 {offsets = [0, 32], sizes = [6, 32], strides = [1, 1]} : vector<6x128xf32> to vector<6x32xf32>
    %cst_45 = arith.constant 0.000000e+00 : f32
    %113 = vector.broadcast %cst_45 : f32 to vector<6x32xf32>
    %114 = arith.subf %113, %112 : vector<6x32xf32>
    %115 = math.exp %114 : vector<6x32xf32>
    %cst_46 = arith.constant 1.000000e+00 : f32
    %116 = vector.broadcast %cst_46 : f32 to vector<6x32xf32>
    %117 = arith.addf %116, %115 : vector<6x32xf32>
    %cst_47 = arith.constant 1.000000e+00 : f32
    %118 = vector.broadcast %cst_47 : f32 to vector<6x32xf32>
    %119 = arith.divf %118, %117 : vector<6x32xf32>
    %120 = vector.extract_strided_slice %99 {offsets = [0, 64], sizes = [6, 32], strides = [1, 1]} : vector<6x128xf32> to vector<6x32xf32>
    %121 = math.tanh %120 : vector<6x32xf32>
    %122 = vector.extract_strided_slice %99 {offsets = [0, 96], sizes = [6, 32], strides = [1, 1]} : vector<6x128xf32> to vector<6x32xf32>
    %cst_48 = arith.constant 0.000000e+00 : f32
    %123 = vector.broadcast %cst_48 : f32 to vector<6x32xf32>
    %124 = arith.subf %123, %122 : vector<6x32xf32>
    %125 = math.exp %124 : vector<6x32xf32>
    %cst_49 = arith.constant 1.000000e+00 : f32
    %126 = vector.broadcast %cst_49 : f32 to vector<6x32xf32>
    %127 = arith.addf %126, %125 : vector<6x32xf32>
    %cst_50 = arith.constant 1.000000e+00 : f32
    %128 = vector.broadcast %cst_50 : f32 to vector<6x32xf32>
    %129 = arith.divf %128, %127 : vector<6x32xf32>
    %130 = arith.mulf %119, %56 : vector<6x32xf32>
    %131 = arith.mulf %111, %121 : vector<6x32xf32>
    %132 = arith.addf %130, %131 : vector<6x32xf32>
    %133 = math.tanh %132 : vector<6x32xf32>
    %134 = arith.mulf %129, %133 : vector<6x32xf32>
    %135 = vector.extract_strided_slice %103 {offsets = [0, 0], sizes = [6, 32], strides = [1, 1]} : vector<6x128xf32> to vector<6x32xf32>
    %cst_51 = arith.constant 0.000000e+00 : f32
    %136 = vector.broadcast %cst_51 : f32 to vector<6x32xf32>
    %137 = arith.subf %136, %135 : vector<6x32xf32>
    %138 = math.exp %137 : vector<6x32xf32>
    %cst_52 = arith.constant 1.000000e+00 : f32
    %139 = vector.broadcast %cst_52 : f32 to vector<6x32xf32>
    %140 = arith.addf %139, %138 : vector<6x32xf32>
    %cst_53 = arith.constant 1.000000e+00 : f32
    %141 = vector.broadcast %cst_53 : f32 to vector<6x32xf32>
    %142 = arith.divf %141, %140 : vector<6x32xf32>
    %143 = vector.extract_strided_slice %103 {offsets = [0, 32], sizes = [6, 32], strides = [1, 1]} : vector<6x128xf32> to vector<6x32xf32>
    %cst_54 = arith.constant 0.000000e+00 : f32
    %144 = vector.broadcast %cst_54 : f32 to vector<6x32xf32>
    %145 = arith.subf %144, %143 : vector<6x32xf32>
    %146 = math.exp %145 : vector<6x32xf32>
    %cst_55 = arith.constant 1.000000e+00 : f32
    %147 = vector.broadcast %cst_55 : f32 to vector<6x32xf32>
    %148 = arith.addf %147, %146 : vector<6x32xf32>
    %cst_56 = arith.constant 1.000000e+00 : f32
    %149 = vector.broadcast %cst_56 : f32 to vector<6x32xf32>
    %150 = arith.divf %149, %148 : vector<6x32xf32>
    %151 = vector.extract_strided_slice %103 {offsets = [0, 64], sizes = [6, 32], strides = [1, 1]} : vector<6x128xf32> to vector<6x32xf32>
    %152 = math.tanh %151 : vector<6x32xf32>
    %153 = vector.extract_strided_slice %103 {offsets = [0, 96], sizes = [6, 32], strides = [1, 1]} : vector<6x128xf32> to vector<6x32xf32>
    %cst_57 = arith.constant 0.000000e+00 : f32
    %154 = vector.broadcast %cst_57 : f32 to vector<6x32xf32>
    %155 = arith.subf %154, %153 : vector<6x32xf32>
    %156 = math.exp %155 : vector<6x32xf32>
    %cst_58 = arith.constant 1.000000e+00 : f32
    %157 = vector.broadcast %cst_58 : f32 to vector<6x32xf32>
    %158 = arith.addf %157, %156 : vector<6x32xf32>
    %cst_59 = arith.constant 1.000000e+00 : f32
    %159 = vector.broadcast %cst_59 : f32 to vector<6x32xf32>
    %160 = arith.divf %159, %158 : vector<6x32xf32>
    %161 = arith.mulf %150, %87 : vector<6x32xf32>
    %162 = arith.mulf %142, %152 : vector<6x32xf32>
    %163 = arith.addf %161, %162 : vector<6x32xf32>
    %164 = math.tanh %163 : vector<6x32xf32>
    %165 = arith.mulf %160, %164 : vector<6x32xf32>
    %c0_60 = arith.constant 0 : index
    %c1 = arith.constant 1 : index
    %c0_61 = arith.constant 0 : index
    %166 = vector.load %arg29[%c0_60, %c1, %c0_61] : memref<6x8x64xf32, #tpu.memory_space<vmem>>, vector<6x1x32xf32>
    %167 = vector.shape_cast %166 : vector<6x1x32xf32> to vector<6x32xf32>
    %168 = vector.shape_cast %134 : vector<6x32xf32> to vector<6x1x32xf32>
    tpu.vector_store %arg29[%c0_60, %c1, %c0_61], %168 {strides = array<i32>} : memref<6x8x64xf32, #tpu.memory_space<vmem>>, vector<6x1x32xf32>,
    %c0_62 = arith.constant 0 : index
    %c6 = arith.constant 6 : index
    %c32_63 = arith.constant 32 : index
    %169 = vector.load %arg29[%c0_62, %c6, %c32_63] : memref<6x8x64xf32, #tpu.memory_space<vmem>>, vector<6x1x32xf32>
    %170 = vector.shape_cast %169 : vector<6x1x32xf32> to vector<6x32xf32>
    %171 = vector.shape_cast %165 : vector<6x32xf32> to vector<6x1x32xf32>
    tpu.vector_store %arg29[%c0_62, %c6, %c32_63], %171 {strides = array<i32>} : memref<6x8x64xf32, #tpu.memory_space<vmem>>, vector<6x1x32xf32>,
    %172 = vector.extract_strided_slice %13 {offsets = [0, 2, 0], sizes = [6, 1, 128], strides = [1, 1, 1]} : vector<6x8x256xf32> to vector<6x1x128xf32>
    %173 = vector.shape_cast %172 : vector<6x1x128xf32> to vector<6x128xf32>
    %cst_64 = arith.constant dense<0.000000e+00> : vector<6x128xf32>
    %174 = tpu.matmul %134, %14, %cst_64 {dimension_numbers = #tpu.dot_dimension_numbers<[1], [0], [0], [1], [0, 0, 1, 1], [], []>} : vector<6x32xf32>, vector<32x128xf32>, vector<6x128xf32> -> vector<6x128xf32>
    %175 = arith.addf %173, %174 : vector<6x128xf32>
    %176 = vector.extract_strided_slice %13 {offsets = [0, 5, 128], sizes = [6, 1, 128], strides = [1, 1, 1]} : vector<6x8x256xf32> to vector<6x1x128xf32>
    %177 = vector.shape_cast %176 : vector<6x1x128xf32> to vector<6x128xf32>
    %cst_65 = arith.constant dense<0.000000e+00> : vector<6x128xf32>
    %178 = tpu.matmul %165, %15, %cst_65 {dimension_numbers = #tpu.dot_dimension_numbers<[1], [0], [0], [1], [0, 0, 1, 1], [], []>} : vector<6x32xf32>, vector<32x128xf32>, vector<6x128xf32> -> vector<6x128xf32>
    %179 = arith.addf %177, %178 : vector<6x128xf32>
    %180 = vector.extract_strided_slice %175 {offsets = [0, 0], sizes = [6, 32], strides = [1, 1]} : vector<6x128xf32> to vector<6x32xf32>
    %cst_66 = arith.constant 0.000000e+00 : f32
    %181 = vector.broadcast %cst_66 : f32 to vector<6x32xf32>
    %182 = arith.subf %181, %180 : vector<6x32xf32>
    %183 = math.exp %182 : vector<6x32xf32>
    %cst_67 = arith.constant 1.000000e+00 : f32
    %184 = vector.broadcast %cst_67 : f32 to vector<6x32xf32>
    %185 = arith.addf %184, %183 : vector<6x32xf32>
    %cst_68 = arith.constant 1.000000e+00 : f32
    %186 = vector.broadcast %cst_68 : f32 to vector<6x32xf32>
    %187 = arith.divf %186, %185 : vector<6x32xf32>
    %188 = vector.extract_strided_slice %175 {offsets = [0, 32], sizes = [6, 32], strides = [1, 1]} : vector<6x128xf32> to vector<6x32xf32>
    %cst_69 = arith.constant 0.000000e+00 : f32
    %189 = vector.broadcast %cst_69 : f32 to vector<6x32xf32>
    %190 = arith.subf %189, %188 : vector<6x32xf32>
    %191 = math.exp %190 : vector<6x32xf32>
    %cst_70 = arith.constant 1.000000e+00 : f32
    %192 = vector.broadcast %cst_70 : f32 to vector<6x32xf32>
    %193 = arith.addf %192, %191 : vector<6x32xf32>
    %cst_71 = arith.constant 1.000000e+00 : f32
    %194 = vector.broadcast %cst_71 : f32 to vector<6x32xf32>
    %195 = arith.divf %194, %193 : vector<6x32xf32>
    %196 = vector.extract_strided_slice %175 {offsets = [0, 64], sizes = [6, 32], strides = [1, 1]} : vector<6x128xf32> to vector<6x32xf32>
    %197 = math.tanh %196 : vector<6x32xf32>
    %198 = vector.extract_strided_slice %175 {offsets = [0, 96], sizes = [6, 32], strides = [1, 1]} : vector<6x128xf32> to vector<6x32xf32>
    %cst_72 = arith.constant 0.000000e+00 : f32
    %199 = vector.broadcast %cst_72 : f32 to vector<6x32xf32>
    %200 = arith.subf %199, %198 : vector<6x32xf32>
    %201 = math.exp %200 : vector<6x32xf32>
    %cst_73 = arith.constant 1.000000e+00 : f32
    %202 = vector.broadcast %cst_73 : f32 to vector<6x32xf32>
    %203 = arith.addf %202, %201 : vector<6x32xf32>
    %cst_74 = arith.constant 1.000000e+00 : f32
    %204 = vector.broadcast %cst_74 : f32 to vector<6x32xf32>
    %205 = arith.divf %204, %203 : vector<6x32xf32>
    %206 = arith.mulf %195, %132 : vector<6x32xf32>
    %207 = arith.mulf %187, %197 : vector<6x32xf32>
    %208 = arith.addf %206, %207 : vector<6x32xf32>
    %209 = math.tanh %208 : vector<6x32xf32>
    %210 = arith.mulf %205, %209 : vector<6x32xf32>
    %211 = vector.extract_strided_slice %179 {offsets = [0, 0], sizes = [6, 32], strides = [1, 1]} : vector<6x128xf32> to vector<6x32xf32>
    %cst_75 = arith.constant 0.000000e+00 : f32
    %212 = vector.broadcast %cst_75 : f32 to vector<6x32xf32>
    %213 = arith.subf %212, %211 : vector<6x32xf32>
    %214 = math.exp %213 : vector<6x32xf32>
    %cst_76 = arith.constant 1.000000e+00 : f32
    %215 = vector.broadcast %cst_76 : f32 to vector<6x32xf32>
    %216 = arith.addf %215, %214 : vector<6x32xf32>
    %cst_77 = arith.constant 1.000000e+00 : f32
    %217 = vector.broadcast %cst_77 : f32 to vector<6x32xf32>
    %218 = arith.divf %217, %216 : vector<6x32xf32>
    %219 = vector.extract_strided_slice %179 {offsets = [0, 32], sizes = [6, 32], strides = [1, 1]} : vector<6x128xf32> to vector<6x32xf32>
    %cst_78 = arith.constant 0.000000e+00 : f32
    %220 = vector.broadcast %cst_78 : f32 to vector<6x32xf32>
    %221 = arith.subf %220, %219 : vector<6x32xf32>
    %222 = math.exp %221 : vector<6x32xf32>
    %cst_79 = arith.constant 1.000000e+00 : f32
    %223 = vector.broadcast %cst_79 : f32 to vector<6x32xf32>
    %224 = arith.addf %223, %222 : vector<6x32xf32>
    %cst_80 = arith.constant 1.000000e+00 : f32
    %225 = vector.broadcast %cst_80 : f32 to vector<6x32xf32>
    %226 = arith.divf %225, %224 : vector<6x32xf32>
    %227 = vector.extract_strided_slice %179 {offsets = [0, 64], sizes = [6, 32], strides = [1, 1]} : vector<6x128xf32> to vector<6x32xf32>
    %228 = math.tanh %227 : vector<6x32xf32>
    %229 = vector.extract_strided_slice %179 {offsets = [0, 96], sizes = [6, 32], strides = [1, 1]} : vector<6x128xf32> to vector<6x32xf32>
    %cst_81 = arith.constant 0.000000e+00 : f32
    %230 = vector.broadcast %cst_81 : f32 to vector<6x32xf32>
    %231 = arith.subf %230, %229 : vector<6x32xf32>
    %232 = math.exp %231 : vector<6x32xf32>
    %cst_82 = arith.constant 1.000000e+00 : f32
    %233 = vector.broadcast %cst_82 : f32 to vector<6x32xf32>
    %234 = arith.addf %233, %232 : vector<6x32xf32>
    %cst_83 = arith.constant 1.000000e+00 : f32
    %235 = vector.broadcast %cst_83 : f32 to vector<6x32xf32>
    %236 = arith.divf %235, %234 : vector<6x32xf32>
    %237 = arith.mulf %226, %163 : vector<6x32xf32>
    %238 = arith.mulf %218, %228 : vector<6x32xf32>
    %239 = arith.addf %237, %238 : vector<6x32xf32>
    %240 = math.tanh %239 : vector<6x32xf32>
    %241 = arith.mulf %236, %240 : vector<6x32xf32>
    %c0_84 = arith.constant 0 : index
    %c2 = arith.constant 2 : index
    %c0_85 = arith.constant 0 : index
    %242 = vector.load %arg29[%c0_84, %c2, %c0_85] : memref<6x8x64xf32, #tpu.memory_space<vmem>>, vector<6x1x32xf32>
    %243 = vector.shape_cast %242 : vector<6x1x32xf32> to vector<6x32xf32>
    %244 = vector.shape_cast %210 : vector<6x32xf32> to vector<6x1x32xf32>
    tpu.vector_store %arg29[%c0_84, %c2, %c0_85], %244 {strides = array<i32>} : memref<6x8x64xf32, #tpu.memory_space<vmem>>, vector<6x1x32xf32>,
    %c0_86 = arith.constant 0 : index
    %c5 = arith.constant 5 : index
    %c32_87 = arith.constant 32 : index
    %245 = vector.load %arg29[%c0_86, %c5, %c32_87] : memref<6x8x64xf32, #tpu.memory_space<vmem>>, vector<6x1x32xf32>
    %246 = vector.shape_cast %245 : vector<6x1x32xf32> to vector<6x32xf32>
    %247 = vector.shape_cast %241 : vector<6x32xf32> to vector<6x1x32xf32>
    tpu.vector_store %arg29[%c0_86, %c5, %c32_87], %247 {strides = array<i32>} : memref<6x8x64xf32, #tpu.memory_space<vmem>>, vector<6x1x32xf32>,
    %248 = vector.extract_strided_slice %13 {offsets = [0, 3, 0], sizes = [6, 1, 128], strides = [1, 1, 1]} : vector<6x8x256xf32> to vector<6x1x128xf32>
    %249 = vector.shape_cast %248 : vector<6x1x128xf32> to vector<6x128xf32>
    %cst_88 = arith.constant dense<0.000000e+00> : vector<6x128xf32>
    %250 = tpu.matmul %210, %14, %cst_88 {dimension_numbers = #tpu.dot_dimension_numbers<[1], [0], [0], [1], [0, 0, 1, 1], [], []>} : vector<6x32xf32>, vector<32x128xf32>, vector<6x128xf32> -> vector<6x128xf32>
    %251 = arith.addf %249, %250 : vector<6x128xf32>
    %252 = vector.extract_strided_slice %13 {offsets = [0, 4, 128], sizes = [6, 1, 128], strides = [1, 1, 1]} : vector<6x8x256xf32> to vector<6x1x128xf32>
    %253 = vector.shape_cast %252 : vector<6x1x128xf32> to vector<6x128xf32>
    %cst_89 = arith.constant dense<0.000000e+00> : vector<6x128xf32>
    %254 = tpu.matmul %241, %15, %cst_89 {dimension_numbers = #tpu.dot_dimension_numbers<[1], [0], [0], [1], [0, 0, 1, 1], [], []>} : vector<6x32xf32>, vector<32x128xf32>, vector<6x128xf32> -> vector<6x128xf32>
    %255 = arith.addf %253, %254 : vector<6x128xf32>
    %256 = vector.extract_strided_slice %251 {offsets = [0, 0], sizes = [6, 32], strides = [1, 1]} : vector<6x128xf32> to vector<6x32xf32>
    %cst_90 = arith.constant 0.000000e+00 : f32
    %257 = vector.broadcast %cst_90 : f32 to vector<6x32xf32>
    %258 = arith.subf %257, %256 : vector<6x32xf32>
    %259 = math.exp %258 : vector<6x32xf32>
    %cst_91 = arith.constant 1.000000e+00 : f32
    %260 = vector.broadcast %cst_91 : f32 to vector<6x32xf32>
    %261 = arith.addf %260, %259 : vector<6x32xf32>
    %cst_92 = arith.constant 1.000000e+00 : f32
    %262 = vector.broadcast %cst_92 : f32 to vector<6x32xf32>
    %263 = arith.divf %262, %261 : vector<6x32xf32>
    %264 = vector.extract_strided_slice %251 {offsets = [0, 32], sizes = [6, 32], strides = [1, 1]} : vector<6x128xf32> to vector<6x32xf32>
    %cst_93 = arith.constant 0.000000e+00 : f32
    %265 = vector.broadcast %cst_93 : f32 to vector<6x32xf32>
    %266 = arith.subf %265, %264 : vector<6x32xf32>
    %267 = math.exp %266 : vector<6x32xf32>
    %cst_94 = arith.constant 1.000000e+00 : f32
    %268 = vector.broadcast %cst_94 : f32 to vector<6x32xf32>
    %269 = arith.addf %268, %267 : vector<6x32xf32>
    %cst_95 = arith.constant 1.000000e+00 : f32
    %270 = vector.broadcast %cst_95 : f32 to vector<6x32xf32>
    %271 = arith.divf %270, %269 : vector<6x32xf32>
    %272 = vector.extract_strided_slice %251 {offsets = [0, 64], sizes = [6, 32], strides = [1, 1]} : vector<6x128xf32> to vector<6x32xf32>
    %273 = math.tanh %272 : vector<6x32xf32>
    %274 = vector.extract_strided_slice %251 {offsets = [0, 96], sizes = [6, 32], strides = [1, 1]} : vector<6x128xf32> to vector<6x32xf32>
    %cst_96 = arith.constant 0.000000e+00 : f32
    %275 = vector.broadcast %cst_96 : f32 to vector<6x32xf32>
    %276 = arith.subf %275, %274 : vector<6x32xf32>
    %277 = math.exp %276 : vector<6x32xf32>
    %cst_97 = arith.constant 1.000000e+00 : f32
    %278 = vector.broadcast %cst_97 : f32 to vector<6x32xf32>
    %279 = arith.addf %278, %277 : vector<6x32xf32>
    %cst_98 = arith.constant 1.000000e+00 : f32
    %280 = vector.broadcast %cst_98 : f32 to vector<6x32xf32>
    %281 = arith.divf %280, %279 : vector<6x32xf32>
    %282 = arith.mulf %271, %208 : vector<6x32xf32>
    %283 = arith.mulf %263, %273 : vector<6x32xf32>
    %284 = arith.addf %282, %283 : vector<6x32xf32>
    %285 = math.tanh %284 : vector<6x32xf32>
    %286 = arith.mulf %281, %285 : vector<6x32xf32>
    %287 = vector.extract_strided_slice %255 {offsets = [0, 0], sizes = [6, 32], strides = [1, 1]} : vector<6x128xf32> to vector<6x32xf32>
    %cst_99 = arith.constant 0.000000e+00 : f32
    %288 = vector.broadcast %cst_99 : f32 to vector<6x32xf32>
    %289 = arith.subf %288, %287 : vector<6x32xf32>
    %290 = math.exp %289 : vector<6x32xf32>
    %cst_100 = arith.constant 1.000000e+00 : f32
    %291 = vector.broadcast %cst_100 : f32 to vector<6x32xf32>
    %292 = arith.addf %291, %290 : vector<6x32xf32>
    %cst_101 = arith.constant 1.000000e+00 : f32
    %293 = vector.broadcast %cst_101 : f32 to vector<6x32xf32>
    %294 = arith.divf %293, %292 : vector<6x32xf32>
    %295 = vector.extract_strided_slice %255 {offsets = [0, 32], sizes = [6, 32], strides = [1, 1]} : vector<6x128xf32> to vector<6x32xf32>
    %cst_102 = arith.constant 0.000000e+00 : f32
    %296 = vector.broadcast %cst_102 : f32 to vector<6x32xf32>
    %297 = arith.subf %296, %295 : vector<6x32xf32>
    %298 = math.exp %297 : vector<6x32xf32>
    %cst_103 = arith.constant 1.000000e+00 : f32
    %299 = vector.broadcast %cst_103 : f32 to vector<6x32xf32>
    %300 = arith.addf %299, %298 : vector<6x32xf32>
    %cst_104 = arith.constant 1.000000e+00 : f32
    %301 = vector.broadcast %cst_104 : f32 to vector<6x32xf32>
    %302 = arith.divf %301, %300 : vector<6x32xf32>
    %303 = vector.extract_strided_slice %255 {offsets = [0, 64], sizes = [6, 32], strides = [1, 1]} : vector<6x128xf32> to vector<6x32xf32>
    %304 = math.tanh %303 : vector<6x32xf32>
    %305 = vector.extract_strided_slice %255 {offsets = [0, 96], sizes = [6, 32], strides = [1, 1]} : vector<6x128xf32> to vector<6x32xf32>
    %cst_105 = arith.constant 0.000000e+00 : f32
    %306 = vector.broadcast %cst_105 : f32 to vector<6x32xf32>
    %307 = arith.subf %306, %305 : vector<6x32xf32>
    %308 = math.exp %307 : vector<6x32xf32>
    %cst_106 = arith.constant 1.000000e+00 : f32
    %309 = vector.broadcast %cst_106 : f32 to vector<6x32xf32>
    %310 = arith.addf %309, %308 : vector<6x32xf32>
    %cst_107 = arith.constant 1.000000e+00 : f32
    %311 = vector.broadcast %cst_107 : f32 to vector<6x32xf32>
    %312 = arith.divf %311, %310 : vector<6x32xf32>
    %313 = arith.mulf %302, %239 : vector<6x32xf32>
    %314 = arith.mulf %294, %304 : vector<6x32xf32>
    %315 = arith.addf %313, %314 : vector<6x32xf32>
    %316 = math.tanh %315 : vector<6x32xf32>
    %317 = arith.mulf %312, %316 : vector<6x32xf32>
    %c0_108 = arith.constant 0 : index
    %c3 = arith.constant 3 : index
    %c0_109 = arith.constant 0 : index
    %318 = vector.load %arg29[%c0_108, %c3, %c0_109] : memref<6x8x64xf32, #tpu.memory_space<vmem>>, vector<6x1x32xf32>
    %319 = vector.shape_cast %318 : vector<6x1x32xf32> to vector<6x32xf32>
    %320 = vector.shape_cast %286 : vector<6x32xf32> to vector<6x1x32xf32>
    tpu.vector_store %arg29[%c0_108, %c3, %c0_109], %320 {strides = array<i32>} : memref<6x8x64xf32, #tpu.memory_space<vmem>>, vector<6x1x32xf32>,
    %c0_110 = arith.constant 0 : index
    %c4 = arith.constant 4 : index
    %c32_111 = arith.constant 32 : index
    %321 = vector.load %arg29[%c0_110, %c4, %c32_111] : memref<6x8x64xf32, #tpu.memory_space<vmem>>, vector<6x1x32xf32>
    %322 = vector.shape_cast %321 : vector<6x1x32xf32> to vector<6x32xf32>
    %323 = vector.shape_cast %317 : vector<6x32xf32> to vector<6x1x32xf32>
    tpu.vector_store %arg29[%c0_110, %c4, %c32_111], %323 {strides = array<i32>} : memref<6x8x64xf32, #tpu.memory_space<vmem>>, vector<6x1x32xf32>,
    %324 = vector.extract_strided_slice %13 {offsets = [0, 4, 0], sizes = [6, 1, 128], strides = [1, 1, 1]} : vector<6x8x256xf32> to vector<6x1x128xf32>
    %325 = vector.shape_cast %324 : vector<6x1x128xf32> to vector<6x128xf32>
    %cst_112 = arith.constant dense<0.000000e+00> : vector<6x128xf32>
    %326 = tpu.matmul %286, %14, %cst_112 {dimension_numbers = #tpu.dot_dimension_numbers<[1], [0], [0], [1], [0, 0, 1, 1], [], []>} : vector<6x32xf32>, vector<32x128xf32>, vector<6x128xf32> -> vector<6x128xf32>
    %327 = arith.addf %325, %326 : vector<6x128xf32>
    %328 = vector.extract_strided_slice %13 {offsets = [0, 3, 128], sizes = [6, 1, 128], strides = [1, 1, 1]} : vector<6x8x256xf32> to vector<6x1x128xf32>
    %329 = vector.shape_cast %328 : vector<6x1x128xf32> to vector<6x128xf32>
    %cst_113 = arith.constant dense<0.000000e+00> : vector<6x128xf32>
    %330 = tpu.matmul %317, %15, %cst_113 {dimension_numbers = #tpu.dot_dimension_numbers<[1], [0], [0], [1], [0, 0, 1, 1], [], []>} : vector<6x32xf32>, vector<32x128xf32>, vector<6x128xf32> -> vector<6x128xf32>
    %331 = arith.addf %329, %330 : vector<6x128xf32>
    %332 = vector.extract_strided_slice %327 {offsets = [0, 0], sizes = [6, 32], strides = [1, 1]} : vector<6x128xf32> to vector<6x32xf32>
    %cst_114 = arith.constant 0.000000e+00 : f32
    %333 = vector.broadcast %cst_114 : f32 to vector<6x32xf32>
    %334 = arith.subf %333, %332 : vector<6x32xf32>
    %335 = math.exp %334 : vector<6x32xf32>
    %cst_115 = arith.constant 1.000000e+00 : f32
    %336 = vector.broadcast %cst_115 : f32 to vector<6x32xf32>
    %337 = arith.addf %336, %335 : vector<6x32xf32>
    %cst_116 = arith.constant 1.000000e+00 : f32
    %338 = vector.broadcast %cst_116 : f32 to vector<6x32xf32>
    %339 = arith.divf %338, %337 : vector<6x32xf32>
    %340 = vector.extract_strided_slice %327 {offsets = [0, 32], sizes = [6, 32], strides = [1, 1]} : vector<6x128xf32> to vector<6x32xf32>
    %cst_117 = arith.constant 0.000000e+00 : f32
    %341 = vector.broadcast %cst_117 : f32 to vector<6x32xf32>
    %342 = arith.subf %341, %340 : vector<6x32xf32>
    %343 = math.exp %342 : vector<6x32xf32>
    %cst_118 = arith.constant 1.000000e+00 : f32
    %344 = vector.broadcast %cst_118 : f32 to vector<6x32xf32>
    %345 = arith.addf %344, %343 : vector<6x32xf32>
    %cst_119 = arith.constant 1.000000e+00 : f32
    %346 = vector.broadcast %cst_119 : f32 to vector<6x32xf32>
    %347 = arith.divf %346, %345 : vector<6x32xf32>
    %348 = vector.extract_strided_slice %327 {offsets = [0, 64], sizes = [6, 32], strides = [1, 1]} : vector<6x128xf32> to vector<6x32xf32>
    %349 = math.tanh %348 : vector<6x32xf32>
    %350 = vector.extract_strided_slice %327 {offsets = [0, 96], sizes = [6, 32], strides = [1, 1]} : vector<6x128xf32> to vector<6x32xf32>
    %cst_120 = arith.constant 0.000000e+00 : f32
    %351 = vector.broadcast %cst_120 : f32 to vector<6x32xf32>
    %352 = arith.subf %351, %350 : vector<6x32xf32>
    %353 = math.exp %352 : vector<6x32xf32>
    %cst_121 = arith.constant 1.000000e+00 : f32
    %354 = vector.broadcast %cst_121 : f32 to vector<6x32xf32>
    %355 = arith.addf %354, %353 : vector<6x32xf32>
    %cst_122 = arith.constant 1.000000e+00 : f32
    %356 = vector.broadcast %cst_122 : f32 to vector<6x32xf32>
    %357 = arith.divf %356, %355 : vector<6x32xf32>
    %358 = arith.mulf %347, %284 : vector<6x32xf32>
    %359 = arith.mulf %339, %349 : vector<6x32xf32>
    %360 = arith.addf %358, %359 : vector<6x32xf32>
    %361 = math.tanh %360 : vector<6x32xf32>
    %362 = arith.mulf %357, %361 : vector<6x32xf32>
    %363 = vector.extract_strided_slice %331 {offsets = [0, 0], sizes = [6, 32], strides = [1, 1]} : vector<6x128xf32> to vector<6x32xf32>
    %cst_123 = arith.constant 0.000000e+00 : f32
    %364 = vector.broadcast %cst_123 : f32 to vector<6x32xf32>
    %365 = arith.subf %364, %363 : vector<6x32xf32>
    %366 = math.exp %365 : vector<6x32xf32>
    %cst_124 = arith.constant 1.000000e+00 : f32
    %367 = vector.broadcast %cst_124 : f32 to vector<6x32xf32>
    %368 = arith.addf %367, %366 : vector<6x32xf32>
    %cst_125 = arith.constant 1.000000e+00 : f32
    %369 = vector.broadcast %cst_125 : f32 to vector<6x32xf32>
    %370 = arith.divf %369, %368 : vector<6x32xf32>
    %371 = vector.extract_strided_slice %331 {offsets = [0, 32], sizes = [6, 32], strides = [1, 1]} : vector<6x128xf32> to vector<6x32xf32>
    %cst_126 = arith.constant 0.000000e+00 : f32
    %372 = vector.broadcast %cst_126 : f32 to vector<6x32xf32>
    %373 = arith.subf %372, %371 : vector<6x32xf32>
    %374 = math.exp %373 : vector<6x32xf32>
    %cst_127 = arith.constant 1.000000e+00 : f32
    %375 = vector.broadcast %cst_127 : f32 to vector<6x32xf32>
    %376 = arith.addf %375, %374 : vector<6x32xf32>
    %cst_128 = arith.constant 1.000000e+00 : f32
    %377 = vector.broadcast %cst_128 : f32 to vector<6x32xf32>
    %378 = arith.divf %377, %376 : vector<6x32xf32>
    %379 = vector.extract_strided_slice %331 {offsets = [0, 64], sizes = [6, 32], strides = [1, 1]} : vector<6x128xf32> to vector<6x32xf32>
    %380 = math.tanh %379 : vector<6x32xf32>
    %381 = vector.extract_strided_slice %331 {offsets = [0, 96], sizes = [6, 32], strides = [1, 1]} : vector<6x128xf32> to vector<6x32xf32>
    %cst_129 = arith.constant 0.000000e+00 : f32
    %382 = vector.broadcast %cst_129 : f32 to vector<6x32xf32>
    %383 = arith.subf %382, %381 : vector<6x32xf32>
    %384 = math.exp %383 : vector<6x32xf32>
    %cst_130 = arith.constant 1.000000e+00 : f32
    %385 = vector.broadcast %cst_130 : f32 to vector<6x32xf32>
    %386 = arith.addf %385, %384 : vector<6x32xf32>
    %cst_131 = arith.constant 1.000000e+00 : f32
    %387 = vector.broadcast %cst_131 : f32 to vector<6x32xf32>
    %388 = arith.divf %387, %386 : vector<6x32xf32>
    %389 = arith.mulf %378, %315 : vector<6x32xf32>
    %390 = arith.mulf %370, %380 : vector<6x32xf32>
    %391 = arith.addf %389, %390 : vector<6x32xf32>
    %392 = math.tanh %391 : vector<6x32xf32>
    %393 = arith.mulf %388, %392 : vector<6x32xf32>
    %c0_132 = arith.constant 0 : index
    %c4_133 = arith.constant 4 : index
    %c0_134 = arith.constant 0 : index
    %394 = vector.load %arg29[%c0_132, %c4_133, %c0_134] : memref<6x8x64xf32, #tpu.memory_space<vmem>>, vector<6x1x32xf32>
    %395 = vector.shape_cast %394 : vector<6x1x32xf32> to vector<6x32xf32>
    %396 = vector.shape_cast %362 : vector<6x32xf32> to vector<6x1x32xf32>
    tpu.vector_store %arg29[%c0_132, %c4_133, %c0_134], %396 {strides = array<i32>} : memref<6x8x64xf32, #tpu.memory_space<vmem>>, vector<6x1x32xf32>,
    %c0_135 = arith.constant 0 : index
    %c3_136 = arith.constant 3 : index
    %c32_137 = arith.constant 32 : index
    %397 = vector.load %arg29[%c0_135, %c3_136, %c32_137] : memref<6x8x64xf32, #tpu.memory_space<vmem>>, vector<6x1x32xf32>
    %398 = vector.shape_cast %397 : vector<6x1x32xf32> to vector<6x32xf32>
    %399 = vector.shape_cast %393 : vector<6x32xf32> to vector<6x1x32xf32>
    tpu.vector_store %arg29[%c0_135, %c3_136, %c32_137], %399 {strides = array<i32>} : memref<6x8x64xf32, #tpu.memory_space<vmem>>, vector<6x1x32xf32>,
    %400 = vector.extract_strided_slice %13 {offsets = [0, 5, 0], sizes = [6, 1, 128], strides = [1, 1, 1]} : vector<6x8x256xf32> to vector<6x1x128xf32>
    %401 = vector.shape_cast %400 : vector<6x1x128xf32> to vector<6x128xf32>
    %cst_138 = arith.constant dense<0.000000e+00> : vector<6x128xf32>
    %402 = tpu.matmul %362, %14, %cst_138 {dimension_numbers = #tpu.dot_dimension_numbers<[1], [0], [0], [1], [0, 0, 1, 1], [], []>} : vector<6x32xf32>, vector<32x128xf32>, vector<6x128xf32> -> vector<6x128xf32>
    %403 = arith.addf %401, %402 : vector<6x128xf32>
    %404 = vector.extract_strided_slice %13 {offsets = [0, 2, 128], sizes = [6, 1, 128], strides = [1, 1, 1]} : vector<6x8x256xf32> to vector<6x1x128xf32>
    %405 = vector.shape_cast %404 : vector<6x1x128xf32> to vector<6x128xf32>
    %cst_139 = arith.constant dense<0.000000e+00> : vector<6x128xf32>
    %406 = tpu.matmul %393, %15, %cst_139 {dimension_numbers = #tpu.dot_dimension_numbers<[1], [0], [0], [1], [0, 0, 1, 1], [], []>} : vector<6x32xf32>, vector<32x128xf32>, vector<6x128xf32> -> vector<6x128xf32>
    %407 = arith.addf %405, %406 : vector<6x128xf32>
    %408 = vector.extract_strided_slice %403 {offsets = [0, 0], sizes = [6, 32], strides = [1, 1]} : vector<6x128xf32> to vector<6x32xf32>
    %cst_140 = arith.constant 0.000000e+00 : f32
    %409 = vector.broadcast %cst_140 : f32 to vector<6x32xf32>
    %410 = arith.subf %409, %408 : vector<6x32xf32>
    %411 = math.exp %410 : vector<6x32xf32>
    %cst_141 = arith.constant 1.000000e+00 : f32
    %412 = vector.broadcast %cst_141 : f32 to vector<6x32xf32>
    %413 = arith.addf %412, %411 : vector<6x32xf32>
    %cst_142 = arith.constant 1.000000e+00 : f32
    %414 = vector.broadcast %cst_142 : f32 to vector<6x32xf32>
    %415 = arith.divf %414, %413 : vector<6x32xf32>
    %416 = vector.extract_strided_slice %403 {offsets = [0, 32], sizes = [6, 32], strides = [1, 1]} : vector<6x128xf32> to vector<6x32xf32>
    %cst_143 = arith.constant 0.000000e+00 : f32
    %417 = vector.broadcast %cst_143 : f32 to vector<6x32xf32>
    %418 = arith.subf %417, %416 : vector<6x32xf32>
    %419 = math.exp %418 : vector<6x32xf32>
    %cst_144 = arith.constant 1.000000e+00 : f32
    %420 = vector.broadcast %cst_144 : f32 to vector<6x32xf32>
    %421 = arith.addf %420, %419 : vector<6x32xf32>
    %cst_145 = arith.constant 1.000000e+00 : f32
    %422 = vector.broadcast %cst_145 : f32 to vector<6x32xf32>
    %423 = arith.divf %422, %421 : vector<6x32xf32>
    %424 = vector.extract_strided_slice %403 {offsets = [0, 64], sizes = [6, 32], strides = [1, 1]} : vector<6x128xf32> to vector<6x32xf32>
    %425 = math.tanh %424 : vector<6x32xf32>
    %426 = vector.extract_strided_slice %403 {offsets = [0, 96], sizes = [6, 32], strides = [1, 1]} : vector<6x128xf32> to vector<6x32xf32>
    %cst_146 = arith.constant 0.000000e+00 : f32
    %427 = vector.broadcast %cst_146 : f32 to vector<6x32xf32>
    %428 = arith.subf %427, %426 : vector<6x32xf32>
    %429 = math.exp %428 : vector<6x32xf32>
    %cst_147 = arith.constant 1.000000e+00 : f32
    %430 = vector.broadcast %cst_147 : f32 to vector<6x32xf32>
    %431 = arith.addf %430, %429 : vector<6x32xf32>
    %cst_148 = arith.constant 1.000000e+00 : f32
    %432 = vector.broadcast %cst_148 : f32 to vector<6x32xf32>
    %433 = arith.divf %432, %431 : vector<6x32xf32>
    %434 = arith.mulf %423, %360 : vector<6x32xf32>
    %435 = arith.mulf %415, %425 : vector<6x32xf32>
    %436 = arith.addf %434, %435 : vector<6x32xf32>
    %437 = math.tanh %436 : vector<6x32xf32>
    %438 = arith.mulf %433, %437 : vector<6x32xf32>
    %439 = vector.extract_strided_slice %407 {offsets = [0, 0], sizes = [6, 32], strides = [1, 1]} : vector<6x128xf32> to vector<6x32xf32>
    %cst_149 = arith.constant 0.000000e+00 : f32
    %440 = vector.broadcast %cst_149 : f32 to vector<6x32xf32>
    %441 = arith.subf %440, %439 : vector<6x32xf32>
    %442 = math.exp %441 : vector<6x32xf32>
    %cst_150 = arith.constant 1.000000e+00 : f32
    %443 = vector.broadcast %cst_150 : f32 to vector<6x32xf32>
    %444 = arith.addf %443, %442 : vector<6x32xf32>
    %cst_151 = arith.constant 1.000000e+00 : f32
    %445 = vector.broadcast %cst_151 : f32 to vector<6x32xf32>
    %446 = arith.divf %445, %444 : vector<6x32xf32>
    %447 = vector.extract_strided_slice %407 {offsets = [0, 32], sizes = [6, 32], strides = [1, 1]} : vector<6x128xf32> to vector<6x32xf32>
    %cst_152 = arith.constant 0.000000e+00 : f32
    %448 = vector.broadcast %cst_152 : f32 to vector<6x32xf32>
    %449 = arith.subf %448, %447 : vector<6x32xf32>
    %450 = math.exp %449 : vector<6x32xf32>
    %cst_153 = arith.constant 1.000000e+00 : f32
    %451 = vector.broadcast %cst_153 : f32 to vector<6x32xf32>
    %452 = arith.addf %451, %450 : vector<6x32xf32>
    %cst_154 = arith.constant 1.000000e+00 : f32
    %453 = vector.broadcast %cst_154 : f32 to vector<6x32xf32>
    %454 = arith.divf %453, %452 : vector<6x32xf32>
    %455 = vector.extract_strided_slice %407 {offsets = [0, 64], sizes = [6, 32], strides = [1, 1]} : vector<6x128xf32> to vector<6x32xf32>
    %456 = math.tanh %455 : vector<6x32xf32>
    %457 = vector.extract_strided_slice %407 {offsets = [0, 96], sizes = [6, 32], strides = [1, 1]} : vector<6x128xf32> to vector<6x32xf32>
    %cst_155 = arith.constant 0.000000e+00 : f32
    %458 = vector.broadcast %cst_155 : f32 to vector<6x32xf32>
    %459 = arith.subf %458, %457 : vector<6x32xf32>
    %460 = math.exp %459 : vector<6x32xf32>
    %cst_156 = arith.constant 1.000000e+00 : f32
    %461 = vector.broadcast %cst_156 : f32 to vector<6x32xf32>
    %462 = arith.addf %461, %460 : vector<6x32xf32>
    %cst_157 = arith.constant 1.000000e+00 : f32
    %463 = vector.broadcast %cst_157 : f32 to vector<6x32xf32>
    %464 = arith.divf %463, %462 : vector<6x32xf32>
    %465 = arith.mulf %454, %391 : vector<6x32xf32>
    %466 = arith.mulf %446, %456 : vector<6x32xf32>
    %467 = arith.addf %465, %466 : vector<6x32xf32>
    %468 = math.tanh %467 : vector<6x32xf32>
    %469 = arith.mulf %464, %468 : vector<6x32xf32>
    %c0_158 = arith.constant 0 : index
    %c5_159 = arith.constant 5 : index
    %c0_160 = arith.constant 0 : index
    %470 = vector.load %arg29[%c0_158, %c5_159, %c0_160] : memref<6x8x64xf32, #tpu.memory_space<vmem>>, vector<6x1x32xf32>
    %471 = vector.shape_cast %470 : vector<6x1x32xf32> to vector<6x32xf32>
    %472 = vector.shape_cast %438 : vector<6x32xf32> to vector<6x1x32xf32>
    tpu.vector_store %arg29[%c0_158, %c5_159, %c0_160], %472 {strides = array<i32>} : memref<6x8x64xf32, #tpu.memory_space<vmem>>, vector<6x1x32xf32>,
    %c0_161 = arith.constant 0 : index
    %c2_162 = arith.constant 2 : index
    %c32_163 = arith.constant 32 : index
    %473 = vector.load %arg29[%c0_161, %c2_162, %c32_163] : memref<6x8x64xf32, #tpu.memory_space<vmem>>, vector<6x1x32xf32>
    %474 = vector.shape_cast %473 : vector<6x1x32xf32> to vector<6x32xf32>
    %475 = vector.shape_cast %469 : vector<6x32xf32> to vector<6x1x32xf32>
    tpu.vector_store %arg29[%c0_161, %c2_162, %c32_163], %475 {strides = array<i32>} : memref<6x8x64xf32, #tpu.memory_space<vmem>>, vector<6x1x32xf32>,
    %476 = vector.extract_strided_slice %13 {offsets = [0, 6, 0], sizes = [6, 1, 128], strides = [1, 1, 1]} : vector<6x8x256xf32> to vector<6x1x128xf32>
    %477 = vector.shape_cast %476 : vector<6x1x128xf32> to vector<6x128xf32>
    %cst_164 = arith.constant dense<0.000000e+00> : vector<6x128xf32>
    %478 = tpu.matmul %438, %14, %cst_164 {dimension_numbers = #tpu.dot_dimension_numbers<[1], [0], [0], [1], [0, 0, 1, 1], [], []>} : vector<6x32xf32>, vector<32x128xf32>, vector<6x128xf32> -> vector<6x128xf32>
    %479 = arith.addf %477, %478 : vector<6x128xf32>
    %480 = vector.extract_strided_slice %13 {offsets = [0, 1, 128], sizes = [6, 1, 128], strides = [1, 1, 1]} : vector<6x8x256xf32> to vector<6x1x128xf32>
    %481 = vector.shape_cast %480 : vector<6x1x128xf32> to vector<6x128xf32>
    %cst_165 = arith.constant dense<0.000000e+00> : vector<6x128xf32>
    %482 = tpu.matmul %469, %15, %cst_165 {dimension_numbers = #tpu.dot_dimension_numbers<[1], [0], [0], [1], [0, 0, 1, 1], [], []>} : vector<6x32xf32>, vector<32x128xf32>, vector<6x128xf32> -> vector<6x128xf32>
    %483 = arith.addf %481, %482 : vector<6x128xf32>
    %484 = vector.extract_strided_slice %479 {offsets = [0, 0], sizes = [6, 32], strides = [1, 1]} : vector<6x128xf32> to vector<6x32xf32>
    %cst_166 = arith.constant 0.000000e+00 : f32
    %485 = vector.broadcast %cst_166 : f32 to vector<6x32xf32>
    %486 = arith.subf %485, %484 : vector<6x32xf32>
    %487 = math.exp %486 : vector<6x32xf32>
    %cst_167 = arith.constant 1.000000e+00 : f32
    %488 = vector.broadcast %cst_167 : f32 to vector<6x32xf32>
    %489 = arith.addf %488, %487 : vector<6x32xf32>
    %cst_168 = arith.constant 1.000000e+00 : f32
    %490 = vector.broadcast %cst_168 : f32 to vector<6x32xf32>
    %491 = arith.divf %490, %489 : vector<6x32xf32>
    %492 = vector.extract_strided_slice %479 {offsets = [0, 32], sizes = [6, 32], strides = [1, 1]} : vector<6x128xf32> to vector<6x32xf32>
    %cst_169 = arith.constant 0.000000e+00 : f32
    %493 = vector.broadcast %cst_169 : f32 to vector<6x32xf32>
    %494 = arith.subf %493, %492 : vector<6x32xf32>
    %495 = math.exp %494 : vector<6x32xf32>
    %cst_170 = arith.constant 1.000000e+00 : f32
    %496 = vector.broadcast %cst_170 : f32 to vector<6x32xf32>
    %497 = arith.addf %496, %495 : vector<6x32xf32>
    %cst_171 = arith.constant 1.000000e+00 : f32
    %498 = vector.broadcast %cst_171 : f32 to vector<6x32xf32>
    %499 = arith.divf %498, %497 : vector<6x32xf32>
    %500 = vector.extract_strided_slice %479 {offsets = [0, 64], sizes = [6, 32], strides = [1, 1]} : vector<6x128xf32> to vector<6x32xf32>
    %501 = math.tanh %500 : vector<6x32xf32>
    %502 = vector.extract_strided_slice %479 {offsets = [0, 96], sizes = [6, 32], strides = [1, 1]} : vector<6x128xf32> to vector<6x32xf32>
    %cst_172 = arith.constant 0.000000e+00 : f32
    %503 = vector.broadcast %cst_172 : f32 to vector<6x32xf32>
    %504 = arith.subf %503, %502 : vector<6x32xf32>
    %505 = math.exp %504 : vector<6x32xf32>
    %cst_173 = arith.constant 1.000000e+00 : f32
    %506 = vector.broadcast %cst_173 : f32 to vector<6x32xf32>
    %507 = arith.addf %506, %505 : vector<6x32xf32>
    %cst_174 = arith.constant 1.000000e+00 : f32
    %508 = vector.broadcast %cst_174 : f32 to vector<6x32xf32>
    %509 = arith.divf %508, %507 : vector<6x32xf32>
    %510 = arith.mulf %499, %436 : vector<6x32xf32>
    %511 = arith.mulf %491, %501 : vector<6x32xf32>
    %512 = arith.addf %510, %511 : vector<6x32xf32>
    %513 = math.tanh %512 : vector<6x32xf32>
    %514 = arith.mulf %509, %513 : vector<6x32xf32>
    %515 = vector.extract_strided_slice %483 {offsets = [0, 0], sizes = [6, 32], strides = [1, 1]} : vector<6x128xf32> to vector<6x32xf32>
    %cst_175 = arith.constant 0.000000e+00 : f32
    %516 = vector.broadcast %cst_175 : f32 to vector<6x32xf32>
    %517 = arith.subf %516, %515 : vector<6x32xf32>
    %518 = math.exp %517 : vector<6x32xf32>
    %cst_176 = arith.constant 1.000000e+00 : f32
    %519 = vector.broadcast %cst_176 : f32 to vector<6x32xf32>
    %520 = arith.addf %519, %518 : vector<6x32xf32>
    %cst_177 = arith.constant 1.000000e+00 : f32
    %521 = vector.broadcast %cst_177 : f32 to vector<6x32xf32>
    %522 = arith.divf %521, %520 : vector<6x32xf32>
    %523 = vector.extract_strided_slice %483 {offsets = [0, 32], sizes = [6, 32], strides = [1, 1]} : vector<6x128xf32> to vector<6x32xf32>
    %cst_178 = arith.constant 0.000000e+00 : f32
    %524 = vector.broadcast %cst_178 : f32 to vector<6x32xf32>
    %525 = arith.subf %524, %523 : vector<6x32xf32>
    %526 = math.exp %525 : vector<6x32xf32>
    %cst_179 = arith.constant 1.000000e+00 : f32
    %527 = vector.broadcast %cst_179 : f32 to vector<6x32xf32>
    %528 = arith.addf %527, %526 : vector<6x32xf32>
    %cst_180 = arith.constant 1.000000e+00 : f32
    %529 = vector.broadcast %cst_180 : f32 to vector<6x32xf32>
    %530 = arith.divf %529, %528 : vector<6x32xf32>
    %531 = vector.extract_strided_slice %483 {offsets = [0, 64], sizes = [6, 32], strides = [1, 1]} : vector<6x128xf32> to vector<6x32xf32>
    %532 = math.tanh %531 : vector<6x32xf32>
    %533 = vector.extract_strided_slice %483 {offsets = [0, 96], sizes = [6, 32], strides = [1, 1]} : vector<6x128xf32> to vector<6x32xf32>
    %cst_181 = arith.constant 0.000000e+00 : f32
    %534 = vector.broadcast %cst_181 : f32 to vector<6x32xf32>
    %535 = arith.subf %534, %533 : vector<6x32xf32>
    %536 = math.exp %535 : vector<6x32xf32>
    %cst_182 = arith.constant 1.000000e+00 : f32
    %537 = vector.broadcast %cst_182 : f32 to vector<6x32xf32>
    %538 = arith.addf %537, %536 : vector<6x32xf32>
    %cst_183 = arith.constant 1.000000e+00 : f32
    %539 = vector.broadcast %cst_183 : f32 to vector<6x32xf32>
    %540 = arith.divf %539, %538 : vector<6x32xf32>
    %541 = arith.mulf %530, %467 : vector<6x32xf32>
    %542 = arith.mulf %522, %532 : vector<6x32xf32>
    %543 = arith.addf %541, %542 : vector<6x32xf32>
    %544 = math.tanh %543 : vector<6x32xf32>
    %545 = arith.mulf %540, %544 : vector<6x32xf32>
    %c0_184 = arith.constant 0 : index
    %c6_185 = arith.constant 6 : index
    %c0_186 = arith.constant 0 : index
    %546 = vector.load %arg29[%c0_184, %c6_185, %c0_186] : memref<6x8x64xf32, #tpu.memory_space<vmem>>, vector<6x1x32xf32>
    %547 = vector.shape_cast %546 : vector<6x1x32xf32> to vector<6x32xf32>
    %548 = vector.shape_cast %514 : vector<6x32xf32> to vector<6x1x32xf32>
    tpu.vector_store %arg29[%c0_184, %c6_185, %c0_186], %548 {strides = array<i32>} : memref<6x8x64xf32, #tpu.memory_space<vmem>>, vector<6x1x32xf32>,
    %c0_187 = arith.constant 0 : index
    %c1_188 = arith.constant 1 : index
    %c32_189 = arith.constant 32 : index
    %549 = vector.load %arg29[%c0_187, %c1_188, %c32_189] : memref<6x8x64xf32, #tpu.memory_space<vmem>>, vector<6x1x32xf32>
    %550 = vector.shape_cast %549 : vector<6x1x32xf32> to vector<6x32xf32>
    %551 = vector.shape_cast %545 : vector<6x32xf32> to vector<6x1x32xf32>
    tpu.vector_store %arg29[%c0_187, %c1_188, %c32_189], %551 {strides = array<i32>} : memref<6x8x64xf32, #tpu.memory_space<vmem>>, vector<6x1x32xf32>,
    %552 = vector.extract_strided_slice %13 {offsets = [0, 7, 0], sizes = [6, 1, 128], strides = [1, 1, 1]} : vector<6x8x256xf32> to vector<6x1x128xf32>
    %553 = vector.shape_cast %552 : vector<6x1x128xf32> to vector<6x128xf32>
    %cst_190 = arith.constant dense<0.000000e+00> : vector<6x128xf32>
    %554 = tpu.matmul %514, %14, %cst_190 {dimension_numbers = #tpu.dot_dimension_numbers<[1], [0], [0], [1], [0, 0, 1, 1], [], []>} : vector<6x32xf32>, vector<32x128xf32>, vector<6x128xf32> -> vector<6x128xf32>
    %555 = arith.addf %553, %554 : vector<6x128xf32>
    %556 = vector.extract_strided_slice %13 {offsets = [0, 0, 128], sizes = [6, 1, 128], strides = [1, 1, 1]} : vector<6x8x256xf32> to vector<6x1x128xf32>
    %557 = vector.shape_cast %556 : vector<6x1x128xf32> to vector<6x128xf32>
    %cst_191 = arith.constant dense<0.000000e+00> : vector<6x128xf32>
    %558 = tpu.matmul %545, %15, %cst_191 {dimension_numbers = #tpu.dot_dimension_numbers<[1], [0], [0], [1], [0, 0, 1, 1], [], []>} : vector<6x32xf32>, vector<32x128xf32>, vector<6x128xf32> -> vector<6x128xf32>
    %559 = arith.addf %557, %558 : vector<6x128xf32>
    %560 = vector.extract_strided_slice %555 {offsets = [0, 0], sizes = [6, 32], strides = [1, 1]} : vector<6x128xf32> to vector<6x32xf32>
    %cst_192 = arith.constant 0.000000e+00 : f32
    %561 = vector.broadcast %cst_192 : f32 to vector<6x32xf32>
    %562 = arith.subf %561, %560 : vector<6x32xf32>
    %563 = math.exp %562 : vector<6x32xf32>
    %cst_193 = arith.constant 1.000000e+00 : f32
    %564 = vector.broadcast %cst_193 : f32 to vector<6x32xf32>
    %565 = arith.addf %564, %563 : vector<6x32xf32>
    %cst_194 = arith.constant 1.000000e+00 : f32
    %566 = vector.broadcast %cst_194 : f32 to vector<6x32xf32>
    %567 = arith.divf %566, %565 : vector<6x32xf32>
    %568 = vector.extract_strided_slice %555 {offsets = [0, 32], sizes = [6, 32], strides = [1, 1]} : vector<6x128xf32> to vector<6x32xf32>
    %cst_195 = arith.constant 0.000000e+00 : f32
    %569 = vector.broadcast %cst_195 : f32 to vector<6x32xf32>
    %570 = arith.subf %569, %568 : vector<6x32xf32>
    %571 = math.exp %570 : vector<6x32xf32>
    %cst_196 = arith.constant 1.000000e+00 : f32
    %572 = vector.broadcast %cst_196 : f32 to vector<6x32xf32>
    %573 = arith.addf %572, %571 : vector<6x32xf32>
    %cst_197 = arith.constant 1.000000e+00 : f32
    %574 = vector.broadcast %cst_197 : f32 to vector<6x32xf32>
    %575 = arith.divf %574, %573 : vector<6x32xf32>
    %576 = vector.extract_strided_slice %555 {offsets = [0, 64], sizes = [6, 32], strides = [1, 1]} : vector<6x128xf32> to vector<6x32xf32>
    %577 = math.tanh %576 : vector<6x32xf32>
    %578 = vector.extract_strided_slice %555 {offsets = [0, 96], sizes = [6, 32], strides = [1, 1]} : vector<6x128xf32> to vector<6x32xf32>
    %cst_198 = arith.constant 0.000000e+00 : f32
    %579 = vector.broadcast %cst_198 : f32 to vector<6x32xf32>
    %580 = arith.subf %579, %578 : vector<6x32xf32>
    %581 = math.exp %580 : vector<6x32xf32>
    %cst_199 = arith.constant 1.000000e+00 : f32
    %582 = vector.broadcast %cst_199 : f32 to vector<6x32xf32>
    %583 = arith.addf %582, %581 : vector<6x32xf32>
    %cst_200 = arith.constant 1.000000e+00 : f32
    %584 = vector.broadcast %cst_200 : f32 to vector<6x32xf32>
    %585 = arith.divf %584, %583 : vector<6x32xf32>
    %586 = arith.mulf %575, %512 : vector<6x32xf32>
    %587 = arith.mulf %567, %577 : vector<6x32xf32>
    %588 = arith.addf %586, %587 : vector<6x32xf32>
    %589 = math.tanh %588 : vector<6x32xf32>
    %590 = arith.mulf %585, %589 : vector<6x32xf32>
    %591 = vector.extract_strided_slice %559 {offsets = [0, 0], sizes = [6, 32], strides = [1, 1]} : vector<6x128xf32> to vector<6x32xf32>
    %cst_201 = arith.constant 0.000000e+00 : f32
    %592 = vector.broadcast %cst_201 : f32 to vector<6x32xf32>
    %593 = arith.subf %592, %591 : vector<6x32xf32>
    %594 = math.exp %593 : vector<6x32xf32>
    %cst_202 = arith.constant 1.000000e+00 : f32
    %595 = vector.broadcast %cst_202 : f32 to vector<6x32xf32>
    %596 = arith.addf %595, %594 : vector<6x32xf32>
    %cst_203 = arith.constant 1.000000e+00 : f32
    %597 = vector.broadcast %cst_203 : f32 to vector<6x32xf32>
    %598 = arith.divf %597, %596 : vector<6x32xf32>
    %599 = vector.extract_strided_slice %559 {offsets = [0, 32], sizes = [6, 32], strides = [1, 1]} : vector<6x128xf32> to vector<6x32xf32>
    %cst_204 = arith.constant 0.000000e+00 : f32
    %600 = vector.broadcast %cst_204 : f32 to vector<6x32xf32>
    %601 = arith.subf %600, %599 : vector<6x32xf32>
    %602 = math.exp %601 : vector<6x32xf32>
    %cst_205 = arith.constant 1.000000e+00 : f32
    %603 = vector.broadcast %cst_205 : f32 to vector<6x32xf32>
    %604 = arith.addf %603, %602 : vector<6x32xf32>
    %cst_206 = arith.constant 1.000000e+00 : f32
    %605 = vector.broadcast %cst_206 : f32 to vector<6x32xf32>
    %606 = arith.divf %605, %604 : vector<6x32xf32>
    %607 = vector.extract_strided_slice %559 {offsets = [0, 64], sizes = [6, 32], strides = [1, 1]} : vector<6x128xf32> to vector<6x32xf32>
    %608 = math.tanh %607 : vector<6x32xf32>
    %609 = vector.extract_strided_slice %559 {offsets = [0, 96], sizes = [6, 32], strides = [1, 1]} : vector<6x128xf32> to vector<6x32xf32>
    %cst_207 = arith.constant 0.000000e+00 : f32
    %610 = vector.broadcast %cst_207 : f32 to vector<6x32xf32>
    %611 = arith.subf %610, %609 : vector<6x32xf32>
    %612 = math.exp %611 : vector<6x32xf32>
    %cst_208 = arith.constant 1.000000e+00 : f32
    %613 = vector.broadcast %cst_208 : f32 to vector<6x32xf32>
    %614 = arith.addf %613, %612 : vector<6x32xf32>
    %cst_209 = arith.constant 1.000000e+00 : f32
    %615 = vector.broadcast %cst_209 : f32 to vector<6x32xf32>
    %616 = arith.divf %615, %614 : vector<6x32xf32>
    %617 = arith.mulf %606, %543 : vector<6x32xf32>
    %618 = arith.mulf %598, %608 : vector<6x32xf32>
    %619 = arith.addf %617, %618 : vector<6x32xf32>
    %620 = math.tanh %619 : vector<6x32xf32>
    %621 = arith.mulf %616, %620 : vector<6x32xf32>
    %c0_210 = arith.constant 0 : index
    %c7_211 = arith.constant 7 : index
    %c0_212 = arith.constant 0 : index
    %622 = vector.load %arg29[%c0_210, %c7_211, %c0_212] : memref<6x8x64xf32, #tpu.memory_space<vmem>>, vector<6x1x32xf32>
    %623 = vector.shape_cast %622 : vector<6x1x32xf32> to vector<6x32xf32>
    %624 = vector.shape_cast %590 : vector<6x32xf32> to vector<6x1x32xf32>
    tpu.vector_store %arg29[%c0_210, %c7_211, %c0_212], %624 {strides = array<i32>} : memref<6x8x64xf32, #tpu.memory_space<vmem>>, vector<6x1x32xf32>,
    %c0_213 = arith.constant 0 : index
    %c0_214 = arith.constant 0 : index
    %c32_215 = arith.constant 32 : index
    %625 = vector.load %arg29[%c0_213, %c0_214, %c32_215] : memref<6x8x64xf32, #tpu.memory_space<vmem>>, vector<6x1x32xf32>
    %626 = vector.shape_cast %625 : vector<6x1x32xf32> to vector<6x32xf32>
    %627 = vector.shape_cast %621 : vector<6x32xf32> to vector<6x1x32xf32>
    tpu.vector_store %arg29[%c0_213, %c0_214, %c32_215], %627 {strides = array<i32>} : memref<6x8x64xf32, #tpu.memory_space<vmem>>, vector<6x1x32xf32>,
    %c0_216 = arith.constant 0 : index
    %c0_217 = arith.constant 0 : index
    %c0_218 = arith.constant 0 : index
    %628 = vector.load %arg29[%c0_216, %c0_217, %c0_218] : memref<6x8x64xf32, #tpu.memory_space<vmem>>, vector<6x8x64xf32>
    %c0_219 = arith.constant 0 : index
    %c0_220 = arith.constant 0 : index
    %629 = vector.load %arg12[%c0_219, %c0_220] : memref<64x32xf32, #tpu.memory_space<vmem>>, vector<64x32xf32>
    %c0_221 = arith.constant 0 : index
    %c0_222 = arith.constant 0 : index
    %630 = vector.load %arg13[%c0_221, %c0_222] : memref<1x32xf32, #tpu.memory_space<vmem>>, vector<1x32xf32>
    "tpu.trace_start"() <{level = 10 : i32, message = "bqd,bkd->bqk"}> : () -> ()
    %cst_223 = arith.constant dense<0.000000e+00> : vector<6x8x8xf32>
    %631 = tpu.matmul %628, %628, %cst_223 {dimension_numbers = #tpu.dot_dimension_numbers<[2], [2], [1], [1], [0, 0, 0, 1, 1, 1], [0], [0]>} : vector<6x8x64xf32>, vector<6x8x64xf32>, vector<6x8x8xf32> -> vector<6x8x8xf32>
    "tpu.trace_stop"() : () -> ()
    %cst_224 = arith.constant 1.250000e-01 : f32
    %632 = vector.broadcast %cst_224 : f32 to vector<6x8x8xf32>
    %633 = arith.mulf %631, %632 : vector<6x8x8xf32>
    %cst_225 = arith.constant dense<0xFF800000> : vector<6x8xf32>
    %634 = vector.multi_reduction <maximumf>, %633, %cst_225 [2] : vector<6x8x8xf32> to vector<6x8xf32>
    %635 = vector.shape_cast %634 : vector<6x8xf32> to vector<6x8x1xf32>
    %636 = vector.broadcast %635 : vector<6x8x1xf32> to vector<6x8x8xf32>
    %637 = arith.subf %633, %636 : vector<6x8x8xf32>
    %638 = math.exp %637 : vector<6x8x8xf32>
    %cst_226 = arith.constant dense<0.000000e+00> : vector<6x8xf32>
    %639 = vector.multi_reduction <add>, %638, %cst_226 [2] : vector<6x8x8xf32> to vector<6x8xf32>
    %640 = vector.shape_cast %639 : vector<6x8xf32> to vector<6x8x1xf32>
    %641 = tpu.reciprocal %640 {approx = true} : vector<6x8x1xf32> -> vector<6x8x1xf32>
    %642 = vector.broadcast %641 : vector<6x8x1xf32> to vector<6x8x8xf32>
    %643 = arith.mulf %638, %642 : vector<6x8x8xf32>
    %cst_227 = arith.constant dense<0.000000e+00> : vector<6x8xf32>
    %644 = vector.multi_reduction <add>, %643, %cst_227 [1] : vector<6x8x8xf32> to vector<6x8xf32>
    %645 = vector.shape_cast %644 : vector<6x8xf32> to vector<6x8x1xf32>
    %646 = vector.broadcast %645 : vector<6x8x1xf32> to vector<6x8x64xf32>
    %647 = arith.mulf %646, %628 : vector<6x8x64xf32>
    %cst_228 = arith.constant dense<0.000000e+00> : vector<6x64xf32>
    %648 = vector.multi_reduction <add>, %647, %cst_228 [1] : vector<6x8x64xf32> to vector<6x64xf32>
    %cst_229 = arith.constant dense<0.000000e+00> : vector<6x32xf32>
    %649 = tpu.matmul %648, %629, %cst_229 {dimension_numbers = #tpu.dot_dimension_numbers<[1], [0], [0], [1], [0, 0, 1, 1], [], []>} : vector<6x64xf32>, vector<64x32xf32>, vector<6x32xf32> -> vector<6x32xf32>
    %650 = vector.broadcast %630 : vector<1x32xf32> to vector<6x32xf32>
    %651 = arith.addf %649, %650 : vector<6x32xf32>
    %c0_230 = arith.constant 0 : index
    %c0_231 = arith.constant 0 : index
    %652 = vector.load %arg8[%c0_230, %c0_231] : memref<32x256xf32, #tpu.memory_space<vmem>>, vector<32x256xf32>
    %cst_232 = arith.constant dense<0.000000e+00> : vector<6x256xf32>
    %653 = tpu.matmul %651, %652, %cst_232 {dimension_numbers = #tpu.dot_dimension_numbers<[1], [0], [0], [1], [0, 0, 1, 1], [], []>} : vector<6x32xf32>, vector<32x256xf32>, vector<6x256xf32> -> vector<6x256xf32>
    %c0_233 = arith.constant 0 : index
    %c0_234 = arith.constant 0 : index
    %654 = vector.load %arg9[%c0_233, %c0_234] : memref<1x256xf32, #tpu.memory_space<vmem>>, vector<1x256xf32>
    %655 = vector.broadcast %654 : vector<1x256xf32> to vector<6x256xf32>
    %656 = arith.addf %653, %655 : vector<6x256xf32>
    %657 = vector.shape_cast %656 : vector<6x256xf32> to vector<2x3x256xf32>
    %c0_235 = arith.constant 0 : index
    %c0_236 = arith.constant 0 : index
    %658 = vector.load %arg10[%c0_235, %c0_236] : memref<32x128xf32, #tpu.memory_space<vmem>>, vector<32x128xf32>
    %c0_237 = arith.constant 0 : index
    %c0_238 = arith.constant 0 : index
    %659 = vector.load %arg11[%c0_237, %c0_238] : memref<32x128xf32, #tpu.memory_space<vmem>>, vector<32x128xf32>
    %cst_239 = arith.constant 0.000000e+00 : f32
    %660 = vector.broadcast %cst_239 : f32 to vector<2x32xf32>
    %cst_240 = arith.constant 0.000000e+00 : f32
    %661 = vector.broadcast %cst_240 : f32 to vector<2x32xf32>
    %cst_241 = arith.constant 0.000000e+00 : f32
    %662 = vector.broadcast %cst_241 : f32 to vector<2x32xf32>
    %cst_242 = arith.constant 0.000000e+00 : f32
    %663 = vector.broadcast %cst_242 : f32 to vector<2x32xf32>
    %664 = vector.extract_strided_slice %657 {offsets = [0, 0, 0], sizes = [2, 1, 128], strides = [1, 1, 1]} : vector<2x3x256xf32> to vector<2x1x128xf32>
    %665 = vector.shape_cast %664 : vector<2x1x128xf32> to vector<2x128xf32>
    %cst_243 = arith.constant dense<0.000000e+00> : vector<2x128xf32>
    %666 = tpu.matmul %660, %658, %cst_243 {dimension_numbers = #tpu.dot_dimension_numbers<[1], [0], [0], [1], [0, 0, 1, 1], [], []>} : vector<2x32xf32>, vector<32x128xf32>, vector<2x128xf32> -> vector<2x128xf32>
    %667 = arith.addf %665, %666 : vector<2x128xf32>
    %668 = vector.extract_strided_slice %657 {offsets = [0, 2, 128], sizes = [2, 1, 128], strides = [1, 1, 1]} : vector<2x3x256xf32> to vector<2x1x128xf32>
    %669 = vector.shape_cast %668 : vector<2x1x128xf32> to vector<2x128xf32>
    %cst_244 = arith.constant dense<0.000000e+00> : vector<2x128xf32>
    %670 = tpu.matmul %662, %659, %cst_244 {dimension_numbers = #tpu.dot_dimension_numbers<[1], [0], [0], [1], [0, 0, 1, 1], [], []>} : vector<2x32xf32>, vector<32x128xf32>, vector<2x128xf32> -> vector<2x128xf32>
    %671 = arith.addf %669, %670 : vector<2x128xf32>
    %672 = vector.extract_strided_slice %667 {offsets = [0, 0], sizes = [2, 32], strides = [1, 1]} : vector<2x128xf32> to vector<2x32xf32>
    %cst_245 = arith.constant 0.000000e+00 : f32
    %673 = vector.broadcast %cst_245 : f32 to vector<2x32xf32>
    %674 = arith.subf %673, %672 : vector<2x32xf32>
    %675 = math.exp %674 : vector<2x32xf32>
    %cst_246 = arith.constant 1.000000e+00 : f32
    %676 = vector.broadcast %cst_246 : f32 to vector<2x32xf32>
    %677 = arith.addf %676, %675 : vector<2x32xf32>
    %cst_247 = arith.constant 1.000000e+00 : f32
    %678 = vector.broadcast %cst_247 : f32 to vector<2x32xf32>
    %679 = arith.divf %678, %677 : vector<2x32xf32>
    %680 = vector.extract_strided_slice %667 {offsets = [0, 32], sizes = [2, 32], strides = [1, 1]} : vector<2x128xf32> to vector<2x32xf32>
    %cst_248 = arith.constant 0.000000e+00 : f32
    %681 = vector.broadcast %cst_248 : f32 to vector<2x32xf32>
    %682 = arith.subf %681, %680 : vector<2x32xf32>
    %683 = math.exp %682 : vector<2x32xf32>
    %cst_249 = arith.constant 1.000000e+00 : f32
    %684 = vector.broadcast %cst_249 : f32 to vector<2x32xf32>
    %685 = arith.addf %684, %683 : vector<2x32xf32>
    %cst_250 = arith.constant 1.000000e+00 : f32
    %686 = vector.broadcast %cst_250 : f32 to vector<2x32xf32>
    %687 = arith.divf %686, %685 : vector<2x32xf32>
    %688 = vector.extract_strided_slice %667 {offsets = [0, 64], sizes = [2, 32], strides = [1, 1]} : vector<2x128xf32> to vector<2x32xf32>
    %689 = math.tanh %688 : vector<2x32xf32>
    %690 = vector.extract_strided_slice %667 {offsets = [0, 96], sizes = [2, 32], strides = [1, 1]} : vector<2x128xf32> to vector<2x32xf32>
    %cst_251 = arith.constant 0.000000e+00 : f32
    %691 = vector.broadcast %cst_251 : f32 to vector<2x32xf32>
    %692 = arith.subf %691, %690 : vector<2x32xf32>
    %693 = math.exp %692 : vector<2x32xf32>
    %cst_252 = arith.constant 1.000000e+00 : f32
    %694 = vector.broadcast %cst_252 : f32 to vector<2x32xf32>
    %695 = arith.addf %694, %693 : vector<2x32xf32>
    %cst_253 = arith.constant 1.000000e+00 : f32
    %696 = vector.broadcast %cst_253 : f32 to vector<2x32xf32>
    %697 = arith.divf %696, %695 : vector<2x32xf32>
    %698 = arith.mulf %687, %661 : vector<2x32xf32>
    %699 = arith.mulf %679, %689 : vector<2x32xf32>
    %700 = arith.addf %698, %699 : vector<2x32xf32>
    %701 = math.tanh %700 : vector<2x32xf32>
    %702 = arith.mulf %697, %701 : vector<2x32xf32>
    %703 = vector.extract_strided_slice %671 {offsets = [0, 0], sizes = [2, 32], strides = [1, 1]} : vector<2x128xf32> to vector<2x32xf32>
    %cst_254 = arith.constant 0.000000e+00 : f32
    %704 = vector.broadcast %cst_254 : f32 to vector<2x32xf32>
    %705 = arith.subf %704, %703 : vector<2x32xf32>
    %706 = math.exp %705 : vector<2x32xf32>
    %cst_255 = arith.constant 1.000000e+00 : f32
    %707 = vector.broadcast %cst_255 : f32 to vector<2x32xf32>
    %708 = arith.addf %707, %706 : vector<2x32xf32>
    %cst_256 = arith.constant 1.000000e+00 : f32
    %709 = vector.broadcast %cst_256 : f32 to vector<2x32xf32>
    %710 = arith.divf %709, %708 : vector<2x32xf32>
    %711 = vector.extract_strided_slice %671 {offsets = [0, 32], sizes = [2, 32], strides = [1, 1]} : vector<2x128xf32> to vector<2x32xf32>
    %cst_257 = arith.constant 0.000000e+00 : f32
    %712 = vector.broadcast %cst_257 : f32 to vector<2x32xf32>
    %713 = arith.subf %712, %711 : vector<2x32xf32>
    %714 = math.exp %713 : vector<2x32xf32>
    %cst_258 = arith.constant 1.000000e+00 : f32
    %715 = vector.broadcast %cst_258 : f32 to vector<2x32xf32>
    %716 = arith.addf %715, %714 : vector<2x32xf32>
    %cst_259 = arith.constant 1.000000e+00 : f32
    %717 = vector.broadcast %cst_259 : f32 to vector<2x32xf32>
    %718 = arith.divf %717, %716 : vector<2x32xf32>
    %719 = vector.extract_strided_slice %671 {offsets = [0, 64], sizes = [2, 32], strides = [1, 1]} : vector<2x128xf32> to vector<2x32xf32>
    %720 = math.tanh %719 : vector<2x32xf32>
    %721 = vector.extract_strided_slice %671 {offsets = [0, 96], sizes = [2, 32], strides = [1, 1]} : vector<2x128xf32> to vector<2x32xf32>
    %cst_260 = arith.constant 0.000000e+00 : f32
    %722 = vector.broadcast %cst_260 : f32 to vector<2x32xf32>
    %723 = arith.subf %722, %721 : vector<2x32xf32>
    %724 = math.exp %723 : vector<2x32xf32>
    %cst_261 = arith.constant 1.000000e+00 : f32
    %725 = vector.broadcast %cst_261 : f32 to vector<2x32xf32>
    %726 = arith.addf %725, %724 : vector<2x32xf32>
    %cst_262 = arith.constant 1.000000e+00 : f32
    %727 = vector.broadcast %cst_262 : f32 to vector<2x32xf32>
    %728 = arith.divf %727, %726 : vector<2x32xf32>
    %729 = arith.mulf %718, %663 : vector<2x32xf32>
    %730 = arith.mulf %710, %720 : vector<2x32xf32>
    %731 = arith.addf %729, %730 : vector<2x32xf32>
    %732 = math.tanh %731 : vector<2x32xf32>
    %733 = arith.mulf %728, %732 : vector<2x32xf32>
    %c0_263 = arith.constant 0 : index
    %c0_264 = arith.constant 0 : index
    %c0_265 = arith.constant 0 : index
    %734 = vector.load %arg30[%c0_263, %c0_264, %c0_265] : memref<2x3x64xf32, #tpu.memory_space<vmem>>, vector<2x1x32xf32>
    %735 = vector.shape_cast %734 : vector<2x1x32xf32> to vector<2x32xf32>
    %736 = vector.shape_cast %702 : vector<2x32xf32> to vector<2x1x32xf32>
    tpu.vector_store %arg30[%c0_263, %c0_264, %c0_265], %736 {strides = array<i32>} : memref<2x3x64xf32, #tpu.memory_space<vmem>>, vector<2x1x32xf32>,
    %c0_266 = arith.constant 0 : index
    %c2_267 = arith.constant 2 : index
    %c32_268 = arith.constant 32 : index
    %737 = vector.load %arg30[%c0_266, %c2_267, %c32_268] : memref<2x3x64xf32, #tpu.memory_space<vmem>>, vector<2x1x32xf32>
    %738 = vector.shape_cast %737 : vector<2x1x32xf32> to vector<2x32xf32>
    %739 = vector.shape_cast %733 : vector<2x32xf32> to vector<2x1x32xf32>
    tpu.vector_store %arg30[%c0_266, %c2_267, %c32_268], %739 {strides = array<i32>} : memref<2x3x64xf32, #tpu.memory_space<vmem>>, vector<2x1x32xf32>,
    %740 = vector.extract_strided_slice %657 {offsets = [0, 1, 0], sizes = [2, 1, 128], strides = [1, 1, 1]} : vector<2x3x256xf32> to vector<2x1x128xf32>
    %741 = vector.shape_cast %740 : vector<2x1x128xf32> to vector<2x128xf32>
    %cst_269 = arith.constant dense<0.000000e+00> : vector<2x128xf32>
    %742 = tpu.matmul %702, %658, %cst_269 {dimension_numbers = #tpu.dot_dimension_numbers<[1], [0], [0], [1], [0, 0, 1, 1], [], []>} : vector<2x32xf32>, vector<32x128xf32>, vector<2x128xf32> -> vector<2x128xf32>
    %743 = arith.addf %741, %742 : vector<2x128xf32>
    %744 = vector.extract_strided_slice %657 {offsets = [0, 1, 128], sizes = [2, 1, 128], strides = [1, 1, 1]} : vector<2x3x256xf32> to vector<2x1x128xf32>
    %745 = vector.shape_cast %744 : vector<2x1x128xf32> to vector<2x128xf32>
    %cst_270 = arith.constant dense<0.000000e+00> : vector<2x128xf32>
    %746 = tpu.matmul %733, %659, %cst_270 {dimension_numbers = #tpu.dot_dimension_numbers<[1], [0], [0], [1], [0, 0, 1, 1], [], []>} : vector<2x32xf32>, vector<32x128xf32>, vector<2x128xf32> -> vector<2x128xf32>
    %747 = arith.addf %745, %746 : vector<2x128xf32>
    %748 = vector.extract_strided_slice %743 {offsets = [0, 0], sizes = [2, 32], strides = [1, 1]} : vector<2x128xf32> to vector<2x32xf32>
    %cst_271 = arith.constant 0.000000e+00 : f32
    %749 = vector.broadcast %cst_271 : f32 to vector<2x32xf32>
    %750 = arith.subf %749, %748 : vector<2x32xf32>
    %751 = math.exp %750 : vector<2x32xf32>
    %cst_272 = arith.constant 1.000000e+00 : f32
    %752 = vector.broadcast %cst_272 : f32 to vector<2x32xf32>
    %753 = arith.addf %752, %751 : vector<2x32xf32>
    %cst_273 = arith.constant 1.000000e+00 : f32
    %754 = vector.broadcast %cst_273 : f32 to vector<2x32xf32>
    %755 = arith.divf %754, %753 : vector<2x32xf32>
    %756 = vector.extract_strided_slice %743 {offsets = [0, 32], sizes = [2, 32], strides = [1, 1]} : vector<2x128xf32> to vector<2x32xf32>
    %cst_274 = arith.constant 0.000000e+00 : f32
    %757 = vector.broadcast %cst_274 : f32 to vector<2x32xf32>
    %758 = arith.subf %757, %756 : vector<2x32xf32>
    %759 = math.exp %758 : vector<2x32xf32>
    %cst_275 = arith.constant 1.000000e+00 : f32
    %760 = vector.broadcast %cst_275 : f32 to vector<2x32xf32>
    %761 = arith.addf %760, %759 : vector<2x32xf32>
    %cst_276 = arith.constant 1.000000e+00 : f32
    %762 = vector.broadcast %cst_276 : f32 to vector<2x32xf32>
    %763 = arith.divf %762, %761 : vector<2x32xf32>
    %764 = vector.extract_strided_slice %743 {offsets = [0, 64], sizes = [2, 32], strides = [1, 1]} : vector<2x128xf32> to vector<2x32xf32>
    %765 = math.tanh %764 : vector<2x32xf32>
    %766 = vector.extract_strided_slice %743 {offsets = [0, 96], sizes = [2, 32], strides = [1, 1]} : vector<2x128xf32> to vector<2x32xf32>
    %cst_277 = arith.constant 0.000000e+00 : f32
    %767 = vector.broadcast %cst_277 : f32 to vector<2x32xf32>
    %768 = arith.subf %767, %766 : vector<2x32xf32>
    %769 = math.exp %768 : vector<2x32xf32>
    %cst_278 = arith.constant 1.000000e+00 : f32
    %770 = vector.broadcast %cst_278 : f32 to vector<2x32xf32>
    %771 = arith.addf %770, %769 : vector<2x32xf32>
    %cst_279 = arith.constant 1.000000e+00 : f32
    %772 = vector.broadcast %cst_279 : f32 to vector<2x32xf32>
    %773 = arith.divf %772, %771 : vector<2x32xf32>
    %774 = arith.mulf %763, %700 : vector<2x32xf32>
    %775 = arith.mulf %755, %765 : vector<2x32xf32>
    %776 = arith.addf %774, %775 : vector<2x32xf32>
    %777 = math.tanh %776 : vector<2x32xf32>
    %778 = arith.mulf %773, %777 : vector<2x32xf32>
    %779 = vector.extract_strided_slice %747 {offsets = [0, 0], sizes = [2, 32], strides = [1, 1]} : vector<2x128xf32> to vector<2x32xf32>
    %cst_280 = arith.constant 0.000000e+00 : f32
    %780 = vector.broadcast %cst_280 : f32 to vector<2x32xf32>
    %781 = arith.subf %780, %779 : vector<2x32xf32>
    %782 = math.exp %781 : vector<2x32xf32>
    %cst_281 = arith.constant 1.000000e+00 : f32
    %783 = vector.broadcast %cst_281 : f32 to vector<2x32xf32>
    %784 = arith.addf %783, %782 : vector<2x32xf32>
    %cst_282 = arith.constant 1.000000e+00 : f32
    %785 = vector.broadcast %cst_282 : f32 to vector<2x32xf32>
    %786 = arith.divf %785, %784 : vector<2x32xf32>
    %787 = vector.extract_strided_slice %747 {offsets = [0, 32], sizes = [2, 32], strides = [1, 1]} : vector<2x128xf32> to vector<2x32xf32>
    %cst_283 = arith.constant 0.000000e+00 : f32
    %788 = vector.broadcast %cst_283 : f32 to vector<2x32xf32>
    %789 = arith.subf %788, %787 : vector<2x32xf32>
    %790 = math.exp %789 : vector<2x32xf32>
    %cst_284 = arith.constant 1.000000e+00 : f32
    %791 = vector.broadcast %cst_284 : f32 to vector<2x32xf32>
    %792 = arith.addf %791, %790 : vector<2x32xf32>
    %cst_285 = arith.constant 1.000000e+00 : f32
    %793 = vector.broadcast %cst_285 : f32 to vector<2x32xf32>
    %794 = arith.divf %793, %792 : vector<2x32xf32>
    %795 = vector.extract_strided_slice %747 {offsets = [0, 64], sizes = [2, 32], strides = [1, 1]} : vector<2x128xf32> to vector<2x32xf32>
    %796 = math.tanh %795 : vector<2x32xf32>
    %797 = vector.extract_strided_slice %747 {offsets = [0, 96], sizes = [2, 32], strides = [1, 1]} : vector<2x128xf32> to vector<2x32xf32>
    %cst_286 = arith.constant 0.000000e+00 : f32
    %798 = vector.broadcast %cst_286 : f32 to vector<2x32xf32>
    %799 = arith.subf %798, %797 : vector<2x32xf32>
    %800 = math.exp %799 : vector<2x32xf32>
    %cst_287 = arith.constant 1.000000e+00 : f32
    %801 = vector.broadcast %cst_287 : f32 to vector<2x32xf32>
    %802 = arith.addf %801, %800 : vector<2x32xf32>
    %cst_288 = arith.constant 1.000000e+00 : f32
    %803 = vector.broadcast %cst_288 : f32 to vector<2x32xf32>
    %804 = arith.divf %803, %802 : vector<2x32xf32>
    %805 = arith.mulf %794, %731 : vector<2x32xf32>
    %806 = arith.mulf %786, %796 : vector<2x32xf32>
    %807 = arith.addf %805, %806 : vector<2x32xf32>
    %808 = math.tanh %807 : vector<2x32xf32>
    %809 = arith.mulf %804, %808 : vector<2x32xf32>
    %c0_289 = arith.constant 0 : index
    %c1_290 = arith.constant 1 : index
    %c0_291 = arith.constant 0 : index
    %810 = vector.load %arg30[%c0_289, %c1_290, %c0_291] : memref<2x3x64xf32, #tpu.memory_space<vmem>>, vector<2x1x32xf32>
    %811 = vector.shape_cast %810 : vector<2x1x32xf32> to vector<2x32xf32>
    %812 = vector.shape_cast %778 : vector<2x32xf32> to vector<2x1x32xf32>
    tpu.vector_store %arg30[%c0_289, %c1_290, %c0_291], %812 {strides = array<i32>} : memref<2x3x64xf32, #tpu.memory_space<vmem>>, vector<2x1x32xf32>,
    %c0_292 = arith.constant 0 : index
    %c1_293 = arith.constant 1 : index
    %c32_294 = arith.constant 32 : index
    %813 = vector.load %arg30[%c0_292, %c1_293, %c32_294] : memref<2x3x64xf32, #tpu.memory_space<vmem>>, vector<2x1x32xf32>
    %814 = vector.shape_cast %813 : vector<2x1x32xf32> to vector<2x32xf32>
    %815 = vector.shape_cast %809 : vector<2x32xf32> to vector<2x1x32xf32>
    tpu.vector_store %arg30[%c0_292, %c1_293, %c32_294], %815 {strides = array<i32>} : memref<2x3x64xf32, #tpu.memory_space<vmem>>, vector<2x1x32xf32>,
    %816 = vector.extract_strided_slice %657 {offsets = [0, 2, 0], sizes = [2, 1, 128], strides = [1, 1, 1]} : vector<2x3x256xf32> to vector<2x1x128xf32>
    %817 = vector.shape_cast %816 : vector<2x1x128xf32> to vector<2x128xf32>
    %cst_295 = arith.constant dense<0.000000e+00> : vector<2x128xf32>
    %818 = tpu.matmul %778, %658, %cst_295 {dimension_numbers = #tpu.dot_dimension_numbers<[1], [0], [0], [1], [0, 0, 1, 1], [], []>} : vector<2x32xf32>, vector<32x128xf32>, vector<2x128xf32> -> vector<2x128xf32>
    %819 = arith.addf %817, %818 : vector<2x128xf32>
    %820 = vector.extract_strided_slice %657 {offsets = [0, 0, 128], sizes = [2, 1, 128], strides = [1, 1, 1]} : vector<2x3x256xf32> to vector<2x1x128xf32>
    %821 = vector.shape_cast %820 : vector<2x1x128xf32> to vector<2x128xf32>
    %cst_296 = arith.constant dense<0.000000e+00> : vector<2x128xf32>
    %822 = tpu.matmul %809, %659, %cst_296 {dimension_numbers = #tpu.dot_dimension_numbers<[1], [0], [0], [1], [0, 0, 1, 1], [], []>} : vector<2x32xf32>, vector<32x128xf32>, vector<2x128xf32> -> vector<2x128xf32>
    %823 = arith.addf %821, %822 : vector<2x128xf32>
    %824 = vector.extract_strided_slice %819 {offsets = [0, 0], sizes = [2, 32], strides = [1, 1]} : vector<2x128xf32> to vector<2x32xf32>
    %cst_297 = arith.constant 0.000000e+00 : f32
    %825 = vector.broadcast %cst_297 : f32 to vector<2x32xf32>
    %826 = arith.subf %825, %824 : vector<2x32xf32>
    %827 = math.exp %826 : vector<2x32xf32>
    %cst_298 = arith.constant 1.000000e+00 : f32
    %828 = vector.broadcast %cst_298 : f32 to vector<2x32xf32>
    %829 = arith.addf %828, %827 : vector<2x32xf32>
    %cst_299 = arith.constant 1.000000e+00 : f32
    %830 = vector.broadcast %cst_299 : f32 to vector<2x32xf32>
    %831 = arith.divf %830, %829 : vector<2x32xf32>
    %832 = vector.extract_strided_slice %819 {offsets = [0, 32], sizes = [2, 32], strides = [1, 1]} : vector<2x128xf32> to vector<2x32xf32>
    %cst_300 = arith.constant 0.000000e+00 : f32
    %833 = vector.broadcast %cst_300 : f32 to vector<2x32xf32>
    %834 = arith.subf %833, %832 : vector<2x32xf32>
    %835 = math.exp %834 : vector<2x32xf32>
    %cst_301 = arith.constant 1.000000e+00 : f32
    %836 = vector.broadcast %cst_301 : f32 to vector<2x32xf32>
    %837 = arith.addf %836, %835 : vector<2x32xf32>
    %cst_302 = arith.constant 1.000000e+00 : f32
    %838 = vector.broadcast %cst_302 : f32 to vector<2x32xf32>
    %839 = arith.divf %838, %837 : vector<2x32xf32>
    %840 = vector.extract_strided_slice %819 {offsets = [0, 64], sizes = [2, 32], strides = [1, 1]} : vector<2x128xf32> to vector<2x32xf32>
    %841 = math.tanh %840 : vector<2x32xf32>
    %842 = vector.extract_strided_slice %819 {offsets = [0, 96], sizes = [2, 32], strides = [1, 1]} : vector<2x128xf32> to vector<2x32xf32>
    %cst_303 = arith.constant 0.000000e+00 : f32
    %843 = vector.broadcast %cst_303 : f32 to vector<2x32xf32>
    %844 = arith.subf %843, %842 : vector<2x32xf32>
    %845 = math.exp %844 : vector<2x32xf32>
    %cst_304 = arith.constant 1.000000e+00 : f32
    %846 = vector.broadcast %cst_304 : f32 to vector<2x32xf32>
    %847 = arith.addf %846, %845 : vector<2x32xf32>
    %cst_305 = arith.constant 1.000000e+00 : f32
    %848 = vector.broadcast %cst_305 : f32 to vector<2x32xf32>
    %849 = arith.divf %848, %847 : vector<2x32xf32>
    %850 = arith.mulf %839, %776 : vector<2x32xf32>
    %851 = arith.mulf %831, %841 : vector<2x32xf32>
    %852 = arith.addf %850, %851 : vector<2x32xf32>
    %853 = math.tanh %852 : vector<2x32xf32>
    %854 = arith.mulf %849, %853 : vector<2x32xf32>
    %855 = vector.extract_strided_slice %823 {offsets = [0, 0], sizes = [2, 32], strides = [1, 1]} : vector<2x128xf32> to vector<2x32xf32>
    %cst_306 = arith.constant 0.000000e+00 : f32
    %856 = vector.broadcast %cst_306 : f32 to vector<2x32xf32>
    %857 = arith.subf %856, %855 : vector<2x32xf32>
    %858 = math.exp %857 : vector<2x32xf32>
    %cst_307 = arith.constant 1.000000e+00 : f32
    %859 = vector.broadcast %cst_307 : f32 to vector<2x32xf32>
    %860 = arith.addf %859, %858 : vector<2x32xf32>
    %cst_308 = arith.constant 1.000000e+00 : f32
    %861 = vector.broadcast %cst_308 : f32 to vector<2x32xf32>
    %862 = arith.divf %861, %860 : vector<2x32xf32>
    %863 = vector.extract_strided_slice %823 {offsets = [0, 32], sizes = [2, 32], strides = [1, 1]} : vector<2x128xf32> to vector<2x32xf32>
    %cst_309 = arith.constant 0.000000e+00 : f32
    %864 = vector.broadcast %cst_309 : f32 to vector<2x32xf32>
    %865 = arith.subf %864, %863 : vector<2x32xf32>
    %866 = math.exp %865 : vector<2x32xf32>
    %cst_310 = arith.constant 1.000000e+00 : f32
    %867 = vector.broadcast %cst_310 : f32 to vector<2x32xf32>
    %868 = arith.addf %867, %866 : vector<2x32xf32>
    %cst_311 = arith.constant 1.000000e+00 : f32
    %869 = vector.broadcast %cst_311 : f32 to vector<2x32xf32>
    %870 = arith.divf %869, %868 : vector<2x32xf32>
    %871 = vector.extract_strided_slice %823 {offsets = [0, 64], sizes = [2, 32], strides = [1, 1]} : vector<2x128xf32> to vector<2x32xf32>
    %872 = math.tanh %871 : vector<2x32xf32>
    %873 = vector.extract_strided_slice %823 {offsets = [0, 96], sizes = [2, 32], strides = [1, 1]} : vector<2x128xf32> to vector<2x32xf32>
    %cst_312 = arith.constant 0.000000e+00 : f32
    %874 = vector.broadcast %cst_312 : f32 to vector<2x32xf32>
    %875 = arith.subf %874, %873 : vector<2x32xf32>
    %876 = math.exp %875 : vector<2x32xf32>
    %cst_313 = arith.constant 1.000000e+00 : f32
    %877 = vector.broadcast %cst_313 : f32 to vector<2x32xf32>
    %878 = arith.addf %877, %876 : vector<2x32xf32>
    %cst_314 = arith.constant 1.000000e+00 : f32
    %879 = vector.broadcast %cst_314 : f32 to vector<2x32xf32>
    %880 = arith.divf %879, %878 : vector<2x32xf32>
    %881 = arith.mulf %870, %807 : vector<2x32xf32>
    %882 = arith.mulf %862, %872 : vector<2x32xf32>
    %883 = arith.addf %881, %882 : vector<2x32xf32>
    %884 = math.tanh %883 : vector<2x32xf32>
    %885 = arith.mulf %880, %884 : vector<2x32xf32>
    %c0_315 = arith.constant 0 : index
    %c2_316 = arith.constant 2 : index
    %c0_317 = arith.constant 0 : index
    %886 = vector.load %arg30[%c0_315, %c2_316, %c0_317] : memref<2x3x64xf32, #tpu.memory_space<vmem>>, vector<2x1x32xf32>
    %887 = vector.shape_cast %886 : vector<2x1x32xf32> to vector<2x32xf32>
    %888 = vector.shape_cast %854 : vector<2x32xf32> to vector<2x1x32xf32>
    tpu.vector_store %arg30[%c0_315, %c2_316, %c0_317], %888 {strides = array<i32>} : memref<2x3x64xf32, #tpu.memory_space<vmem>>, vector<2x1x32xf32>,
    %c0_318 = arith.constant 0 : index
    %c0_319 = arith.constant 0 : index
    %c32_320 = arith.constant 32 : index
    %889 = vector.load %arg30[%c0_318, %c0_319, %c32_320] : memref<2x3x64xf32, #tpu.memory_space<vmem>>, vector<2x1x32xf32>
    %890 = vector.shape_cast %889 : vector<2x1x32xf32> to vector<2x32xf32>
    %891 = vector.shape_cast %885 : vector<2x32xf32> to vector<2x1x32xf32>
    tpu.vector_store %arg30[%c0_318, %c0_319, %c32_320], %891 {strides = array<i32>} : memref<2x3x64xf32, #tpu.memory_space<vmem>>, vector<2x1x32xf32>,
    %c0_321 = arith.constant 0 : index
    %c0_322 = arith.constant 0 : index
    %c0_323 = arith.constant 0 : index
    %892 = vector.load %arg30[%c0_321, %c0_322, %c0_323] : memref<2x3x64xf32, #tpu.memory_space<vmem>>, vector<2x3x64xf32>
    %c0_324 = arith.constant 0 : index
    %c0_325 = arith.constant 0 : index
    %893 = vector.load %arg14[%c0_324, %c0_325] : memref<64x32xf32, #tpu.memory_space<vmem>>, vector<64x32xf32>
    %c0_326 = arith.constant 0 : index
    %c0_327 = arith.constant 0 : index
    %894 = vector.load %arg15[%c0_326, %c0_327] : memref<1x32xf32, #tpu.memory_space<vmem>>, vector<1x32xf32>
    "tpu.trace_start"() <{level = 10 : i32, message = "bqd,bkd->bqk"}> : () -> ()
    %cst_328 = arith.constant dense<0.000000e+00> : vector<2x3x3xf32>
    %895 = tpu.matmul %892, %892, %cst_328 {dimension_numbers = #tpu.dot_dimension_numbers<[2], [2], [1], [1], [0, 0, 0, 1, 1, 1], [0], [0]>} : vector<2x3x64xf32>, vector<2x3x64xf32>, vector<2x3x3xf32> -> vector<2x3x3xf32>
    "tpu.trace_stop"() : () -> ()
    %cst_329 = arith.constant 1.250000e-01 : f32
    %896 = vector.broadcast %cst_329 : f32 to vector<2x3x3xf32>
    %897 = arith.mulf %895, %896 : vector<2x3x3xf32>
    %cst_330 = arith.constant dense<0xFF800000> : vector<2x3xf32>
    %898 = vector.multi_reduction <maximumf>, %897, %cst_330 [2] : vector<2x3x3xf32> to vector<2x3xf32>
    %899 = vector.shape_cast %898 : vector<2x3xf32> to vector<2x3x1xf32>
    %900 = vector.broadcast %899 : vector<2x3x1xf32> to vector<2x3x3xf32>
    %901 = arith.subf %897, %900 : vector<2x3x3xf32>
    %902 = math.exp %901 : vector<2x3x3xf32>
    %cst_331 = arith.constant dense<0.000000e+00> : vector<2x3xf32>
    %903 = vector.multi_reduction <add>, %902, %cst_331 [2] : vector<2x3x3xf32> to vector<2x3xf32>
    %904 = vector.shape_cast %903 : vector<2x3xf32> to vector<2x3x1xf32>
    %905 = tpu.reciprocal %904 {approx = true} : vector<2x3x1xf32> -> vector<2x3x1xf32>
    %906 = vector.broadcast %905 : vector<2x3x1xf32> to vector<2x3x3xf32>
    %907 = arith.mulf %902, %906 : vector<2x3x3xf32>
    %cst_332 = arith.constant dense<0.000000e+00> : vector<2x3xf32>
    %908 = vector.multi_reduction <add>, %907, %cst_332 [1] : vector<2x3x3xf32> to vector<2x3xf32>
    %909 = vector.shape_cast %908 : vector<2x3xf32> to vector<2x3x1xf32>
    %910 = vector.broadcast %909 : vector<2x3x1xf32> to vector<2x3x64xf32>
    %911 = arith.mulf %910, %892 : vector<2x3x64xf32>
    %cst_333 = arith.constant dense<0.000000e+00> : vector<2x64xf32>
    %912 = vector.multi_reduction <add>, %911, %cst_333 [1] : vector<2x3x64xf32> to vector<2x64xf32>
    %cst_334 = arith.constant dense<0.000000e+00> : vector<2x32xf32>
    %913 = tpu.matmul %912, %893, %cst_334 {dimension_numbers = #tpu.dot_dimension_numbers<[1], [0], [0], [1], [0, 0, 1, 1], [], []>} : vector<2x64xf32>, vector<64x32xf32>, vector<2x32xf32> -> vector<2x32xf32>
    %914 = vector.broadcast %894 : vector<1x32xf32> to vector<2x32xf32>
    %915 = arith.addf %913, %914 : vector<2x32xf32>
    %c0_335 = arith.constant 0 : index
    %c0_336 = arith.constant 0 : index
    %916 = vector.load %arg1[%c0_335, %c0_336] : memref<12x1xi32, #tpu.memory_space<vmem>>, vector<12x1xi32>
    %917 = tpu.iota {dimensions = array<i32: 1>} : vector<12x30xi32>
    %918 = vector.broadcast %916 : vector<12x1xi32> to vector<12x30xi32>
    %919 = arith.cmpi eq, %918, %917 : vector<12x30xi32>
    %920 = arith.extui %919 : vector<12x30xi1> to vector<12x30xi32>
    %921 = arith.sitofp %920 : vector<12x30xi32> to vector<12x30xf32>
    %c0_337 = arith.constant 0 : index
    %c0_338 = arith.constant 0 : index
    %922 = vector.load %arg3[%c0_337, %c0_338] : memref<30x16xf32, #tpu.memory_space<vmem>>, vector<30x16xf32>
    %cst_339 = arith.constant dense<0.000000e+00> : vector<12x16xf32>
    %923 = tpu.matmul %921, %922, %cst_339 {dimension_numbers = #tpu.dot_dimension_numbers<[1], [0], [0], [1], [0, 0, 1, 1], [], []>} : vector<12x30xf32>, vector<30x16xf32>, vector<12x16xf32> -> vector<12x16xf32>
    %c0_340 = arith.constant 0 : index
    %c0_341 = arith.constant 0 : index
    %924 = vector.load %arg16[%c0_340, %c0_341] : memref<16x32xf32, #tpu.memory_space<vmem>>, vector<16x32xf32>
    %cst_342 = arith.constant dense<0.000000e+00> : vector<12x32xf32>
    %925 = tpu.matmul %923, %924, %cst_342 {dimension_numbers = #tpu.dot_dimension_numbers<[1], [0], [0], [1], [0, 0, 1, 1], [], []>} : vector<12x16xf32>, vector<16x32xf32>, vector<12x32xf32> -> vector<12x32xf32>
    %c0_343 = arith.constant 0 : index
    %c0_344 = arith.constant 0 : index
    %926 = vector.load %arg17[%c0_343, %c0_344] : memref<1x32xf32, #tpu.memory_space<vmem>>, vector<1x32xf32>
    %927 = vector.broadcast %926 : vector<1x32xf32> to vector<12x32xf32>
    %928 = arith.addf %925, %927 : vector<12x32xf32>
    %929 = vector.shape_cast %928 : vector<12x32xf32> to vector<2x6x32xf32>
    %c0_345 = arith.constant 0 : index
    %c0_346 = arith.constant 0 : index
    %930 = vector.load %arg18[%c0_345, %c0_346] : memref<32x6xf32, #tpu.memory_space<vmem>>, vector<32x6xf32>
    %c0_347 = arith.constant 0 : index
    %c0_348 = arith.constant 0 : index
    %931 = vector.load %arg19[%c0_347, %c0_348] : memref<1x6xf32, #tpu.memory_space<vmem>>, vector<1x6xf32>
    %c0_349 = arith.constant 0 : index
    %c0_350 = arith.constant 0 : index
    %932 = vector.load %arg20[%c0_349, %c0_350] : memref<1x6xf32, #tpu.memory_space<vmem>>, vector<1x6xf32>
    %c0_351 = arith.constant 0 : index
    %c0_352 = arith.constant 0 : index
    %933 = vector.load %arg21[%c0_351, %c0_352] : memref<1x1xf32, #tpu.memory_space<vmem>>, vector<1x1xf32>
    %934 = vector.shape_cast %929 : vector<2x6x32xf32> to vector<12x32xf32>
    %cst_353 = arith.constant dense<0.000000e+00> : vector<12x6xf32>
    %935 = tpu.matmul %934, %930, %cst_353 {dimension_numbers = #tpu.dot_dimension_numbers<[1], [0], [0], [1], [0, 0, 1, 1], [], []>} : vector<12x32xf32>, vector<32x6xf32>, vector<12x6xf32> -> vector<12x6xf32>
    %936 = vector.broadcast %931 : vector<1x6xf32> to vector<12x6xf32>
    %937 = arith.addf %935, %936 : vector<12x6xf32>
    %cst_354 = arith.constant 0.000000e+00 : f32
    %938 = vector.broadcast %cst_354 : f32 to vector<12x6xf32>
    %939 = arith.maximumf %937, %938 : vector<12x6xf32>
    %940 = vector.shape_cast %939 : vector<12x6xf32> to vector<2x6x6xf32>
    %941 = vector.shape_cast %932 : vector<1x6xf32> to vector<1x1x6xf32>
    %942 = vector.broadcast %941 : vector<1x1x6xf32> to vector<2x6x6xf32>
    %943 = arith.mulf %940, %942 : vector<2x6x6xf32>
    %cst_355 = arith.constant dense<0.000000e+00> : vector<2x6xf32>
    %944 = vector.multi_reduction <add>, %943, %cst_355 [2] : vector<2x6x6xf32> to vector<2x6xf32>
    %945 = vector.broadcast %933 : vector<1x1xf32> to vector<2x6xf32>
    %946 = arith.addf %944, %945 : vector<2x6xf32>
    %cst_356 = arith.constant dense<0xFF800000> : vector<2xf32>
    %947 = vector.multi_reduction <maximumf>, %946, %cst_356 [1] : vector<2x6xf32> to vector<2xf32>
    %948 = vector.shape_cast %947 : vector<2xf32> to vector<2x1xf32>
    %949 = vector.broadcast %948 : vector<2x1xf32> to vector<2x6xf32>
    %950 = arith.subf %946, %949 : vector<2x6xf32>
    %951 = math.exp %950 : vector<2x6xf32>
    %cst_357 = arith.constant dense<0.000000e+00> : vector<2xf32>
    %952 = vector.multi_reduction <add>, %951, %cst_357 [1] : vector<2x6xf32> to vector<2xf32>
    %953 = vector.shape_cast %952 : vector<2xf32> to vector<2x1xf32>
    %954 = tpu.reciprocal %953 {approx = true} : vector<2x1xf32> -> vector<2x1xf32>
    %955 = vector.broadcast %954 : vector<2x1xf32> to vector<2x6xf32>
    %956 = arith.mulf %951, %955 : vector<2x6xf32>
    %957 = vector.shape_cast %956 : vector<2x6xf32> to vector<2x6x1xf32>
    %958 = vector.broadcast %957 : vector<2x6x1xf32> to vector<2x6x32xf32>
    %959 = arith.mulf %929, %958 : vector<2x6x32xf32>
    %cst_358 = arith.constant dense<0.000000e+00> : vector<2x32xf32>
    %960 = vector.multi_reduction <add>, %959, %cst_358 [1] : vector<2x6x32xf32> to vector<2x32xf32>
    %c0_359 = arith.constant 0 : index
    %c0_360 = arith.constant 0 : index
    %961 = vector.load %arg22[%c0_359, %c0_360] : memref<32x6xf32, #tpu.memory_space<vmem>>, vector<32x6xf32>
    %c0_361 = arith.constant 0 : index
    %c0_362 = arith.constant 0 : index
    %962 = vector.load %arg23[%c0_361, %c0_362] : memref<1x6xf32, #tpu.memory_space<vmem>>, vector<1x6xf32>
    %c0_363 = arith.constant 0 : index
    %c0_364 = arith.constant 0 : index
    %963 = vector.load %arg24[%c0_363, %c0_364] : memref<1x6xf32, #tpu.memory_space<vmem>>, vector<1x6xf32>
    %c0_365 = arith.constant 0 : index
    %c0_366 = arith.constant 0 : index
    %964 = vector.load %arg25[%c0_365, %c0_366] : memref<1x1xf32, #tpu.memory_space<vmem>>, vector<1x1xf32>
    %cst_367 = arith.constant dense<0.000000e+00> : vector<2x6xf32>
    %965 = tpu.matmul %915, %961, %cst_367 {dimension_numbers = #tpu.dot_dimension_numbers<[1], [0], [0], [1], [0, 0, 1, 1], [], []>} : vector<2x32xf32>, vector<32x6xf32>, vector<2x6xf32> -> vector<2x6xf32>
    %966 = vector.broadcast %962 : vector<1x6xf32> to vector<2x6xf32>
    %967 = arith.addf %965, %966 : vector<2x6xf32>
    %cst_368 = arith.constant 0.000000e+00 : f32
    %968 = vector.broadcast %cst_368 : f32 to vector<2x6xf32>
    %969 = arith.maximumf %967, %968 : vector<2x6xf32>
    %970 = vector.broadcast %963 : vector<1x6xf32> to vector<2x6xf32>
    %971 = arith.mulf %969, %970 : vector<2x6xf32>
    %cst_369 = arith.constant dense<0.000000e+00> : vector<2xf32>
    %972 = vector.multi_reduction <add>, %971, %cst_369 [1] : vector<2x6xf32> to vector<2xf32>
    %973 = vector.shape_cast %972 : vector<2xf32> to vector<2x1xf32>
    %974 = vector.broadcast %964 : vector<1x1xf32> to vector<2x1xf32>
    %975 = arith.addf %973, %974 : vector<2x1xf32>
    %cst_370 = arith.constant dense<0.000000e+00> : vector<2x6xf32>
    %976 = tpu.matmul %960, %961, %cst_370 {dimension_numbers = #tpu.dot_dimension_numbers<[1], [0], [0], [1], [0, 0, 1, 1], [], []>} : vector<2x32xf32>, vector<32x6xf32>, vector<2x6xf32> -> vector<2x6xf32>
    %977 = vector.broadcast %962 : vector<1x6xf32> to vector<2x6xf32>
    %978 = arith.addf %976, %977 : vector<2x6xf32>
    %cst_371 = arith.constant 0.000000e+00 : f32
    %979 = vector.broadcast %cst_371 : f32 to vector<2x6xf32>
    %980 = arith.maximumf %978, %979 : vector<2x6xf32>
    %981 = vector.broadcast %963 : vector<1x6xf32> to vector<2x6xf32>
    %982 = arith.mulf %980, %981 : vector<2x6xf32>
    %cst_372 = arith.constant dense<0.000000e+00> : vector<2xf32>
    %983 = vector.multi_reduction <add>, %982, %cst_372 [1] : vector<2x6xf32> to vector<2xf32>
    %984 = vector.shape_cast %983 : vector<2xf32> to vector<2x1xf32>
    %985 = vector.broadcast %964 : vector<1x1xf32> to vector<2x1xf32>
    %986 = arith.addf %984, %985 : vector<2x1xf32>
    %987 = arith.maximumf %975, %986 : vector<2x1xf32>
    %988 = arith.subf %975, %987 : vector<2x1xf32>
    %989 = math.exp %988 : vector<2x1xf32>
    %990 = arith.subf %986, %987 : vector<2x1xf32>
    %991 = math.exp %990 : vector<2x1xf32>
    %992 = arith.addf %989, %991 : vector<2x1xf32>
    %993 = tpu.reciprocal %992 {approx = true} : vector<2x1xf32> -> vector<2x1xf32>
    %994 = arith.mulf %989, %993 : vector<2x1xf32>
    %995 = vector.broadcast %994 : vector<2x1xf32> to vector<2x32xf32>
    %996 = arith.mulf %995, %915 : vector<2x32xf32>
    %997 = arith.mulf %991, %993 : vector<2x1xf32>
    %998 = vector.broadcast %997 : vector<2x1xf32> to vector<2x32xf32>
    %999 = arith.mulf %998, %960 : vector<2x32xf32>
    %1000 = arith.addf %996, %999 : vector<2x32xf32>
    %c0_373 = arith.constant 0 : index
    %c0_374 = arith.constant 0 : index
    %1001 = vector.load %arg26[%c0_373, %c0_374] : memref<32x5xf32, #tpu.memory_space<vmem>>, vector<32x5xf32>
    %cst_375 = arith.constant dense<0.000000e+00> : vector<2x5xf32>
    %1002 = tpu.matmul %1000, %1001, %cst_375 {dimension_numbers = #tpu.dot_dimension_numbers<[1], [0], [0], [1], [0, 0, 1, 1], [], []>} : vector<2x32xf32>, vector<32x5xf32>, vector<2x5xf32> -> vector<2x5xf32>
    %c0_376 = arith.constant 0 : index
    %c0_377 = arith.constant 0 : index
    %1003 = vector.load %arg27[%c0_376, %c0_377] : memref<1x5xf32, #tpu.memory_space<vmem>>, vector<1x5xf32>
    %1004 = vector.broadcast %1003 : vector<1x5xf32> to vector<2x5xf32>
    %1005 = arith.addf %1002, %1004 : vector<2x5xf32>
    %c0_378 = arith.constant 0 : index
    %c0_379 = arith.constant 0 : index
    %1006 = vector.load %arg28[%c0_378, %c0_379] : memref<2x5xf32, #tpu.memory_space<vmem>>, vector<2x5xf32>
    tpu.vector_store %arg28[%c0_378, %c0_379], %1005 {strides = array<i32>} : memref<2x5xf32, #tpu.memory_space<vmem>>, vector<2x5xf32>,
    return
  }
}

</mosaic_0001>

<llo_original>
// kernel: basic_type_classifier.1
$region0: #{basic_type_classifier.1}
  #allocation0 [shape = 'u32[]', space=smem, size = 0x4, offset = 0x4, fixed_abs, tag = 'smem constant byte address 0x4 - core index']
  #allocation1 [shape = 'u32[144,128]{1,0:T(1,128)}', space=vmem, size = 0x12000, scoped, tag = 'internal scratch']
  #allocation2 [shape = 'f32[6,8,64]{2,1,0:T(8,128)}', space=vmem, size = 0x6000, scoped, tag = 'scratch operand']
  #allocation3 [shape = 'f32[2,3,64]{2,1,0:T(4,128)}', space=vmem, size = 0x1000, scoped, tag = 'scratch operand']
  #allocation4 [shape = 'f32[1,1]{1,0:T(1,128)S(1)}', space=vmem, size = 0x200, scoped, tag = 'scoped memory for basic_type_classifier.1']
  #allocation5 [shape = 'f32[1,1]{1,0:T(1,128)S(1)}', space=vmem, size = 0x200, scoped, tag = 'scoped memory for basic_type_classifier.1']
  %s0 = inlined_call_operand.vmem [shape: s32[48,1], index: 0, kind: input, shape index: {}]
  %s1 = inlined_call_operand.vmem [shape: s32[12,1], index: 1, kind: input, shape index: {}]
  %s2 = inlined_call_operand.vmem [shape: f32[50,16], index: 2, kind: input, shape index: {}]
  %s3 = inlined_call_operand.vmem [shape: f32[30,16], index: 3, kind: input, shape index: {}]
  %s4 = inlined_call_operand.vmem [shape: f32[16,256], index: 4, kind: input, shape index: {}]
  %s5 = inlined_call_operand.vmem [shape: f32[1,256], index: 5, kind: input, shape index: {}]
  %s6 = inlined_call_operand.vmem [shape: f32[32,128], index: 6, kind: input, shape index: {}]
  %s7 = inlined_call_operand.vmem [shape: f32[32,128], index: 7, kind: input, shape index: {}]
  %s8 = inlined_call_operand.vmem [shape: f32[32,256], index: 8, kind: input, shape index: {}]
  %s9 = inlined_call_operand.vmem [shape: f32[1,256], index: 9, kind: input, shape index: {}]
  %s10 = inlined_call_operand.vmem [shape: f32[32,128], index: 10, kind: input, shape index: {}]
  %s11 = inlined_call_operand.vmem [shape: f32[32,128], index: 11, kind: input, shape index: {}]
  %s12 = inlined_call_operand.vmem [shape: f32[64,32], index: 12, kind: input, shape index: {}]
  %s13 = inlined_call_operand.vmem [shape: f32[1,32], index: 13, kind: input, shape index: {}]
  %s14 = inlined_call_operand.vmem [shape: f32[64,32], index: 14, kind: input, shape index: {}]
  %s15 = inlined_call_operand.vmem [shape: f32[1,32], index: 15, kind: input, shape index: {}]
  %s16 = inlined_call_operand.vmem [shape: f32[16,32], index: 16, kind: input, shape index: {}]
  %s17 = inlined_call_operand.vmem [shape: f32[1,32], index: 17, kind: input, shape index: {}]
  %s18 = inlined_call_operand.vmem [shape: f32[32,6], index: 18, kind: input, shape index: {}]
  %s19 = inlined_call_operand.vmem [shape: f32[1,6], index: 19, kind: input, shape index: {}]
  %s20 = inlined_call_operand.vmem [shape: f32[1,6], index: 20, kind: input, shape index: {}]
  %s21 = inlined_call_operand.<no memory space> [shape: f32[1,1], index: 21, kind: input, shape index: {}]
  %s22 = inlined_call_operand.vmem [shape: f32[32,6], index: 22, kind: input, shape index: {}]
  %s23 = inlined_call_operand.vmem [shape: f32[1,6], index: 23, kind: input, shape index: {}]
  %s24 = inlined_call_operand.vmem [shape: f32[1,6], index: 24, kind: input, shape index: {}]
  %s25 = inlined_call_operand.<no memory space> [shape: f32[1,1], index: 25, kind: input, shape index: {}]
  %s26 = inlined_call_operand.vmem [shape: f32[32,5], index: 26, kind: input, shape index: {}]
  %s27 = inlined_call_operand.vmem [shape: f32[1,5], index: 27, kind: input, shape index: {}]
  %s28 = inlined_call_operand.hbm [shape: f32[2,5], index: 28, kind: output, shape index: {}]
  %s29 = sld [smem:[#allocation0]]
  $region122: #{basic_type_classifier.1} parent=0
    _
  %s31 = ssub.s32 1, %s29
  %s32 = scalar_select 0, %s31, %s29
  %v33 = vstv %s21
  %34 = vst [vmem:[#allocation4] sm:$0x1] %v33
  %v35 = vstv %s25
  %36 = vst [vmem:[#allocation5] sm:$0x1] %v35
  $region1: #{basic_type_classifier.1} parent=0
    #allocation6 [shape = 'u8[1024]{0}', space=vmem, size = 0x400, scoped, tag = 'output window, operand 0, single buffered']
    #allocation7 [shape = 's32[1]{0}', space=sflag, size = 0x4, scoped, tag = 'scoped memory for basic_type_classifier.1']
    %37 = vsyncpa [#allocation7], 0
    // Predicated region
    $region2: #{basic_type_classifier.1} parent=1 // pred_check
      _
    $region3: #{basic_type_classifier.1} parent=1 // pred_check_branch
      %39 = sbr.rel (0) target = $region5
    $region4: #{basic_type_classifier.1} parent=1 // pred_region
      _
    $region5: #{basic_type_classifier.1} parent=1 // pred_fallthru
      _
    // Predicated region
    $region6: #{basic_type_classifier.1} parent=1 // pred_check
      _
    $region7: #{basic_type_classifier.1} parent=1 // pred_check_branch
      %41 = sbr.rel (0) target = $region9
    $region8: #{basic_type_classifier.1} parent=1 // pred_region
      _
    $region9: #{basic_type_classifier.1} parent=1 // pred_fallthru
      _
    // Predicated region
    $region10: #{basic_type_classifier.1} parent=1 // pred_check
      _
    $region11: #{basic_type_classifier.1} parent=1 // pred_check_branch
      %43 = sbr.rel (0) target = $region13
    $region12: #{basic_type_classifier.1} parent=1 // pred_region
      _
    $region13: #{basic_type_classifier.1} parent=1 // pred_fallthru
      _
    // Predicated region
    $region14: #{basic_type_classifier.1} parent=1 // pred_check
      _
    $region15: #{basic_type_classifier.1} parent=1 // pred_check_branch
      %45 = sbr.rel (0) target = $region17
    $region16: #{basic_type_classifier.1} parent=1 // pred_region
      _
    $region17: #{basic_type_classifier.1} parent=1 // pred_fallthru
      _
    // Predicated region
    $region18: #{basic_type_classifier.1} parent=1 // pred_check
      _
    $region19: #{basic_type_classifier.1} parent=1 // pred_check_branch
      %47 = sbr.rel (0) target = $region21
    $region20: #{basic_type_classifier.1} parent=1 // pred_region
      _
    $region21: #{basic_type_classifier.1} parent=1 // pred_fallthru
      _
    // Predicated region
    $region22: #{basic_type_classifier.1} parent=1 // pred_check
      _
    $region23: #{basic_type_classifier.1} parent=1 // pred_check_branch
      %49 = sbr.rel (0) target = $region25
    $region24: #{basic_type_classifier.1} parent=1 // pred_region
      _
    $region25: #{basic_type_classifier.1} parent=1 // pred_fallthru
      _
    // Predicated region
    $region26: #{basic_type_classifier.1} parent=1 // pred_check
      _
    $region27: #{basic_type_classifier.1} parent=1 // pred_check_branch
      %51 = sbr.rel (0) target = $region29
    $region28: #{basic_type_classifier.1} parent=1 // pred_region
      _
    $region29: #{basic_type_classifier.1} parent=1 // pred_fallthru
      _
    // Predicated region
    $region30: #{basic_type_classifier.1} parent=1 // pred_check
      _
    $region31: #{basic_type_classifier.1} parent=1 // pred_check_branch
      %53 = sbr.rel (0) target = $region33
    $region32: #{basic_type_classifier.1} parent=1 // pred_region
      _
    $region33: #{basic_type_classifier.1} parent=1 // pred_fallthru
      _
    // Predicated region
    $region34: #{basic_type_classifier.1} parent=1 // pred_check
      _
    $region35: #{basic_type_classifier.1} parent=1 // pred_check_branch
      %55 = sbr.rel (0) target = $region37
    $region36: #{basic_type_classifier.1} parent=1 // pred_region
      _
    $region37: #{basic_type_classifier.1} parent=1 // pred_fallthru
      _
    // Predicated region
    $region38: #{basic_type_classifier.1} parent=1 // pred_check
      _
    $region39: #{basic_type_classifier.1} parent=1 // pred_check_branch
      %57 = sbr.rel (0) target = $region41
    $region40: #{basic_type_classifier.1} parent=1 // pred_region
      _
    $region41: #{basic_type_classifier.1} parent=1 // pred_fallthru
      _
    // Predicated region
    $region42: #{basic_type_classifier.1} parent=1 // pred_check
      _
    $region43: #{basic_type_classifier.1} parent=1 // pred_check_branch
      %59 = sbr.rel (0) target = $region45
    $region44: #{basic_type_classifier.1} parent=1 // pred_region
      _
    $region45: #{basic_type_classifier.1} parent=1 // pred_fallthru
      _
    // Predicated region
    $region46: #{basic_type_classifier.1} parent=1 // pred_check
      _
    $region47: #{basic_type_classifier.1} parent=1 // pred_check_branch
      %61 = sbr.rel (0) target = $region49
    $region48: #{basic_type_classifier.1} parent=1 // pred_region
      _
    $region49: #{basic_type_classifier.1} parent=1 // pred_fallthru
      _
    // Predicated region
    $region50: #{basic_type_classifier.1} parent=1 // pred_check
      _
    $region51: #{basic_type_classifier.1} parent=1 // pred_check_branch
      %63 = sbr.rel (0) target = $region53
    $region52: #{basic_type_classifier.1} parent=1 // pred_region
      _
    $region53: #{basic_type_classifier.1} parent=1 // pred_fallthru
      _
    // Predicated region
    $region54: #{basic_type_classifier.1} parent=1 // pred_check
      _
    $region55: #{basic_type_classifier.1} parent=1 // pred_check_branch
      %65 = sbr.rel (0) target = $region57
    $region56: #{basic_type_classifier.1} parent=1 // pred_region
      _
    $region57: #{basic_type_classifier.1} parent=1 // pred_fallthru
      _
    // Predicated region
    $region58: #{basic_type_classifier.1} parent=1 // pred_check
      _
    $region59: #{basic_type_classifier.1} parent=1 // pred_check_branch
      %67 = sbr.rel (0) target = $region61
    $region60: #{basic_type_classifier.1} parent=1 // pred_region
      _
    $region61: #{basic_type_classifier.1} parent=1 // pred_fallthru
      _
    // Predicated region
    $region62: #{basic_type_classifier.1} parent=1 // pred_check
      _
    $region63: #{basic_type_classifier.1} parent=1 // pred_check_branch
      %69 = sbr.rel (0) target = $region65
    $region64: #{basic_type_classifier.1} parent=1 // pred_region
      _
    $region65: #{basic_type_classifier.1} parent=1 // pred_fallthru
      _
    // Predicated region
    $region66: #{basic_type_classifier.1} parent=1 // pred_check
      _
    $region67: #{basic_type_classifier.1} parent=1 // pred_check_branch
      %71 = sbr.rel (0) target = $region69
    $region68: #{basic_type_classifier.1} parent=1 // pred_region
      _
    $region69: #{basic_type_classifier.1} parent=1 // pred_fallthru
      _
    // Predicated region
    $region70: #{basic_type_classifier.1} parent=1 // pred_check
      _
    $region71: #{basic_type_classifier.1} parent=1 // pred_check_branch
      %73 = sbr.rel (0) target = $region73
    $region72: #{basic_type_classifier.1} parent=1 // pred_region
      _
    $region73: #{basic_type_classifier.1} parent=1 // pred_fallthru
      _
    // Predicated region
    $region74: #{basic_type_classifier.1} parent=1 // pred_check
      _
    $region75: #{basic_type_classifier.1} parent=1 // pred_check_branch
      %75 = sbr.rel (0) target = $region77
    $region76: #{basic_type_classifier.1} parent=1 // pred_region
      _
    $region77: #{basic_type_classifier.1} parent=1 // pred_fallthru
      _
    // Predicated region
    $region78: #{basic_type_classifier.1} parent=1 // pred_check
      _
    $region79: #{basic_type_classifier.1} parent=1 // pred_check_branch
      %77 = sbr.rel (0) target = $region81
    $region80: #{basic_type_classifier.1} parent=1 // pred_region
      _
    $region81: #{basic_type_classifier.1} parent=1 // pred_fallthru
      _
    // Predicated region
    $region82: #{basic_type_classifier.1} parent=1 // pred_check
      _
    $region83: #{basic_type_classifier.1} parent=1 // pred_check_branch
      %79 = sbr.rel (0) target = $region85
    $region84: #{basic_type_classifier.1} parent=1 // pred_region
      _
    $region85: #{basic_type_classifier.1} parent=1 // pred_fallthru
      _
    // Predicated region
    $region86: #{basic_type_classifier.1} parent=1 // pred_check
      _
    $region87: #{basic_type_classifier.1} parent=1 // pred_check_branch
      %81 = sbr.rel (0) target = $region89
    $region88: #{basic_type_classifier.1} parent=1 // pred_region
      _
    $region89: #{basic_type_classifier.1} parent=1 // pred_fallthru
      _
    // Predicated region
    $region90: #{basic_type_classifier.1} parent=1 // pred_check
      _
    $region91: #{basic_type_classifier.1} parent=1 // pred_check_branch
      %83 = sbr.rel (0) target = $region93
    $region92: #{basic_type_classifier.1} parent=1 // pred_region
      _
    $region93: #{basic_type_classifier.1} parent=1 // pred_fallthru
      _
    // Predicated region
    $region94: #{basic_type_classifier.1} parent=1 // pred_check
      _
    $region95: #{basic_type_classifier.1} parent=1 // pred_check_branch
      %85 = sbr.rel (0) target = $region97
    $region96: #{basic_type_classifier.1} parent=1 // pred_region
      _
    $region97: #{basic_type_classifier.1} parent=1 // pred_fallthru
      _
    // Predicated region
    $region98: #{basic_type_classifier.1} parent=1 // pred_check
      _
    $region99: #{basic_type_classifier.1} parent=1 // pred_check_branch
      %87 = sbr.rel (0) target = $region101
    $region100: #{basic_type_classifier.1} parent=1 // pred_region
      _
    $region101: #{basic_type_classifier.1} parent=1 // pred_fallthru
      _
    // Predicated region
    $region102: #{basic_type_classifier.1} parent=1 // pred_check
      _
    $region103: #{basic_type_classifier.1} parent=1 // pred_check_branch
      %89 = sbr.rel (0) target = $region105
    $region104: #{basic_type_classifier.1} parent=1 // pred_region
      _
    $region105: #{basic_type_classifier.1} parent=1 // pred_fallthru
      _
    // Predicated region
    $region106: #{basic_type_classifier.1} parent=1 // pred_check
      _
    $region107: #{basic_type_classifier.1} parent=1 // pred_check_branch
      %91 = sbr.rel (0) target = $region109
    $region108: #{basic_type_classifier.1} parent=1 // pred_region
      _
    $region109: #{basic_type_classifier.1} parent=1 // pred_fallthru
      _
    // Predicated region
    $region110: #{basic_type_classifier.1} parent=1 // pred_check
      _
    $region111: #{basic_type_classifier.1} parent=1 // pred_check_branch
      %93 = sbr.rel (0) target = $region113
    $region112: #{basic_type_classifier.1} parent=1 // pred_region
      _
    $region113: #{basic_type_classifier.1} parent=1 // pred_fallthru
      _
    %v94 = vld [vmem:[%s0] sm:$0xff]
    %v95 = vld [vmem:[%s0 + $0x8] sm:$0xff]
    %v96 = vld [vmem:[%s0 + $0x10] sm:$0xff]
    %v97 = vld [vmem:[%s0 + $0x18] sm:$0xff]
    %v98 = vld [vmem:[%s0 + $0x20] sm:$0xff]
    %v99 = vld [vmem:[%s0 + $0x28] sm:$0xff]
    %v100 = vlaneseq
    %v101 = vand.u32 %v100, 127
    %102 = vset.pattern.permute.xlu0 0
    %103 = vperm.xlu0 %102, %v94
    %v104 = vpop.permute.xlu0 %103
    %105 = vset.pattern.permute.xlu0 0
    %106 = vperm.xlu0 %105, %v95
    %v107 = vpop.permute.xlu0 %106
    %108 = vset.pattern.permute.xlu0 0
    %109 = vperm.xlu0 %108, %v96
    %v110 = vpop.permute.xlu0 %109
    %111 = vset.pattern.permute.xlu0 0
    %112 = vperm.xlu0 %111, %v97
    %v113 = vpop.permute.xlu0 %112
    %114 = vset.pattern.permute.xlu0 0
    %115 = vperm.xlu0 %114, %v98
    %v116 = vpop.permute.xlu0 %115
    %117 = vset.pattern.permute.xlu0 0
    %118 = vperm.xlu0 %117, %v99
    %v119 = vpop.permute.xlu0 %118
    %vm120 = vcmp.eq.s32.totalorder %v104, %v101
    %vm121 = vcmp.eq.s32.totalorder %v107, %v101
    %vm122 = vcmp.eq.s32.totalorder %v110, %v101
    %vm123 = vcmp.eq.s32.totalorder %v113, %v101
    %vm124 = vcmp.eq.s32.totalorder %v116, %v101
    %vm125 = vcmp.eq.s32.totalorder %v119, %v101
    %v126 = vsel %vm120, 1, 0
    %v127 = vsel %vm121, 1, 0
    %v128 = vsel %vm122, 1, 0
    %v129 = vsel %vm123, 1, 0
    %v130 = vsel %vm124, 1, 0
    %v131 = vsel %vm125, 1, 0
    %v132 = vcvt.s32.f32 %v126
    %v133 = vcvt.s32.f32 %v127
    %v134 = vcvt.s32.f32 %v128
    %v135 = vcvt.s32.f32 %v129
    %v136 = vcvt.s32.f32 %v130
    %v137 = vcvt.s32.f32 %v131
    %v138 = vld [vmem:[%s2] sm:$0xff]
    %v139 = vld [vmem:[%s2 + $0x8] sm:$0xff]
    %v140 = vld [vmem:[%s2 + $0x10] sm:$0xff]
    %v141 = vld [vmem:[%s2 + $0x18] sm:$0xff]
    %v142 = vld [vmem:[%s2 + $0x20] sm:$0xff]
    %v143 = vld [vmem:[%s2 + $0x28] sm:$0xff]
    %v144 = vld [vmem:[%s2 + $0x30] sm:$0x3]
    %vm145 = vcmask 408576
    %v147 = vsel %vm145, %v132, 0
    %v150 = vsel %vm145, %v133, 0
    %v153 = vsel %vm145, %v134, 0
    %v156 = vsel %vm145, %v135, 0
    %v159 = vsel %vm145, %v136, 0
    %v162 = vsel %vm145, %v137, 0
    %vm164 = vcmask 1041408
    %v166 = vsel %vm164, %v144, 0
    %168 = vmatprep.subr.mxu0 0.0
    %169 = vmatpush1.msra.mxu0 0.0
    %170 = vmatprep.subr.mxu0 0.0
    %171 = vmatpush1.msra.mxu0 0.0
    %172 = vmatprep.subr.mxu0 0.0
    %173 = vmatpush1.msra.mxu0 0.0
    %174 = vmatprep.subr.mxu0 0.0
    %175 = vmatpush1.msra.mxu0 0.0
    %176 = vmatprep.subr.mxu0 0.0
    %177 = vmatpush1.msra.mxu0 0.0
    %178 = vmatprep.subr.mxu0 0.0
    %179 = vmatpush1.msra.mxu0 0.0
    %180 = vmatprep.subr.mxu0 0.0
    %181 = vmatpush1.msra.mxu0 0.0
    %182 = vmatprep.subr.mxu0 0.0
    %183 = vmatpush1.msra.mxu0 0.0
    %184 = vmatprep.subr.mxu0 0.0
    %185 = vmatpush1.msra.mxu0 0.0
    %186 = vmatprep.subr.mxu0 0.0
    %187 = vmatpush1.msra.mxu0 %v166
    %188 = vmatprep.subr.mxu0 0.0
    %189 = vmatpush1.msra.mxu0 %v143
    %190 = vmatprep.subr.mxu0 0.0
    %191 = vmatpush1.msra.mxu0 %v142
    %192 = vmatprep.subr.mxu0 0.0
    %193 = vmatpush1.msra.mxu0 %v141
    %194 = vmatprep.subr.mxu0 0.0
    %195 = vmatpush1.msra.mxu0 %v140
    %196 = vmatprep.subr.mxu0 0.0
    %197 = vmatpush1.msra.mxu0 %v139
    %198 = vmatprep.subr.mxu0 0.0
    %199 = vmatpush1.msra.mxu0 %v138
    %200 = vmatprep.subr.mxu0 0.0
    %201 = vmatpush2.msra.mxu0 0.0
    %202 = vmatprep.subr.mxu0 0.0
    %203 = vmatpush2.msra.mxu0 0.0
    %204 = vmatprep.subr.mxu0 0.0
    %205 = vmatpush2.msra.mxu0 0.0
    %206 = vmatprep.subr.mxu0 0.0
    %207 = vmatpush2.msra.mxu0 0.0
    %208 = vmatprep.subr.mxu0 0.0
    %209 = vmatpush2.msra.mxu0 0.0
    %210 = vmatprep.subr.mxu0 0.0
    %211 = vmatpush2.msra.mxu0 0.0
    %212 = vmatprep.subr.mxu0 0.0
    %213 = vmatpush2.msra.mxu0 0.0
    %214 = vmatprep.subr.mxu0 0.0
    %215 = vmatpush2.msra.mxu0 0.0
    %216 = vmatprep.subr.mxu0 0.0
    %217 = vmatpush2.msra.mxu0 0.0
    %218 = vmatprep.subr.mxu0 0.0
    %219 = vmatpush2.msra.mxu0 0.0
    %220 = vmatprep.subr.mxu0 0.0
    %221 = vmatpush2.msra.mxu0 0.0
    %222 = vmatprep.subr.mxu0 0.0
    %223 = vmatpush2.msra.mxu0 0.0
    %224 = vmatprep.subr.mxu0 0.0
    %225 = vmatpush2.msra.mxu0 0.0
    %226 = vmatprep.subr.mxu0 0.0
    %227 = vmatpush2.msra.mxu0 0.0
    %228 = vmatprep.subr.mxu0 0.0
    %229 = vmatpush2.msra.mxu0 0.0
    %230 = vmatprep.subr.mxu0 0.0
    %231 = vmatpush2.msra.mxu0 0.0
    %232 = vmatprep.mubr.f32.mxu0 0.0
    %233 = vmatmul.mubr.f32.gmra.mxu0 %v147
    %v234 = vpop.f32.mrf.mxu0
    %v235 = vadd.f32 0.0, %v234
    %v236 = vpop.f32.mrf.mxu0
    %237 = vmatprep.mubr.f32.mxu0 0.0
    %238 = vmatmul.mubr.f32.gmra.mxu0 %v150
    %v239 = vpop.f32.mrf.mxu0
    %v240 = vadd.f32 0.0, %v239
    %v241 = vpop.f32.mrf.mxu0
    %242 = vmatprep.mubr.f32.mxu0 0.0
    %243 = vmatmul.mubr.f32.gmra.mxu0 %v153
    %v244 = vpop.f32.mrf.mxu0
    %v245 = vadd.f32 0.0, %v244
    %v246 = vpop.f32.mrf.mxu0
    %247 = vmatprep.mubr.f32.mxu0 0.0
    %248 = vmatmul.mubr.f32.gmra.mxu0 %v156
    %v249 = vpop.f32.mrf.mxu0
    %v250 = vadd.f32 0.0, %v249
    %v251 = vpop.f32.mrf.mxu0
    %252 = vmatprep.mubr.f32.mxu0 0.0
    %253 = vmatmul.mubr.f32.gmra.mxu0 %v159
    %v254 = vpop.f32.mrf.mxu0
    %v255 = vadd.f32 0.0, %v254
    %v256 = vpop.f32.mrf.mxu0
    %257 = vmatprep.mubr.f32.mxu0 0.0
    %258 = vmatmul.mubr.f32.gmra.mxu0 %v162
    %v259 = vpop.f32.mrf.mxu0
    %v260 = vadd.f32 0.0, %v259
    %v261 = vpop.f32.mrf.mxu0
    %262 = vdwg.mxu0
    %v263 = vld [vmem:[%s4] sm:$0xff]
    %v264 = vld [vmem:[%s4 + $0x8] sm:$0xff]
    %v265 = vld [vmem:[%s4 + $0x10] sm:$0xff]
    %v266 = vld [vmem:[%s4 + $0x18] sm:$0xff]
    %v267 = vld [vmem:[%s5] sm:$0x3]
    %v269 = vlaneseq
    %v270 = vshrl.u32 %v269, 7
    %v271 = vsub.s32 0, %v270
    %v272 = vrot.slane %v267, %v271
    %v273 = vlaneseq
    %v274 = vshrl.u32 %v273, 7
    %v275 = vsub.s32 1, %v274
    %v276 = vrot.slane %v267, %v275
    %vm279 = vcmask 130048
    %v281 = vsel %vm279, %v235, 0
    %v284 = vsel %vm279, %v240, 0
    %v287 = vsel %vm279, %v245, 0
    %v290 = vsel %vm279, %v250, 0
    %v293 = vsel %vm279, %v255, 0
    %v296 = vsel %vm279, %v260, 0
    %298 = vmatprep.subr.mxu0 0.0
    %299 = vmatpush1.msra.mxu0 0.0
    %300 = vmatprep.subr.mxu0 0.0
    %301 = vmatpush1.msra.mxu0 0.0
    %302 = vmatprep.subr.mxu0 0.0
    %303 = vmatpush1.msra.mxu0 0.0
    %304 = vmatprep.subr.mxu0 0.0
    %305 = vmatpush1.msra.mxu0 0.0
    %306 = vmatprep.subr.mxu0 0.0
    %307 = vmatpush1.msra.mxu0 0.0
    %308 = vmatprep.subr.mxu0 0.0
    %309 = vmatpush1.msra.mxu0 0.0
    %310 = vmatprep.subr.mxu0 0.0
    %311 = vmatpush1.msra.mxu0 0.0
    %312 = vmatprep.subr.mxu0 0.0
    %313 = vmatpush1.msra.mxu0 0.0
    %314 = vmatprep.subr.mxu0 0.0
    %315 = vmatpush1.msra.mxu0 0.0
    %316 = vmatprep.subr.mxu0 0.0
    %317 = vmatpush1.msra.mxu0 0.0
    %318 = vmatprep.subr.mxu0 0.0
    %319 = vmatpush1.msra.mxu0 0.0
    %320 = vmatprep.subr.mxu0 0.0
    %321 = vmatpush1.msra.mxu0 0.0
    %322 = vmatprep.subr.mxu0 0.0
    %323 = vmatpush1.msra.mxu0 0.0
    %324 = vmatprep.subr.mxu0 0.0
    %325 = vmatpush1.msra.mxu0 0.0
    %326 = vmatprep.subr.mxu0 %v266
    %327 = vmatpush1.msra.mxu0 %v265
    %328 = vmatprep.subr.mxu0 %v264
    %329 = vmatpush1.msra.mxu0 %v263
    %330 = vmatprep.subr.mxu0 0.0
    %331 = vmatpush2.msra.mxu0 0.0
    %332 = vmatprep.subr.mxu0 0.0
    %333 = vmatpush2.msra.mxu0 0.0
    %334 = vmatprep.subr.mxu0 0.0
    %335 = vmatpush2.msra.mxu0 0.0
    %336 = vmatprep.subr.mxu0 0.0
    %337 = vmatpush2.msra.mxu0 0.0
    %338 = vmatprep.subr.mxu0 0.0
    %339 = vmatpush2.msra.mxu0 0.0
    %340 = vmatprep.subr.mxu0 0.0
    %341 = vmatpush2.msra.mxu0 0.0
    %342 = vmatprep.subr.mxu0 0.0
    %343 = vmatpush2.msra.mxu0 0.0
    %344 = vmatprep.subr.mxu0 0.0
    %345 = vmatpush2.msra.mxu0 0.0
    %346 = vmatprep.subr.mxu0 0.0
    %347 = vmatpush2.msra.mxu0 0.0
    %348 = vmatprep.subr.mxu0 0.0
    %349 = vmatpush2.msra.mxu0 0.0
    %350 = vmatprep.subr.mxu0 0.0
    %351 = vmatpush2.msra.mxu0 0.0
    %352 = vmatprep.subr.mxu0 0.0
    %353 = vmatpush2.msra.mxu0 0.0
    %354 = vmatprep.subr.mxu0 0.0
    %355 = vmatpush2.msra.mxu0 0.0
    %356 = vmatprep.subr.mxu0 0.0
    %357 = vmatpush2.msra.mxu0 0.0
    %358 = vmatprep.subr.mxu0 0.0
    %359 = vmatpush2.msra.mxu0 0.0
    %360 = vmatprep.subr.mxu0 0.0
    %361 = vmatpush2.msra.mxu0 0.0
    %362 = vmatprep.mubr.f32.mxu0 0.0
    %363 = vmatmul.mubr.f32.gmra.mxu0 %v281
    %v364 = vpop.f32.mrf.mxu0
    %v365 = vadd.f32 %v272, %v364
    %v366 = vpop.f32.mrf.mxu0
    %v367 = vadd.f32 %v276, %v366
    %368 = vmatprep.mubr.f32.mxu0 0.0
    %369 = vmatmul.mubr.f32.gmra.mxu0 %v284
    %v370 = vpop.f32.mrf.mxu0
    %v371 = vadd.f32 %v272, %v370
    %v372 = vpop.f32.mrf.mxu0
    %v373 = vadd.f32 %v276, %v372
    %374 = vmatprep.mubr.f32.mxu0 0.0
    %375 = vmatmul.mubr.f32.gmra.mxu0 %v287
    %v376 = vpop.f32.mrf.mxu0
    %v377 = vadd.f32 %v272, %v376
    %v378 = vpop.f32.mrf.mxu0
    %v379 = vadd.f32 %v276, %v378
    %380 = vmatprep.mubr.f32.mxu0 0.0
    %381 = vmatmul.mubr.f32.gmra.mxu0 %v290
    %v382 = vpop.f32.mrf.mxu0
    %v383 = vadd.f32 %v272, %v382
    %v384 = vpop.f32.mrf.mxu0
    %v385 = vadd.f32 %v276, %v384
    %386 = vmatprep.mubr.f32.mxu0 0.0
    %387 = vmatmul.mubr.f32.gmra.mxu0 %v293
    %v388 = vpop.f32.mrf.mxu0
    %v389 = vadd.f32 %v272, %v388
    %v390 = vpop.f32.mrf.mxu0
    %v391 = vadd.f32 %v276, %v390
    %392 = vmatprep.mubr.f32.mxu0 0.0
    %393 = vmatmul.mubr.f32.gmra.mxu0 %v296
    %v394 = vpop.f32.mrf.mxu0
    %v395 = vadd.f32 %v272, %v394
    %v396 = vpop.f32.mrf.mxu0
    %v397 = vadd.f32 %v276, %v396
    %398 = vdwg.mxu0
    %v399 = vld [vmem:[%s6] sm:$0xff]
    %v400 = vld [vmem:[%s6 + $0x8] sm:$0xff]
    %v401 = vld [vmem:[%s6 + $0x10] sm:$0xff]
    %v402 = vld [vmem:[%s6 + $0x18] sm:$0xff]
    %v403 = vld [vmem:[%s7] sm:$0xff]
    %v404 = vld [vmem:[%s7 + $0x8] sm:$0xff]
    %v405 = vld [vmem:[%s7 + $0x10] sm:$0xff]
    %v406 = vld [vmem:[%s7 + $0x18] sm:$0xff]
    %vm407 = vcmask 261120
    %v409 = vsel %vm407, 0.0, 0
    %411 = vmatprep.subr.mxu0 0.0
    %412 = vmatpush1.msra.mxu0 0.0
    %413 = vmatprep.subr.mxu0 0.0
    %414 = vmatpush1.msra.mxu0 0.0
    %415 = vmatprep.subr.mxu0 0.0
    %416 = vmatpush1.msra.mxu0 0.0
    %417 = vmatprep.subr.mxu0 0.0
    %418 = vmatpush1.msra.mxu0 0.0
    %419 = vmatprep.subr.mxu0 0.0
    %420 = vmatpush1.msra.mxu0 0.0
    %421 = vmatprep.subr.mxu0 0.0
    %422 = vmatpush1.msra.mxu0 0.0
    %423 = vmatprep.subr.mxu0 0.0
    %424 = vmatpush1.msra.mxu0 0.0
    %425 = vmatprep.subr.mxu0 0.0
    %426 = vmatpush1.msra.mxu0 0.0
    %427 = vmatprep.subr.mxu0 0.0
    %428 = vmatpush1.msra.mxu0 0.0
    %429 = vmatprep.subr.mxu0 0.0
    %430 = vmatpush1.msra.mxu0 0.0
    %431 = vmatprep.subr.mxu0 0.0
    %432 = vmatpush1.msra.mxu0 0.0
    %433 = vmatprep.subr.mxu0 0.0
    %434 = vmatpush1.msra.mxu0 0.0
    %435 = vmatprep.subr.mxu0 0.0
    %436 = vmatpush1.msra.mxu0 %v402
    %437 = vmatprep.subr.mxu0 0.0
    %438 = vmatpush1.msra.mxu0 %v401
    %439 = vmatprep.subr.mxu0 0.0
    %440 = vmatpush1.msra.mxu0 %v400
    %441 = vmatprep.subr.mxu0 0.0
    %442 = vmatpush1.msra.mxu0 %v399
    %443 = vmatprep.subr.mxu0 0.0
    %444 = vmatpush2.msra.mxu0 0.0
    %445 = vmatprep.subr.mxu0 0.0
    %446 = vmatpush2.msra.mxu0 0.0
    %447 = vmatprep.subr.mxu0 0.0
    %448 = vmatpush2.msra.mxu0 0.0
    %449 = vmatprep.subr.mxu0 0.0
    %450 = vmatpush2.msra.mxu0 0.0
    %451 = vmatprep.subr.mxu0 0.0
    %452 = vmatpush2.msra.mxu0 0.0
    %453 = vmatprep.subr.mxu0 0.0
    %454 = vmatpush2.msra.mxu0 0.0
    %455 = vmatprep.subr.mxu0 0.0
    %456 = vmatpush2.msra.mxu0 0.0
    %457 = vmatprep.subr.mxu0 0.0
    %458 = vmatpush2.msra.mxu0 0.0
    %459 = vmatprep.subr.mxu0 0.0
    %460 = vmatpush2.msra.mxu0 0.0
    %461 = vmatprep.subr.mxu0 0.0
    %462 = vmatpush2.msra.mxu0 0.0
    %463 = vmatprep.subr.mxu0 0.0
    %464 = vmatpush2.msra.mxu0 0.0
    %465 = vmatprep.subr.mxu0 0.0
    %466 = vmatpush2.msra.mxu0 0.0
    %467 = vmatprep.subr.mxu0 0.0
    %468 = vmatpush2.msra.mxu0 0.0
    %469 = vmatprep.subr.mxu0 0.0
    %470 = vmatpush2.msra.mxu0 0.0
    %471 = vmatprep.subr.mxu0 0.0
    %472 = vmatpush2.msra.mxu0 0.0
    %473 = vmatprep.subr.mxu0 0.0
    %474 = vmatpush2.msra.mxu0 0.0
    %475 = vmatprep.mubr.f32.mxu0 0.0
    %476 = vmatmul.mubr.f32.gmra.mxu0 %v409
    %v477 = vpop.f32.mrf.mxu0
    %v478 = vadd.f32 0.0, %v477
    %v479 = vpop.f32.mrf.mxu0
    %480 = vdwg.mxu0
    %v482 = vrot.slane %v478, 1
    %v483 = vrot.slane %v478, 2
    %v484 = vrot.slane %v478, 3
    %v485 = vrot.slane %v478, 4
    %v486 = vrot.slane %v478, 5
    %v493 = vadd.f32 %v365, %v478
    %v494 = vadd.f32 %v371, %v482
    %v495 = vadd.f32 %v377, %v483
    %v496 = vadd.f32 %v383, %v484
    %v497 = vadd.f32 %v389, %v485
    %v498 = vadd.f32 %v395, %v486
    %499 = vmatprep.subr.mxu0 0.0
    %500 = vmatpush1.msra.mxu0 0.0
    %501 = vmatprep.subr.mxu0 0.0
    %502 = vmatpush1.msra.mxu0 0.0
    %503 = vmatprep.subr.mxu0 0.0
    %504 = vmatpush1.msra.mxu0 0.0
    %505 = vmatprep.subr.mxu0 0.0
    %506 = vmatpush1.msra.mxu0 0.0
    %507 = vmatprep.subr.mxu0 0.0
    %508 = vmatpush1.msra.mxu0 0.0
    %509 = vmatprep.subr.mxu0 0.0
    %510 = vmatpush1.msra.mxu0 0.0
    %511 = vmatprep.subr.mxu0 0.0
    %512 = vmatpush1.msra.mxu0 0.0
    %513 = vmatprep.subr.mxu0 0.0
    %514 = vmatpush1.msra.mxu0 0.0
    %515 = vmatprep.subr.mxu0 0.0
    %516 = vmatpush1.msra.mxu0 0.0
    %517 = vmatprep.subr.mxu0 0.0
    %518 = vmatpush1.msra.mxu0 0.0
    %519 = vmatprep.subr.mxu0 0.0
    %520 = vmatpush1.msra.mxu0 0.0
    %521 = vmatprep.subr.mxu0 0.0
    %522 = vmatpush1.msra.mxu0 0.0
    %523 = vmatprep.subr.mxu0 0.0
    %524 = vmatpush1.msra.mxu0 %v406
    %525 = vmatprep.subr.mxu0 0.0
    %526 = vmatpush1.msra.mxu0 %v405
    %527 = vmatprep.subr.mxu0 0.0
    %528 = vmatpush1.msra.mxu0 %v404
    %529 = vmatprep.subr.mxu0 0.0
    %530 = vmatpush1.msra.mxu0 %v403
    %531 = vmatprep.subr.mxu0 0.0
    %532 = vmatpush2.msra.mxu0 0.0
    %533 = vmatprep.subr.mxu0 0.0
    %534 = vmatpush2.msra.mxu0 0.0
    %535 = vmatprep.subr.mxu0 0.0
    %536 = vmatpush2.msra.mxu0 0.0
    %537 = vmatprep.subr.mxu0 0.0
    %538 = vmatpush2.msra.mxu0 0.0
    %539 = vmatprep.subr.mxu0 0.0
    %540 = vmatpush2.msra.mxu0 0.0
    %541 = vmatprep.subr.mxu0 0.0
    %542 = vmatpush2.msra.mxu0 0.0
    %543 = vmatprep.subr.mxu0 0.0
    %544 = vmatpush2.msra.mxu0 0.0
    %545 = vmatprep.subr.mxu0 0.0
    %546 = vmatpush2.msra.mxu0 0.0
    %547 = vmatprep.subr.mxu0 0.0
    %548 = vmatpush2.msra.mxu0 0.0
    %549 = vmatprep.subr.mxu0 0.0
    %550 = vmatpush2.msra.mxu0 0.0
    %551 = vmatprep.subr.mxu0 0.0
    %552 = vmatpush2.msra.mxu0 0.0
    %553 = vmatprep.subr.mxu0 0.0
    %554 = vmatpush2.msra.mxu0 0.0
    %555 = vmatprep.subr.mxu0 0.0
    %556 = vmatpush2.msra.mxu0 0.0
    %557 = vmatprep.subr.mxu0 0.0
    %558 = vmatpush2.msra.mxu0 0.0
    %559 = vmatprep.subr.mxu0 0.0
    %560 = vmatpush2.msra.mxu0 0.0
    %561 = vmatprep.subr.mxu0 0.0
    %562 = vmatpush2.msra.mxu0 0.0
    %563 = vmatprep.mubr.f32.mxu0 0.0
    %564 = vmatmul.mubr.f32.gmra.mxu0 %v409
    %v565 = vpop.f32.mrf.mxu0
    %v566 = vadd.f32 0.0, %v565
    %v567 = vpop.f32.mrf.mxu0
    %568 = vdwg.mxu0
    %v570 = vrot.slane %v566, 1
    %v571 = vrot.slane %v566, 2
    %v572 = vrot.slane %v566, 3
    %v573 = vrot.slane %v566, 4
    %v574 = vrot.slane %v566, 5
    %v575 = vrot.slane %v566, 6
    %v582 = vadd.f32 %v367, %v570
    %v583 = vadd.f32 %v373, %v571
    %v584 = vadd.f32 %v379, %v572
    %v585 = vadd.f32 %v385, %v573
    %v586 = vadd.f32 %v391, %v574
    %v587 = vadd.f32 %v397, %v575
    %v588 = vsub.f32 0.0, %v493
    %v589 = vsub.f32 0.0, %v494
    %v590 = vsub.f32 0.0, %v495
    %v591 = vsub.f32 0.0, %v496
    %v592 = vsub.f32 0.0, %v497
    %v593 = vsub.f32 0.0, %v498
    %v594 = vmul.f32 %v588, 1.442695
    %v595 = vpow.pop %v594
    %v596 = vmul.f32 %v589, 1.442695
    %v597 = vpow.pop %v596
    %v598 = vmul.f32 %v590, 1.442695
    %v599 = vpow.pop %v598
    %v600 = vmul.f32 %v591, 1.442695
    %v601 = vpow.pop %v600
    %v602 = vmul.f32 %v592, 1.442695
    %v603 = vpow.pop %v602
    %v604 = vmul.f32 %v593, 1.442695
    %v605 = vpow.pop %v604
    %v606 = vadd.f32 %v595, 1.0
    %v607 = vadd.f32 %v597, 1.0
    %v608 = vadd.f32 %v599, 1.0
    %v609 = vadd.f32 %v601, 1.0
    %v610 = vadd.f32 %v603, 1.0
    %v611 = vadd.f32 %v605, 1.0
    %v612 = vrcp.pop %v606
    %v613 = vmul.f32 1.0, %v612
    %v614 = vrcp.pop %v607
    %v615 = vmul.f32 1.0, %v614
    %v616 = vrcp.pop %v608
    %v617 = vmul.f32 1.0, %v616
    %v618 = vrcp.pop %v609
    %v619 = vmul.f32 1.0, %v618
    %v620 = vrcp.pop %v610
    %v621 = vmul.f32 1.0, %v620
    %v622 = vrcp.pop %v611
    %v623 = vmul.f32 1.0, %v622
    %v624 = vtanh.pop %v493
    %v625 = vtanh.pop %v494
    %v626 = vtanh.pop %v495
    %v627 = vtanh.pop %v496
    %v628 = vtanh.pop %v497
    %v629 = vtanh.pop %v498
    %v630 = vmul.f32 %v613, 0.0
    %v631 = vmul.f32 %v615, 0.0
    %v632 = vmul.f32 %v617, 0.0
    %v633 = vmul.f32 %v619, 0.0
    %v634 = vmul.f32 %v621, 0.0
    %v635 = vmul.f32 %v623, 0.0
    %642 = vrot.lane.b32.xlu0 %v624, 64
    %v643 = vpop.permute.xlu0 %642
    %644 = vrot.lane.b32.xlu0 %v625, 64
    %v645 = vpop.permute.xlu0 %644
    %646 = vrot.lane.b32.xlu0 %v626, 64
    %v647 = vpop.permute.xlu0 %646
    %648 = vrot.lane.b32.xlu0 %v627, 64
    %v649 = vpop.permute.xlu0 %648
    %650 = vrot.lane.b32.xlu0 %v628, 64
    %v651 = vpop.permute.xlu0 %650
    %652 = vrot.lane.b32.xlu0 %v629, 64
    %v653 = vpop.permute.xlu0 %652
    %v660 = vmul.f32 %v613, %v643
    %v661 = vmul.f32 %v615, %v645
    %v662 = vmul.f32 %v617, %v647
    %v663 = vmul.f32 %v619, %v649
    %v664 = vmul.f32 %v621, %v651
    %v665 = vmul.f32 %v623, %v653
    %672 = vrot.lane.b32.xlu0 %v660, 32
    %v673 = vpop.permute.xlu0 %672
    %674 = vrot.lane.b32.xlu0 %v661, 32
    %v675 = vpop.permute.xlu0 %674
    %676 = vrot.lane.b32.xlu0 %v662, 32
    %v677 = vpop.permute.xlu0 %676
    %678 = vrot.lane.b32.xlu0 %v663, 32
    %v679 = vpop.permute.xlu0 %678
    %680 = vrot.lane.b32.xlu0 %v664, 32
    %v681 = vpop.permute.xlu0 %680
    %682 = vrot.lane.b32.xlu0 %v665, 32
    %v683 = vpop.permute.xlu0 %682
    %v690 = vadd.f32 %v630, %v673
    %v691 = vadd.f32 %v631, %v675
    %v692 = vadd.f32 %v632, %v677
    %v693 = vadd.f32 %v633, %v679
    %v694 = vadd.f32 %v634, %v681
    %v695 = vadd.f32 %v635, %v683
    %v696 = vtanh.pop %v690
    %v697 = vtanh.pop %v691
    %v698 = vtanh.pop %v692
    %v699 = vtanh.pop %v693
    %v700 = vtanh.pop %v694
    %v701 = vtanh.pop %v695
    %708 = vrot.lane.b32.xlu0 %v696, 64
    %v709 = vpop.permute.xlu0 %708
    %710 = vrot.lane.b32.xlu0 %v697, 64
    %v711 = vpop.permute.xlu0 %710
    %712 = vrot.lane.b32.xlu0 %v698, 64
    %v713 = vpop.permute.xlu0 %712
    %714 = vrot.lane.b32.xlu0 %v699, 64
    %v715 = vpop.permute.xlu0 %714
    %716 = vrot.lane.b32.xlu0 %v700, 64
    %v717 = vpop.permute.xlu0 %716
    %718 = vrot.lane.b32.xlu0 %v701, 64
    %v719 = vpop.permute.xlu0 %718
    %v726 = vmul.f32 %v613, %v709
    %v727 = vmul.f32 %v615, %v711
    %v728 = vmul.f32 %v617, %v713
    %v729 = vmul.f32 %v619, %v715
    %v730 = vmul.f32 %v621, %v717
    %v731 = vmul.f32 %v623, %v719
    %v732 = vsub.f32 0.0, %v582
    %v733 = vsub.f32 0.0, %v583
    %v734 = vsub.f32 0.0, %v584
    %v735 = vsub.f32 0.0, %v585
    %v736 = vsub.f32 0.0, %v586
    %v737 = vsub.f32 0.0, %v587
    %v738 = vmul.f32 %v732, 1.442695
    %v739 = vpow.pop %v738
    %v740 = vmul.f32 %v733, 1.442695
    %v741 = vpow.pop %v740
    %v742 = vmul.f32 %v734, 1.442695
    %v743 = vpow.pop %v742
    %v744 = vmul.f32 %v735, 1.442695
    %v745 = vpow.pop %v744
    %v746 = vmul.f32 %v736, 1.442695
    %v747 = vpow.pop %v746
    %v748 = vmul.f32 %v737, 1.442695
    %v749 = vpow.pop %v748
    %v750 = vadd.f32 %v739, 1.0
    %v751 = vadd.f32 %v741, 1.0
    %v752 = vadd.f32 %v743, 1.0
    %v753 = vadd.f32 %v745, 1.0
    %v754 = vadd.f32 %v747, 1.0
    %v755 = vadd.f32 %v749, 1.0
    %v756 = vrcp.pop %v750
    %v757 = vmul.f32 1.0, %v756
    %v758 = vrcp.pop %v751
    %v759 = vmul.f32 1.0, %v758
    %v760 = vrcp.pop %v752
    %v761 = vmul.f32 1.0, %v760
    %v762 = vrcp.pop %v753
    %v763 = vmul.f32 1.0, %v762
    %v764 = vrcp.pop %v754
    %v765 = vmul.f32 1.0, %v764
    %v766 = vrcp.pop %v755
    %v767 = vmul.f32 1.0, %v766
    %v768 = vtanh.pop %v582
    %v769 = vtanh.pop %v583
    %v770 = vtanh.pop %v584
    %v771 = vtanh.pop %v585
    %v772 = vtanh.pop %v586
    %v773 = vtanh.pop %v587
    %v774 = vmul.f32 %v757, 0.0
    %v775 = vmul.f32 %v759, 0.0
    %v776 = vmul.f32 %v761, 0.0
    %v777 = vmul.f32 %v763, 0.0
    %v778 = vmul.f32 %v765, 0.0
    %v779 = vmul.f32 %v767, 0.0
    %786 = vrot.lane.b32.xlu0 %v768, 64
    %v787 = vpop.permute.xlu0 %786
    %788 = vrot.lane.b32.xlu0 %v769, 64
    %v789 = vpop.permute.xlu0 %788
    %790 = vrot.lane.b32.xlu0 %v770, 64
    %v791 = vpop.permute.xlu0 %790
    %792 = vrot.lane.b32.xlu0 %v771, 64
    %v793 = vpop.permute.xlu0 %792
    %794 = vrot.lane.b32.xlu0 %v772, 64
    %v795 = vpop.permute.xlu0 %794
    %796 = vrot.lane.b32.xlu0 %v773, 64
    %v797 = vpop.permute.xlu0 %796
    %v804 = vmul.f32 %v757, %v787
    %v805 = vmul.f32 %v759, %v789
    %v806 = vmul.f32 %v761, %v791
    %v807 = vmul.f32 %v763, %v793
    %v808 = vmul.f32 %v765, %v795
    %v809 = vmul.f32 %v767, %v797
    %816 = vrot.lane.b32.xlu0 %v804, 32
    %v817 = vpop.permute.xlu0 %816
    %818 = vrot.lane.b32.xlu0 %v805, 32
    %v819 = vpop.permute.xlu0 %818
    %820 = vrot.lane.b32.xlu0 %v806, 32
    %v821 = vpop.permute.xlu0 %820
    %822 = vrot.lane.b32.xlu0 %v807, 32
    %v823 = vpop.permute.xlu0 %822
    %824 = vrot.lane.b32.xlu0 %v808, 32
    %v825 = vpop.permute.xlu0 %824
    %826 = vrot.lane.b32.xlu0 %v809, 32
    %v827 = vpop.permute.xlu0 %826
    %v834 = vadd.f32 %v774, %v817
    %v835 = vadd.f32 %v775, %v819
    %v836 = vadd.f32 %v776, %v821
    %v837 = vadd.f32 %v777, %v823
    %v838 = vadd.f32 %v778, %v825
    %v839 = vadd.f32 %v779, %v827
    %v840 = vtanh.pop %v834
    %v841 = vtanh.pop %v835
    %v842 = vtanh.pop %v836
    %v843 = vtanh.pop %v837
    %v844 = vtanh.pop %v838
    %v845 = vtanh.pop %v839
    %852 = vrot.lane.b32.xlu0 %v840, 64
    %v853 = vpop.permute.xlu0 %852
    %854 = vrot.lane.b32.xlu0 %v841, 64
    %v855 = vpop.permute.xlu0 %854
    %856 = vrot.lane.b32.xlu0 %v842, 64
    %v857 = vpop.permute.xlu0 %856
    %858 = vrot.lane.b32.xlu0 %v843, 64
    %v859 = vpop.permute.xlu0 %858
    %860 = vrot.lane.b32.xlu0 %v844, 64
    %v861 = vpop.permute.xlu0 %860
    %862 = vrot.lane.b32.xlu0 %v845, 64
    %v863 = vpop.permute.xlu0 %862
    %v870 = vmul.f32 %v757, %v853
    %v871 = vmul.f32 %v759, %v855
    %v872 = vmul.f32 %v761, %v857
    %v873 = vmul.f32 %v763, %v859
    %v874 = vmul.f32 %v765, %v861
    %v875 = vmul.f32 %v767, %v863
    %882 = vrot.lane.b32.xlu0 %v726, 32
    %v883 = vpop.permute.xlu0 %882
    %884 = vrot.lane.b32.xlu0 %v727, 32
    %v885 = vpop.permute.xlu0 %884
    %886 = vrot.lane.b32.xlu0 %v728, 32
    %v887 = vpop.permute.xlu0 %886
    %888 = vrot.lane.b32.xlu0 %v729, 32
    %v889 = vpop.permute.xlu0 %888
    %890 = vrot.lane.b32.xlu0 %v730, 32
    %v891 = vpop.permute.xlu0 %890
    %892 = vrot.lane.b32.xlu0 %v731, 32
    %v893 = vpop.permute.xlu0 %892
    %vm900 = vcmask 253952
    %901 = vst.msk [vmem:[#allocation2] sm:$0x1] %vm900, %v883
    %902 = vst.msk [vmem:[#allocation2 + $0x8] sm:$0x1] %vm900, %v885
    %903 = vst.msk [vmem:[#allocation2 + $0x10] sm:$0x1] %vm900, %v887
    %904 = vst.msk [vmem:[#allocation2 + $0x18] sm:$0x1] %vm900, %v889
    %905 = vst.msk [vmem:[#allocation2 + $0x20] sm:$0x1] %vm900, %v891
    %906 = vst.msk [vmem:[#allocation2 + $0x28] sm:$0x1] %vm900, %v893
    %913 = vrot.lane.b32.xlu0 %v870, 64
    %v914 = vpop.permute.xlu0 %913
    %915 = vrot.lane.b32.xlu0 %v871, 64
    %v916 = vpop.permute.xlu0 %915
    %917 = vrot.lane.b32.xlu0 %v872, 64
    %v918 = vpop.permute.xlu0 %917
    %919 = vrot.lane.b32.xlu0 %v873, 64
    %v920 = vpop.permute.xlu0 %919
    %921 = vrot.lane.b32.xlu0 %v874, 64
    %v922 = vpop.permute.xlu0 %921
    %923 = vrot.lane.b32.xlu0 %v875, 64
    %v924 = vpop.permute.xlu0 %923
    %vm931 = vcmask 523527
    %932 = vst.msk [vmem:[#allocation2] sm:$0x80] %vm931, %v914
    %933 = vst.msk [vmem:[#allocation2 + $0x8] sm:$0x80] %vm931, %v916
    %934 = vst.msk [vmem:[#allocation2 + $0x10] sm:$0x80] %vm931, %v918
    %935 = vst.msk [vmem:[#allocation2 + $0x18] sm:$0x80] %vm931, %v920
    %936 = vst.msk [vmem:[#allocation2 + $0x20] sm:$0x80] %vm931, %v922
    %937 = vst.msk [vmem:[#allocation2 + $0x28] sm:$0x80] %vm931, %v924
    %v938 = vrot.slane %v727, 7
    %vm939 = vcmask 1041409
    %v940 = vsel %vm939, %v938, %v726
    %v941 = vrot.slane %v728, 6
    %vm942 = vcmask 1042434
    %v943 = vsel %vm942, %v941, %v940
    %v944 = vrot.slane %v729, 5
    %vm945 = vcmask 1043459
    %v946 = vsel %vm945, %v944, %v943
    %v947 = vrot.slane %v730, 4
    %vm948 = vcmask 1044484
    %v949 = vsel %vm948, %v947, %v946
    %v950 = vrot.slane %v731, 3
    %vm951 = vcmask 1045509
    %v952 = vsel %vm951, %v950, %v949
    %953 = vrot.lane.b32.xlu0 %v952, 32
    %v954 = vpop.permute.xlu0 %953
    %v955 = vsel %vm407, %v954, 0
    %957 = vmatprep.subr.mxu0 0.0
    %958 = vmatpush1.msra.mxu0 0.0
    %959 = vmatprep.subr.mxu0 0.0
    %960 = vmatpush1.msra.mxu0 0.0
    %961 = vmatprep.subr.mxu0 0.0
    %962 = vmatpush1.msra.mxu0 0.0
    %963 = vmatprep.subr.mxu0 0.0
    %964 = vmatpush1.msra.mxu0 0.0
    %965 = vmatprep.subr.mxu0 0.0
    %966 = vmatpush1.msra.mxu0 0.0
    %967 = vmatprep.subr.mxu0 0.0
    %968 = vmatpush1.msra.mxu0 0.0
    %969 = vmatprep.subr.mxu0 0.0
    %970 = vmatpush1.msra.mxu0 0.0
    %971 = vmatprep.subr.mxu0 0.0
    %972 = vmatpush1.msra.mxu0 0.0
    %973 = vmatprep.subr.mxu0 0.0
    %974 = vmatpush1.msra.mxu0 0.0
    %975 = vmatprep.subr.mxu0 0.0
    %976 = vmatpush1.msra.mxu0 0.0
    %977 = vmatprep.subr.mxu0 0.0
    %978 = vmatpush1.msra.mxu0 0.0
    %979 = vmatprep.subr.mxu0 0.0
    %980 = vmatpush1.msra.mxu0 0.0
    %981 = vmatprep.subr.mxu0 0.0
    %982 = vmatpush1.msra.mxu0 %v402
    %983 = vmatprep.subr.mxu0 0.0
    %984 = vmatpush1.msra.mxu0 %v401
    %985 = vmatprep.subr.mxu0 0.0
    %986 = vmatpush1.msra.mxu0 %v400
    %987 = vmatprep.subr.mxu0 0.0
    %988 = vmatpush1.msra.mxu0 %v399
    %989 = vmatprep.subr.mxu0 0.0
    %990 = vmatpush2.msra.mxu0 0.0
    %991 = vmatprep.subr.mxu0 0.0
    %992 = vmatpush2.msra.mxu0 0.0
    %993 = vmatprep.subr.mxu0 0.0
    %994 = vmatpush2.msra.mxu0 0.0
    %995 = vmatprep.subr.mxu0 0.0
    %996 = vmatpush2.msra.mxu0 0.0
    %997 = vmatprep.subr.mxu0 0.0
    %998 = vmatpush2.msra.mxu0 0.0
    %999 = vmatprep.subr.mxu0 0.0
    %1000 = vmatpush2.msra.mxu0 0.0
    %1001 = vmatprep.subr.mxu0 0.0
    %1002 = vmatpush2.msra.mxu0 0.0
    %1003 = vmatprep.subr.mxu0 0.0
    %1004 = vmatpush2.msra.mxu0 0.0
    %1005 = vmatprep.subr.mxu0 0.0
    %1006 = vmatpush2.msra.mxu0 0.0
    %1007 = vmatprep.subr.mxu0 0.0
    %1008 = vmatpush2.msra.mxu0 0.0
    %1009 = vmatprep.subr.mxu0 0.0
    %1010 = vmatpush2.msra.mxu0 0.0
    %1011 = vmatprep.subr.mxu0 0.0
    %1012 = vmatpush2.msra.mxu0 0.0
    %1013 = vmatprep.subr.mxu0 0.0
    %1014 = vmatpush2.msra.mxu0 0.0
    %1015 = vmatprep.subr.mxu0 0.0
    %1016 = vmatpush2.msra.mxu0 0.0
    %1017 = vmatprep.subr.mxu0 0.0
    %1018 = vmatpush2.msra.mxu0 0.0
    %1019 = vmatprep.subr.mxu0 0.0
    %1020 = vmatpush2.msra.mxu0 0.0
    %1021 = vmatprep.mubr.f32.mxu0 0.0
    %1022 = vmatmul.mubr.f32.gmra.mxu0 %v955
    %v1023 = vpop.f32.mrf.mxu0
    %v1024 = vadd.f32 0.0, %v1023
    %v1025 = vpop.f32.mrf.mxu0
    %1026 = vdwg.mxu0
    %v1028 = vrot.slane %v1024, 7
    %v1029 = vrot.slane %v1024, 1
    %v1030 = vrot.slane %v1024, 2
    %v1031 = vrot.slane %v1024, 3
    %v1032 = vrot.slane %v1024, 4
    %v1039 = vadd.f32 %v365, %v1028
    %v1040 = vadd.f32 %v371, %v1024
    %v1041 = vadd.f32 %v377, %v1029
    %v1042 = vadd.f32 %v383, %v1030
    %v1043 = vadd.f32 %v389, %v1031
    %v1044 = vadd.f32 %v395, %v1032
    %v1045 = vrot.slane %v870, 7
    %v1046 = vrot.slane %v871, 6
    %v1047 = vsel %vm939, %v1046, %v1045
    %v1048 = vrot.slane %v872, 5
    %v1049 = vsel %vm942, %v1048, %v1047
    %v1050 = vrot.slane %v873, 4
    %v1051 = vsel %vm945, %v1050, %v1049
    %v1052 = vrot.slane %v874, 3
    %v1053 = vsel %vm948, %v1052, %v1051
    %v1054 = vrot.slane %v875, 2
    %v1055 = vsel %vm951, %v1054, %v1053
    %1056 = vrot.lane.b32.xlu0 %v1055, 32
    %v1057 = vpop.permute.xlu0 %1056
    %v1058 = vsel %vm407, %v1057, 0
    %1060 = vmatprep.subr.mxu0 0.0
    %1061 = vmatpush1.msra.mxu0 0.0
    %1062 = vmatprep.subr.mxu0 0.0
    %1063 = vmatpush1.msra.mxu0 0.0
    %1064 = vmatprep.subr.mxu0 0.0
    %1065 = vmatpush1.msra.mxu0 0.0
    %1066 = vmatprep.subr.mxu0 0.0
    %1067 = vmatpush1.msra.mxu0 0.0
    %1068 = vmatprep.subr.mxu0 0.0
    %1069 = vmatpush1.msra.mxu0 0.0
    %1070 = vmatprep.subr.mxu0 0.0
    %1071 = vmatpush1.msra.mxu0 0.0
    %1072 = vmatprep.subr.mxu0 0.0
    %1073 = vmatpush1.msra.mxu0 0.0
    %1074 = vmatprep.subr.mxu0 0.0
    %1075 = vmatpush1.msra.mxu0 0.0
    %1076 = vmatprep.subr.mxu0 0.0
    %1077 = vmatpush1.msra.mxu0 0.0
    %1078 = vmatprep.subr.mxu0 0.0
    %1079 = vmatpush1.msra.mxu0 0.0
    %1080 = vmatprep.subr.mxu0 0.0
    %1081 = vmatpush1.msra.mxu0 0.0
    %1082 = vmatprep.subr.mxu0 0.0
    %1083 = vmatpush1.msra.mxu0 0.0
    %1084 = vmatprep.subr.mxu0 0.0
    %1085 = vmatpush1.msra.mxu0 %v406
    %1086 = vmatprep.subr.mxu0 0.0
    %1087 = vmatpush1.msra.mxu0 %v405
    %1088 = vmatprep.subr.mxu0 0.0
    %1089 = vmatpush1.msra.mxu0 %v404
    %1090 = vmatprep.subr.mxu0 0.0
    %1091 = vmatpush1.msra.mxu0 %v403
    %1092 = vmatprep.subr.mxu0 0.0
    %1093 = vmatpush2.msra.mxu0 0.0
    %1094 = vmatprep.subr.mxu0 0.0
    %1095 = vmatpush2.msra.mxu0 0.0
    %1096 = vmatprep.subr.mxu0 0.0
    %1097 = vmatpush2.msra.mxu0 0.0
    %1098 = vmatprep.subr.mxu0 0.0
    %1099 = vmatpush2.msra.mxu0 0.0
    %1100 = vmatprep.subr.mxu0 0.0
    %1101 = vmatpush2.msra.mxu0 0.0
    %1102 = vmatprep.subr.mxu0 0.0
    %1103 = vmatpush2.msra.mxu0 0.0
    %1104 = vmatprep.subr.mxu0 0.0
    %1105 = vmatpush2.msra.mxu0 0.0
    %1106 = vmatprep.subr.mxu0 0.0
    %1107 = vmatpush2.msra.mxu0 0.0
    %1108 = vmatprep.subr.mxu0 0.0
    %1109 = vmatpush2.msra.mxu0 0.0
    %1110 = vmatprep.subr.mxu0 0.0
    %1111 = vmatpush2.msra.mxu0 0.0
    %1112 = vmatprep.subr.mxu0 0.0
    %1113 = vmatpush2.msra.mxu0 0.0
    %1114 = vmatprep.subr.mxu0 0.0
    %1115 = vmatpush2.msra.mxu0 0.0
    %1116 = vmatprep.subr.mxu0 0.0
    %1117 = vmatpush2.msra.mxu0 0.0
    %1118 = vmatprep.subr.mxu0 0.0
    %1119 = vmatpush2.msra.mxu0 0.0
    %1120 = vmatprep.subr.mxu0 0.0
    %1121 = vmatpush2.msra.mxu0 0.0
    %1122 = vmatprep.subr.mxu0 0.0
    %1123 = vmatpush2.msra.mxu0 0.0
    %1124 = vmatprep.mubr.f32.mxu0 0.0
    %1125 = vmatmul.mubr.f32.gmra.mxu0 %v1058
    %v1126 = vpop.f32.mrf.mxu0
    %v1127 = vadd.f32 0.0, %v1126
    %v1128 = vpop.f32.mrf.mxu0
    %1129 = vdwg.mxu0
    %v1131 = vrot.slane %v1127, 2
    %v1132 = vrot.slane %v1127, 3
    %v1133 = vrot.slane %v1127, 4
    %v1134 = vrot.slane %v1127, 5
    %v1135 = vrot.slane %v1127, 6
    %v1136 = vrot.slane %v1127, 7
    %v1143 = vadd.f32 %v367, %v1131
    %v1144 = vadd.f32 %v373, %v1132
    %v1145 = vadd.f32 %v379, %v1133
    %v1146 = vadd.f32 %v385, %v1134
    %v1147 = vadd.f32 %v391, %v1135
    %v1148 = vadd.f32 %v397, %v1136
    %v1149 = vsub.f32 0.0, %v1039
    %v1150 = vsub.f32 0.0, %v1040
    %v1151 = vsub.f32 0.0, %v1041
    %v1152 = vsub.f32 0.0, %v1042
    %v1153 = vsub.f32 0.0, %v1043
    %v1154 = vsub.f32 0.0, %v1044
    %v1155 = vmul.f32 %v1149, 1.442695
    %v1156 = vpow.pop %v1155
    %v1157 = vmul.f32 %v1150, 1.442695
    %v1158 = vpow.pop %v1157
    %v1159 = vmul.f32 %v1151, 1.442695
    %v1160 = vpow.pop %v1159
    %v1161 = vmul.f32 %v1152, 1.442695
    %v1162 = vpow.pop %v1161
    %v1163 = vmul.f32 %v1153, 1.442695
    %v1164 = vpow.pop %v1163
    %v1165 = vmul.f32 %v1154, 1.442695
    %v1166 = vpow.pop %v1165
    %v1167 = vadd.f32 %v1156, 1.0
    %v1168 = vadd.f32 %v1158, 1.0
    %v1169 = vadd.f32 %v1160, 1.0
    %v1170 = vadd.f32 %v1162, 1.0
    %v1171 = vadd.f32 %v1164, 1.0
    %v1172 = vadd.f32 %v1166, 1.0
    %v1173 = vrcp.pop %v1167
    %v1174 = vmul.f32 1.0, %v1173
    %v1175 = vrcp.pop %v1168
    %v1176 = vmul.f32 1.0, %v1175
    %v1177 = vrcp.pop %v1169
    %v1178 = vmul.f32 1.0, %v1177
    %v1179 = vrcp.pop %v1170
    %v1180 = vmul.f32 1.0, %v1179
    %v1181 = vrcp.pop %v1171
    %v1182 = vmul.f32 1.0, %v1181
    %v1183 = vrcp.pop %v1172
    %v1184 = vmul.f32 1.0, %v1183
    %v1185 = vtanh.pop %v1039
    %v1186 = vtanh.pop %v1040
    %v1187 = vtanh.pop %v1041
    %v1188 = vtanh.pop %v1042
    %v1189 = vtanh.pop %v1043
    %v1190 = vtanh.pop %v1044
    %v1197 = vrot.slane %v690, 7
    %v1198 = vrot.slane %v691, 7
    %v1199 = vrot.slane %v692, 7
    %v1200 = vrot.slane %v693, 7
    %v1201 = vrot.slane %v694, 7
    %v1202 = vrot.slane %v695, 7
    %v1209 = vmul.f32 %v1174, %v1197
    %v1210 = vmul.f32 %v1176, %v1198
    %v1211 = vmul.f32 %v1178, %v1199
    %v1212 = vmul.f32 %v1180, %v1200
    %v1213 = vmul.f32 %v1182, %v1201
    %v1214 = vmul.f32 %v1184, %v1202
    %1221 = vrot.lane.b32.xlu0 %v1185, 64
    %v1222 = vpop.permute.xlu0 %1221
    %1223 = vrot.lane.b32.xlu0 %v1186, 64
    %v1224 = vpop.permute.xlu0 %1223
    %1225 = vrot.lane.b32.xlu0 %v1187, 64
    %v1226 = vpop.permute.xlu0 %1225
    %1227 = vrot.lane.b32.xlu0 %v1188, 64
    %v1228 = vpop.permute.xlu0 %1227
    %1229 = vrot.lane.b32.xlu0 %v1189, 64
    %v1230 = vpop.permute.xlu0 %1229
    %1231 = vrot.lane.b32.xlu0 %v1190, 64
    %v1232 = vpop.permute.xlu0 %1231
    %v1239 = vmul.f32 %v1174, %v1222
    %v1240 = vmul.f32 %v1176, %v1224
    %v1241 = vmul.f32 %v1178, %v1226
    %v1242 = vmul.f32 %v1180, %v1228
    %v1243 = vmul.f32 %v1182, %v1230
    %v1244 = vmul.f32 %v1184, %v1232
    %1251 = vrot.lane.b32.xlu0 %v1239, 32
    %v1252 = vpop.permute.xlu0 %1251
    %1253 = vrot.lane.b32.xlu0 %v1240, 32
    %v1254 = vpop.permute.xlu0 %1253
    %1255 = vrot.lane.b32.xlu0 %v1241, 32
    %v1256 = vpop.permute.xlu0 %1255
    %1257 = vrot.lane.b32.xlu0 %v1242, 32
    %v1258 = vpop.permute.xlu0 %1257
    %1259 = vrot.lane.b32.xlu0 %v1243, 32
    %v1260 = vpop.permute.xlu0 %1259
    %1261 = vrot.lane.b32.xlu0 %v1244, 32
    %v1262 = vpop.permute.xlu0 %1261
    %v1269 = vadd.f32 %v1209, %v1252
    %v1270 = vadd.f32 %v1210, %v1254
    %v1271 = vadd.f32 %v1211, %v1256
    %v1272 = vadd.f32 %v1212, %v1258
    %v1273 = vadd.f32 %v1213, %v1260
    %v1274 = vadd.f32 %v1214, %v1262
    %v1275 = vtanh.pop %v1269
    %v1276 = vtanh.pop %v1270
    %v1277 = vtanh.pop %v1271
    %v1278 = vtanh.pop %v1272
    %v1279 = vtanh.pop %v1273
    %v1280 = vtanh.pop %v1274
    %1287 = vrot.lane.b32.xlu0 %v1275, 64
    %v1288 = vpop.permute.xlu0 %1287
    %1289 = vrot.lane.b32.xlu0 %v1276, 64
    %v1290 = vpop.permute.xlu0 %1289
    %1291 = vrot.lane.b32.xlu0 %v1277, 64
    %v1292 = vpop.permute.xlu0 %1291
    %1293 = vrot.lane.b32.xlu0 %v1278, 64
    %v1294 = vpop.permute.xlu0 %1293
    %1295 = vrot.lane.b32.xlu0 %v1279, 64
    %v1296 = vpop.permute.xlu0 %1295
    %1297 = vrot.lane.b32.xlu0 %v1280, 64
    %v1298 = vpop.permute.xlu0 %1297
    %v1305 = vmul.f32 %v1174, %v1288
    %v1306 = vmul.f32 %v1176, %v1290
    %v1307 = vmul.f32 %v1178, %v1292
    %v1308 = vmul.f32 %v1180, %v1294
    %v1309 = vmul.f32 %v1182, %v1296
    %v1310 = vmul.f32 %v1184, %v1298
    %v1311 = vsub.f32 0.0, %v1143
    %v1312 = vsub.f32 0.0, %v1144
    %v1313 = vsub.f32 0.0, %v1145
    %v1314 = vsub.f32 0.0, %v1146
    %v1315 = vsub.f32 0.0, %v1147
    %v1316 = vsub.f32 0.0, %v1148
    %v1317 = vmul.f32 %v1311, 1.442695
    %v1318 = vpow.pop %v1317
    %v1319 = vmul.f32 %v1312, 1.442695
    %v1320 = vpow.pop %v1319
    %v1321 = vmul.f32 %v1313, 1.442695
    %v1322 = vpow.pop %v1321
    %v1323 = vmul.f32 %v1314, 1.442695
    %v1324 = vpow.pop %v1323
    %v1325 = vmul.f32 %v1315, 1.442695
    %v1326 = vpow.pop %v1325
    %v1327 = vmul.f32 %v1316, 1.442695
    %v1328 = vpow.pop %v1327
    %v1329 = vadd.f32 %v1318, 1.0
    %v1330 = vadd.f32 %v1320, 1.0
    %v1331 = vadd.f32 %v1322, 1.0
    %v1332 = vadd.f32 %v1324, 1.0
    %v1333 = vadd.f32 %v1326, 1.0
    %v1334 = vadd.f32 %v1328, 1.0
    %v1335 = vrcp.pop %v1329
    %v1336 = vmul.f32 1.0, %v1335
    %v1337 = vrcp.pop %v1330
    %v1338 = vmul.f32 1.0, %v1337
    %v1339 = vrcp.pop %v1331
    %v1340 = vmul.f32 1.0, %v1339
    %v1341 = vrcp.pop %v1332
    %v1342 = vmul.f32 1.0, %v1341
    %v1343 = vrcp.pop %v1333
    %v1344 = vmul.f32 1.0, %v1343
    %v1345 = vrcp.pop %v1334
    %v1346 = vmul.f32 1.0, %v1345
    %v1347 = vtanh.pop %v1143
    %v1348 = vtanh.pop %v1144
    %v1349 = vtanh.pop %v1145
    %v1350 = vtanh.pop %v1146
    %v1351 = vtanh.pop %v1147
    %v1352 = vtanh.pop %v1148
    %v1359 = vrot.slane %v834, 1
    %v1360 = vrot.slane %v835, 1
    %v1361 = vrot.slane %v836, 1
    %v1362 = vrot.slane %v837, 1
    %v1363 = vrot.slane %v838, 1
    %v1364 = vrot.slane %v839, 1
    %v1371 = vmul.f32 %v1336, %v1359
    %v1372 = vmul.f32 %v1338, %v1360
    %v1373 = vmul.f32 %v1340, %v1361
    %v1374 = vmul.f32 %v1342, %v1362
    %v1375 = vmul.f32 %v1344, %v1363
    %v1376 = vmul.f32 %v1346, %v1364
    %1383 = vrot.lane.b32.xlu0 %v1347, 64
    %v1384 = vpop.permute.xlu0 %1383
    %1385 = vrot.lane.b32.xlu0 %v1348, 64
    %v1386 = vpop.permute.xlu0 %1385
    %1387 = vrot.lane.b32.xlu0 %v1349, 64
    %v1388 = vpop.permute.xlu0 %1387
    %1389 = vrot.lane.b32.xlu0 %v1350, 64
    %v1390 = vpop.permute.xlu0 %1389
    %1391 = vrot.lane.b32.xlu0 %v1351, 64
    %v1392 = vpop.permute.xlu0 %1391
    %1393 = vrot.lane.b32.xlu0 %v1352, 64
    %v1394 = vpop.permute.xlu0 %1393
    %v1401 = vmul.f32 %v1336, %v1384
    %v1402 = vmul.f32 %v1338, %v1386
    %v1403 = vmul.f32 %v1340, %v1388
    %v1404 = vmul.f32 %v1342, %v1390
    %v1405 = vmul.f32 %v1344, %v1392
    %v1406 = vmul.f32 %v1346, %v1394
    %1413 = vrot.lane.b32.xlu0 %v1401, 32
    %v1414 = vpop.permute.xlu0 %1413
    %1415 = vrot.lane.b32.xlu0 %v1402, 32
    %v1416 = vpop.permute.xlu0 %1415
    %1417 = vrot.lane.b32.xlu0 %v1403, 32
    %v1418 = vpop.permute.xlu0 %1417
    %1419 = vrot.lane.b32.xlu0 %v1404, 32
    %v1420 = vpop.permute.xlu0 %1419
    %1421 = vrot.lane.b32.xlu0 %v1405, 32
    %v1422 = vpop.permute.xlu0 %1421
    %1423 = vrot.lane.b32.xlu0 %v1406, 32
    %v1424 = vpop.permute.xlu0 %1423
    %v1431 = vadd.f32 %v1371, %v1414
    %v1432 = vadd.f32 %v1372, %v1416
    %v1433 = vadd.f32 %v1373, %v1418
    %v1434 = vadd.f32 %v1374, %v1420
    %v1435 = vadd.f32 %v1375, %v1422
    %v1436 = vadd.f32 %v1376, %v1424
    %v1437 = vtanh.pop %v1431
    %v1438 = vtanh.pop %v1432
    %v1439 = vtanh.pop %v1433
    %v1440 = vtanh.pop %v1434
    %v1441 = vtanh.pop %v1435
    %v1442 = vtanh.pop %v1436
    %1449 = vrot.lane.b32.xlu0 %v1437, 64
    %v1450 = vpop.permute.xlu0 %1449
    %1451 = vrot.lane.b32.xlu0 %v1438, 64
    %v1452 = vpop.permute.xlu0 %1451
    %1453 = vrot.lane.b32.xlu0 %v1439, 64
    %v1454 = vpop.permute.xlu0 %1453
    %1455 = vrot.lane.b32.xlu0 %v1440, 64
    %v1456 = vpop.permute.xlu0 %1455
    %1457 = vrot.lane.b32.xlu0 %v1441, 64
    %v1458 = vpop.permute.xlu0 %1457
    %1459 = vrot.lane.b32.xlu0 %v1442, 64
    %v1460 = vpop.permute.xlu0 %1459
    %v1467 = vmul.f32 %v1336, %v1450
    %v1468 = vmul.f32 %v1338, %v1452
    %v1469 = vmul.f32 %v1340, %v1454
    %v1470 = vmul.f32 %v1342, %v1456
    %v1471 = vmul.f32 %v1344, %v1458
    %v1472 = vmul.f32 %v1346, %v1460
    %1479 = vrot.lane.b32.xlu0 %v1305, 32
    %v1480 = vpop.permute.xlu0 %1479
    %1481 = vrot.lane.b32.xlu0 %v1306, 32
    %v1482 = vpop.permute.xlu0 %1481
    %1483 = vrot.lane.b32.xlu0 %v1307, 32
    %v1484 = vpop.permute.xlu0 %1483
    %1485 = vrot.lane.b32.xlu0 %v1308, 32
    %v1486 = vpop.permute.xlu0 %1485
    %1487 = vrot.lane.b32.xlu0 %v1309, 32
    %v1488 = vpop.permute.xlu0 %1487
    %1489 = vrot.lane.b32.xlu0 %v1310, 32
    %v1490 = vpop.permute.xlu0 %1489
    %vm1497 = vcmask 254977
    %1498 = vst.msk [vmem:[#allocation2] sm:$0x2] %vm1497, %v1480
    %1499 = vst.msk [vmem:[#allocation2 + $0x8] sm:$0x2] %vm1497, %v1482
    %1500 = vst.msk [vmem:[#allocation2 + $0x10] sm:$0x2] %vm1497, %v1484
    %1501 = vst.msk [vmem:[#allocation2 + $0x18] sm:$0x2] %vm1497, %v1486
    %1502 = vst.msk [vmem:[#allocation2 + $0x20] sm:$0x2] %vm1497, %v1488
    %1503 = vst.msk [vmem:[#allocation2 + $0x28] sm:$0x2] %vm1497, %v1490
    %1510 = vrot.lane.b32.xlu0 %v1467, 64
    %v1511 = vpop.permute.xlu0 %1510
    %1512 = vrot.lane.b32.xlu0 %v1468, 64
    %v1513 = vpop.permute.xlu0 %1512
    %1514 = vrot.lane.b32.xlu0 %v1469, 64
    %v1515 = vpop.permute.xlu0 %1514
    %1516 = vrot.lane.b32.xlu0 %v1470, 64
    %v1517 = vpop.permute.xlu0 %1516
    %1518 = vrot.lane.b32.xlu0 %v1471, 64
    %v1519 = vpop.permute.xlu0 %1518
    %1520 = vrot.lane.b32.xlu0 %v1472, 64
    %v1521 = vpop.permute.xlu0 %1520
    %vm1528 = vcmask 522502
    %1529 = vst.msk [vmem:[#allocation2] sm:$0x40] %vm1528, %v1511
    %1530 = vst.msk [vmem:[#allocation2 + $0x8] sm:$0x40] %vm1528, %v1513
    %1531 = vst.msk [vmem:[#allocation2 + $0x10] sm:$0x40] %vm1528, %v1515
    %1532 = vst.msk [vmem:[#allocation2 + $0x18] sm:$0x40] %vm1528, %v1517
    %1533 = vst.msk [vmem:[#allocation2 + $0x20] sm:$0x40] %vm1528, %v1519
    %1534 = vst.msk [vmem:[#allocation2 + $0x28] sm:$0x40] %vm1528, %v1521
    %v1535 = vrot.slane %v1305, 1
    %v1536 = vsel %vm939, %v1306, %v1535
    %v1537 = vrot.slane %v1307, 7
    %v1538 = vsel %vm942, %v1537, %v1536
    %v1539 = vrot.slane %v1308, 6
    %v1540 = vsel %vm945, %v1539, %v1538
    %v1541 = vrot.slane %v1309, 5
    %v1542 = vsel %vm948, %v1541, %v1540
    %v1543 = vrot.slane %v1310, 4
    %v1544 = vsel %vm951, %v1543, %v1542
    %1545 = vrot.lane.b32.xlu0 %v1544, 32
    %v1546 = vpop.permute.xlu0 %1545
    %v1547 = vsel %vm407, %v1546, 0
    %1549 = vmatprep.subr.mxu0 0.0
    %1550 = vmatpush1.msra.mxu0 0.0
    %1551 = vmatprep.subr.mxu0 0.0
    %1552 = vmatpush1.msra.mxu0 0.0
    %1553 = vmatprep.subr.mxu0 0.0
    %1554 = vmatpush1.msra.mxu0 0.0
    %1555 = vmatprep.subr.mxu0 0.0
    %1556 = vmatpush1.msra.mxu0 0.0
    %1557 = vmatprep.subr.mxu0 0.0
    %1558 = vmatpush1.msra.mxu0 0.0
    %1559 = vmatprep.subr.mxu0 0.0
    %1560 = vmatpush1.msra.mxu0 0.0
    %1561 = vmatprep.subr.mxu0 0.0
    %1562 = vmatpush1.msra.mxu0 0.0
    %1563 = vmatprep.subr.mxu0 0.0
    %1564 = vmatpush1.msra.mxu0 0.0
    %1565 = vmatprep.subr.mxu0 0.0
    %1566 = vmatpush1.msra.mxu0 0.0
    %1567 = vmatprep.subr.mxu0 0.0
    %1568 = vmatpush1.msra.mxu0 0.0
    %1569 = vmatprep.subr.mxu0 0.0
    %1570 = vmatpush1.msra.mxu0 0.0
    %1571 = vmatprep.subr.mxu0 0.0
    %1572 = vmatpush1.msra.mxu0 0.0
    %1573 = vmatprep.subr.mxu0 0.0
    %1574 = vmatpush1.msra.mxu0 %v402
    %1575 = vmatprep.subr.mxu0 0.0
    %1576 = vmatpush1.msra.mxu0 %v401
    %1577 = vmatprep.subr.mxu0 0.0
    %1578 = vmatpush1.msra.mxu0 %v400
    %1579 = vmatprep.subr.mxu0 0.0
    %1580 = vmatpush1.msra.mxu0 %v399
    %1581 = vmatprep.subr.mxu0 0.0
    %1582 = vmatpush2.msra.mxu0 0.0
    %1583 = vmatprep.subr.mxu0 0.0
    %1584 = vmatpush2.msra.mxu0 0.0
    %1585 = vmatprep.subr.mxu0 0.0
    %1586 = vmatpush2.msra.mxu0 0.0
    %1587 = vmatprep.subr.mxu0 0.0
    %1588 = vmatpush2.msra.mxu0 0.0
    %1589 = vmatprep.subr.mxu0 0.0
    %1590 = vmatpush2.msra.mxu0 0.0
    %1591 = vmatprep.subr.mxu0 0.0
    %1592 = vmatpush2.msra.mxu0 0.0
    %1593 = vmatprep.subr.mxu0 0.0
    %1594 = vmatpush2.msra.mxu0 0.0
    %1595 = vmatprep.subr.mxu0 0.0
    %1596 = vmatpush2.msra.mxu0 0.0
    %1597 = vmatprep.subr.mxu0 0.0
    %1598 = vmatpush2.msra.mxu0 0.0
    %1599 = vmatprep.subr.mxu0 0.0
    %1600 = vmatpush2.msra.mxu0 0.0
    %1601 = vmatprep.subr.mxu0 0.0
    %1602 = vmatpush2.msra.mxu0 0.0
    %1603 = vmatprep.subr.mxu0 0.0
    %1604 = vmatpush2.msra.mxu0 0.0
    %1605 = vmatprep.subr.mxu0 0.0
    %1606 = vmatpush2.msra.mxu0 0.0
    %1607 = vmatprep.subr.mxu0 0.0
    %1608 = vmatpush2.msra.mxu0 0.0
    %1609 = vmatprep.subr.mxu0 0.0
    %1610 = vmatpush2.msra.mxu0 0.0
    %1611 = vmatprep.subr.mxu0 0.0
    %1612 = vmatpush2.msra.mxu0 0.0
    %1613 = vmatprep.mubr.f32.mxu0 0.0
    %1614 = vmatmul.mubr.f32.gmra.mxu0 %v1547
    %v1615 = vpop.f32.mrf.mxu0
    %v1616 = vadd.f32 0.0, %v1615
    %v1617 = vpop.f32.mrf.mxu0
    %1618 = vdwg.mxu0
    %v1620 = vrot.slane %v1616, 6
    %v1621 = vrot.slane %v1616, 7
    %v1622 = vrot.slane %v1616, 1
    %v1623 = vrot.slane %v1616, 2
    %v1624 = vrot.slane %v1616, 3
    %v1631 = vadd.f32 %v365, %v1620
    %v1632 = vadd.f32 %v371, %v1621
    %v1633 = vadd.f32 %v377, %v1616
    %v1634 = vadd.f32 %v383, %v1622
    %v1635 = vadd.f32 %v389, %v1623
    %v1636 = vadd.f32 %v395, %v1624
    %v1637 = vrot.slane %v1467, 6
    %v1638 = vrot.slane %v1468, 5
    %v1639 = vsel %vm939, %v1638, %v1637
    %v1640 = vrot.slane %v1469, 4
    %v1641 = vsel %vm942, %v1640, %v1639
    %v1642 = vrot.slane %v1470, 3
    %v1643 = vsel %vm945, %v1642, %v1641
    %v1644 = vrot.slane %v1471, 2
    %v1645 = vsel %vm948, %v1644, %v1643
    %v1646 = vrot.slane %v1472, 1
    %v1647 = vsel %vm951, %v1646, %v1645
    %1648 = vrot.lane.b32.xlu0 %v1647, 32
    %v1649 = vpop.permute.xlu0 %1648
    %v1650 = vsel %vm407, %v1649, 0
    %1652 = vmatprep.subr.mxu0 0.0
    %1653 = vmatpush1.msra.mxu0 0.0
    %1654 = vmatprep.subr.mxu0 0.0
    %1655 = vmatpush1.msra.mxu0 0.0
    %1656 = vmatprep.subr.mxu0 0.0
    %1657 = vmatpush1.msra.mxu0 0.0
    %1658 = vmatprep.subr.mxu0 0.0
    %1659 = vmatpush1.msra.mxu0 0.0
    %1660 = vmatprep.subr.mxu0 0.0
    %1661 = vmatpush1.msra.mxu0 0.0
    %1662 = vmatprep.subr.mxu0 0.0
    %1663 = vmatpush1.msra.mxu0 0.0
    %1664 = vmatprep.subr.mxu0 0.0
    %1665 = vmatpush1.msra.mxu0 0.0
    %1666 = vmatprep.subr.mxu0 0.0
    %1667 = vmatpush1.msra.mxu0 0.0
    %1668 = vmatprep.subr.mxu0 0.0
    %1669 = vmatpush1.msra.mxu0 0.0
    %1670 = vmatprep.subr.mxu0 0.0
    %1671 = vmatpush1.msra.mxu0 0.0
    %1672 = vmatprep.subr.mxu0 0.0
    %1673 = vmatpush1.msra.mxu0 0.0
    %1674 = vmatprep.subr.mxu0 0.0
    %1675 = vmatpush1.msra.mxu0 0.0
    %1676 = vmatprep.subr.mxu0 0.0
    %1677 = vmatpush1.msra.mxu0 %v406
    %1678 = vmatprep.subr.mxu0 0.0
    %1679 = vmatpush1.msra.mxu0 %v405
    %1680 = vmatprep.subr.mxu0 0.0
    %1681 = vmatpush1.msra.mxu0 %v404
    %1682 = vmatprep.subr.mxu0 0.0
    %1683 = vmatpush1.msra.mxu0 %v403
    %1684 = vmatprep.subr.mxu0 0.0
    %1685 = vmatpush2.msra.mxu0 0.0
    %1686 = vmatprep.subr.mxu0 0.0
    %1687 = vmatpush2.msra.mxu0 0.0
    %1688 = vmatprep.subr.mxu0 0.0
    %1689 = vmatpush2.msra.mxu0 0.0
    %1690 = vmatprep.subr.mxu0 0.0
    %1691 = vmatpush2.msra.mxu0 0.0
    %1692 = vmatprep.subr.mxu0 0.0
    %1693 = vmatpush2.msra.mxu0 0.0
    %1694 = vmatprep.subr.mxu0 0.0
    %1695 = vmatpush2.msra.mxu0 0.0
    %1696 = vmatprep.subr.mxu0 0.0
    %1697 = vmatpush2.msra.mxu0 0.0
    %1698 = vmatprep.subr.mxu0 0.0
    %1699 = vmatpush2.msra.mxu0 0.0
    %1700 = vmatprep.subr.mxu0 0.0
    %1701 = vmatpush2.msra.mxu0 0.0
    %1702 = vmatprep.subr.mxu0 0.0
    %1703 = vmatpush2.msra.mxu0 0.0
    %1704 = vmatprep.subr.mxu0 0.0
    %1705 = vmatpush2.msra.mxu0 0.0
    %1706 = vmatprep.subr.mxu0 0.0
    %1707 = vmatpush2.msra.mxu0 0.0
    %1708 = vmatprep.subr.mxu0 0.0
    %1709 = vmatpush2.msra.mxu0 0.0
    %1710 = vmatprep.subr.mxu0 0.0
    %1711 = vmatpush2.msra.mxu0 0.0
    %1712 = vmatprep.subr.mxu0 0.0
    %1713 = vmatpush2.msra.mxu0 0.0
    %1714 = vmatprep.subr.mxu0 0.0
    %1715 = vmatpush2.msra.mxu0 0.0
    %1716 = vmatprep.mubr.f32.mxu0 0.0
    %1717 = vmatmul.mubr.f32.gmra.mxu0 %v1650
    %v1718 = vpop.f32.mrf.mxu0
    %v1719 = vadd.f32 0.0, %v1718
    %v1720 = vpop.f32.mrf.mxu0
    %1721 = vdwg.mxu0
    %v1723 = vrot.slane %v1719, 3
    %v1724 = vrot.slane %v1719, 4
    %v1725 = vrot.slane %v1719, 5
    %v1726 = vrot.slane %v1719, 6
    %v1727 = vrot.slane %v1719, 7
    %v1734 = vadd.f32 %v367, %v1723
    %v1735 = vadd.f32 %v373, %v1724
    %v1736 = vadd.f32 %v379, %v1725
    %v1737 = vadd.f32 %v385, %v1726
    %v1738 = vadd.f32 %v391, %v1727
    %v1739 = vadd.f32 %v397, %v1719
    %v1740 = vsub.f32 0.0, %v1631
    %v1741 = vsub.f32 0.0, %v1632
    %v1742 = vsub.f32 0.0, %v1633
    %v1743 = vsub.f32 0.0, %v1634
    %v1744 = vsub.f32 0.0, %v1635
    %v1745 = vsub.f32 0.0, %v1636
    %v1746 = vmul.f32 %v1740, 1.442695
    %v1747 = vpow.pop %v1746
    %v1748 = vmul.f32 %v1741, 1.442695
    %v1749 = vpow.pop %v1748
    %v1750 = vmul.f32 %v1742, 1.442695
    %v1751 = vpow.pop %v1750
    %v1752 = vmul.f32 %v1743, 1.442695
    %v1753 = vpow.pop %v1752
    %v1754 = vmul.f32 %v1744, 1.442695
    %v1755 = vpow.pop %v1754
    %v1756 = vmul.f32 %v1745, 1.442695
    %v1757 = vpow.pop %v1756
    %v1758 = vadd.f32 %v1747, 1.0
    %v1759 = vadd.f32 %v1749, 1.0
    %v1760 = vadd.f32 %v1751, 1.0
    %v1761 = vadd.f32 %v1753, 1.0
    %v1762 = vadd.f32 %v1755, 1.0
    %v1763 = vadd.f32 %v1757, 1.0
    %v1764 = vrcp.pop %v1758
    %v1765 = vmul.f32 1.0, %v1764
    %v1766 = vrcp.pop %v1759
    %v1767 = vmul.f32 1.0, %v1766
    %v1768 = vrcp.pop %v1760
    %v1769 = vmul.f32 1.0, %v1768
    %v1770 = vrcp.pop %v1761
    %v1771 = vmul.f32 1.0, %v1770
    %v1772 = vrcp.pop %v1762
    %v1773 = vmul.f32 1.0, %v1772
    %v1774 = vrcp.pop %v1763
    %v1775 = vmul.f32 1.0, %v1774
    %v1776 = vtanh.pop %v1631
    %v1777 = vtanh.pop %v1632
    %v1778 = vtanh.pop %v1633
    %v1779 = vtanh.pop %v1634
    %v1780 = vtanh.pop %v1635
    %v1781 = vtanh.pop %v1636
    %v1788 = vrot.slane %v1269, 7
    %v1789 = vrot.slane %v1270, 7
    %v1790 = vrot.slane %v1271, 7
    %v1791 = vrot.slane %v1272, 7
    %v1792 = vrot.slane %v1273, 7
    %v1793 = vrot.slane %v1274, 7
    %v1800 = vmul.f32 %v1765, %v1788
    %v1801 = vmul.f32 %v1767, %v1789
    %v1802 = vmul.f32 %v1769, %v1790
    %v1803 = vmul.f32 %v1771, %v1791
    %v1804 = vmul.f32 %v1773, %v1792
    %v1805 = vmul.f32 %v1775, %v1793
    %1812 = vrot.lane.b32.xlu0 %v1776, 64
    %v1813 = vpop.permute.xlu0 %1812
    %1814 = vrot.lane.b32.xlu0 %v1777, 64
    %v1815 = vpop.permute.xlu0 %1814
    %1816 = vrot.lane.b32.xlu0 %v1778, 64
    %v1817 = vpop.permute.xlu0 %1816
    %1818 = vrot.lane.b32.xlu0 %v1779, 64
    %v1819 = vpop.permute.xlu0 %1818
    %1820 = vrot.lane.b32.xlu0 %v1780, 64
    %v1821 = vpop.permute.xlu0 %1820
    %1822 = vrot.lane.b32.xlu0 %v1781, 64
    %v1823 = vpop.permute.xlu0 %1822
    %v1830 = vmul.f32 %v1765, %v1813
    %v1831 = vmul.f32 %v1767, %v1815
    %v1832 = vmul.f32 %v1769, %v1817
    %v1833 = vmul.f32 %v1771, %v1819
    %v1834 = vmul.f32 %v1773, %v1821
    %v1835 = vmul.f32 %v1775, %v1823
    %1842 = vrot.lane.b32.xlu0 %v1830, 32
    %v1843 = vpop.permute.xlu0 %1842
    %1844 = vrot.lane.b32.xlu0 %v1831, 32
    %v1845 = vpop.permute.xlu0 %1844
    %1846 = vrot.lane.b32.xlu0 %v1832, 32
    %v1847 = vpop.permute.xlu0 %1846
    %1848 = vrot.lane.b32.xlu0 %v1833, 32
    %v1849 = vpop.permute.xlu0 %1848
    %1850 = vrot.lane.b32.xlu0 %v1834, 32
    %v1851 = vpop.permute.xlu0 %1850
    %1852 = vrot.lane.b32.xlu0 %v1835, 32
    %v1853 = vpop.permute.xlu0 %1852
    %v1860 = vadd.f32 %v1800, %v1843
    %v1861 = vadd.f32 %v1801, %v1845
    %v1862 = vadd.f32 %v1802, %v1847
    %v1863 = vadd.f32 %v1803, %v1849
    %v1864 = vadd.f32 %v1804, %v1851
    %v1865 = vadd.f32 %v1805, %v1853
    %v1866 = vtanh.pop %v1860
    %v1867 = vtanh.pop %v1861
    %v1868 = vtanh.pop %v1862
    %v1869 = vtanh.pop %v1863
    %v1870 = vtanh.pop %v1864
    %v1871 = vtanh.pop %v1865
    %1878 = vrot.lane.b32.xlu0 %v1866, 64
    %v1879 = vpop.permute.xlu0 %1878
    %1880 = vrot.lane.b32.xlu0 %v1867, 64
    %v1881 = vpop.permute.xlu0 %1880
    %1882 = vrot.lane.b32.xlu0 %v1868, 64
    %v1883 = vpop.permute.xlu0 %1882
    %1884 = vrot.lane.b32.xlu0 %v1869, 64
    %v1885 = vpop.permute.xlu0 %1884
    %1886 = vrot.lane.b32.xlu0 %v1870, 64
    %v1887 = vpop.permute.xlu0 %1886
    %1888 = vrot.lane.b32.xlu0 %v1871, 64
    %v1889 = vpop.permute.xlu0 %1888
    %v1896 = vmul.f32 %v1765, %v1879
    %v1897 = vmul.f32 %v1767, %v1881
    %v1898 = vmul.f32 %v1769, %v1883
    %v1899 = vmul.f32 %v1771, %v1885
    %v1900 = vmul.f32 %v1773, %v1887
    %v1901 = vmul.f32 %v1775, %v1889
    %v1902 = vsub.f32 0.0, %v1734
    %v1903 = vsub.f32 0.0, %v1735
    %v1904 = vsub.f32 0.0, %v1736
    %v1905 = vsub.f32 0.0, %v1737
    %v1906 = vsub.f32 0.0, %v1738
    %v1907 = vsub.f32 0.0, %v1739
    %v1908 = vmul.f32 %v1902, 1.442695
    %v1909 = vpow.pop %v1908
    %v1910 = vmul.f32 %v1903, 1.442695
    %v1911 = vpow.pop %v1910
    %v1912 = vmul.f32 %v1904, 1.442695
    %v1913 = vpow.pop %v1912
    %v1914 = vmul.f32 %v1905, 1.442695
    %v1915 = vpow.pop %v1914
    %v1916 = vmul.f32 %v1906, 1.442695
    %v1917 = vpow.pop %v1916
    %v1918 = vmul.f32 %v1907, 1.442695
    %v1919 = vpow.pop %v1918
    %v1920 = vadd.f32 %v1909, 1.0
    %v1921 = vadd.f32 %v1911, 1.0
    %v1922 = vadd.f32 %v1913, 1.0
    %v1923 = vadd.f32 %v1915, 1.0
    %v1924 = vadd.f32 %v1917, 1.0
    %v1925 = vadd.f32 %v1919, 1.0
    %v1926 = vrcp.pop %v1920
    %v1927 = vmul.f32 1.0, %v1926
    %v1928 = vrcp.pop %v1921
    %v1929 = vmul.f32 1.0, %v1928
    %v1930 = vrcp.pop %v1922
    %v1931 = vmul.f32 1.0, %v1930
    %v1932 = vrcp.pop %v1923
    %v1933 = vmul.f32 1.0, %v1932
    %v1934 = vrcp.pop %v1924
    %v1935 = vmul.f32 1.0, %v1934
    %v1936 = vrcp.pop %v1925
    %v1937 = vmul.f32 1.0, %v1936
    %v1938 = vtanh.pop %v1734
    %v1939 = vtanh.pop %v1735
    %v1940 = vtanh.pop %v1736
    %v1941 = vtanh.pop %v1737
    %v1942 = vtanh.pop %v1738
    %v1943 = vtanh.pop %v1739
    %v1950 = vrot.slane %v1431, 1
    %v1951 = vrot.slane %v1432, 1
    %v1952 = vrot.slane %v1433, 1
    %v1953 = vrot.slane %v1434, 1
    %v1954 = vrot.slane %v1435, 1
    %v1955 = vrot.slane %v1436, 1
    %v1962 = vmul.f32 %v1927, %v1950
    %v1963 = vmul.f32 %v1929, %v1951
    %v1964 = vmul.f32 %v1931, %v1952
    %v1965 = vmul.f32 %v1933, %v1953
    %v1966 = vmul.f32 %v1935, %v1954
    %v1967 = vmul.f32 %v1937, %v1955
    %1974 = vrot.lane.b32.xlu0 %v1938, 64
    %v1975 = vpop.permute.xlu0 %1974
    %1976 = vrot.lane.b32.xlu0 %v1939, 64
    %v1977 = vpop.permute.xlu0 %1976
    %1978 = vrot.lane.b32.xlu0 %v1940, 64
    %v1979 = vpop.permute.xlu0 %1978
    %1980 = vrot.lane.b32.xlu0 %v1941, 64
    %v1981 = vpop.permute.xlu0 %1980
    %1982 = vrot.lane.b32.xlu0 %v1942, 64
    %v1983 = vpop.permute.xlu0 %1982
    %1984 = vrot.lane.b32.xlu0 %v1943, 64
    %v1985 = vpop.permute.xlu0 %1984
    %v1992 = vmul.f32 %v1927, %v1975
    %v1993 = vmul.f32 %v1929, %v1977
    %v1994 = vmul.f32 %v1931, %v1979
    %v1995 = vmul.f32 %v1933, %v1981
    %v1996 = vmul.f32 %v1935, %v1983
    %v1997 = vmul.f32 %v1937, %v1985
    %2004 = vrot.lane.b32.xlu0 %v1992, 32
    %v2005 = vpop.permute.xlu0 %2004
    %2006 = vrot.lane.b32.xlu0 %v1993, 32
    %v2007 = vpop.permute.xlu0 %2006
    %2008 = vrot.lane.b32.xlu0 %v1994, 32
    %v2009 = vpop.permute.xlu0 %2008
    %2010 = vrot.lane.b32.xlu0 %v1995, 32
    %v2011 = vpop.permute.xlu0 %2010
    %2012 = vrot.lane.b32.xlu0 %v1996, 32
    %v2013 = vpop.permute.xlu0 %2012
    %2014 = vrot.lane.b32.xlu0 %v1997, 32
    %v2015 = vpop.permute.xlu0 %2014
    %v2022 = vadd.f32 %v1962, %v2005
    %v2023 = vadd.f32 %v1963, %v2007
    %v2024 = vadd.f32 %v1964, %v2009
    %v2025 = vadd.f32 %v1965, %v2011
    %v2026 = vadd.f32 %v1966, %v2013
    %v2027 = vadd.f32 %v1967, %v2015
    %v2028 = vtanh.pop %v2022
    %v2029 = vtanh.pop %v2023
    %v2030 = vtanh.pop %v2024
    %v2031 = vtanh.pop %v2025
    %v2032 = vtanh.pop %v2026
    %v2033 = vtanh.pop %v2027
    %2040 = vrot.lane.b32.xlu0 %v2028, 64
    %v2041 = vpop.permute.xlu0 %2040
    %2042 = vrot.lane.b32.xlu0 %v2029, 64
    %v2043 = vpop.permute.xlu0 %2042
    %2044 = vrot.lane.b32.xlu0 %v2030, 64
    %v2045 = vpop.permute.xlu0 %2044
    %2046 = vrot.lane.b32.xlu0 %v2031, 64
    %v2047 = vpop.permute.xlu0 %2046
    %2048 = vrot.lane.b32.xlu0 %v2032, 64
    %v2049 = vpop.permute.xlu0 %2048
    %2050 = vrot.lane.b32.xlu0 %v2033, 64
    %v2051 = vpop.permute.xlu0 %2050
    %v2058 = vmul.f32 %v1927, %v2041
    %v2059 = vmul.f32 %v1929, %v2043
    %v2060 = vmul.f32 %v1931, %v2045
    %v2061 = vmul.f32 %v1933, %v2047
    %v2062 = vmul.f32 %v1935, %v2049
    %v2063 = vmul.f32 %v1937, %v2051
    %2070 = vrot.lane.b32.xlu0 %v1896, 32
    %v2071 = vpop.permute.xlu0 %2070
    %2072 = vrot.lane.b32.xlu0 %v1897, 32
    %v2073 = vpop.permute.xlu0 %2072
    %2074 = vrot.lane.b32.xlu0 %v1898, 32
    %v2075 = vpop.permute.xlu0 %2074
    %2076 = vrot.lane.b32.xlu0 %v1899, 32
    %v2077 = vpop.permute.xlu0 %2076
    %2078 = vrot.lane.b32.xlu0 %v1900, 32
    %v2079 = vpop.permute.xlu0 %2078
    %2080 = vrot.lane.b32.xlu0 %v1901, 32
    %v2081 = vpop.permute.xlu0 %2080
    %vm2088 = vcmask 256002
    %2089 = vst.msk [vmem:[#allocation2] sm:$0x4] %vm2088, %v2071
    %2090 = vst.msk [vmem:[#allocation2 + $0x8] sm:$0x4] %vm2088, %v2073
    %2091 = vst.msk [vmem:[#allocation2 + $0x10] sm:$0x4] %vm2088, %v2075
    %2092 = vst.msk [vmem:[#allocation2 + $0x18] sm:$0x4] %vm2088, %v2077
    %2093 = vst.msk [vmem:[#allocation2 + $0x20] sm:$0x4] %vm2088, %v2079
    %2094 = vst.msk [vmem:[#allocation2 + $0x28] sm:$0x4] %vm2088, %v2081
    %2101 = vrot.lane.b32.xlu0 %v2058, 64
    %v2102 = vpop.permute.xlu0 %2101
    %2103 = vrot.lane.b32.xlu0 %v2059, 64
    %v2104 = vpop.permute.xlu0 %2103
    %2105 = vrot.lane.b32.xlu0 %v2060, 64
    %v2106 = vpop.permute.xlu0 %2105
    %2107 = vrot.lane.b32.xlu0 %v2061, 64
    %v2108 = vpop.permute.xlu0 %2107
    %2109 = vrot.lane.b32.xlu0 %v2062, 64
    %v2110 = vpop.permute.xlu0 %2109
    %2111 = vrot.lane.b32.xlu0 %v2063, 64
    %v2112 = vpop.permute.xlu0 %2111
    %vm2119 = vcmask 521477
    %2120 = vst.msk [vmem:[#allocation2] sm:$0x20] %vm2119, %v2102
    %2121 = vst.msk [vmem:[#allocation2 + $0x8] sm:$0x20] %vm2119, %v2104
    %2122 = vst.msk [vmem:[#allocation2 + $0x10] sm:$0x20] %vm2119, %v2106
    %2123 = vst.msk [vmem:[#allocation2 + $0x18] sm:$0x20] %vm2119, %v2108
    %2124 = vst.msk [vmem:[#allocation2 + $0x20] sm:$0x20] %vm2119, %v2110
    %2125 = vst.msk [vmem:[#allocation2 + $0x28] sm:$0x20] %vm2119, %v2112
    %v2126 = vrot.slane %v1896, 2
    %v2127 = vrot.slane %v1897, 1
    %v2128 = vsel %vm939, %v2127, %v2126
    %v2129 = vsel %vm942, %v1898, %v2128
    %v2130 = vrot.slane %v1899, 7
    %v2131 = vsel %vm945, %v2130, %v2129
    %v2132 = vrot.slane %v1900, 6
    %v2133 = vsel %vm948, %v2132, %v2131
    %v2134 = vrot.slane %v1901, 5
    %v2135 = vsel %vm951, %v2134, %v2133
    %2136 = vrot.lane.b32.xlu0 %v2135, 32
    %v2137 = vpop.permute.xlu0 %2136
    %v2138 = vsel %vm407, %v2137, 0
    %2140 = vmatprep.subr.mxu0 0.0
    %2141 = vmatpush1.msra.mxu0 0.0
    %2142 = vmatprep.subr.mxu0 0.0
    %2143 = vmatpush1.msra.mxu0 0.0
    %2144 = vmatprep.subr.mxu0 0.0
    %2145 = vmatpush1.msra.mxu0 0.0
    %2146 = vmatprep.subr.mxu0 0.0
    %2147 = vmatpush1.msra.mxu0 0.0
    %2148 = vmatprep.subr.mxu0 0.0
    %2149 = vmatpush1.msra.mxu0 0.0
    %2150 = vmatprep.subr.mxu0 0.0
    %2151 = vmatpush1.msra.mxu0 0.0
    %2152 = vmatprep.subr.mxu0 0.0
    %2153 = vmatpush1.msra.mxu0 0.0
    %2154 = vmatprep.subr.mxu0 0.0
    %2155 = vmatpush1.msra.mxu0 0.0
    %2156 = vmatprep.subr.mxu0 0.0
    %2157 = vmatpush1.msra.mxu0 0.0
    %2158 = vmatprep.subr.mxu0 0.0
    %2159 = vmatpush1.msra.mxu0 0.0
    %2160 = vmatprep.subr.mxu0 0.0
    %2161 = vmatpush1.msra.mxu0 0.0
    %2162 = vmatprep.subr.mxu0 0.0
    %2163 = vmatpush1.msra.mxu0 0.0
    %2164 = vmatprep.subr.mxu0 0.0
    %2165 = vmatpush1.msra.mxu0 %v402
    %2166 = vmatprep.subr.mxu0 0.0
    %2167 = vmatpush1.msra.mxu0 %v401
    %2168 = vmatprep.subr.mxu0 0.0
    %2169 = vmatpush1.msra.mxu0 %v400
    %2170 = vmatprep.subr.mxu0 0.0
    %2171 = vmatpush1.msra.mxu0 %v399
    %2172 = vmatprep.subr.mxu0 0.0
    %2173 = vmatpush2.msra.mxu0 0.0
    %2174 = vmatprep.subr.mxu0 0.0
    %2175 = vmatpush2.msra.mxu0 0.0
    %2176 = vmatprep.subr.mxu0 0.0
    %2177 = vmatpush2.msra.mxu0 0.0
    %2178 = vmatprep.subr.mxu0 0.0
    %2179 = vmatpush2.msra.mxu0 0.0
    %2180 = vmatprep.subr.mxu0 0.0
    %2181 = vmatpush2.msra.mxu0 0.0
    %2182 = vmatprep.subr.mxu0 0.0
    %2183 = vmatpush2.msra.mxu0 0.0
    %2184 = vmatprep.subr.mxu0 0.0
    %2185 = vmatpush2.msra.mxu0 0.0
    %2186 = vmatprep.subr.mxu0 0.0
    %2187 = vmatpush2.msra.mxu0 0.0
    %2188 = vmatprep.subr.mxu0 0.0
    %2189 = vmatpush2.msra.mxu0 0.0
    %2190 = vmatprep.subr.mxu0 0.0
    %2191 = vmatpush2.msra.mxu0 0.0
    %2192 = vmatprep.subr.mxu0 0.0
    %2193 = vmatpush2.msra.mxu0 0.0
    %2194 = vmatprep.subr.mxu0 0.0
    %2195 = vmatpush2.msra.mxu0 0.0
    %2196 = vmatprep.subr.mxu0 0.0
    %2197 = vmatpush2.msra.mxu0 0.0
    %2198 = vmatprep.subr.mxu0 0.0
    %2199 = vmatpush2.msra.mxu0 0.0
    %2200 = vmatprep.subr.mxu0 0.0
    %2201 = vmatpush2.msra.mxu0 0.0
    %2202 = vmatprep.subr.mxu0 0.0
    %2203 = vmatpush2.msra.mxu0 0.0
    %2204 = vmatprep.mubr.f32.mxu0 0.0
    %2205 = vmatmul.mubr.f32.gmra.mxu0 %v2138
    %v2206 = vpop.f32.mrf.mxu0
    %v2207 = vadd.f32 0.0, %v2206
    %v2208 = vpop.f32.mrf.mxu0
    %2209 = vdwg.mxu0
    %v2211 = vrot.slane %v2207, 5
    %v2212 = vrot.slane %v2207, 6
    %v2213 = vrot.slane %v2207, 7
    %v2214 = vrot.slane %v2207, 1
    %v2215 = vrot.slane %v2207, 2
    %v2222 = vadd.f32 %v365, %v2211
    %v2223 = vadd.f32 %v371, %v2212
    %v2224 = vadd.f32 %v377, %v2213
    %v2225 = vadd.f32 %v383, %v2207
    %v2226 = vadd.f32 %v389, %v2214
    %v2227 = vadd.f32 %v395, %v2215
    %v2228 = vrot.slane %v2058, 5
    %v2229 = vrot.slane %v2059, 4
    %v2230 = vsel %vm939, %v2229, %v2228
    %v2231 = vrot.slane %v2060, 3
    %v2232 = vsel %vm942, %v2231, %v2230
    %v2233 = vrot.slane %v2061, 2
    %v2234 = vsel %vm945, %v2233, %v2232
    %v2235 = vrot.slane %v2062, 1
    %v2236 = vsel %vm948, %v2235, %v2234
    %v2237 = vsel %vm951, %v2063, %v2236
    %2238 = vrot.lane.b32.xlu0 %v2237, 32
    %v2239 = vpop.permute.xlu0 %2238
    %v2240 = vsel %vm407, %v2239, 0
    %2242 = vmatprep.subr.mxu0 0.0
    %2243 = vmatpush1.msra.mxu0 0.0
    %2244 = vmatprep.subr.mxu0 0.0
    %2245 = vmatpush1.msra.mxu0 0.0
    %2246 = vmatprep.subr.mxu0 0.0
    %2247 = vmatpush1.msra.mxu0 0.0
    %2248 = vmatprep.subr.mxu0 0.0
    %2249 = vmatpush1.msra.mxu0 0.0
    %2250 = vmatprep.subr.mxu0 0.0
    %2251 = vmatpush1.msra.mxu0 0.0
    %2252 = vmatprep.subr.mxu0 0.0
    %2253 = vmatpush1.msra.mxu0 0.0
    %2254 = vmatprep.subr.mxu0 0.0
    %2255 = vmatpush1.msra.mxu0 0.0
    %2256 = vmatprep.subr.mxu0 0.0
    %2257 = vmatpush1.msra.mxu0 0.0
    %2258 = vmatprep.subr.mxu0 0.0
    %2259 = vmatpush1.msra.mxu0 0.0
    %2260 = vmatprep.subr.mxu0 0.0
    %2261 = vmatpush1.msra.mxu0 0.0
    %2262 = vmatprep.subr.mxu0 0.0
    %2263 = vmatpush1.msra.mxu0 0.0
    %2264 = vmatprep.subr.mxu0 0.0
    %2265 = vmatpush1.msra.mxu0 0.0
    %2266 = vmatprep.subr.mxu0 0.0
    %2267 = vmatpush1.msra.mxu0 %v406
    %2268 = vmatprep.subr.mxu0 0.0
    %2269 = vmatpush1.msra.mxu0 %v405
    %2270 = vmatprep.subr.mxu0 0.0
    %2271 = vmatpush1.msra.mxu0 %v404
    %2272 = vmatprep.subr.mxu0 0.0
    %2273 = vmatpush1.msra.mxu0 %v403
    %2274 = vmatprep.subr.mxu0 0.0
    %2275 = vmatpush2.msra.mxu0 0.0
    %2276 = vmatprep.subr.mxu0 0.0
    %2277 = vmatpush2.msra.mxu0 0.0
    %2278 = vmatprep.subr.mxu0 0.0
    %2279 = vmatpush2.msra.mxu0 0.0
    %2280 = vmatprep.subr.mxu0 0.0
    %2281 = vmatpush2.msra.mxu0 0.0
    %2282 = vmatprep.subr.mxu0 0.0
    %2283 = vmatpush2.msra.mxu0 0.0
    %2284 = vmatprep.subr.mxu0 0.0
    %2285 = vmatpush2.msra.mxu0 0.0
    %2286 = vmatprep.subr.mxu0 0.0
    %2287 = vmatpush2.msra.mxu0 0.0
    %2288 = vmatprep.subr.mxu0 0.0
    %2289 = vmatpush2.msra.mxu0 0.0
    %2290 = vmatprep.subr.mxu0 0.0
    %2291 = vmatpush2.msra.mxu0 0.0
    %2292 = vmatprep.subr.mxu0 0.0
    %2293 = vmatpush2.msra.mxu0 0.0
    %2294 = vmatprep.subr.mxu0 0.0
    %2295 = vmatpush2.msra.mxu0 0.0
    %2296 = vmatprep.subr.mxu0 0.0
    %2297 = vmatpush2.msra.mxu0 0.0
    %2298 = vmatprep.subr.mxu0 0.0
    %2299 = vmatpush2.msra.mxu0 0.0
    %2300 = vmatprep.subr.mxu0 0.0
    %2301 = vmatpush2.msra.mxu0 0.0
    %2302 = vmatprep.subr.mxu0 0.0
    %2303 = vmatpush2.msra.mxu0 0.0
    %2304 = vmatprep.subr.mxu0 0.0
    %2305 = vmatpush2.msra.mxu0 0.0
    %2306 = vmatprep.mubr.f32.mxu0 0.0
    %2307 = vmatmul.mubr.f32.gmra.mxu0 %v2240
    %v2308 = vpop.f32.mrf.mxu0
    %v2309 = vadd.f32 0.0, %v2308
    %v2310 = vpop.f32.mrf.mxu0
    %2311 = vdwg.mxu0
    %v2313 = vrot.slane %v2309, 4
    %v2314 = vrot.slane %v2309, 5
    %v2315 = vrot.slane %v2309, 6
    %v2316 = vrot.slane %v2309, 7
    %v2317 = vrot.slane %v2309, 1
    %v2324 = vadd.f32 %v367, %v2313
    %v2325 = vadd.f32 %v373, %v2314
    %v2326 = vadd.f32 %v379, %v2315
    %v2327 = vadd.f32 %v385, %v2316
    %v2328 = vadd.f32 %v391, %v2309
    %v2329 = vadd.f32 %v397, %v2317
    %v2330 = vsub.f32 0.0, %v2222
    %v2331 = vsub.f32 0.0, %v2223
    %v2332 = vsub.f32 0.0, %v2224
    %v2333 = vsub.f32 0.0, %v2225
    %v2334 = vsub.f32 0.0, %v2226
    %v2335 = vsub.f32 0.0, %v2227
    %v2336 = vmul.f32 %v2330, 1.442695
    %v2337 = vpow.pop %v2336
    %v2338 = vmul.f32 %v2331, 1.442695
    %v2339 = vpow.pop %v2338
    %v2340 = vmul.f32 %v2332, 1.442695
    %v2341 = vpow.pop %v2340
    %v2342 = vmul.f32 %v2333, 1.442695
    %v2343 = vpow.pop %v2342
    %v2344 = vmul.f32 %v2334, 1.442695
    %v2345 = vpow.pop %v2344
    %v2346 = vmul.f32 %v2335, 1.442695
    %v2347 = vpow.pop %v2346
    %v2348 = vadd.f32 %v2337, 1.0
    %v2349 = vadd.f32 %v2339, 1.0
    %v2350 = vadd.f32 %v2341, 1.0
    %v2351 = vadd.f32 %v2343, 1.0
    %v2352 = vadd.f32 %v2345, 1.0
    %v2353 = vadd.f32 %v2347, 1.0
    %v2354 = vrcp.pop %v2348
    %v2355 = vmul.f32 1.0, %v2354
    %v2356 = vrcp.pop %v2349
    %v2357 = vmul.f32 1.0, %v2356
    %v2358 = vrcp.pop %v2350
    %v2359 = vmul.f32 1.0, %v2358
    %v2360 = vrcp.pop %v2351
    %v2361 = vmul.f32 1.0, %v2360
    %v2362 = vrcp.pop %v2352
    %v2363 = vmul.f32 1.0, %v2362
    %v2364 = vrcp.pop %v2353
    %v2365 = vmul.f32 1.0, %v2364
    %v2366 = vtanh.pop %v2222
    %v2367 = vtanh.pop %v2223
    %v2368 = vtanh.pop %v2224
    %v2369 = vtanh.pop %v2225
    %v2370 = vtanh.pop %v2226
    %v2371 = vtanh.pop %v2227
    %v2378 = vrot.slane %v1860, 7
    %v2379 = vrot.slane %v1861, 7
    %v2380 = vrot.slane %v1862, 7
    %v2381 = vrot.slane %v1863, 7
    %v2382 = vrot.slane %v1864, 7
    %v2383 = vrot.slane %v1865, 7
    %v2390 = vmul.f32 %v2355, %v2378
    %v2391 = vmul.f32 %v2357, %v2379
    %v2392 = vmul.f32 %v2359, %v2380
    %v2393 = vmul.f32 %v2361, %v2381
    %v2394 = vmul.f32 %v2363, %v2382
    %v2395 = vmul.f32 %v2365, %v2383
    %2402 = vrot.lane.b32.xlu0 %v2366, 64
    %v2403 = vpop.permute.xlu0 %2402
    %2404 = vrot.lane.b32.xlu0 %v2367, 64
    %v2405 = vpop.permute.xlu0 %2404
    %2406 = vrot.lane.b32.xlu0 %v2368, 64
    %v2407 = vpop.permute.xlu0 %2406
    %2408 = vrot.lane.b32.xlu0 %v2369, 64
    %v2409 = vpop.permute.xlu0 %2408
    %2410 = vrot.lane.b32.xlu0 %v2370, 64
    %v2411 = vpop.permute.xlu0 %2410
    %2412 = vrot.lane.b32.xlu0 %v2371, 64
    %v2413 = vpop.permute.xlu0 %2412
    %v2420 = vmul.f32 %v2355, %v2403
    %v2421 = vmul.f32 %v2357, %v2405
    %v2422 = vmul.f32 %v2359, %v2407
    %v2423 = vmul.f32 %v2361, %v2409
    %v2424 = vmul.f32 %v2363, %v2411
    %v2425 = vmul.f32 %v2365, %v2413
    %2432 = vrot.lane.b32.xlu0 %v2420, 32
    %v2433 = vpop.permute.xlu0 %2432
    %2434 = vrot.lane.b32.xlu0 %v2421, 32
    %v2435 = vpop.permute.xlu0 %2434
    %2436 = vrot.lane.b32.xlu0 %v2422, 32
    %v2437 = vpop.permute.xlu0 %2436
    %2438 = vrot.lane.b32.xlu0 %v2423, 32
    %v2439 = vpop.permute.xlu0 %2438
    %2440 = vrot.lane.b32.xlu0 %v2424, 32
    %v2441 = vpop.permute.xlu0 %2440
    %2442 = vrot.lane.b32.xlu0 %v2425, 32
    %v2443 = vpop.permute.xlu0 %2442
    %v2450 = vadd.f32 %v2390, %v2433
    %v2451 = vadd.f32 %v2391, %v2435
    %v2452 = vadd.f32 %v2392, %v2437
    %v2453 = vadd.f32 %v2393, %v2439
    %v2454 = vadd.f32 %v2394, %v2441
    %v2455 = vadd.f32 %v2395, %v2443
    %v2456 = vtanh.pop %v2450
    %v2457 = vtanh.pop %v2451
    %v2458 = vtanh.pop %v2452
    %v2459 = vtanh.pop %v2453
    %v2460 = vtanh.pop %v2454
    %v2461 = vtanh.pop %v2455
    %2468 = vrot.lane.b32.xlu0 %v2456, 64
    %v2469 = vpop.permute.xlu0 %2468
    %2470 = vrot.lane.b32.xlu0 %v2457, 64
    %v2471 = vpop.permute.xlu0 %2470
    %2472 = vrot.lane.b32.xlu0 %v2458, 64
    %v2473 = vpop.permute.xlu0 %2472
    %2474 = vrot.lane.b32.xlu0 %v2459, 64
    %v2475 = vpop.permute.xlu0 %2474
    %2476 = vrot.lane.b32.xlu0 %v2460, 64
    %v2477 = vpop.permute.xlu0 %2476
    %2478 = vrot.lane.b32.xlu0 %v2461, 64
    %v2479 = vpop.permute.xlu0 %2478
    %v2486 = vmul.f32 %v2355, %v2469
    %v2487 = vmul.f32 %v2357, %v2471
    %v2488 = vmul.f32 %v2359, %v2473
    %v2489 = vmul.f32 %v2361, %v2475
    %v2490 = vmul.f32 %v2363, %v2477
    %v2491 = vmul.f32 %v2365, %v2479
    %v2492 = vsub.f32 0.0, %v2324
    %v2493 = vsub.f32 0.0, %v2325
    %v2494 = vsub.f32 0.0, %v2326
    %v2495 = vsub.f32 0.0, %v2327
    %v2496 = vsub.f32 0.0, %v2328
    %v2497 = vsub.f32 0.0, %v2329
    %v2498 = vmul.f32 %v2492, 1.442695
    %v2499 = vpow.pop %v2498
    %v2500 = vmul.f32 %v2493, 1.442695
    %v2501 = vpow.pop %v2500
    %v2502 = vmul.f32 %v2494, 1.442695
    %v2503 = vpow.pop %v2502
    %v2504 = vmul.f32 %v2495, 1.442695
    %v2505 = vpow.pop %v2504
    %v2506 = vmul.f32 %v2496, 1.442695
    %v2507 = vpow.pop %v2506
    %v2508 = vmul.f32 %v2497, 1.442695
    %v2509 = vpow.pop %v2508
    %v2510 = vadd.f32 %v2499, 1.0
    %v2511 = vadd.f32 %v2501, 1.0
    %v2512 = vadd.f32 %v2503, 1.0
    %v2513 = vadd.f32 %v2505, 1.0
    %v2514 = vadd.f32 %v2507, 1.0
    %v2515 = vadd.f32 %v2509, 1.0
    %v2516 = vrcp.pop %v2510
    %v2517 = vmul.f32 1.0, %v2516
    %v2518 = vrcp.pop %v2511
    %v2519 = vmul.f32 1.0, %v2518
    %v2520 = vrcp.pop %v2512
    %v2521 = vmul.f32 1.0, %v2520
    %v2522 = vrcp.pop %v2513
    %v2523 = vmul.f32 1.0, %v2522
    %v2524 = vrcp.pop %v2514
    %v2525 = vmul.f32 1.0, %v2524
    %v2526 = vrcp.pop %v2515
    %v2527 = vmul.f32 1.0, %v2526
    %v2528 = vtanh.pop %v2324
    %v2529 = vtanh.pop %v2325
    %v2530 = vtanh.pop %v2326
    %v2531 = vtanh.pop %v2327
    %v2532 = vtanh.pop %v2328
    %v2533 = vtanh.pop %v2329
    %v2540 = vrot.slane %v2022, 1
    %v2541 = vrot.slane %v2023, 1
    %v2542 = vrot.slane %v2024, 1
    %v2543 = vrot.slane %v2025, 1
    %v2544 = vrot.slane %v2026, 1
    %v2545 = vrot.slane %v2027, 1
    %v2552 = vmul.f32 %v2517, %v2540
    %v2553 = vmul.f32 %v2519, %v2541
    %v2554 = vmul.f32 %v2521, %v2542
    %v2555 = vmul.f32 %v2523, %v2543
    %v2556 = vmul.f32 %v2525, %v2544
    %v2557 = vmul.f32 %v2527, %v2545
    %2564 = vrot.lane.b32.xlu0 %v2528, 64
    %v2565 = vpop.permute.xlu0 %2564
    %2566 = vrot.lane.b32.xlu0 %v2529, 64
    %v2567 = vpop.permute.xlu0 %2566
    %2568 = vrot.lane.b32.xlu0 %v2530, 64
    %v2569 = vpop.permute.xlu0 %2568
    %2570 = vrot.lane.b32.xlu0 %v2531, 64
    %v2571 = vpop.permute.xlu0 %2570
    %2572 = vrot.lane.b32.xlu0 %v2532, 64
    %v2573 = vpop.permute.xlu0 %2572
    %2574 = vrot.lane.b32.xlu0 %v2533, 64
    %v2575 = vpop.permute.xlu0 %2574
    %v2582 = vmul.f32 %v2517, %v2565
    %v2583 = vmul.f32 %v2519, %v2567
    %v2584 = vmul.f32 %v2521, %v2569
    %v2585 = vmul.f32 %v2523, %v2571
    %v2586 = vmul.f32 %v2525, %v2573
    %v2587 = vmul.f32 %v2527, %v2575
    %2594 = vrot.lane.b32.xlu0 %v2582, 32
    %v2595 = vpop.permute.xlu0 %2594
    %2596 = vrot.lane.b32.xlu0 %v2583, 32
    %v2597 = vpop.permute.xlu0 %2596
    %2598 = vrot.lane.b32.xlu0 %v2584, 32
    %v2599 = vpop.permute.xlu0 %2598
    %2600 = vrot.lane.b32.xlu0 %v2585, 32
    %v2601 = vpop.permute.xlu0 %2600
    %2602 = vrot.lane.b32.xlu0 %v2586, 32
    %v2603 = vpop.permute.xlu0 %2602
    %2604 = vrot.lane.b32.xlu0 %v2587, 32
    %v2605 = vpop.permute.xlu0 %2604
    %v2612 = vadd.f32 %v2552, %v2595
    %v2613 = vadd.f32 %v2553, %v2597
    %v2614 = vadd.f32 %v2554, %v2599
    %v2615 = vadd.f32 %v2555, %v2601
    %v2616 = vadd.f32 %v2556, %v2603
    %v2617 = vadd.f32 %v2557, %v2605
    %v2618 = vtanh.pop %v2612
    %v2619 = vtanh.pop %v2613
    %v2620 = vtanh.pop %v2614
    %v2621 = vtanh.pop %v2615
    %v2622 = vtanh.pop %v2616
    %v2623 = vtanh.pop %v2617
    %2630 = vrot.lane.b32.xlu0 %v2618, 64
    %v2631 = vpop.permute.xlu0 %2630
    %2632 = vrot.lane.b32.xlu0 %v2619, 64
    %v2633 = vpop.permute.xlu0 %2632
    %2634 = vrot.lane.b32.xlu0 %v2620, 64
    %v2635 = vpop.permute.xlu0 %2634
    %2636 = vrot.lane.b32.xlu0 %v2621, 64
    %v2637 = vpop.permute.xlu0 %2636
    %2638 = vrot.lane.b32.xlu0 %v2622, 64
    %v2639 = vpop.permute.xlu0 %2638
    %2640 = vrot.lane.b32.xlu0 %v2623, 64
    %v2641 = vpop.permute.xlu0 %2640
    %v2648 = vmul.f32 %v2517, %v2631
    %v2649 = vmul.f32 %v2519, %v2633
    %v2650 = vmul.f32 %v2521, %v2635
    %v2651 = vmul.f32 %v2523, %v2637
    %v2652 = vmul.f32 %v2525, %v2639
    %v2653 = vmul.f32 %v2527, %v2641
    %2660 = vrot.lane.b32.xlu0 %v2486, 32
    %v2661 = vpop.permute.xlu0 %2660
    %2662 = vrot.lane.b32.xlu0 %v2487, 32
    %v2663 = vpop.permute.xlu0 %2662
    %2664 = vrot.lane.b32.xlu0 %v2488, 32
    %v2665 = vpop.permute.xlu0 %2664
    %2666 = vrot.lane.b32.xlu0 %v2489, 32
    %v2667 = vpop.permute.xlu0 %2666
    %2668 = vrot.lane.b32.xlu0 %v2490, 32
    %v2669 = vpop.permute.xlu0 %2668
    %2670 = vrot.lane.b32.xlu0 %v2491, 32
    %v2671 = vpop.permute.xlu0 %2670
    %vm2678 = vcmask 257027
    %2679 = vst.msk [vmem:[#allocation2] sm:$0x8] %vm2678, %v2661
    %2680 = vst.msk [vmem:[#allocation2 + $0x8] sm:$0x8] %vm2678, %v2663
    %2681 = vst.msk [vmem:[#allocation2 + $0x10] sm:$0x8] %vm2678, %v2665
    %2682 = vst.msk [vmem:[#allocation2 + $0x18] sm:$0x8] %vm2678, %v2667
    %2683 = vst.msk [vmem:[#allocation2 + $0x20] sm:$0x8] %vm2678, %v2669
    %2684 = vst.msk [vmem:[#allocation2 + $0x28] sm:$0x8] %vm2678, %v2671
    %2691 = vrot.lane.b32.xlu0 %v2648, 64
    %v2692 = vpop.permute.xlu0 %2691
    %2693 = vrot.lane.b32.xlu0 %v2649, 64
    %v2694 = vpop.permute.xlu0 %2693
    %2695 = vrot.lane.b32.xlu0 %v2650, 64
    %v2696 = vpop.permute.xlu0 %2695
    %2697 = vrot.lane.b32.xlu0 %v2651, 64
    %v2698 = vpop.permute.xlu0 %2697
    %2699 = vrot.lane.b32.xlu0 %v2652, 64
    %v2700 = vpop.permute.xlu0 %2699
    %2701 = vrot.lane.b32.xlu0 %v2653, 64
    %v2702 = vpop.permute.xlu0 %2701
    %vm2709 = vcmask 520452
    %2710 = vst.msk [vmem:[#allocation2] sm:$0x10] %vm2709, %v2692
    %2711 = vst.msk [vmem:[#allocation2 + $0x8] sm:$0x10] %vm2709, %v2694
    %2712 = vst.msk [vmem:[#allocation2 + $0x10] sm:$0x10] %vm2709, %v2696
    %2713 = vst.msk [vmem:[#allocation2 + $0x18] sm:$0x10] %vm2709, %v2698
    %2714 = vst.msk [vmem:[#allocation2 + $0x20] sm:$0x10] %vm2709, %v2700
    %2715 = vst.msk [vmem:[#allocation2 + $0x28] sm:$0x10] %vm2709, %v2702
    %v2716 = vrot.slane %v2486, 3
    %v2717 = vrot.slane %v2487, 2
    %v2718 = vsel %vm939, %v2717, %v2716
    %v2719 = vrot.slane %v2488, 1
    %v2720 = vsel %vm942, %v2719, %v2718
    %v2721 = vsel %vm945, %v2489, %v2720
    %v2722 = vrot.slane %v2490, 7
    %v2723 = vsel %vm948, %v2722, %v2721
    %v2724 = vrot.slane %v2491, 6
    %v2725 = vsel %vm951, %v2724, %v2723
    %2726 = vrot.lane.b32.xlu0 %v2725, 32
    %v2727 = vpop.permute.xlu0 %2726
    %v2728 = vsel %vm407, %v2727, 0
    %2730 = vmatprep.subr.mxu0 0.0
    %2731 = vmatpush1.msra.mxu0 0.0
    %2732 = vmatprep.subr.mxu0 0.0
    %2733 = vmatpush1.msra.mxu0 0.0
    %2734 = vmatprep.subr.mxu0 0.0
    %2735 = vmatpush1.msra.mxu0 0.0
    %2736 = vmatprep.subr.mxu0 0.0
    %2737 = vmatpush1.msra.mxu0 0.0
    %2738 = vmatprep.subr.mxu0 0.0
    %2739 = vmatpush1.msra.mxu0 0.0
    %2740 = vmatprep.subr.mxu0 0.0
    %2741 = vmatpush1.msra.mxu0 0.0
    %2742 = vmatprep.subr.mxu0 0.0
    %2743 = vmatpush1.msra.mxu0 0.0
    %2744 = vmatprep.subr.mxu0 0.0
    %2745 = vmatpush1.msra.mxu0 0.0
    %2746 = vmatprep.subr.mxu0 0.0
    %2747 = vmatpush1.msra.mxu0 0.0
    %2748 = vmatprep.subr.mxu0 0.0
    %2749 = vmatpush1.msra.mxu0 0.0
    %2750 = vmatprep.subr.mxu0 0.0
    %2751 = vmatpush1.msra.mxu0 0.0
    %2752 = vmatprep.subr.mxu0 0.0
    %2753 = vmatpush1.msra.mxu0 0.0
    %2754 = vmatprep.subr.mxu0 0.0
    %2755 = vmatpush1.msra.mxu0 %v402
    %2756 = vmatprep.subr.mxu0 0.0
    %2757 = vmatpush1.msra.mxu0 %v401
    %2758 = vmatprep.subr.mxu0 0.0
    %2759 = vmatpush1.msra.mxu0 %v400
    %2760 = vmatprep.subr.mxu0 0.0
    %2761 = vmatpush1.msra.mxu0 %v399
    %2762 = vmatprep.subr.mxu0 0.0
    %2763 = vmatpush2.msra.mxu0 0.0
    %2764 = vmatprep.subr.mxu0 0.0
    %2765 = vmatpush2.msra.mxu0 0.0
    %2766 = vmatprep.subr.mxu0 0.0
    %2767 = vmatpush2.msra.mxu0 0.0
    %2768 = vmatprep.subr.mxu0 0.0
    %2769 = vmatpush2.msra.mxu0 0.0
    %2770 = vmatprep.subr.mxu0 0.0
    %2771 = vmatpush2.msra.mxu0 0.0
    %2772 = vmatprep.subr.mxu0 0.0
    %2773 = vmatpush2.msra.mxu0 0.0
    %2774 = vmatprep.subr.mxu0 0.0
    %2775 = vmatpush2.msra.mxu0 0.0
    %2776 = vmatprep.subr.mxu0 0.0
    %2777 = vmatpush2.msra.mxu0 0.0
    %2778 = vmatprep.subr.mxu0 0.0
    %2779 = vmatpush2.msra.mxu0 0.0
    %2780 = vmatprep.subr.mxu0 0.0
    %2781 = vmatpush2.msra.mxu0 0.0
    %2782 = vmatprep.subr.mxu0 0.0
    %2783 = vmatpush2.msra.mxu0 0.0
    %2784 = vmatprep.subr.mxu0 0.0
    %2785 = vmatpush2.msra.mxu0 0.0
    %2786 = vmatprep.subr.mxu0 0.0
    %2787 = vmatpush2.msra.mxu0 0.0
    %2788 = vmatprep.subr.mxu0 0.0
    %2789 = vmatpush2.msra.mxu0 0.0
    %2790 = vmatprep.subr.mxu0 0.0
    %2791 = vmatpush2.msra.mxu0 0.0
    %2792 = vmatprep.subr.mxu0 0.0
    %2793 = vmatpush2.msra.mxu0 0.0
    %2794 = vmatprep.mubr.f32.mxu0 0.0
    %2795 = vmatmul.mubr.f32.gmra.mxu0 %v2728
    %v2796 = vpop.f32.mrf.mxu0
    %v2797 = vadd.f32 0.0, %v2796
    %v2798 = vpop.f32.mrf.mxu0
    %2799 = vdwg.mxu0
    %v2801 = vrot.slane %v2797, 4
    %v2802 = vrot.slane %v2797, 5
    %v2803 = vrot.slane %v2797, 6
    %v2804 = vrot.slane %v2797, 7
    %v2805 = vrot.slane %v2797, 1
    %v2812 = vadd.f32 %v365, %v2801
    %v2813 = vadd.f32 %v371, %v2802
    %v2814 = vadd.f32 %v377, %v2803
    %v2815 = vadd.f32 %v383, %v2804
    %v2816 = vadd.f32 %v389, %v2797
    %v2817 = vadd.f32 %v395, %v2805
    %v2818 = vrot.slane %v2648, 4
    %v2819 = vrot.slane %v2649, 3
    %v2820 = vsel %vm939, %v2819, %v2818
    %v2821 = vrot.slane %v2650, 2
    %v2822 = vsel %vm942, %v2821, %v2820
    %v2823 = vrot.slane %v2651, 1
    %v2824 = vsel %vm945, %v2823, %v2822
    %v2825 = vsel %vm948, %v2652, %v2824
    %v2826 = vrot.slane %v2653, 7
    %v2827 = vsel %vm951, %v2826, %v2825
    %2828 = vrot.lane.b32.xlu0 %v2827, 32
    %v2829 = vpop.permute.xlu0 %2828
    %v2830 = vsel %vm407, %v2829, 0
    %2832 = vmatprep.subr.mxu0 0.0
    %2833 = vmatpush1.msra.mxu0 0.0
    %2834 = vmatprep.subr.mxu0 0.0
    %2835 = vmatpush1.msra.mxu0 0.0
    %2836 = vmatprep.subr.mxu0 0.0
    %2837 = vmatpush1.msra.mxu0 0.0
    %2838 = vmatprep.subr.mxu0 0.0
    %2839 = vmatpush1.msra.mxu0 0.0
    %2840 = vmatprep.subr.mxu0 0.0
    %2841 = vmatpush1.msra.mxu0 0.0
    %2842 = vmatprep.subr.mxu0 0.0
    %2843 = vmatpush1.msra.mxu0 0.0
    %2844 = vmatprep.subr.mxu0 0.0
    %2845 = vmatpush1.msra.mxu0 0.0
    %2846 = vmatprep.subr.mxu0 0.0
    %2847 = vmatpush1.msra.mxu0 0.0
    %2848 = vmatprep.subr.mxu0 0.0
    %2849 = vmatpush1.msra.mxu0 0.0
    %2850 = vmatprep.subr.mxu0 0.0
    %2851 = vmatpush1.msra.mxu0 0.0
    %2852 = vmatprep.subr.mxu0 0.0
    %2853 = vmatpush1.msra.mxu0 0.0
    %2854 = vmatprep.subr.mxu0 0.0
    %2855 = vmatpush1.msra.mxu0 0.0
    %2856 = vmatprep.subr.mxu0 0.0
    %2857 = vmatpush1.msra.mxu0 %v406
    %2858 = vmatprep.subr.mxu0 0.0
    %2859 = vmatpush1.msra.mxu0 %v405
    %2860 = vmatprep.subr.mxu0 0.0
    %2861 = vmatpush1.msra.mxu0 %v404
    %2862 = vmatprep.subr.mxu0 0.0
    %2863 = vmatpush1.msra.mxu0 %v403
    %2864 = vmatprep.subr.mxu0 0.0
    %2865 = vmatpush2.msra.mxu0 0.0
    %2866 = vmatprep.subr.mxu0 0.0
    %2867 = vmatpush2.msra.mxu0 0.0
    %2868 = vmatprep.subr.mxu0 0.0
    %2869 = vmatpush2.msra.mxu0 0.0
    %2870 = vmatprep.subr.mxu0 0.0
    %2871 = vmatpush2.msra.mxu0 0.0
    %2872 = vmatprep.subr.mxu0 0.0
    %2873 = vmatpush2.msra.mxu0 0.0
    %2874 = vmatprep.subr.mxu0 0.0
    %2875 = vmatpush2.msra.mxu0 0.0
    %2876 = vmatprep.subr.mxu0 0.0
    %2877 = vmatpush2.msra.mxu0 0.0
    %2878 = vmatprep.subr.mxu0 0.0
    %2879 = vmatpush2.msra.mxu0 0.0
    %2880 = vmatprep.subr.mxu0 0.0
    %2881 = vmatpush2.msra.mxu0 0.0
    %2882 = vmatprep.subr.mxu0 0.0
    %2883 = vmatpush2.msra.mxu0 0.0
    %2884 = vmatprep.subr.mxu0 0.0
    %2885 = vmatpush2.msra.mxu0 0.0
    %2886 = vmatprep.subr.mxu0 0.0
    %2887 = vmatpush2.msra.mxu0 0.0
    %2888 = vmatprep.subr.mxu0 0.0
    %2889 = vmatpush2.msra.mxu0 0.0
    %2890 = vmatprep.subr.mxu0 0.0
    %2891 = vmatpush2.msra.mxu0 0.0
    %2892 = vmatprep.subr.mxu0 0.0
    %2893 = vmatpush2.msra.mxu0 0.0
    %2894 = vmatprep.subr.mxu0 0.0
    %2895 = vmatpush2.msra.mxu0 0.0
    %2896 = vmatprep.mubr.f32.mxu0 0.0
    %2897 = vmatmul.mubr.f32.gmra.mxu0 %v2830
    %v2898 = vpop.f32.mrf.mxu0
    %v2899 = vadd.f32 0.0, %v2898
    %v2900 = vpop.f32.mrf.mxu0
    %2901 = vdwg.mxu0
    %v2903 = vrot.slane %v2899, 5
    %v2904 = vrot.slane %v2899, 6
    %v2905 = vrot.slane %v2899, 7
    %v2906 = vrot.slane %v2899, 1
    %v2907 = vrot.slane %v2899, 2
    %v2914 = vadd.f32 %v367, %v2903
    %v2915 = vadd.f32 %v373, %v2904
    %v2916 = vadd.f32 %v379, %v2905
    %v2917 = vadd.f32 %v385, %v2899
    %v2918 = vadd.f32 %v391, %v2906
    %v2919 = vadd.f32 %v397, %v2907
    %v2920 = vsub.f32 0.0, %v2812
    %v2921 = vsub.f32 0.0, %v2813
    %v2922 = vsub.f32 0.0, %v2814
    %v2923 = vsub.f32 0.0, %v2815
    %v2924 = vsub.f32 0.0, %v2816
    %v2925 = vsub.f32 0.0, %v2817
    %v2926 = vmul.f32 %v2920, 1.442695
    %v2927 = vpow.pop %v2926
    %v2928 = vmul.f32 %v2921, 1.442695
    %v2929 = vpow.pop %v2928
    %v2930 = vmul.f32 %v2922, 1.442695
    %v2931 = vpow.pop %v2930
    %v2932 = vmul.f32 %v2923, 1.442695
    %v2933 = vpow.pop %v2932
    %v2934 = vmul.f32 %v2924, 1.442695
    %v2935 = vpow.pop %v2934
    %v2936 = vmul.f32 %v2925, 1.442695
    %v2937 = vpow.pop %v2936
    %v2938 = vadd.f32 %v2927, 1.0
    %v2939 = vadd.f32 %v2929, 1.0
    %v2940 = vadd.f32 %v2931, 1.0
    %v2941 = vadd.f32 %v2933, 1.0
    %v2942 = vadd.f32 %v2935, 1.0
    %v2943 = vadd.f32 %v2937, 1.0
    %v2944 = vrcp.pop %v2938
    %v2945 = vmul.f32 1.0, %v2944
    %v2946 = vrcp.pop %v2939
    %v2947 = vmul.f32 1.0, %v2946
    %v2948 = vrcp.pop %v2940
    %v2949 = vmul.f32 1.0, %v2948
    %v2950 = vrcp.pop %v2941
    %v2951 = vmul.f32 1.0, %v2950
    %v2952 = vrcp.pop %v2942
    %v2953 = vmul.f32 1.0, %v2952
    %v2954 = vrcp.pop %v2943
    %v2955 = vmul.f32 1.0, %v2954
    %v2956 = vtanh.pop %v2812
    %v2957 = vtanh.pop %v2813
    %v2958 = vtanh.pop %v2814
    %v2959 = vtanh.pop %v2815
    %v2960 = vtanh.pop %v2816
    %v2961 = vtanh.pop %v2817
    %v2968 = vrot.slane %v2450, 7
    %v2969 = vrot.slane %v2451, 7
    %v2970 = vrot.slane %v2452, 7
    %v2971 = vrot.slane %v2453, 7
    %v2972 = vrot.slane %v2454, 7
    %v2973 = vrot.slane %v2455, 7
    %v2980 = vmul.f32 %v2945, %v2968
    %v2981 = vmul.f32 %v2947, %v2969
    %v2982 = vmul.f32 %v2949, %v2970
    %v2983 = vmul.f32 %v2951, %v2971
    %v2984 = vmul.f32 %v2953, %v2972
    %v2985 = vmul.f32 %v2955, %v2973
    %2992 = vrot.lane.b32.xlu0 %v2956, 64
    %v2993 = vpop.permute.xlu0 %2992
    %2994 = vrot.lane.b32.xlu0 %v2957, 64
    %v2995 = vpop.permute.xlu0 %2994
    %2996 = vrot.lane.b32.xlu0 %v2958, 64
    %v2997 = vpop.permute.xlu0 %2996
    %2998 = vrot.lane.b32.xlu0 %v2959, 64
    %v2999 = vpop.permute.xlu0 %2998
    %3000 = vrot.lane.b32.xlu0 %v2960, 64
    %v3001 = vpop.permute.xlu0 %3000
    %3002 = vrot.lane.b32.xlu0 %v2961, 64
    %v3003 = vpop.permute.xlu0 %3002
    %v3010 = vmul.f32 %v2945, %v2993
    %v3011 = vmul.f32 %v2947, %v2995
    %v3012 = vmul.f32 %v2949, %v2997
    %v3013 = vmul.f32 %v2951, %v2999
    %v3014 = vmul.f32 %v2953, %v3001
    %v3015 = vmul.f32 %v2955, %v3003
    %3022 = vrot.lane.b32.xlu0 %v3010, 32
    %v3023 = vpop.permute.xlu0 %3022
    %3024 = vrot.lane.b32.xlu0 %v3011, 32
    %v3025 = vpop.permute.xlu0 %3024
    %3026 = vrot.lane.b32.xlu0 %v3012, 32
    %v3027 = vpop.permute.xlu0 %3026
    %3028 = vrot.lane.b32.xlu0 %v3013, 32
    %v3029 = vpop.permute.xlu0 %3028
    %3030 = vrot.lane.b32.xlu0 %v3014, 32
    %v3031 = vpop.permute.xlu0 %3030
    %3032 = vrot.lane.b32.xlu0 %v3015, 32
    %v3033 = vpop.permute.xlu0 %3032
    %v3040 = vadd.f32 %v2980, %v3023
    %v3041 = vadd.f32 %v2981, %v3025
    %v3042 = vadd.f32 %v2982, %v3027
    %v3043 = vadd.f32 %v2983, %v3029
    %v3044 = vadd.f32 %v2984, %v3031
    %v3045 = vadd.f32 %v2985, %v3033
    %v3046 = vtanh.pop %v3040
    %v3047 = vtanh.pop %v3041
    %v3048 = vtanh.pop %v3042
    %v3049 = vtanh.pop %v3043
    %v3050 = vtanh.pop %v3044
    %v3051 = vtanh.pop %v3045
    %3058 = vrot.lane.b32.xlu0 %v3046, 64
    %v3059 = vpop.permute.xlu0 %3058
    %3060 = vrot.lane.b32.xlu0 %v3047, 64
    %v3061 = vpop.permute.xlu0 %3060
    %3062 = vrot.lane.b32.xlu0 %v3048, 64
    %v3063 = vpop.permute.xlu0 %3062
    %3064 = vrot.lane.b32.xlu0 %v3049, 64
    %v3065 = vpop.permute.xlu0 %3064
    %3066 = vrot.lane.b32.xlu0 %v3050, 64
    %v3067 = vpop.permute.xlu0 %3066
    %3068 = vrot.lane.b32.xlu0 %v3051, 64
    %v3069 = vpop.permute.xlu0 %3068
    %v3076 = vmul.f32 %v2945, %v3059
    %v3077 = vmul.f32 %v2947, %v3061
    %v3078 = vmul.f32 %v2949, %v3063
    %v3079 = vmul.f32 %v2951, %v3065
    %v3080 = vmul.f32 %v2953, %v3067
    %v3081 = vmul.f32 %v2955, %v3069
    %v3082 = vsub.f32 0.0, %v2914
    %v3083 = vsub.f32 0.0, %v2915
    %v3084 = vsub.f32 0.0, %v2916
    %v3085 = vsub.f32 0.0, %v2917
    %v3086 = vsub.f32 0.0, %v2918
    %v3087 = vsub.f32 0.0, %v2919
    %v3088 = vmul.f32 %v3082, 1.442695
    %v3089 = vpow.pop %v3088
    %v3090 = vmul.f32 %v3083, 1.442695
    %v3091 = vpow.pop %v3090
    %v3092 = vmul.f32 %v3084, 1.442695
    %v3093 = vpow.pop %v3092
    %v3094 = vmul.f32 %v3085, 1.442695
    %v3095 = vpow.pop %v3094
    %v3096 = vmul.f32 %v3086, 1.442695
    %v3097 = vpow.pop %v3096
    %v3098 = vmul.f32 %v3087, 1.442695
    %v3099 = vpow.pop %v3098
    %v3100 = vadd.f32 %v3089, 1.0
    %v3101 = vadd.f32 %v3091, 1.0
    %v3102 = vadd.f32 %v3093, 1.0
    %v3103 = vadd.f32 %v3095, 1.0
    %v3104 = vadd.f32 %v3097, 1.0
    %v3105 = vadd.f32 %v3099, 1.0
    %v3106 = vrcp.pop %v3100
    %v3107 = vmul.f32 1.0, %v3106
    %v3108 = vrcp.pop %v3101
    %v3109 = vmul.f32 1.0, %v3108
    %v3110 = vrcp.pop %v3102
    %v3111 = vmul.f32 1.0, %v3110
    %v3112 = vrcp.pop %v3103
    %v3113 = vmul.f32 1.0, %v3112
    %v3114 = vrcp.pop %v3104
    %v3115 = vmul.f32 1.0, %v3114
    %v3116 = vrcp.pop %v3105
    %v3117 = vmul.f32 1.0, %v3116
    %v3118 = vtanh.pop %v2914
    %v3119 = vtanh.pop %v2915
    %v3120 = vtanh.pop %v2916
    %v3121 = vtanh.pop %v2917
    %v3122 = vtanh.pop %v2918
    %v3123 = vtanh.pop %v2919
    %v3130 = vrot.slane %v2612, 1
    %v3131 = vrot.slane %v2613, 1
    %v3132 = vrot.slane %v2614, 1
    %v3133 = vrot.slane %v2615, 1
    %v3134 = vrot.slane %v2616, 1
    %v3135 = vrot.slane %v2617, 1
    %v3142 = vmul.f32 %v3107, %v3130
    %v3143 = vmul.f32 %v3109, %v3131
    %v3144 = vmul.f32 %v3111, %v3132
    %v3145 = vmul.f32 %v3113, %v3133
    %v3146 = vmul.f32 %v3115, %v3134
    %v3147 = vmul.f32 %v3117, %v3135
    %3154 = vrot.lane.b32.xlu0 %v3118, 64
    %v3155 = vpop.permute.xlu0 %3154
    %3156 = vrot.lane.b32.xlu0 %v3119, 64
    %v3157 = vpop.permute.xlu0 %3156
    %3158 = vrot.lane.b32.xlu0 %v3120, 64
    %v3159 = vpop.permute.xlu0 %3158
    %3160 = vrot.lane.b32.xlu0 %v3121, 64
    %v3161 = vpop.permute.xlu0 %3160
    %3162 = vrot.lane.b32.xlu0 %v3122, 64
    %v3163 = vpop.permute.xlu0 %3162
    %3164 = vrot.lane.b32.xlu0 %v3123, 64
    %v3165 = vpop.permute.xlu0 %3164
    %v3172 = vmul.f32 %v3107, %v3155
    %v3173 = vmul.f32 %v3109, %v3157
    %v3174 = vmul.f32 %v3111, %v3159
    %v3175 = vmul.f32 %v3113, %v3161
    %v3176 = vmul.f32 %v3115, %v3163
    %v3177 = vmul.f32 %v3117, %v3165
    %3184 = vrot.lane.b32.xlu0 %v3172, 32
    %v3185 = vpop.permute.xlu0 %3184
    %3186 = vrot.lane.b32.xlu0 %v3173, 32
    %v3187 = vpop.permute.xlu0 %3186
    %3188 = vrot.lane.b32.xlu0 %v3174, 32
    %v3189 = vpop.permute.xlu0 %3188
    %3190 = vrot.lane.b32.xlu0 %v3175, 32
    %v3191 = vpop.permute.xlu0 %3190
    %3192 = vrot.lane.b32.xlu0 %v3176, 32
    %v3193 = vpop.permute.xlu0 %3192
    %3194 = vrot.lane.b32.xlu0 %v3177, 32
    %v3195 = vpop.permute.xlu0 %3194
    %v3202 = vadd.f32 %v3142, %v3185
    %v3203 = vadd.f32 %v3143, %v3187
    %v3204 = vadd.f32 %v3144, %v3189
    %v3205 = vadd.f32 %v3145, %v3191
    %v3206 = vadd.f32 %v3146, %v3193
    %v3207 = vadd.f32 %v3147, %v3195
    %v3208 = vtanh.pop %v3202
    %v3209 = vtanh.pop %v3203
    %v3210 = vtanh.pop %v3204
    %v3211 = vtanh.pop %v3205
    %v3212 = vtanh.pop %v3206
    %v3213 = vtanh.pop %v3207
    %3220 = vrot.lane.b32.xlu0 %v3208, 64
    %v3221 = vpop.permute.xlu0 %3220
    %3222 = vrot.lane.b32.xlu0 %v3209, 64
    %v3223 = vpop.permute.xlu0 %3222
    %3224 = vrot.lane.b32.xlu0 %v3210, 64
    %v3225 = vpop.permute.xlu0 %3224
    %3226 = vrot.lane.b32.xlu0 %v3211, 64
    %v3227 = vpop.permute.xlu0 %3226
    %3228 = vrot.lane.b32.xlu0 %v3212, 64
    %v3229 = vpop.permute.xlu0 %3228
    %3230 = vrot.lane.b32.xlu0 %v3213, 64
    %v3231 = vpop.permute.xlu0 %3230
    %v3238 = vmul.f32 %v3107, %v3221
    %v3239 = vmul.f32 %v3109, %v3223
    %v3240 = vmul.f32 %v3111, %v3225
    %v3241 = vmul.f32 %v3113, %v3227
    %v3242 = vmul.f32 %v3115, %v3229
    %v3243 = vmul.f32 %v3117, %v3231
    %3250 = vrot.lane.b32.xlu0 %v3076, 32
    %v3251 = vpop.permute.xlu0 %3250
    %3252 = vrot.lane.b32.xlu0 %v3077, 32
    %v3253 = vpop.permute.xlu0 %3252
    %3254 = vrot.lane.b32.xlu0 %v3078, 32
    %v3255 = vpop.permute.xlu0 %3254
    %3256 = vrot.lane.b32.xlu0 %v3079, 32
    %v3257 = vpop.permute.xlu0 %3256
    %3258 = vrot.lane.b32.xlu0 %v3080, 32
    %v3259 = vpop.permute.xlu0 %3258
    %3260 = vrot.lane.b32.xlu0 %v3081, 32
    %v3261 = vpop.permute.xlu0 %3260
    %vm3268 = vcmask 258052
    %3269 = vst.msk [vmem:[#allocation2] sm:$0x10] %vm3268, %v3251
    %3270 = vst.msk [vmem:[#allocation2 + $0x8] sm:$0x10] %vm3268, %v3253
    %3271 = vst.msk [vmem:[#allocation2 + $0x10] sm:$0x10] %vm3268, %v3255
    %3272 = vst.msk [vmem:[#allocation2 + $0x18] sm:$0x10] %vm3268, %v3257
    %3273 = vst.msk [vmem:[#allocation2 + $0x20] sm:$0x10] %vm3268, %v3259
    %3274 = vst.msk [vmem:[#allocation2 + $0x28] sm:$0x10] %vm3268, %v3261
    %3281 = vrot.lane.b32.xlu0 %v3238, 64
    %v3282 = vpop.permute.xlu0 %3281
    %3283 = vrot.lane.b32.xlu0 %v3239, 64
    %v3284 = vpop.permute.xlu0 %3283
    %3285 = vrot.lane.b32.xlu0 %v3240, 64
    %v3286 = vpop.permute.xlu0 %3285
    %3287 = vrot.lane.b32.xlu0 %v3241, 64
    %v3288 = vpop.permute.xlu0 %3287
    %3289 = vrot.lane.b32.xlu0 %v3242, 64
    %v3290 = vpop.permute.xlu0 %3289
    %3291 = vrot.lane.b32.xlu0 %v3243, 64
    %v3292 = vpop.permute.xlu0 %3291
    %vm3299 = vcmask 519427
    %3300 = vst.msk [vmem:[#allocation2] sm:$0x8] %vm3299, %v3282
    %3301 = vst.msk [vmem:[#allocation2 + $0x8] sm:$0x8] %vm3299, %v3284
    %3302 = vst.msk [vmem:[#allocation2 + $0x10] sm:$0x8] %vm3299, %v3286
    %3303 = vst.msk [vmem:[#allocation2 + $0x18] sm:$0x8] %vm3299, %v3288
    %3304 = vst.msk [vmem:[#allocation2 + $0x20] sm:$0x8] %vm3299, %v3290
    %3305 = vst.msk [vmem:[#allocation2 + $0x28] sm:$0x8] %vm3299, %v3292
    %v3306 = vrot.slane %v3076, 4
    %v3307 = vrot.slane %v3077, 3
    %v3308 = vsel %vm939, %v3307, %v3306
    %v3309 = vrot.slane %v3078, 2
    %v3310 = vsel %vm942, %v3309, %v3308
    %v3311 = vrot.slane %v3079, 1
    %v3312 = vsel %vm945, %v3311, %v3310
    %v3313 = vsel %vm948, %v3080, %v3312
    %v3314 = vrot.slane %v3081, 7
    %v3315 = vsel %vm951, %v3314, %v3313
    %3316 = vrot.lane.b32.xlu0 %v3315, 32
    %v3317 = vpop.permute.xlu0 %3316
    %v3318 = vsel %vm407, %v3317, 0
    %3320 = vmatprep.subr.mxu0 0.0
    %3321 = vmatpush1.msra.mxu0 0.0
    %3322 = vmatprep.subr.mxu0 0.0
    %3323 = vmatpush1.msra.mxu0 0.0
    %3324 = vmatprep.subr.mxu0 0.0
    %3325 = vmatpush1.msra.mxu0 0.0
    %3326 = vmatprep.subr.mxu0 0.0
    %3327 = vmatpush1.msra.mxu0 0.0
    %3328 = vmatprep.subr.mxu0 0.0
    %3329 = vmatpush1.msra.mxu0 0.0
    %3330 = vmatprep.subr.mxu0 0.0
    %3331 = vmatpush1.msra.mxu0 0.0
    %3332 = vmatprep.subr.mxu0 0.0
    %3333 = vmatpush1.msra.mxu0 0.0
    %3334 = vmatprep.subr.mxu0 0.0
    %3335 = vmatpush1.msra.mxu0 0.0
    %3336 = vmatprep.subr.mxu0 0.0
    %3337 = vmatpush1.msra.mxu0 0.0
    %3338 = vmatprep.subr.mxu0 0.0
    %3339 = vmatpush1.msra.mxu0 0.0
    %3340 = vmatprep.subr.mxu0 0.0
    %3341 = vmatpush1.msra.mxu0 0.0
    %3342 = vmatprep.subr.mxu0 0.0
    %3343 = vmatpush1.msra.mxu0 0.0
    %3344 = vmatprep.subr.mxu0 0.0
    %3345 = vmatpush1.msra.mxu0 %v402
    %3346 = vmatprep.subr.mxu0 0.0
    %3347 = vmatpush1.msra.mxu0 %v401
    %3348 = vmatprep.subr.mxu0 0.0
    %3349 = vmatpush1.msra.mxu0 %v400
    %3350 = vmatprep.subr.mxu0 0.0
    %3351 = vmatpush1.msra.mxu0 %v399
    %3352 = vmatprep.subr.mxu0 0.0
    %3353 = vmatpush2.msra.mxu0 0.0
    %3354 = vmatprep.subr.mxu0 0.0
    %3355 = vmatpush2.msra.mxu0 0.0
    %3356 = vmatprep.subr.mxu0 0.0
    %3357 = vmatpush2.msra.mxu0 0.0
    %3358 = vmatprep.subr.mxu0 0.0
    %3359 = vmatpush2.msra.mxu0 0.0
    %3360 = vmatprep.subr.mxu0 0.0
    %3361 = vmatpush2.msra.mxu0 0.0
    %3362 = vmatprep.subr.mxu0 0.0
    %3363 = vmatpush2.msra.mxu0 0.0
    %3364 = vmatprep.subr.mxu0 0.0
    %3365 = vmatpush2.msra.mxu0 0.0
    %3366 = vmatprep.subr.mxu0 0.0
    %3367 = vmatpush2.msra.mxu0 0.0
    %3368 = vmatprep.subr.mxu0 0.0
    %3369 = vmatpush2.msra.mxu0 0.0
    %3370 = vmatprep.subr.mxu0 0.0
    %3371 = vmatpush2.msra.mxu0 0.0
    %3372 = vmatprep.subr.mxu0 0.0
    %3373 = vmatpush2.msra.mxu0 0.0
    %3374 = vmatprep.subr.mxu0 0.0
    %3375 = vmatpush2.msra.mxu0 0.0
    %3376 = vmatprep.subr.mxu0 0.0
    %3377 = vmatpush2.msra.mxu0 0.0
    %3378 = vmatprep.subr.mxu0 0.0
    %3379 = vmatpush2.msra.mxu0 0.0
    %3380 = vmatprep.subr.mxu0 0.0
    %3381 = vmatpush2.msra.mxu0 0.0
    %3382 = vmatprep.subr.mxu0 0.0
    %3383 = vmatpush2.msra.mxu0 0.0
    %3384 = vmatprep.mubr.f32.mxu0 0.0
    %3385 = vmatmul.mubr.f32.gmra.mxu0 %v3318
    %v3386 = vpop.f32.mrf.mxu0
    %v3387 = vadd.f32 0.0, %v3386
    %v3388 = vpop.f32.mrf.mxu0
    %3389 = vdwg.mxu0
    %v3391 = vrot.slane %v3387, 3
    %v3392 = vrot.slane %v3387, 4
    %v3393 = vrot.slane %v3387, 5
    %v3394 = vrot.slane %v3387, 6
    %v3395 = vrot.slane %v3387, 7
    %v3402 = vadd.f32 %v365, %v3391
    %v3403 = vadd.f32 %v371, %v3392
    %v3404 = vadd.f32 %v377, %v3393
    %v3405 = vadd.f32 %v383, %v3394
    %v3406 = vadd.f32 %v389, %v3395
    %v3407 = vadd.f32 %v395, %v3387
    %v3408 = vrot.slane %v3238, 3
    %v3409 = vrot.slane %v3239, 2
    %v3410 = vsel %vm939, %v3409, %v3408
    %v3411 = vrot.slane %v3240, 1
    %v3412 = vsel %vm942, %v3411, %v3410
    %v3413 = vsel %vm945, %v3241, %v3412
    %v3414 = vrot.slane %v3242, 7
    %v3415 = vsel %vm948, %v3414, %v3413
    %v3416 = vrot.slane %v3243, 6
    %v3417 = vsel %vm951, %v3416, %v3415
    %3418 = vrot.lane.b32.xlu0 %v3417, 32
    %v3419 = vpop.permute.xlu0 %3418
    %v3420 = vsel %vm407, %v3419, 0
    %3422 = vmatprep.subr.mxu0 0.0
    %3423 = vmatpush1.msra.mxu0 0.0
    %3424 = vmatprep.subr.mxu0 0.0
    %3425 = vmatpush1.msra.mxu0 0.0
    %3426 = vmatprep.subr.mxu0 0.0
    %3427 = vmatpush1.msra.mxu0 0.0
    %3428 = vmatprep.subr.mxu0 0.0
    %3429 = vmatpush1.msra.mxu0 0.0
    %3430 = vmatprep.subr.mxu0 0.0
    %3431 = vmatpush1.msra.mxu0 0.0
    %3432 = vmatprep.subr.mxu0 0.0
    %3433 = vmatpush1.msra.mxu0 0.0
    %3434 = vmatprep.subr.mxu0 0.0
    %3435 = vmatpush1.msra.mxu0 0.0
    %3436 = vmatprep.subr.mxu0 0.0
    %3437 = vmatpush1.msra.mxu0 0.0
    %3438 = vmatprep.subr.mxu0 0.0
    %3439 = vmatpush1.msra.mxu0 0.0
    %3440 = vmatprep.subr.mxu0 0.0
    %3441 = vmatpush1.msra.mxu0 0.0
    %3442 = vmatprep.subr.mxu0 0.0
    %3443 = vmatpush1.msra.mxu0 0.0
    %3444 = vmatprep.subr.mxu0 0.0
    %3445 = vmatpush1.msra.mxu0 0.0
    %3446 = vmatprep.subr.mxu0 0.0
    %3447 = vmatpush1.msra.mxu0 %v406
    %3448 = vmatprep.subr.mxu0 0.0
    %3449 = vmatpush1.msra.mxu0 %v405
    %3450 = vmatprep.subr.mxu0 0.0
    %3451 = vmatpush1.msra.mxu0 %v404
    %3452 = vmatprep.subr.mxu0 0.0
    %3453 = vmatpush1.msra.mxu0 %v403
    %3454 = vmatprep.subr.mxu0 0.0
    %3455 = vmatpush2.msra.mxu0 0.0
    %3456 = vmatprep.subr.mxu0 0.0
    %3457 = vmatpush2.msra.mxu0 0.0
    %3458 = vmatprep.subr.mxu0 0.0
    %3459 = vmatpush2.msra.mxu0 0.0
    %3460 = vmatprep.subr.mxu0 0.0
    %3461 = vmatpush2.msra.mxu0 0.0
    %3462 = vmatprep.subr.mxu0 0.0
    %3463 = vmatpush2.msra.mxu0 0.0
    %3464 = vmatprep.subr.mxu0 0.0
    %3465 = vmatpush2.msra.mxu0 0.0
    %3466 = vmatprep.subr.mxu0 0.0
    %3467 = vmatpush2.msra.mxu0 0.0
    %3468 = vmatprep.subr.mxu0 0.0
    %3469 = vmatpush2.msra.mxu0 0.0
    %3470 = vmatprep.subr.mxu0 0.0
    %3471 = vmatpush2.msra.mxu0 0.0
    %3472 = vmatprep.subr.mxu0 0.0
    %3473 = vmatpush2.msra.mxu0 0.0
    %3474 = vmatprep.subr.mxu0 0.0
    %3475 = vmatpush2.msra.mxu0 0.0
    %3476 = vmatprep.subr.mxu0 0.0
    %3477 = vmatpush2.msra.mxu0 0.0
    %3478 = vmatprep.subr.mxu0 0.0
    %3479 = vmatpush2.msra.mxu0 0.0
    %3480 = vmatprep.subr.mxu0 0.0
    %3481 = vmatpush2.msra.mxu0 0.0
    %3482 = vmatprep.subr.mxu0 0.0
    %3483 = vmatpush2.msra.mxu0 0.0
    %3484 = vmatprep.subr.mxu0 0.0
    %3485 = vmatpush2.msra.mxu0 0.0
    %3486 = vmatprep.mubr.f32.mxu0 0.0
    %3487 = vmatmul.mubr.f32.gmra.mxu0 %v3420
    %v3488 = vpop.f32.mrf.mxu0
    %v3489 = vadd.f32 0.0, %v3488
    %v3490 = vpop.f32.mrf.mxu0
    %3491 = vdwg.mxu0
    %v3493 = vrot.slane %v3489, 6
    %v3494 = vrot.slane %v3489, 7
    %v3495 = vrot.slane %v3489, 1
    %v3496 = vrot.slane %v3489, 2
    %v3497 = vrot.slane %v3489, 3
    %v3504 = vadd.f32 %v367, %v3493
    %v3505 = vadd.f32 %v373, %v3494
    %v3506 = vadd.f32 %v379, %v3489
    %v3507 = vadd.f32 %v385, %v3495
    %v3508 = vadd.f32 %v391, %v3496
    %v3509 = vadd.f32 %v397, %v3497
    %v3510 = vsub.f32 0.0, %v3402
    %v3511 = vsub.f32 0.0, %v3403
    %v3512 = vsub.f32 0.0, %v3404
    %v3513 = vsub.f32 0.0, %v3405
    %v3514 = vsub.f32 0.0, %v3406
    %v3515 = vsub.f32 0.0, %v3407
    %v3516 = vmul.f32 %v3510, 1.442695
    %v3517 = vpow.pop %v3516
    %v3518 = vmul.f32 %v3511, 1.442695
    %v3519 = vpow.pop %v3518
    %v3520 = vmul.f32 %v3512, 1.442695
    %v3521 = vpow.pop %v3520
    %v3522 = vmul.f32 %v3513, 1.442695
    %v3523 = vpow.pop %v3522
    %v3524 = vmul.f32 %v3514, 1.442695
    %v3525 = vpow.pop %v3524
    %v3526 = vmul.f32 %v3515, 1.442695
    %v3527 = vpow.pop %v3526
    %v3528 = vadd.f32 %v3517, 1.0
    %v3529 = vadd.f32 %v3519, 1.0
    %v3530 = vadd.f32 %v3521, 1.0
    %v3531 = vadd.f32 %v3523, 1.0
    %v3532 = vadd.f32 %v3525, 1.0
    %v3533 = vadd.f32 %v3527, 1.0
    %v3534 = vrcp.pop %v3528
    %v3535 = vmul.f32 1.0, %v3534
    %v3536 = vrcp.pop %v3529
    %v3537 = vmul.f32 1.0, %v3536
    %v3538 = vrcp.pop %v3530
    %v3539 = vmul.f32 1.0, %v3538
    %v3540 = vrcp.pop %v3531
    %v3541 = vmul.f32 1.0, %v3540
    %v3542 = vrcp.pop %v3532
    %v3543 = vmul.f32 1.0, %v3542
    %v3544 = vrcp.pop %v3533
    %v3545 = vmul.f32 1.0, %v3544
    %v3546 = vtanh.pop %v3402
    %v3547 = vtanh.pop %v3403
    %v3548 = vtanh.pop %v3404
    %v3549 = vtanh.pop %v3405
    %v3550 = vtanh.pop %v3406
    %v3551 = vtanh.pop %v3407
    %v3558 = vrot.slane %v3040, 7
    %v3559 = vrot.slane %v3041, 7
    %v3560 = vrot.slane %v3042, 7
    %v3561 = vrot.slane %v3043, 7
    %v3562 = vrot.slane %v3044, 7
    %v3563 = vrot.slane %v3045, 7
    %v3570 = vmul.f32 %v3535, %v3558
    %v3571 = vmul.f32 %v3537, %v3559
    %v3572 = vmul.f32 %v3539, %v3560
    %v3573 = vmul.f32 %v3541, %v3561
    %v3574 = vmul.f32 %v3543, %v3562
    %v3575 = vmul.f32 %v3545, %v3563
    %3582 = vrot.lane.b32.xlu0 %v3546, 64
    %v3583 = vpop.permute.xlu0 %3582
    %3584 = vrot.lane.b32.xlu0 %v3547, 64
    %v3585 = vpop.permute.xlu0 %3584
    %3586 = vrot.lane.b32.xlu0 %v3548, 64
    %v3587 = vpop.permute.xlu0 %3586
    %3588 = vrot.lane.b32.xlu0 %v3549, 64
    %v3589 = vpop.permute.xlu0 %3588
    %3590 = vrot.lane.b32.xlu0 %v3550, 64
    %v3591 = vpop.permute.xlu0 %3590
    %3592 = vrot.lane.b32.xlu0 %v3551, 64
    %v3593 = vpop.permute.xlu0 %3592
    %v3600 = vmul.f32 %v3535, %v3583
    %v3601 = vmul.f32 %v3537, %v3585
    %v3602 = vmul.f32 %v3539, %v3587
    %v3603 = vmul.f32 %v3541, %v3589
    %v3604 = vmul.f32 %v3543, %v3591
    %v3605 = vmul.f32 %v3545, %v3593
    %3612 = vrot.lane.b32.xlu0 %v3600, 32
    %v3613 = vpop.permute.xlu0 %3612
    %3614 = vrot.lane.b32.xlu0 %v3601, 32
    %v3615 = vpop.permute.xlu0 %3614
    %3616 = vrot.lane.b32.xlu0 %v3602, 32
    %v3617 = vpop.permute.xlu0 %3616
    %3618 = vrot.lane.b32.xlu0 %v3603, 32
    %v3619 = vpop.permute.xlu0 %3618
    %3620 = vrot.lane.b32.xlu0 %v3604, 32
    %v3621 = vpop.permute.xlu0 %3620
    %3622 = vrot.lane.b32.xlu0 %v3605, 32
    %v3623 = vpop.permute.xlu0 %3622
    %v3630 = vadd.f32 %v3570, %v3613
    %v3631 = vadd.f32 %v3571, %v3615
    %v3632 = vadd.f32 %v3572, %v3617
    %v3633 = vadd.f32 %v3573, %v3619
    %v3634 = vadd.f32 %v3574, %v3621
    %v3635 = vadd.f32 %v3575, %v3623
    %v3636 = vtanh.pop %v3630
    %v3637 = vtanh.pop %v3631
    %v3638 = vtanh.pop %v3632
    %v3639 = vtanh.pop %v3633
    %v3640 = vtanh.pop %v3634
    %v3641 = vtanh.pop %v3635
    %3648 = vrot.lane.b32.xlu0 %v3636, 64
    %v3649 = vpop.permute.xlu0 %3648
    %3650 = vrot.lane.b32.xlu0 %v3637, 64
    %v3651 = vpop.permute.xlu0 %3650
    %3652 = vrot.lane.b32.xlu0 %v3638, 64
    %v3653 = vpop.permute.xlu0 %3652
    %3654 = vrot.lane.b32.xlu0 %v3639, 64
    %v3655 = vpop.permute.xlu0 %3654
    %3656 = vrot.lane.b32.xlu0 %v3640, 64
    %v3657 = vpop.permute.xlu0 %3656
    %3658 = vrot.lane.b32.xlu0 %v3641, 64
    %v3659 = vpop.permute.xlu0 %3658
    %v3666 = vmul.f32 %v3535, %v3649
    %v3667 = vmul.f32 %v3537, %v3651
    %v3668 = vmul.f32 %v3539, %v3653
    %v3669 = vmul.f32 %v3541, %v3655
    %v3670 = vmul.f32 %v3543, %v3657
    %v3671 = vmul.f32 %v3545, %v3659
    %v3672 = vsub.f32 0.0, %v3504
    %v3673 = vsub.f32 0.0, %v3505
    %v3674 = vsub.f32 0.0, %v3506
    %v3675 = vsub.f32 0.0, %v3507
    %v3676 = vsub.f32 0.0, %v3508
    %v3677 = vsub.f32 0.0, %v3509
    %v3678 = vmul.f32 %v3672, 1.442695
    %v3679 = vpow.pop %v3678
    %v3680 = vmul.f32 %v3673, 1.442695
    %v3681 = vpow.pop %v3680
    %v3682 = vmul.f32 %v3674, 1.442695
    %v3683 = vpow.pop %v3682
    %v3684 = vmul.f32 %v3675, 1.442695
    %v3685 = vpow.pop %v3684
    %v3686 = vmul.f32 %v3676, 1.442695
    %v3687 = vpow.pop %v3686
    %v3688 = vmul.f32 %v3677, 1.442695
    %v3689 = vpow.pop %v3688
    %v3690 = vadd.f32 %v3679, 1.0
    %v3691 = vadd.f32 %v3681, 1.0
    %v3692 = vadd.f32 %v3683, 1.0
    %v3693 = vadd.f32 %v3685, 1.0
    %v3694 = vadd.f32 %v3687, 1.0
    %v3695 = vadd.f32 %v3689, 1.0
    %v3696 = vrcp.pop %v3690
    %v3697 = vmul.f32 1.0, %v3696
    %v3698 = vrcp.pop %v3691
    %v3699 = vmul.f32 1.0, %v3698
    %v3700 = vrcp.pop %v3692
    %v3701 = vmul.f32 1.0, %v3700
    %v3702 = vrcp.pop %v3693
    %v3703 = vmul.f32 1.0, %v3702
    %v3704 = vrcp.pop %v3694
    %v3705 = vmul.f32 1.0, %v3704
    %v3706 = vrcp.pop %v3695
    %v3707 = vmul.f32 1.0, %v3706
    %v3708 = vtanh.pop %v3504
    %v3709 = vtanh.pop %v3505
    %v3710 = vtanh.pop %v3506
    %v3711 = vtanh.pop %v3507
    %v3712 = vtanh.pop %v3508
    %v3713 = vtanh.pop %v3509
    %v3720 = vrot.slane %v3202, 1
    %v3721 = vrot.slane %v3203, 1
    %v3722 = vrot.slane %v3204, 1
    %v3723 = vrot.slane %v3205, 1
    %v3724 = vrot.slane %v3206, 1
    %v3725 = vrot.slane %v3207, 1
    %v3732 = vmul.f32 %v3697, %v3720
    %v3733 = vmul.f32 %v3699, %v3721
    %v3734 = vmul.f32 %v3701, %v3722
    %v3735 = vmul.f32 %v3703, %v3723
    %v3736 = vmul.f32 %v3705, %v3724
    %v3737 = vmul.f32 %v3707, %v3725
    %3744 = vrot.lane.b32.xlu0 %v3708, 64
    %v3745 = vpop.permute.xlu0 %3744
    %3746 = vrot.lane.b32.xlu0 %v3709, 64
    %v3747 = vpop.permute.xlu0 %3746
    %3748 = vrot.lane.b32.xlu0 %v3710, 64
    %v3749 = vpop.permute.xlu0 %3748
    %3750 = vrot.lane.b32.xlu0 %v3711, 64
    %v3751 = vpop.permute.xlu0 %3750
    %3752 = vrot.lane.b32.xlu0 %v3712, 64
    %v3753 = vpop.permute.xlu0 %3752
    %3754 = vrot.lane.b32.xlu0 %v3713, 64
    %v3755 = vpop.permute.xlu0 %3754
    %v3762 = vmul.f32 %v3697, %v3745
    %v3763 = vmul.f32 %v3699, %v3747
    %v3764 = vmul.f32 %v3701, %v3749
    %v3765 = vmul.f32 %v3703, %v3751
    %v3766 = vmul.f32 %v3705, %v3753
    %v3767 = vmul.f32 %v3707, %v3755
    %3774 = vrot.lane.b32.xlu0 %v3762, 32
    %v3775 = vpop.permute.xlu0 %3774
    %3776 = vrot.lane.b32.xlu0 %v3763, 32
    %v3777 = vpop.permute.xlu0 %3776
    %3778 = vrot.lane.b32.xlu0 %v3764, 32
    %v3779 = vpop.permute.xlu0 %3778
    %3780 = vrot.lane.b32.xlu0 %v3765, 32
    %v3781 = vpop.permute.xlu0 %3780
    %3782 = vrot.lane.b32.xlu0 %v3766, 32
    %v3783 = vpop.permute.xlu0 %3782
    %3784 = vrot.lane.b32.xlu0 %v3767, 32
    %v3785 = vpop.permute.xlu0 %3784
    %v3792 = vadd.f32 %v3732, %v3775
    %v3793 = vadd.f32 %v3733, %v3777
    %v3794 = vadd.f32 %v3734, %v3779
    %v3795 = vadd.f32 %v3735, %v3781
    %v3796 = vadd.f32 %v3736, %v3783
    %v3797 = vadd.f32 %v3737, %v3785
    %v3798 = vtanh.pop %v3792
    %v3799 = vtanh.pop %v3793
    %v3800 = vtanh.pop %v3794
    %v3801 = vtanh.pop %v3795
    %v3802 = vtanh.pop %v3796
    %v3803 = vtanh.pop %v3797
    %3810 = vrot.lane.b32.xlu0 %v3798, 64
    %v3811 = vpop.permute.xlu0 %3810
    %3812 = vrot.lane.b32.xlu0 %v3799, 64
    %v3813 = vpop.permute.xlu0 %3812
    %3814 = vrot.lane.b32.xlu0 %v3800, 64
    %v3815 = vpop.permute.xlu0 %3814
    %3816 = vrot.lane.b32.xlu0 %v3801, 64
    %v3817 = vpop.permute.xlu0 %3816
    %3818 = vrot.lane.b32.xlu0 %v3802, 64
    %v3819 = vpop.permute.xlu0 %3818
    %3820 = vrot.lane.b32.xlu0 %v3803, 64
    %v3821 = vpop.permute.xlu0 %3820
    %v3828 = vmul.f32 %v3697, %v3811
    %v3829 = vmul.f32 %v3699, %v3813
    %v3830 = vmul.f32 %v3701, %v3815
    %v3831 = vmul.f32 %v3703, %v3817
    %v3832 = vmul.f32 %v3705, %v3819
    %v3833 = vmul.f32 %v3707, %v3821
    %3840 = vrot.lane.b32.xlu0 %v3666, 32
    %v3841 = vpop.permute.xlu0 %3840
    %3842 = vrot.lane.b32.xlu0 %v3667, 32
    %v3843 = vpop.permute.xlu0 %3842
    %3844 = vrot.lane.b32.xlu0 %v3668, 32
    %v3845 = vpop.permute.xlu0 %3844
    %3846 = vrot.lane.b32.xlu0 %v3669, 32
    %v3847 = vpop.permute.xlu0 %3846
    %3848 = vrot.lane.b32.xlu0 %v3670, 32
    %v3849 = vpop.permute.xlu0 %3848
    %3850 = vrot.lane.b32.xlu0 %v3671, 32
    %v3851 = vpop.permute.xlu0 %3850
    %vm3858 = vcmask 259077
    %3859 = vst.msk [vmem:[#allocation2] sm:$0x20] %vm3858, %v3841
    %3860 = vst.msk [vmem:[#allocation2 + $0x8] sm:$0x20] %vm3858, %v3843
    %3861 = vst.msk [vmem:[#allocation2 + $0x10] sm:$0x20] %vm3858, %v3845
    %3862 = vst.msk [vmem:[#allocation2 + $0x18] sm:$0x20] %vm3858, %v3847
    %3863 = vst.msk [vmem:[#allocation2 + $0x20] sm:$0x20] %vm3858, %v3849
    %3864 = vst.msk [vmem:[#allocation2 + $0x28] sm:$0x20] %vm3858, %v3851
    %3871 = vrot.lane.b32.xlu0 %v3828, 64
    %v3872 = vpop.permute.xlu0 %3871
    %3873 = vrot.lane.b32.xlu0 %v3829, 64
    %v3874 = vpop.permute.xlu0 %3873
    %3875 = vrot.lane.b32.xlu0 %v3830, 64
    %v3876 = vpop.permute.xlu0 %3875
    %3877 = vrot.lane.b32.xlu0 %v3831, 64
    %v3878 = vpop.permute.xlu0 %3877
    %3879 = vrot.lane.b32.xlu0 %v3832, 64
    %v3880 = vpop.permute.xlu0 %3879
    %3881 = vrot.lane.b32.xlu0 %v3833, 64
    %v3882 = vpop.permute.xlu0 %3881
    %vm3889 = vcmask 518402
    %3890 = vst.msk [vmem:[#allocation2] sm:$0x4] %vm3889, %v3872
    %3891 = vst.msk [vmem:[#allocation2 + $0x8] sm:$0x4] %vm3889, %v3874
    %3892 = vst.msk [vmem:[#allocation2 + $0x10] sm:$0x4] %vm3889, %v3876
    %3893 = vst.msk [vmem:[#allocation2 + $0x18] sm:$0x4] %vm3889, %v3878
    %3894 = vst.msk [vmem:[#allocation2 + $0x20] sm:$0x4] %vm3889, %v3880
    %3895 = vst.msk [vmem:[#allocation2 + $0x28] sm:$0x4] %vm3889, %v3882
    %v3896 = vrot.slane %v3666, 5
    %v3897 = vrot.slane %v3667, 4
    %v3898 = vsel %vm939, %v3897, %v3896
    %v3899 = vrot.slane %v3668, 3
    %v3900 = vsel %vm942, %v3899, %v3898
    %v3901 = vrot.slane %v3669, 2
    %v3902 = vsel %vm945, %v3901, %v3900
    %v3903 = vrot.slane %v3670, 1
    %v3904 = vsel %vm948, %v3903, %v3902
    %v3905 = vsel %vm951, %v3671, %v3904
    %3906 = vrot.lane.b32.xlu0 %v3905, 32
    %v3907 = vpop.permute.xlu0 %3906
    %v3908 = vsel %vm407, %v3907, 0
    %3910 = vmatprep.subr.mxu0 0.0
    %3911 = vmatpush1.msra.mxu0 0.0
    %3912 = vmatprep.subr.mxu0 0.0
    %3913 = vmatpush1.msra.mxu0 0.0
    %3914 = vmatprep.subr.mxu0 0.0
    %3915 = vmatpush1.msra.mxu0 0.0
    %3916 = vmatprep.subr.mxu0 0.0
    %3917 = vmatpush1.msra.mxu0 0.0
    %3918 = vmatprep.subr.mxu0 0.0
    %3919 = vmatpush1.msra.mxu0 0.0
    %3920 = vmatprep.subr.mxu0 0.0
    %3921 = vmatpush1.msra.mxu0 0.0
    %3922 = vmatprep.subr.mxu0 0.0
    %3923 = vmatpush1.msra.mxu0 0.0
    %3924 = vmatprep.subr.mxu0 0.0
    %3925 = vmatpush1.msra.mxu0 0.0
    %3926 = vmatprep.subr.mxu0 0.0
    %3927 = vmatpush1.msra.mxu0 0.0
    %3928 = vmatprep.subr.mxu0 0.0
    %3929 = vmatpush1.msra.mxu0 0.0
    %3930 = vmatprep.subr.mxu0 0.0
    %3931 = vmatpush1.msra.mxu0 0.0
    %3932 = vmatprep.subr.mxu0 0.0
    %3933 = vmatpush1.msra.mxu0 0.0
    %3934 = vmatprep.subr.mxu0 0.0
    %3935 = vmatpush1.msra.mxu0 %v402
    %3936 = vmatprep.subr.mxu0 0.0
    %3937 = vmatpush1.msra.mxu0 %v401
    %3938 = vmatprep.subr.mxu0 0.0
    %3939 = vmatpush1.msra.mxu0 %v400
    %3940 = vmatprep.subr.mxu0 0.0
    %3941 = vmatpush1.msra.mxu0 %v399
    %3942 = vmatprep.subr.mxu0 0.0
    %3943 = vmatpush2.msra.mxu0 0.0
    %3944 = vmatprep.subr.mxu0 0.0
    %3945 = vmatpush2.msra.mxu0 0.0
    %3946 = vmatprep.subr.mxu0 0.0
    %3947 = vmatpush2.msra.mxu0 0.0
    %3948 = vmatprep.subr.mxu0 0.0
    %3949 = vmatpush2.msra.mxu0 0.0
    %3950 = vmatprep.subr.mxu0 0.0
    %3951 = vmatpush2.msra.mxu0 0.0
    %3952 = vmatprep.subr.mxu0 0.0
    %3953 = vmatpush2.msra.mxu0 0.0
    %3954 = vmatprep.subr.mxu0 0.0
    %3955 = vmatpush2.msra.mxu0 0.0
    %3956 = vmatprep.subr.mxu0 0.0
    %3957 = vmatpush2.msra.mxu0 0.0
    %3958 = vmatprep.subr.mxu0 0.0
    %3959 = vmatpush2.msra.mxu0 0.0
    %3960 = vmatprep.subr.mxu0 0.0
    %3961 = vmatpush2.msra.mxu0 0.0
    %3962 = vmatprep.subr.mxu0 0.0
    %3963 = vmatpush2.msra.mxu0 0.0
    %3964 = vmatprep.subr.mxu0 0.0
    %3965 = vmatpush2.msra.mxu0 0.0
    %3966 = vmatprep.subr.mxu0 0.0
    %3967 = vmatpush2.msra.mxu0 0.0
    %3968 = vmatprep.subr.mxu0 0.0
    %3969 = vmatpush2.msra.mxu0 0.0
    %3970 = vmatprep.subr.mxu0 0.0
    %3971 = vmatpush2.msra.mxu0 0.0
    %3972 = vmatprep.subr.mxu0 0.0
    %3973 = vmatpush2.msra.mxu0 0.0
    %3974 = vmatprep.mubr.f32.mxu0 0.0
    %3975 = vmatmul.mubr.f32.gmra.mxu0 %v3908
    %v3976 = vpop.f32.mrf.mxu0
    %v3977 = vadd.f32 0.0, %v3976
    %v3978 = vpop.f32.mrf.mxu0
    %3979 = vdwg.mxu0
    %v3981 = vrot.slane %v3977, 2
    %v3982 = vrot.slane %v3977, 3
    %v3983 = vrot.slane %v3977, 4
    %v3984 = vrot.slane %v3977, 5
    %v3985 = vrot.slane %v3977, 6
    %v3986 = vrot.slane %v3977, 7
    %v3993 = vadd.f32 %v365, %v3981
    %v3994 = vadd.f32 %v371, %v3982
    %v3995 = vadd.f32 %v377, %v3983
    %v3996 = vadd.f32 %v383, %v3984
    %v3997 = vadd.f32 %v389, %v3985
    %v3998 = vadd.f32 %v395, %v3986
    %v3999 = vrot.slane %v3828, 2
    %v4000 = vrot.slane %v3829, 1
    %v4001 = vsel %vm939, %v4000, %v3999
    %v4002 = vsel %vm942, %v3830, %v4001
    %v4003 = vrot.slane %v3831, 7
    %v4004 = vsel %vm945, %v4003, %v4002
    %v4005 = vrot.slane %v3832, 6
    %v4006 = vsel %vm948, %v4005, %v4004
    %v4007 = vrot.slane %v3833, 5
    %v4008 = vsel %vm951, %v4007, %v4006
    %4009 = vrot.lane.b32.xlu0 %v4008, 32
    %v4010 = vpop.permute.xlu0 %4009
    %v4011 = vsel %vm407, %v4010, 0
    %4013 = vmatprep.subr.mxu0 0.0
    %4014 = vmatpush1.msra.mxu0 0.0
    %4015 = vmatprep.subr.mxu0 0.0
    %4016 = vmatpush1.msra.mxu0 0.0
    %4017 = vmatprep.subr.mxu0 0.0
    %4018 = vmatpush1.msra.mxu0 0.0
    %4019 = vmatprep.subr.mxu0 0.0
    %4020 = vmatpush1.msra.mxu0 0.0
    %4021 = vmatprep.subr.mxu0 0.0
    %4022 = vmatpush1.msra.mxu0 0.0
    %4023 = vmatprep.subr.mxu0 0.0
    %4024 = vmatpush1.msra.mxu0 0.0
    %4025 = vmatprep.subr.mxu0 0.0
    %4026 = vmatpush1.msra.mxu0 0.0
    %4027 = vmatprep.subr.mxu0 0.0
    %4028 = vmatpush1.msra.mxu0 0.0
    %4029 = vmatprep.subr.mxu0 0.0
    %4030 = vmatpush1.msra.mxu0 0.0
    %4031 = vmatprep.subr.mxu0 0.0
    %4032 = vmatpush1.msra.mxu0 0.0
    %4033 = vmatprep.subr.mxu0 0.0
    %4034 = vmatpush1.msra.mxu0 0.0
    %4035 = vmatprep.subr.mxu0 0.0
    %4036 = vmatpush1.msra.mxu0 0.0
    %4037 = vmatprep.subr.mxu0 0.0
    %4038 = vmatpush1.msra.mxu0 %v406
    %4039 = vmatprep.subr.mxu0 0.0
    %4040 = vmatpush1.msra.mxu0 %v405
    %4041 = vmatprep.subr.mxu0 0.0
    %4042 = vmatpush1.msra.mxu0 %v404
    %4043 = vmatprep.subr.mxu0 0.0
    %4044 = vmatpush1.msra.mxu0 %v403
    %4045 = vmatprep.subr.mxu0 0.0
    %4046 = vmatpush2.msra.mxu0 0.0
    %4047 = vmatprep.subr.mxu0 0.0
    %4048 = vmatpush2.msra.mxu0 0.0
    %4049 = vmatprep.subr.mxu0 0.0
    %4050 = vmatpush2.msra.mxu0 0.0
    %4051 = vmatprep.subr.mxu0 0.0
    %4052 = vmatpush2.msra.mxu0 0.0
    %4053 = vmatprep.subr.mxu0 0.0
    %4054 = vmatpush2.msra.mxu0 0.0
    %4055 = vmatprep.subr.mxu0 0.0
    %4056 = vmatpush2.msra.mxu0 0.0
    %4057 = vmatprep.subr.mxu0 0.0
    %4058 = vmatpush2.msra.mxu0 0.0
    %4059 = vmatprep.subr.mxu0 0.0
    %4060 = vmatpush2.msra.mxu0 0.0
    %4061 = vmatprep.subr.mxu0 0.0
    %4062 = vmatpush2.msra.mxu0 0.0
    %4063 = vmatprep.subr.mxu0 0.0
    %4064 = vmatpush2.msra.mxu0 0.0
    %4065 = vmatprep.subr.mxu0 0.0
    %4066 = vmatpush2.msra.mxu0 0.0
    %4067 = vmatprep.subr.mxu0 0.0
    %4068 = vmatpush2.msra.mxu0 0.0
    %4069 = vmatprep.subr.mxu0 0.0
    %4070 = vmatpush2.msra.mxu0 0.0
    %4071 = vmatprep.subr.mxu0 0.0
    %4072 = vmatpush2.msra.mxu0 0.0
    %4073 = vmatprep.subr.mxu0 0.0
    %4074 = vmatpush2.msra.mxu0 0.0
    %4075 = vmatprep.subr.mxu0 0.0
    %4076 = vmatpush2.msra.mxu0 0.0
    %4077 = vmatprep.mubr.f32.mxu0 0.0
    %4078 = vmatmul.mubr.f32.gmra.mxu0 %v4011
    %v4079 = vpop.f32.mrf.mxu0
    %v4080 = vadd.f32 0.0, %v4079
    %v4081 = vpop.f32.mrf.mxu0
    %4082 = vdwg.mxu0
    %v4084 = vrot.slane %v4080, 7
    %v4085 = vrot.slane %v4080, 1
    %v4086 = vrot.slane %v4080, 2
    %v4087 = vrot.slane %v4080, 3
    %v4088 = vrot.slane %v4080, 4
    %v4095 = vadd.f32 %v367, %v4084
    %v4096 = vadd.f32 %v373, %v4080
    %v4097 = vadd.f32 %v379, %v4085
    %v4098 = vadd.f32 %v385, %v4086
    %v4099 = vadd.f32 %v391, %v4087
    %v4100 = vadd.f32 %v397, %v4088
    %v4101 = vsub.f32 0.0, %v3993
    %v4102 = vsub.f32 0.0, %v3994
    %v4103 = vsub.f32 0.0, %v3995
    %v4104 = vsub.f32 0.0, %v3996
    %v4105 = vsub.f32 0.0, %v3997
    %v4106 = vsub.f32 0.0, %v3998
    %v4107 = vmul.f32 %v4101, 1.442695
    %v4108 = vpow.pop %v4107
    %v4109 = vmul.f32 %v4102, 1.442695
    %v4110 = vpow.pop %v4109
    %v4111 = vmul.f32 %v4103, 1.442695
    %v4112 = vpow.pop %v4111
    %v4113 = vmul.f32 %v4104, 1.442695
    %v4114 = vpow.pop %v4113
    %v4115 = vmul.f32 %v4105, 1.442695
    %v4116 = vpow.pop %v4115
    %v4117 = vmul.f32 %v4106, 1.442695
    %v4118 = vpow.pop %v4117
    %v4119 = vadd.f32 %v4108, 1.0
    %v4120 = vadd.f32 %v4110, 1.0
    %v4121 = vadd.f32 %v4112, 1.0
    %v4122 = vadd.f32 %v4114, 1.0
    %v4123 = vadd.f32 %v4116, 1.0
    %v4124 = vadd.f32 %v4118, 1.0
    %v4125 = vrcp.pop %v4119
    %v4126 = vmul.f32 1.0, %v4125
    %v4127 = vrcp.pop %v4120
    %v4128 = vmul.f32 1.0, %v4127
    %v4129 = vrcp.pop %v4121
    %v4130 = vmul.f32 1.0, %v4129
    %v4131 = vrcp.pop %v4122
    %v4132 = vmul.f32 1.0, %v4131
    %v4133 = vrcp.pop %v4123
    %v4134 = vmul.f32 1.0, %v4133
    %v4135 = vrcp.pop %v4124
    %v4136 = vmul.f32 1.0, %v4135
    %v4137 = vtanh.pop %v3993
    %v4138 = vtanh.pop %v3994
    %v4139 = vtanh.pop %v3995
    %v4140 = vtanh.pop %v3996
    %v4141 = vtanh.pop %v3997
    %v4142 = vtanh.pop %v3998
    %v4149 = vrot.slane %v3630, 7
    %v4150 = vrot.slane %v3631, 7
    %v4151 = vrot.slane %v3632, 7
    %v4152 = vrot.slane %v3633, 7
    %v4153 = vrot.slane %v3634, 7
    %v4154 = vrot.slane %v3635, 7
    %v4161 = vmul.f32 %v4126, %v4149
    %v4162 = vmul.f32 %v4128, %v4150
    %v4163 = vmul.f32 %v4130, %v4151
    %v4164 = vmul.f32 %v4132, %v4152
    %v4165 = vmul.f32 %v4134, %v4153
    %v4166 = vmul.f32 %v4136, %v4154
    %4173 = vrot.lane.b32.xlu0 %v4137, 64
    %v4174 = vpop.permute.xlu0 %4173
    %4175 = vrot.lane.b32.xlu0 %v4138, 64
    %v4176 = vpop.permute.xlu0 %4175
    %4177 = vrot.lane.b32.xlu0 %v4139, 64
    %v4178 = vpop.permute.xlu0 %4177
    %4179 = vrot.lane.b32.xlu0 %v4140, 64
    %v4180 = vpop.permute.xlu0 %4179
    %4181 = vrot.lane.b32.xlu0 %v4141, 64
    %v4182 = vpop.permute.xlu0 %4181
    %4183 = vrot.lane.b32.xlu0 %v4142, 64
    %v4184 = vpop.permute.xlu0 %4183
    %v4191 = vmul.f32 %v4126, %v4174
    %v4192 = vmul.f32 %v4128, %v4176
    %v4193 = vmul.f32 %v4130, %v4178
    %v4194 = vmul.f32 %v4132, %v4180
    %v4195 = vmul.f32 %v4134, %v4182
    %v4196 = vmul.f32 %v4136, %v4184
    %4203 = vrot.lane.b32.xlu0 %v4191, 32
    %v4204 = vpop.permute.xlu0 %4203
    %4205 = vrot.lane.b32.xlu0 %v4192, 32
    %v4206 = vpop.permute.xlu0 %4205
    %4207 = vrot.lane.b32.xlu0 %v4193, 32
    %v4208 = vpop.permute.xlu0 %4207
    %4209 = vrot.lane.b32.xlu0 %v4194, 32
    %v4210 = vpop.permute.xlu0 %4209
    %4211 = vrot.lane.b32.xlu0 %v4195, 32
    %v4212 = vpop.permute.xlu0 %4211
    %4213 = vrot.lane.b32.xlu0 %v4196, 32
    %v4214 = vpop.permute.xlu0 %4213
    %v4221 = vadd.f32 %v4161, %v4204
    %v4222 = vadd.f32 %v4162, %v4206
    %v4223 = vadd.f32 %v4163, %v4208
    %v4224 = vadd.f32 %v4164, %v4210
    %v4225 = vadd.f32 %v4165, %v4212
    %v4226 = vadd.f32 %v4166, %v4214
    %v4227 = vtanh.pop %v4221
    %v4228 = vtanh.pop %v4222
    %v4229 = vtanh.pop %v4223
    %v4230 = vtanh.pop %v4224
    %v4231 = vtanh.pop %v4225
    %v4232 = vtanh.pop %v4226
    %4239 = vrot.lane.b32.xlu0 %v4227, 64
    %v4240 = vpop.permute.xlu0 %4239
    %4241 = vrot.lane.b32.xlu0 %v4228, 64
    %v4242 = vpop.permute.xlu0 %4241
    %4243 = vrot.lane.b32.xlu0 %v4229, 64
    %v4244 = vpop.permute.xlu0 %4243
    %4245 = vrot.lane.b32.xlu0 %v4230, 64
    %v4246 = vpop.permute.xlu0 %4245
    %4247 = vrot.lane.b32.xlu0 %v4231, 64
    %v4248 = vpop.permute.xlu0 %4247
    %4249 = vrot.lane.b32.xlu0 %v4232, 64
    %v4250 = vpop.permute.xlu0 %4249
    %v4257 = vmul.f32 %v4126, %v4240
    %v4258 = vmul.f32 %v4128, %v4242
    %v4259 = vmul.f32 %v4130, %v4244
    %v4260 = vmul.f32 %v4132, %v4246
    %v4261 = vmul.f32 %v4134, %v4248
    %v4262 = vmul.f32 %v4136, %v4250
    %v4263 = vsub.f32 0.0, %v4095
    %v4264 = vsub.f32 0.0, %v4096
    %v4265 = vsub.f32 0.0, %v4097
    %v4266 = vsub.f32 0.0, %v4098
    %v4267 = vsub.f32 0.0, %v4099
    %v4268 = vsub.f32 0.0, %v4100
    %v4269 = vmul.f32 %v4263, 1.442695
    %v4270 = vpow.pop %v4269
    %v4271 = vmul.f32 %v4264, 1.442695
    %v4272 = vpow.pop %v4271
    %v4273 = vmul.f32 %v4265, 1.442695
    %v4274 = vpow.pop %v4273
    %v4275 = vmul.f32 %v4266, 1.442695
    %v4276 = vpow.pop %v4275
    %v4277 = vmul.f32 %v4267, 1.442695
    %v4278 = vpow.pop %v4277
    %v4279 = vmul.f32 %v4268, 1.442695
    %v4280 = vpow.pop %v4279
    %v4281 = vadd.f32 %v4270, 1.0
    %v4282 = vadd.f32 %v4272, 1.0
    %v4283 = vadd.f32 %v4274, 1.0
    %v4284 = vadd.f32 %v4276, 1.0
    %v4285 = vadd.f32 %v4278, 1.0
    %v4286 = vadd.f32 %v4280, 1.0
    %v4287 = vrcp.pop %v4281
    %v4288 = vmul.f32 1.0, %v4287
    %v4289 = vrcp.pop %v4282
    %v4290 = vmul.f32 1.0, %v4289
    %v4291 = vrcp.pop %v4283
    %v4292 = vmul.f32 1.0, %v4291
    %v4293 = vrcp.pop %v4284
    %v4294 = vmul.f32 1.0, %v4293
    %v4295 = vrcp.pop %v4285
    %v4296 = vmul.f32 1.0, %v4295
    %v4297 = vrcp.pop %v4286
    %v4298 = vmul.f32 1.0, %v4297
    %v4299 = vtanh.pop %v4095
    %v4300 = vtanh.pop %v4096
    %v4301 = vtanh.pop %v4097
    %v4302 = vtanh.pop %v4098
    %v4303 = vtanh.pop %v4099
    %v4304 = vtanh.pop %v4100
    %v4311 = vrot.slane %v3792, 1
    %v4312 = vrot.slane %v3793, 1
    %v4313 = vrot.slane %v3794, 1
    %v4314 = vrot.slane %v3795, 1
    %v4315 = vrot.slane %v3796, 1
    %v4316 = vrot.slane %v3797, 1
    %v4323 = vmul.f32 %v4288, %v4311
    %v4324 = vmul.f32 %v4290, %v4312
    %v4325 = vmul.f32 %v4292, %v4313
    %v4326 = vmul.f32 %v4294, %v4314
    %v4327 = vmul.f32 %v4296, %v4315
    %v4328 = vmul.f32 %v4298, %v4316
    %4335 = vrot.lane.b32.xlu0 %v4299, 64
    %v4336 = vpop.permute.xlu0 %4335
    %4337 = vrot.lane.b32.xlu0 %v4300, 64
    %v4338 = vpop.permute.xlu0 %4337
    %4339 = vrot.lane.b32.xlu0 %v4301, 64
    %v4340 = vpop.permute.xlu0 %4339
    %4341 = vrot.lane.b32.xlu0 %v4302, 64
    %v4342 = vpop.permute.xlu0 %4341
    %4343 = vrot.lane.b32.xlu0 %v4303, 64
    %v4344 = vpop.permute.xlu0 %4343
    %4345 = vrot.lane.b32.xlu0 %v4304, 64
    %v4346 = vpop.permute.xlu0 %4345
    %v4353 = vmul.f32 %v4288, %v4336
    %v4354 = vmul.f32 %v4290, %v4338
    %v4355 = vmul.f32 %v4292, %v4340
    %v4356 = vmul.f32 %v4294, %v4342
    %v4357 = vmul.f32 %v4296, %v4344
    %v4358 = vmul.f32 %v4298, %v4346
    %4365 = vrot.lane.b32.xlu0 %v4353, 32
    %v4366 = vpop.permute.xlu0 %4365
    %4367 = vrot.lane.b32.xlu0 %v4354, 32
    %v4368 = vpop.permute.xlu0 %4367
    %4369 = vrot.lane.b32.xlu0 %v4355, 32
    %v4370 = vpop.permute.xlu0 %4369
    %4371 = vrot.lane.b32.xlu0 %v4356, 32
    %v4372 = vpop.permute.xlu0 %4371
    %4373 = vrot.lane.b32.xlu0 %v4357, 32
    %v4374 = vpop.permute.xlu0 %4373
    %4375 = vrot.lane.b32.xlu0 %v4358, 32
    %v4376 = vpop.permute.xlu0 %4375
    %v4383 = vadd.f32 %v4323, %v4366
    %v4384 = vadd.f32 %v4324, %v4368
    %v4385 = vadd.f32 %v4325, %v4370
    %v4386 = vadd.f32 %v4326, %v4372
    %v4387 = vadd.f32 %v4327, %v4374
    %v4388 = vadd.f32 %v4328, %v4376
    %v4389 = vtanh.pop %v4383
    %v4390 = vtanh.pop %v4384
    %v4391 = vtanh.pop %v4385
    %v4392 = vtanh.pop %v4386
    %v4393 = vtanh.pop %v4387
    %v4394 = vtanh.pop %v4388
    %4401 = vrot.lane.b32.xlu0 %v4389, 64
    %v4402 = vpop.permute.xlu0 %4401
    %4403 = vrot.lane.b32.xlu0 %v4390, 64
    %v4404 = vpop.permute.xlu0 %4403
    %4405 = vrot.lane.b32.xlu0 %v4391, 64
    %v4406 = vpop.permute.xlu0 %4405
    %4407 = vrot.lane.b32.xlu0 %v4392, 64
    %v4408 = vpop.permute.xlu0 %4407
    %4409 = vrot.lane.b32.xlu0 %v4393, 64
    %v4410 = vpop.permute.xlu0 %4409
    %4411 = vrot.lane.b32.xlu0 %v4394, 64
    %v4412 = vpop.permute.xlu0 %4411
    %v4419 = vmul.f32 %v4288, %v4402
    %v4420 = vmul.f32 %v4290, %v4404
    %v4421 = vmul.f32 %v4292, %v4406
    %v4422 = vmul.f32 %v4294, %v4408
    %v4423 = vmul.f32 %v4296, %v4410
    %v4424 = vmul.f32 %v4298, %v4412
    %4431 = vrot.lane.b32.xlu0 %v4257, 32
    %v4432 = vpop.permute.xlu0 %4431
    %4433 = vrot.lane.b32.xlu0 %v4258, 32
    %v4434 = vpop.permute.xlu0 %4433
    %4435 = vrot.lane.b32.xlu0 %v4259, 32
    %v4436 = vpop.permute.xlu0 %4435
    %4437 = vrot.lane.b32.xlu0 %v4260, 32
    %v4438 = vpop.permute.xlu0 %4437
    %4439 = vrot.lane.b32.xlu0 %v4261, 32
    %v4440 = vpop.permute.xlu0 %4439
    %4441 = vrot.lane.b32.xlu0 %v4262, 32
    %v4442 = vpop.permute.xlu0 %4441
    %vm4449 = vcmask 260102
    %4450 = vst.msk [vmem:[#allocation2] sm:$0x40] %vm4449, %v4432
    %4451 = vst.msk [vmem:[#allocation2 + $0x8] sm:$0x40] %vm4449, %v4434
    %4452 = vst.msk [vmem:[#allocation2 + $0x10] sm:$0x40] %vm4449, %v4436
    %4453 = vst.msk [vmem:[#allocation2 + $0x18] sm:$0x40] %vm4449, %v4438
    %4454 = vst.msk [vmem:[#allocation2 + $0x20] sm:$0x40] %vm4449, %v4440
    %4455 = vst.msk [vmem:[#allocation2 + $0x28] sm:$0x40] %vm4449, %v4442
    %4462 = vrot.lane.b32.xlu0 %v4419, 64
    %v4463 = vpop.permute.xlu0 %4462
    %4464 = vrot.lane.b32.xlu0 %v4420, 64
    %v4465 = vpop.permute.xlu0 %4464
    %4466 = vrot.lane.b32.xlu0 %v4421, 64
    %v4467 = vpop.permute.xlu0 %4466
    %4468 = vrot.lane.b32.xlu0 %v4422, 64
    %v4469 = vpop.permute.xlu0 %4468
    %4470 = vrot.lane.b32.xlu0 %v4423, 64
    %v4471 = vpop.permute.xlu0 %4470
    %4472 = vrot.lane.b32.xlu0 %v4424, 64
    %v4473 = vpop.permute.xlu0 %4472
    %vm4480 = vcmask 517377
    %4481 = vst.msk [vmem:[#allocation2] sm:$0x2] %vm4480, %v4463
    %4482 = vst.msk [vmem:[#allocation2 + $0x8] sm:$0x2] %vm4480, %v4465
    %4483 = vst.msk [vmem:[#allocation2 + $0x10] sm:$0x2] %vm4480, %v4467
    %4484 = vst.msk [vmem:[#allocation2 + $0x18] sm:$0x2] %vm4480, %v4469
    %4485 = vst.msk [vmem:[#allocation2 + $0x20] sm:$0x2] %vm4480, %v4471
    %4486 = vst.msk [vmem:[#allocation2 + $0x28] sm:$0x2] %vm4480, %v4473
    %v4487 = vrot.slane %v4257, 6
    %v4488 = vrot.slane %v4258, 5
    %v4489 = vsel %vm939, %v4488, %v4487
    %v4490 = vrot.slane %v4259, 4
    %v4491 = vsel %vm942, %v4490, %v4489
    %v4492 = vrot.slane %v4260, 3
    %v4493 = vsel %vm945, %v4492, %v4491
    %v4494 = vrot.slane %v4261, 2
    %v4495 = vsel %vm948, %v4494, %v4493
    %v4496 = vrot.slane %v4262, 1
    %v4497 = vsel %vm951, %v4496, %v4495
    %4498 = vrot.lane.b32.xlu0 %v4497, 32
    %v4499 = vpop.permute.xlu0 %4498
    %v4500 = vsel %vm407, %v4499, 0
    %4502 = vmatprep.subr.mxu0 0.0
    %4503 = vmatpush1.msra.mxu0 0.0
    %4504 = vmatprep.subr.mxu0 0.0
    %4505 = vmatpush1.msra.mxu0 0.0
    %4506 = vmatprep.subr.mxu0 0.0
    %4507 = vmatpush1.msra.mxu0 0.0
    %4508 = vmatprep.subr.mxu0 0.0
    %4509 = vmatpush1.msra.mxu0 0.0
    %4510 = vmatprep.subr.mxu0 0.0
    %4511 = vmatpush1.msra.mxu0 0.0
    %4512 = vmatprep.subr.mxu0 0.0
    %4513 = vmatpush1.msra.mxu0 0.0
    %4514 = vmatprep.subr.mxu0 0.0
    %4515 = vmatpush1.msra.mxu0 0.0
    %4516 = vmatprep.subr.mxu0 0.0
    %4517 = vmatpush1.msra.mxu0 0.0
    %4518 = vmatprep.subr.mxu0 0.0
    %4519 = vmatpush1.msra.mxu0 0.0
    %4520 = vmatprep.subr.mxu0 0.0
    %4521 = vmatpush1.msra.mxu0 0.0
    %4522 = vmatprep.subr.mxu0 0.0
    %4523 = vmatpush1.msra.mxu0 0.0
    %4524 = vmatprep.subr.mxu0 0.0
    %4525 = vmatpush1.msra.mxu0 0.0
    %4526 = vmatprep.subr.mxu0 0.0
    %4527 = vmatpush1.msra.mxu0 %v402
    %4528 = vmatprep.subr.mxu0 0.0
    %4529 = vmatpush1.msra.mxu0 %v401
    %4530 = vmatprep.subr.mxu0 0.0
    %4531 = vmatpush1.msra.mxu0 %v400
    %4532 = vmatprep.subr.mxu0 0.0
    %4533 = vmatpush1.msra.mxu0 %v399
    %4534 = vmatprep.subr.mxu0 0.0
    %4535 = vmatpush2.msra.mxu0 0.0
    %4536 = vmatprep.subr.mxu0 0.0
    %4537 = vmatpush2.msra.mxu0 0.0
    %4538 = vmatprep.subr.mxu0 0.0
    %4539 = vmatpush2.msra.mxu0 0.0
    %4540 = vmatprep.subr.mxu0 0.0
    %4541 = vmatpush2.msra.mxu0 0.0
    %4542 = vmatprep.subr.mxu0 0.0
    %4543 = vmatpush2.msra.mxu0 0.0
    %4544 = vmatprep.subr.mxu0 0.0
    %4545 = vmatpush2.msra.mxu0 0.0
    %4546 = vmatprep.subr.mxu0 0.0
    %4547 = vmatpush2.msra.mxu0 0.0
    %4548 = vmatprep.subr.mxu0 0.0
    %4549 = vmatpush2.msra.mxu0 0.0
    %4550 = vmatprep.subr.mxu0 0.0
    %4551 = vmatpush2.msra.mxu0 0.0
    %4552 = vmatprep.subr.mxu0 0.0
    %4553 = vmatpush2.msra.mxu0 0.0
    %4554 = vmatprep.subr.mxu0 0.0
    %4555 = vmatpush2.msra.mxu0 0.0
    %4556 = vmatprep.subr.mxu0 0.0
    %4557 = vmatpush2.msra.mxu0 0.0
    %4558 = vmatprep.subr.mxu0 0.0
    %4559 = vmatpush2.msra.mxu0 0.0
    %4560 = vmatprep.subr.mxu0 0.0
    %4561 = vmatpush2.msra.mxu0 0.0
    %4562 = vmatprep.subr.mxu0 0.0
    %4563 = vmatpush2.msra.mxu0 0.0
    %4564 = vmatprep.subr.mxu0 0.0
    %4565 = vmatpush2.msra.mxu0 0.0
    %4566 = vmatprep.mubr.f32.mxu0 0.0
    %4567 = vmatmul.mubr.f32.gmra.mxu0 %v4500
    %v4568 = vpop.f32.mrf.mxu0
    %v4569 = vadd.f32 0.0, %v4568
    %v4570 = vpop.f32.mrf.mxu0
    %4571 = vdwg.mxu0
    %v4573 = vrot.slane %v4569, 1
    %v4574 = vrot.slane %v4569, 2
    %v4575 = vrot.slane %v4569, 3
    %v4576 = vrot.slane %v4569, 4
    %v4577 = vrot.slane %v4569, 5
    %v4578 = vrot.slane %v4569, 6
    %v4585 = vadd.f32 %v365, %v4573
    %v4586 = vadd.f32 %v371, %v4574
    %v4587 = vadd.f32 %v377, %v4575
    %v4588 = vadd.f32 %v383, %v4576
    %v4589 = vadd.f32 %v389, %v4577
    %v4590 = vadd.f32 %v395, %v4578
    %v4591 = vrot.slane %v4419, 1
    %v4592 = vsel %vm939, %v4420, %v4591
    %v4593 = vrot.slane %v4421, 7
    %v4594 = vsel %vm942, %v4593, %v4592
    %v4595 = vrot.slane %v4422, 6
    %v4596 = vsel %vm945, %v4595, %v4594
    %v4597 = vrot.slane %v4423, 5
    %v4598 = vsel %vm948, %v4597, %v4596
    %v4599 = vrot.slane %v4424, 4
    %v4600 = vsel %vm951, %v4599, %v4598
    %4601 = vrot.lane.b32.xlu0 %v4600, 32
    %v4602 = vpop.permute.xlu0 %4601
    %v4603 = vsel %vm407, %v4602, 0
    %4605 = vmatprep.subr.mxu0 0.0
    %4606 = vmatpush1.msra.mxu0 0.0
    %4607 = vmatprep.subr.mxu0 0.0
    %4608 = vmatpush1.msra.mxu0 0.0
    %4609 = vmatprep.subr.mxu0 0.0
    %4610 = vmatpush1.msra.mxu0 0.0
    %4611 = vmatprep.subr.mxu0 0.0
    %4612 = vmatpush1.msra.mxu0 0.0
    %4613 = vmatprep.subr.mxu0 0.0
    %4614 = vmatpush1.msra.mxu0 0.0
    %4615 = vmatprep.subr.mxu0 0.0
    %4616 = vmatpush1.msra.mxu0 0.0
    %4617 = vmatprep.subr.mxu0 0.0
    %4618 = vmatpush1.msra.mxu0 0.0
    %4619 = vmatprep.subr.mxu0 0.0
    %4620 = vmatpush1.msra.mxu0 0.0
    %4621 = vmatprep.subr.mxu0 0.0
    %4622 = vmatpush1.msra.mxu0 0.0
    %4623 = vmatprep.subr.mxu0 0.0
    %4624 = vmatpush1.msra.mxu0 0.0
    %4625 = vmatprep.subr.mxu0 0.0
    %4626 = vmatpush1.msra.mxu0 0.0
    %4627 = vmatprep.subr.mxu0 0.0
    %4628 = vmatpush1.msra.mxu0 0.0
    %4629 = vmatprep.subr.mxu0 0.0
    %4630 = vmatpush1.msra.mxu0 %v406
    %4631 = vmatprep.subr.mxu0 0.0
    %4632 = vmatpush1.msra.mxu0 %v405
    %4633 = vmatprep.subr.mxu0 0.0
    %4634 = vmatpush1.msra.mxu0 %v404
    %4635 = vmatprep.subr.mxu0 0.0
    %4636 = vmatpush1.msra.mxu0 %v403
    %4637 = vmatprep.subr.mxu0 0.0
    %4638 = vmatpush2.msra.mxu0 0.0
    %4639 = vmatprep.subr.mxu0 0.0
    %4640 = vmatpush2.msra.mxu0 0.0
    %4641 = vmatprep.subr.mxu0 0.0
    %4642 = vmatpush2.msra.mxu0 0.0
    %4643 = vmatprep.subr.mxu0 0.0
    %4644 = vmatpush2.msra.mxu0 0.0
    %4645 = vmatprep.subr.mxu0 0.0
    %4646 = vmatpush2.msra.mxu0 0.0
    %4647 = vmatprep.subr.mxu0 0.0
    %4648 = vmatpush2.msra.mxu0 0.0
    %4649 = vmatprep.subr.mxu0 0.0
    %4650 = vmatpush2.msra.mxu0 0.0
    %4651 = vmatprep.subr.mxu0 0.0
    %4652 = vmatpush2.msra.mxu0 0.0
    %4653 = vmatprep.subr.mxu0 0.0
    %4654 = vmatpush2.msra.mxu0 0.0
    %4655 = vmatprep.subr.mxu0 0.0
    %4656 = vmatpush2.msra.mxu0 0.0
    %4657 = vmatprep.subr.mxu0 0.0
    %4658 = vmatpush2.msra.mxu0 0.0
    %4659 = vmatprep.subr.mxu0 0.0
    %4660 = vmatpush2.msra.mxu0 0.0
    %4661 = vmatprep.subr.mxu0 0.0
    %4662 = vmatpush2.msra.mxu0 0.0
    %4663 = vmatprep.subr.mxu0 0.0
    %4664 = vmatpush2.msra.mxu0 0.0
    %4665 = vmatprep.subr.mxu0 0.0
    %4666 = vmatpush2.msra.mxu0 0.0
    %4667 = vmatprep.subr.mxu0 0.0
    %4668 = vmatpush2.msra.mxu0 0.0
    %4669 = vmatprep.mubr.f32.mxu0 0.0
    %4670 = vmatmul.mubr.f32.gmra.mxu0 %v4603
    %v4671 = vpop.f32.mrf.mxu0
    %v4672 = vadd.f32 0.0, %v4671
    %v4673 = vpop.f32.mrf.mxu0
    %4674 = vdwg.mxu0
    %v4676 = vrot.slane %v4672, 1
    %v4677 = vrot.slane %v4672, 2
    %v4678 = vrot.slane %v4672, 3
    %v4679 = vrot.slane %v4672, 4
    %v4680 = vrot.slane %v4672, 5
    %v4687 = vadd.f32 %v367, %v4672
    %v4688 = vadd.f32 %v373, %v4676
    %v4689 = vadd.f32 %v379, %v4677
    %v4690 = vadd.f32 %v385, %v4678
    %v4691 = vadd.f32 %v391, %v4679
    %v4692 = vadd.f32 %v397, %v4680
    %v4693 = vsub.f32 0.0, %v4585
    %v4694 = vsub.f32 0.0, %v4586
    %v4695 = vsub.f32 0.0, %v4587
    %v4696 = vsub.f32 0.0, %v4588
    %v4697 = vsub.f32 0.0, %v4589
    %v4698 = vsub.f32 0.0, %v4590
    %v4699 = vmul.f32 %v4693, 1.442695
    %v4700 = vpow.pop %v4699
    %v4701 = vmul.f32 %v4694, 1.442695
    %v4702 = vpow.pop %v4701
    %v4703 = vmul.f32 %v4695, 1.442695
    %v4704 = vpow.pop %v4703
    %v4705 = vmul.f32 %v4696, 1.442695
    %v4706 = vpow.pop %v4705
    %v4707 = vmul.f32 %v4697, 1.442695
    %v4708 = vpow.pop %v4707
    %v4709 = vmul.f32 %v4698, 1.442695
    %v4710 = vpow.pop %v4709
    %v4711 = vadd.f32 %v4700, 1.0
    %v4712 = vadd.f32 %v4702, 1.0
    %v4713 = vadd.f32 %v4704, 1.0
    %v4714 = vadd.f32 %v4706, 1.0
    %v4715 = vadd.f32 %v4708, 1.0
    %v4716 = vadd.f32 %v4710, 1.0
    %v4717 = vrcp.pop %v4711
    %v4718 = vmul.f32 1.0, %v4717
    %v4719 = vrcp.pop %v4712
    %v4720 = vmul.f32 1.0, %v4719
    %v4721 = vrcp.pop %v4713
    %v4722 = vmul.f32 1.0, %v4721
    %v4723 = vrcp.pop %v4714
    %v4724 = vmul.f32 1.0, %v4723
    %v4725 = vrcp.pop %v4715
    %v4726 = vmul.f32 1.0, %v4725
    %v4727 = vrcp.pop %v4716
    %v4728 = vmul.f32 1.0, %v4727
    %v4729 = vtanh.pop %v4585
    %v4730 = vtanh.pop %v4586
    %v4731 = vtanh.pop %v4587
    %v4732 = vtanh.pop %v4588
    %v4733 = vtanh.pop %v4589
    %v4734 = vtanh.pop %v4590
    %v4741 = vrot.slane %v4221, 7
    %v4742 = vrot.slane %v4222, 7
    %v4743 = vrot.slane %v4223, 7
    %v4744 = vrot.slane %v4224, 7
    %v4745 = vrot.slane %v4225, 7
    %v4746 = vrot.slane %v4226, 7
    %v4753 = vmul.f32 %v4718, %v4741
    %v4754 = vmul.f32 %v4720, %v4742
    %v4755 = vmul.f32 %v4722, %v4743
    %v4756 = vmul.f32 %v4724, %v4744
    %v4757 = vmul.f32 %v4726, %v4745
    %v4758 = vmul.f32 %v4728, %v4746
    %4765 = vrot.lane.b32.xlu0 %v4729, 64
    %v4766 = vpop.permute.xlu0 %4765
    %4767 = vrot.lane.b32.xlu0 %v4730, 64
    %v4768 = vpop.permute.xlu0 %4767
    %4769 = vrot.lane.b32.xlu0 %v4731, 64
    %v4770 = vpop.permute.xlu0 %4769
    %4771 = vrot.lane.b32.xlu0 %v4732, 64
    %v4772 = vpop.permute.xlu0 %4771
    %4773 = vrot.lane.b32.xlu0 %v4733, 64
    %v4774 = vpop.permute.xlu0 %4773
    %4775 = vrot.lane.b32.xlu0 %v4734, 64
    %v4776 = vpop.permute.xlu0 %4775
    %v4783 = vmul.f32 %v4718, %v4766
    %v4784 = vmul.f32 %v4720, %v4768
    %v4785 = vmul.f32 %v4722, %v4770
    %v4786 = vmul.f32 %v4724, %v4772
    %v4787 = vmul.f32 %v4726, %v4774
    %v4788 = vmul.f32 %v4728, %v4776
    %4795 = vrot.lane.b32.xlu0 %v4783, 32
    %v4796 = vpop.permute.xlu0 %4795
    %4797 = vrot.lane.b32.xlu0 %v4784, 32
    %v4798 = vpop.permute.xlu0 %4797
    %4799 = vrot.lane.b32.xlu0 %v4785, 32
    %v4800 = vpop.permute.xlu0 %4799
    %4801 = vrot.lane.b32.xlu0 %v4786, 32
    %v4802 = vpop.permute.xlu0 %4801
    %4803 = vrot.lane.b32.xlu0 %v4787, 32
    %v4804 = vpop.permute.xlu0 %4803
    %4805 = vrot.lane.b32.xlu0 %v4788, 32
    %v4806 = vpop.permute.xlu0 %4805
    %v4813 = vadd.f32 %v4753, %v4796
    %v4814 = vadd.f32 %v4754, %v4798
    %v4815 = vadd.f32 %v4755, %v4800
    %v4816 = vadd.f32 %v4756, %v4802
    %v4817 = vadd.f32 %v4757, %v4804
    %v4818 = vadd.f32 %v4758, %v4806
    %v4819 = vtanh.pop %v4813
    %v4820 = vtanh.pop %v4814
    %v4821 = vtanh.pop %v4815
    %v4822 = vtanh.pop %v4816
    %v4823 = vtanh.pop %v4817
    %v4824 = vtanh.pop %v4818
    %4831 = vrot.lane.b32.xlu0 %v4819, 64
    %v4832 = vpop.permute.xlu0 %4831
    %4833 = vrot.lane.b32.xlu0 %v4820, 64
    %v4834 = vpop.permute.xlu0 %4833
    %4835 = vrot.lane.b32.xlu0 %v4821, 64
    %v4836 = vpop.permute.xlu0 %4835
    %4837 = vrot.lane.b32.xlu0 %v4822, 64
    %v4838 = vpop.permute.xlu0 %4837
    %4839 = vrot.lane.b32.xlu0 %v4823, 64
    %v4840 = vpop.permute.xlu0 %4839
    %4841 = vrot.lane.b32.xlu0 %v4824, 64
    %v4842 = vpop.permute.xlu0 %4841
    %v4849 = vmul.f32 %v4718, %v4832
    %v4850 = vmul.f32 %v4720, %v4834
    %v4851 = vmul.f32 %v4722, %v4836
    %v4852 = vmul.f32 %v4724, %v4838
    %v4853 = vmul.f32 %v4726, %v4840
    %v4854 = vmul.f32 %v4728, %v4842
    %v4855 = vsub.f32 0.0, %v4687
    %v4856 = vsub.f32 0.0, %v4688
    %v4857 = vsub.f32 0.0, %v4689
    %v4858 = vsub.f32 0.0, %v4690
    %v4859 = vsub.f32 0.0, %v4691
    %v4860 = vsub.f32 0.0, %v4692
    %v4861 = vmul.f32 %v4855, 1.442695
    %v4862 = vpow.pop %v4861
    %v4863 = vmul.f32 %v4856, 1.442695
    %v4864 = vpow.pop %v4863
    %v4865 = vmul.f32 %v4857, 1.442695
    %v4866 = vpow.pop %v4865
    %v4867 = vmul.f32 %v4858, 1.442695
    %v4868 = vpow.pop %v4867
    %v4869 = vmul.f32 %v4859, 1.442695
    %v4870 = vpow.pop %v4869
    %v4871 = vmul.f32 %v4860, 1.442695
    %v4872 = vpow.pop %v4871
    %v4873 = vadd.f32 %v4862, 1.0
    %v4874 = vadd.f32 %v4864, 1.0
    %v4875 = vadd.f32 %v4866, 1.0
    %v4876 = vadd.f32 %v4868, 1.0
    %v4877 = vadd.f32 %v4870, 1.0
    %v4878 = vadd.f32 %v4872, 1.0
    %v4879 = vrcp.pop %v4873
    %v4880 = vmul.f32 1.0, %v4879
    %v4881 = vrcp.pop %v4874
    %v4882 = vmul.f32 1.0, %v4881
    %v4883 = vrcp.pop %v4875
    %v4884 = vmul.f32 1.0, %v4883
    %v4885 = vrcp.pop %v4876
    %v4886 = vmul.f32 1.0, %v4885
    %v4887 = vrcp.pop %v4877
    %v4888 = vmul.f32 1.0, %v4887
    %v4889 = vrcp.pop %v4878
    %v4890 = vmul.f32 1.0, %v4889
    %v4891 = vtanh.pop %v4687
    %v4892 = vtanh.pop %v4688
    %v4893 = vtanh.pop %v4689
    %v4894 = vtanh.pop %v4690
    %v4895 = vtanh.pop %v4691
    %v4896 = vtanh.pop %v4692
    %v4903 = vrot.slane %v4383, 1
    %v4904 = vrot.slane %v4384, 1
    %v4905 = vrot.slane %v4385, 1
    %v4906 = vrot.slane %v4386, 1
    %v4907 = vrot.slane %v4387, 1
    %v4908 = vrot.slane %v4388, 1
    %v4915 = vmul.f32 %v4880, %v4903
    %v4916 = vmul.f32 %v4882, %v4904
    %v4917 = vmul.f32 %v4884, %v4905
    %v4918 = vmul.f32 %v4886, %v4906
    %v4919 = vmul.f32 %v4888, %v4907
    %v4920 = vmul.f32 %v4890, %v4908
    %4927 = vrot.lane.b32.xlu0 %v4891, 64
    %v4928 = vpop.permute.xlu0 %4927
    %4929 = vrot.lane.b32.xlu0 %v4892, 64
    %v4930 = vpop.permute.xlu0 %4929
    %4931 = vrot.lane.b32.xlu0 %v4893, 64
    %v4932 = vpop.permute.xlu0 %4931
    %4933 = vrot.lane.b32.xlu0 %v4894, 64
    %v4934 = vpop.permute.xlu0 %4933
    %4935 = vrot.lane.b32.xlu0 %v4895, 64
    %v4936 = vpop.permute.xlu0 %4935
    %4937 = vrot.lane.b32.xlu0 %v4896, 64
    %v4938 = vpop.permute.xlu0 %4937
    %v4945 = vmul.f32 %v4880, %v4928
    %v4946 = vmul.f32 %v4882, %v4930
    %v4947 = vmul.f32 %v4884, %v4932
    %v4948 = vmul.f32 %v4886, %v4934
    %v4949 = vmul.f32 %v4888, %v4936
    %v4950 = vmul.f32 %v4890, %v4938
    %4957 = vrot.lane.b32.xlu0 %v4945, 32
    %v4958 = vpop.permute.xlu0 %4957
    %4959 = vrot.lane.b32.xlu0 %v4946, 32
    %v4960 = vpop.permute.xlu0 %4959
    %4961 = vrot.lane.b32.xlu0 %v4947, 32
    %v4962 = vpop.permute.xlu0 %4961
    %4963 = vrot.lane.b32.xlu0 %v4948, 32
    %v4964 = vpop.permute.xlu0 %4963
    %4965 = vrot.lane.b32.xlu0 %v4949, 32
    %v4966 = vpop.permute.xlu0 %4965
    %4967 = vrot.lane.b32.xlu0 %v4950, 32
    %v4968 = vpop.permute.xlu0 %4967
    %v4975 = vadd.f32 %v4915, %v4958
    %v4976 = vadd.f32 %v4916, %v4960
    %v4977 = vadd.f32 %v4917, %v4962
    %v4978 = vadd.f32 %v4918, %v4964
    %v4979 = vadd.f32 %v4919, %v4966
    %v4980 = vadd.f32 %v4920, %v4968
    %v4981 = vtanh.pop %v4975
    %v4982 = vtanh.pop %v4976
    %v4983 = vtanh.pop %v4977
    %v4984 = vtanh.pop %v4978
    %v4985 = vtanh.pop %v4979
    %v4986 = vtanh.pop %v4980
    %4993 = vrot.lane.b32.xlu0 %v4981, 64
    %v4994 = vpop.permute.xlu0 %4993
    %4995 = vrot.lane.b32.xlu0 %v4982, 64
    %v4996 = vpop.permute.xlu0 %4995
    %4997 = vrot.lane.b32.xlu0 %v4983, 64
    %v4998 = vpop.permute.xlu0 %4997
    %4999 = vrot.lane.b32.xlu0 %v4984, 64
    %v5000 = vpop.permute.xlu0 %4999
    %5001 = vrot.lane.b32.xlu0 %v4985, 64
    %v5002 = vpop.permute.xlu0 %5001
    %5003 = vrot.lane.b32.xlu0 %v4986, 64
    %v5004 = vpop.permute.xlu0 %5003
    %v5011 = vmul.f32 %v4880, %v4994
    %v5012 = vmul.f32 %v4882, %v4996
    %v5013 = vmul.f32 %v4884, %v4998
    %v5014 = vmul.f32 %v4886, %v5000
    %v5015 = vmul.f32 %v4888, %v5002
    %v5016 = vmul.f32 %v4890, %v5004
    %5023 = vrot.lane.b32.xlu0 %v4849, 32
    %v5024 = vpop.permute.xlu0 %5023
    %5025 = vrot.lane.b32.xlu0 %v4850, 32
    %v5026 = vpop.permute.xlu0 %5025
    %5027 = vrot.lane.b32.xlu0 %v4851, 32
    %v5028 = vpop.permute.xlu0 %5027
    %5029 = vrot.lane.b32.xlu0 %v4852, 32
    %v5030 = vpop.permute.xlu0 %5029
    %5031 = vrot.lane.b32.xlu0 %v4853, 32
    %v5032 = vpop.permute.xlu0 %5031
    %5033 = vrot.lane.b32.xlu0 %v4854, 32
    %v5034 = vpop.permute.xlu0 %5033
    %vm5041 = vcmask 261127
    %5042 = vst.msk [vmem:[#allocation2] sm:$0x80] %vm5041, %v5024
    %5043 = vst.msk [vmem:[#allocation2 + $0x8] sm:$0x80] %vm5041, %v5026
    %5044 = vst.msk [vmem:[#allocation2 + $0x10] sm:$0x80] %vm5041, %v5028
    %5045 = vst.msk [vmem:[#allocation2 + $0x18] sm:$0x80] %vm5041, %v5030
    %5046 = vst.msk [vmem:[#allocation2 + $0x20] sm:$0x80] %vm5041, %v5032
    %5047 = vst.msk [vmem:[#allocation2 + $0x28] sm:$0x80] %vm5041, %v5034
    %5054 = vrot.lane.b32.xlu0 %v5011, 64
    %v5055 = vpop.permute.xlu0 %5054
    %5056 = vrot.lane.b32.xlu0 %v5012, 64
    %v5057 = vpop.permute.xlu0 %5056
    %5058 = vrot.lane.b32.xlu0 %v5013, 64
    %v5059 = vpop.permute.xlu0 %5058
    %5060 = vrot.lane.b32.xlu0 %v5014, 64
    %v5061 = vpop.permute.xlu0 %5060
    %5062 = vrot.lane.b32.xlu0 %v5015, 64
    %v5063 = vpop.permute.xlu0 %5062
    %5064 = vrot.lane.b32.xlu0 %v5016, 64
    %v5065 = vpop.permute.xlu0 %5064
    %vm5072 = vcmask 516352
    %5073 = vst.msk [vmem:[#allocation2] sm:$0x1] %vm5072, %v5055
    %5074 = vst.msk [vmem:[#allocation2 + $0x8] sm:$0x1] %vm5072, %v5057
    %5075 = vst.msk [vmem:[#allocation2 + $0x10] sm:$0x1] %vm5072, %v5059
    %5076 = vst.msk [vmem:[#allocation2 + $0x18] sm:$0x1] %vm5072, %v5061
    %5077 = vst.msk [vmem:[#allocation2 + $0x20] sm:$0x1] %vm5072, %v5063
    %5078 = vst.msk [vmem:[#allocation2 + $0x28] sm:$0x1] %vm5072, %v5065
    %v5079 = vld [vmem:[#allocation2] sm:$0xff]
    %v5080 = vld [vmem:[#allocation2 + $0x8] sm:$0xff]
    %v5081 = vld [vmem:[#allocation2 + $0x10] sm:$0xff]
    %v5082 = vld [vmem:[#allocation2 + $0x18] sm:$0xff]
    %v5083 = vld [vmem:[#allocation2 + $0x20] sm:$0xff]
    %v5084 = vld [vmem:[#allocation2 + $0x28] sm:$0xff]
    %v5085 = vld [vmem:[%s12] sm:$0xff]
    %v5086 = vld [vmem:[%s12 + $0x8] sm:$0xff]
    %v5087 = vld [vmem:[%s12 + $0x10] sm:$0xff]
    %v5088 = vld [vmem:[%s12 + $0x18] sm:$0xff]
    %v5089 = vld [vmem:[%s12 + $0x20] sm:$0xff]
    %v5090 = vld [vmem:[%s12 + $0x28] sm:$0xff]
    %v5091 = vld [vmem:[%s12 + $0x30] sm:$0xff]
    %v5092 = vld [vmem:[%s12 + $0x38] sm:$0xff]
    %v5093 = vld [vmem:[%s13] sm:$0x1]
    %vm5094 = vcmask 523264
    %v5096 = vsel %vm5094, %v5079, 0
    %5098 = vmatprep.subr.mxu0 0.0
    %5099 = vmatpush1.xpose.msra.mxu0 0.0
    %5100 = vmatprep.subr.mxu0 0.0
    %5101 = vmatpush1.xpose.msra.mxu0 0.0
    %5102 = vmatprep.subr.mxu0 0.0
    %5103 = vmatpush1.xpose.msra.mxu0 0.0
    %5104 = vmatprep.subr.mxu0 0.0
    %5105 = vmatpush1.xpose.msra.mxu0 0.0
    %5106 = vmatprep.subr.mxu0 0.0
    %5107 = vmatpush1.xpose.msra.mxu0 0.0
    %5108 = vmatprep.subr.mxu0 0.0
    %5109 = vmatpush1.xpose.msra.mxu0 0.0
    %5110 = vmatprep.subr.mxu0 0.0
    %5111 = vmatpush1.xpose.msra.mxu0 0.0
    %5112 = vmatprep.subr.mxu0 0.0
    %5113 = vmatpush1.xpose.msra.mxu0 0.0
    %5114 = vmatprep.subr.mxu0 0.0
    %5115 = vmatpush1.xpose.msra.mxu0 0.0
    %5116 = vmatprep.subr.mxu0 0.0
    %5117 = vmatpush1.xpose.msra.mxu0 0.0
    %5118 = vmatprep.subr.mxu0 0.0
    %5119 = vmatpush1.xpose.msra.mxu0 0.0
    %5120 = vmatprep.subr.mxu0 0.0
    %5121 = vmatpush1.xpose.msra.mxu0 0.0
    %5122 = vmatprep.subr.mxu0 0.0
    %5123 = vmatpush1.xpose.msra.mxu0 0.0
    %5124 = vmatprep.subr.mxu0 0.0
    %5125 = vmatpush1.xpose.msra.mxu0 0.0
    %5126 = vmatprep.subr.mxu0 0.0
    %5127 = vmatpush1.xpose.msra.mxu0 0.0
    %5128 = vmatprep.subr.mxu0 0.0
    %5129 = vmatpush1.xpose.msra.mxu0 %v5096
    %5130 = vmatprep.subr.mxu0 0.0
    %5131 = vmatpush2.xpose.msra.mxu0 0.0
    %5132 = vmatprep.subr.mxu0 0.0
    %5133 = vmatpush2.xpose.msra.mxu0 0.0
    %5134 = vmatprep.subr.mxu0 0.0
    %5135 = vmatpush2.xpose.msra.mxu0 0.0
    %5136 = vmatprep.subr.mxu0 0.0
    %5137 = vmatpush2.xpose.msra.mxu0 0.0
    %5138 = vmatprep.subr.mxu0 0.0
    %5139 = vmatpush2.xpose.msra.mxu0 0.0
    %5140 = vmatprep.subr.mxu0 0.0
    %5141 = vmatpush2.xpose.msra.mxu0 0.0
    %5142 = vmatprep.subr.mxu0 0.0
    %5143 = vmatpush2.xpose.msra.mxu0 0.0
    %5144 = vmatprep.subr.mxu0 0.0
    %5145 = vmatpush2.xpose.msra.mxu0 0.0
    %5146 = vmatprep.subr.mxu0 0.0
    %5147 = vmatpush2.xpose.msra.mxu0 0.0
    %5148 = vmatprep.subr.mxu0 0.0
    %5149 = vmatpush2.xpose.msra.mxu0 0.0
    %5150 = vmatprep.subr.mxu0 0.0
    %5151 = vmatpush2.xpose.msra.mxu0 0.0
    %5152 = vmatprep.subr.mxu0 0.0
    %5153 = vmatpush2.xpose.msra.mxu0 0.0
    %5154 = vmatprep.subr.mxu0 0.0
    %5155 = vmatpush2.xpose.msra.mxu0 0.0
    %5156 = vmatprep.subr.mxu0 0.0
    %5157 = vmatpush2.xpose.msra.mxu0 0.0
    %5158 = vmatprep.subr.mxu0 0.0
    %5159 = vmatpush2.xpose.msra.mxu0 0.0
    %5160 = vmatprep.subr.mxu0 0.0
    %5161 = vmatpush2.xpose.msra.mxu0 0.0
    %5162 = vmatprep.mubr.f32.mxu0 0.0
    %5163 = vmatmul.mubr.f32.gmra.mxu0 %v5096
    %v5164 = vpop.f32.mrf.mxu0
    %v5165 = vadd.f32 0.0, %v5164
    %v5166 = vpop.f32.mrf.mxu0
    %5167 = vdwg.mxu0
    %v5169 = vsel %vm5094, %v5080, 0
    %5171 = vmatprep.subr.mxu0 0.0
    %5172 = vmatpush1.xpose.msra.mxu0 0.0
    %5173 = vmatprep.subr.mxu0 0.0
    %5174 = vmatpush1.xpose.msra.mxu0 0.0
    %5175 = vmatprep.subr.mxu0 0.0
    %5176 = vmatpush1.xpose.msra.mxu0 0.0
    %5177 = vmatprep.subr.mxu0 0.0
    %5178 = vmatpush1.xpose.msra.mxu0 0.0
    %5179 = vmatprep.subr.mxu0 0.0
    %5180 = vmatpush1.xpose.msra.mxu0 0.0
    %5181 = vmatprep.subr.mxu0 0.0
    %5182 = vmatpush1.xpose.msra.mxu0 0.0
    %5183 = vmatprep.subr.mxu0 0.0
    %5184 = vmatpush1.xpose.msra.mxu0 0.0
    %5185 = vmatprep.subr.mxu0 0.0
    %5186 = vmatpush1.xpose.msra.mxu0 0.0
    %5187 = vmatprep.subr.mxu0 0.0
    %5188 = vmatpush1.xpose.msra.mxu0 0.0
    %5189 = vmatprep.subr.mxu0 0.0
    %5190 = vmatpush1.xpose.msra.mxu0 0.0
    %5191 = vmatprep.subr.mxu0 0.0
    %5192 = vmatpush1.xpose.msra.mxu0 0.0
    %5193 = vmatprep.subr.mxu0 0.0
    %5194 = vmatpush1.xpose.msra.mxu0 0.0
    %5195 = vmatprep.subr.mxu0 0.0
    %5196 = vmatpush1.xpose.msra.mxu0 0.0
    %5197 = vmatprep.subr.mxu0 0.0
    %5198 = vmatpush1.xpose.msra.mxu0 0.0
    %5199 = vmatprep.subr.mxu0 0.0
    %5200 = vmatpush1.xpose.msra.mxu0 0.0
    %5201 = vmatprep.subr.mxu0 0.0
    %5202 = vmatpush1.xpose.msra.mxu0 %v5169
    %5203 = vmatprep.subr.mxu0 0.0
    %5204 = vmatpush2.xpose.msra.mxu0 0.0
    %5205 = vmatprep.subr.mxu0 0.0
    %5206 = vmatpush2.xpose.msra.mxu0 0.0
    %5207 = vmatprep.subr.mxu0 0.0
    %5208 = vmatpush2.xpose.msra.mxu0 0.0
    %5209 = vmatprep.subr.mxu0 0.0
    %5210 = vmatpush2.xpose.msra.mxu0 0.0
    %5211 = vmatprep.subr.mxu0 0.0
    %5212 = vmatpush2.xpose.msra.mxu0 0.0
    %5213 = vmatprep.subr.mxu0 0.0
    %5214 = vmatpush2.xpose.msra.mxu0 0.0
    %5215 = vmatprep.subr.mxu0 0.0
    %5216 = vmatpush2.xpose.msra.mxu0 0.0
    %5217 = vmatprep.subr.mxu0 0.0
    %5218 = vmatpush2.xpose.msra.mxu0 0.0
    %5219 = vmatprep.subr.mxu0 0.0
    %5220 = vmatpush2.xpose.msra.mxu0 0.0
    %5221 = vmatprep.subr.mxu0 0.0
    %5222 = vmatpush2.xpose.msra.mxu0 0.0
    %5223 = vmatprep.subr.mxu0 0.0
    %5224 = vmatpush2.xpose.msra.mxu0 0.0
    %5225 = vmatprep.subr.mxu0 0.0
    %5226 = vmatpush2.xpose.msra.mxu0 0.0
    %5227 = vmatprep.subr.mxu0 0.0
    %5228 = vmatpush2.xpose.msra.mxu0 0.0
    %5229 = vmatprep.subr.mxu0 0.0
    %5230 = vmatpush2.xpose.msra.mxu0 0.0
    %5231 = vmatprep.subr.mxu0 0.0
    %5232 = vmatpush2.xpose.msra.mxu0 0.0
    %5233 = vmatprep.subr.mxu0 0.0
    %5234 = vmatpush2.xpose.msra.mxu0 0.0
    %5235 = vmatprep.mubr.f32.mxu0 0.0
    %5236 = vmatmul.mubr.f32.gmra.mxu0 %v5169
    %v5237 = vpop.f32.mrf.mxu0
    %v5238 = vadd.f32 0.0, %v5237
    %v5239 = vpop.f32.mrf.mxu0
    %5240 = vdwg.mxu0
    %v5242 = vsel %vm5094, %v5081, 0
    %5244 = vmatprep.subr.mxu0 0.0
    %5245 = vmatpush1.xpose.msra.mxu0 0.0
    %5246 = vmatprep.subr.mxu0 0.0
    %5247 = vmatpush1.xpose.msra.mxu0 0.0
    %5248 = vmatprep.subr.mxu0 0.0
    %5249 = vmatpush1.xpose.msra.mxu0 0.0
    %5250 = vmatprep.subr.mxu0 0.0
    %5251 = vmatpush1.xpose.msra.mxu0 0.0
    %5252 = vmatprep.subr.mxu0 0.0
    %5253 = vmatpush1.xpose.msra.mxu0 0.0
    %5254 = vmatprep.subr.mxu0 0.0
    %5255 = vmatpush1.xpose.msra.mxu0 0.0
    %5256 = vmatprep.subr.mxu0 0.0
    %5257 = vmatpush1.xpose.msra.mxu0 0.0
    %5258 = vmatprep.subr.mxu0 0.0
    %5259 = vmatpush1.xpose.msra.mxu0 0.0
    %5260 = vmatprep.subr.mxu0 0.0
    %5261 = vmatpush1.xpose.msra.mxu0 0.0
    %5262 = vmatprep.subr.mxu0 0.0
    %5263 = vmatpush1.xpose.msra.mxu0 0.0
    %5264 = vmatprep.subr.mxu0 0.0
    %5265 = vmatpush1.xpose.msra.mxu0 0.0
    %5266 = vmatprep.subr.mxu0 0.0
    %5267 = vmatpush1.xpose.msra.mxu0 0.0
    %5268 = vmatprep.subr.mxu0 0.0
    %5269 = vmatpush1.xpose.msra.mxu0 0.0
    %5270 = vmatprep.subr.mxu0 0.0
    %5271 = vmatpush1.xpose.msra.mxu0 0.0
    %5272 = vmatprep.subr.mxu0 0.0
    %5273 = vmatpush1.xpose.msra.mxu0 0.0
    %5274 = vmatprep.subr.mxu0 0.0
    %5275 = vmatpush1.xpose.msra.mxu0 %v5242
    %5276 = vmatprep.subr.mxu0 0.0
    %5277 = vmatpush2.xpose.msra.mxu0 0.0
    %5278 = vmatprep.subr.mxu0 0.0
    %5279 = vmatpush2.xpose.msra.mxu0 0.0
    %5280 = vmatprep.subr.mxu0 0.0
    %5281 = vmatpush2.xpose.msra.mxu0 0.0
    %5282 = vmatprep.subr.mxu0 0.0
    %5283 = vmatpush2.xpose.msra.mxu0 0.0
    %5284 = vmatprep.subr.mxu0 0.0
    %5285 = vmatpush2.xpose.msra.mxu0 0.0
    %5286 = vmatprep.subr.mxu0 0.0
    %5287 = vmatpush2.xpose.msra.mxu0 0.0
    %5288 = vmatprep.subr.mxu0 0.0
    %5289 = vmatpush2.xpose.msra.mxu0 0.0
    %5290 = vmatprep.subr.mxu0 0.0
    %5291 = vmatpush2.xpose.msra.mxu0 0.0
    %5292 = vmatprep.subr.mxu0 0.0
    %5293 = vmatpush2.xpose.msra.mxu0 0.0
    %5294 = vmatprep.subr.mxu0 0.0
    %5295 = vmatpush2.xpose.msra.mxu0 0.0
    %5296 = vmatprep.subr.mxu0 0.0
    %5297 = vmatpush2.xpose.msra.mxu0 0.0
    %5298 = vmatprep.subr.mxu0 0.0
    %5299 = vmatpush2.xpose.msra.mxu0 0.0
    %5300 = vmatprep.subr.mxu0 0.0
    %5301 = vmatpush2.xpose.msra.mxu0 0.0
    %5302 = vmatprep.subr.mxu0 0.0
    %5303 = vmatpush2.xpose.msra.mxu0 0.0
    %5304 = vmatprep.subr.mxu0 0.0
    %5305 = vmatpush2.xpose.msra.mxu0 0.0
    %5306 = vmatprep.subr.mxu0 0.0
    %5307 = vmatpush2.xpose.msra.mxu0 0.0
    %5308 = vmatprep.mubr.f32.mxu0 0.0
    %5309 = vmatmul.mubr.f32.gmra.mxu0 %v5242
    %v5310 = vpop.f32.mrf.mxu0
    %v5311 = vadd.f32 0.0, %v5310
    %v5312 = vpop.f32.mrf.mxu0
    %5313 = vdwg.mxu0
    %v5315 = vsel %vm5094, %v5082, 0
    %5317 = vmatprep.subr.mxu0 0.0
    %5318 = vmatpush1.xpose.msra.mxu0 0.0
    %5319 = vmatprep.subr.mxu0 0.0
    %5320 = vmatpush1.xpose.msra.mxu0 0.0
    %5321 = vmatprep.subr.mxu0 0.0
    %5322 = vmatpush1.xpose.msra.mxu0 0.0
    %5323 = vmatprep.subr.mxu0 0.0
    %5324 = vmatpush1.xpose.msra.mxu0 0.0
    %5325 = vmatprep.subr.mxu0 0.0
    %5326 = vmatpush1.xpose.msra.mxu0 0.0
    %5327 = vmatprep.subr.mxu0 0.0
    %5328 = vmatpush1.xpose.msra.mxu0 0.0
    %5329 = vmatprep.subr.mxu0 0.0
    %5330 = vmatpush1.xpose.msra.mxu0 0.0
    %5331 = vmatprep.subr.mxu0 0.0
    %5332 = vmatpush1.xpose.msra.mxu0 0.0
    %5333 = vmatprep.subr.mxu0 0.0
    %5334 = vmatpush1.xpose.msra.mxu0 0.0
    %5335 = vmatprep.subr.mxu0 0.0
    %5336 = vmatpush1.xpose.msra.mxu0 0.0
    %5337 = vmatprep.subr.mxu0 0.0
    %5338 = vmatpush1.xpose.msra.mxu0 0.0
    %5339 = vmatprep.subr.mxu0 0.0
    %5340 = vmatpush1.xpose.msra.mxu0 0.0
    %5341 = vmatprep.subr.mxu0 0.0
    %5342 = vmatpush1.xpose.msra.mxu0 0.0
    %5343 = vmatprep.subr.mxu0 0.0
    %5344 = vmatpush1.xpose.msra.mxu0 0.0
    %5345 = vmatprep.subr.mxu0 0.0
    %5346 = vmatpush1.xpose.msra.mxu0 0.0
    %5347 = vmatprep.subr.mxu0 0.0
    %5348 = vmatpush1.xpose.msra.mxu0 %v5315
    %5349 = vmatprep.subr.mxu0 0.0
    %5350 = vmatpush2.xpose.msra.mxu0 0.0
    %5351 = vmatprep.subr.mxu0 0.0
    %5352 = vmatpush2.xpose.msra.mxu0 0.0
    %5353 = vmatprep.subr.mxu0 0.0
    %5354 = vmatpush2.xpose.msra.mxu0 0.0
    %5355 = vmatprep.subr.mxu0 0.0
    %5356 = vmatpush2.xpose.msra.mxu0 0.0
    %5357 = vmatprep.subr.mxu0 0.0
    %5358 = vmatpush2.xpose.msra.mxu0 0.0
    %5359 = vmatprep.subr.mxu0 0.0
    %5360 = vmatpush2.xpose.msra.mxu0 0.0
    %5361 = vmatprep.subr.mxu0 0.0
    %5362 = vmatpush2.xpose.msra.mxu0 0.0
    %5363 = vmatprep.subr.mxu0 0.0
    %5364 = vmatpush2.xpose.msra.mxu0 0.0
    %5365 = vmatprep.subr.mxu0 0.0
    %5366 = vmatpush2.xpose.msra.mxu0 0.0
    %5367 = vmatprep.subr.mxu0 0.0
    %5368 = vmatpush2.xpose.msra.mxu0 0.0
    %5369 = vmatprep.subr.mxu0 0.0
    %5370 = vmatpush2.xpose.msra.mxu0 0.0
    %5371 = vmatprep.subr.mxu0 0.0
    %5372 = vmatpush2.xpose.msra.mxu0 0.0
    %5373 = vmatprep.subr.mxu0 0.0
    %5374 = vmatpush2.xpose.msra.mxu0 0.0
    %5375 = vmatprep.subr.mxu0 0.0
    %5376 = vmatpush2.xpose.msra.mxu0 0.0
    %5377 = vmatprep.subr.mxu0 0.0
    %5378 = vmatpush2.xpose.msra.mxu0 0.0
    %5379 = vmatprep.subr.mxu0 0.0
    %5380 = vmatpush2.xpose.msra.mxu0 0.0
    %5381 = vmatprep.mubr.f32.mxu0 0.0
    %5382 = vmatmul.mubr.f32.gmra.mxu0 %v5315
    %v5383 = vpop.f32.mrf.mxu0
    %v5384 = vadd.f32 0.0, %v5383
    %v5385 = vpop.f32.mrf.mxu0
    %5386 = vdwg.mxu0
    %v5388 = vsel %vm5094, %v5083, 0
    %5390 = vmatprep.subr.mxu0 0.0
    %5391 = vmatpush1.xpose.msra.mxu0 0.0
    %5392 = vmatprep.subr.mxu0 0.0
    %5393 = vmatpush1.xpose.msra.mxu0 0.0
    %5394 = vmatprep.subr.mxu0 0.0
    %5395 = vmatpush1.xpose.msra.mxu0 0.0
    %5396 = vmatprep.subr.mxu0 0.0
    %5397 = vmatpush1.xpose.msra.mxu0 0.0
    %5398 = vmatprep.subr.mxu0 0.0
    %5399 = vmatpush1.xpose.msra.mxu0 0.0
    %5400 = vmatprep.subr.mxu0 0.0
    %5401 = vmatpush1.xpose.msra.mxu0 0.0
    %5402 = vmatprep.subr.mxu0 0.0
    %5403 = vmatpush1.xpose.msra.mxu0 0.0
    %5404 = vmatprep.subr.mxu0 0.0
    %5405 = vmatpush1.xpose.msra.mxu0 0.0
    %5406 = vmatprep.subr.mxu0 0.0
    %5407 = vmatpush1.xpose.msra.mxu0 0.0
    %5408 = vmatprep.subr.mxu0 0.0
    %5409 = vmatpush1.xpose.msra.mxu0 0.0
    %5410 = vmatprep.subr.mxu0 0.0
    %5411 = vmatpush1.xpose.msra.mxu0 0.0
    %5412 = vmatprep.subr.mxu0 0.0
    %5413 = vmatpush1.xpose.msra.mxu0 0.0
    %5414 = vmatprep.subr.mxu0 0.0
    %5415 = vmatpush1.xpose.msra.mxu0 0.0
    %5416 = vmatprep.subr.mxu0 0.0
    %5417 = vmatpush1.xpose.msra.mxu0 0.0
    %5418 = vmatprep.subr.mxu0 0.0
    %5419 = vmatpush1.xpose.msra.mxu0 0.0
    %5420 = vmatprep.subr.mxu0 0.0
    %5421 = vmatpush1.xpose.msra.mxu0 %v5388
    %5422 = vmatprep.subr.mxu0 0.0
    %5423 = vmatpush2.xpose.msra.mxu0 0.0
    %5424 = vmatprep.subr.mxu0 0.0
    %5425 = vmatpush2.xpose.msra.mxu0 0.0
    %5426 = vmatprep.subr.mxu0 0.0
    %5427 = vmatpush2.xpose.msra.mxu0 0.0
    %5428 = vmatprep.subr.mxu0 0.0
    %5429 = vmatpush2.xpose.msra.mxu0 0.0
    %5430 = vmatprep.subr.mxu0 0.0
    %5431 = vmatpush2.xpose.msra.mxu0 0.0
    %5432 = vmatprep.subr.mxu0 0.0
    %5433 = vmatpush2.xpose.msra.mxu0 0.0
    %5434 = vmatprep.subr.mxu0 0.0
    %5435 = vmatpush2.xpose.msra.mxu0 0.0
    %5436 = vmatprep.subr.mxu0 0.0
    %5437 = vmatpush2.xpose.msra.mxu0 0.0
    %5438 = vmatprep.subr.mxu0 0.0
    %5439 = vmatpush2.xpose.msra.mxu0 0.0
    %5440 = vmatprep.subr.mxu0 0.0
    %5441 = vmatpush2.xpose.msra.mxu0 0.0
    %5442 = vmatprep.subr.mxu0 0.0
    %5443 = vmatpush2.xpose.msra.mxu0 0.0
    %5444 = vmatprep.subr.mxu0 0.0
    %5445 = vmatpush2.xpose.msra.mxu0 0.0
    %5446 = vmatprep.subr.mxu0 0.0
    %5447 = vmatpush2.xpose.msra.mxu0 0.0
    %5448 = vmatprep.subr.mxu0 0.0
    %5449 = vmatpush2.xpose.msra.mxu0 0.0
    %5450 = vmatprep.subr.mxu0 0.0
    %5451 = vmatpush2.xpose.msra.mxu0 0.0
    %5452 = vmatprep.subr.mxu0 0.0
    %5453 = vmatpush2.xpose.msra.mxu0 0.0
    %5454 = vmatprep.mubr.f32.mxu0 0.0
    %5455 = vmatmul.mubr.f32.gmra.mxu0 %v5388
    %v5456 = vpop.f32.mrf.mxu0
    %v5457 = vadd.f32 0.0, %v5456
    %v5458 = vpop.f32.mrf.mxu0
    %5459 = vdwg.mxu0
    %v5461 = vsel %vm5094, %v5084, 0
    %5463 = vmatprep.subr.mxu0 0.0
    %5464 = vmatpush1.xpose.msra.mxu0 0.0
    %5465 = vmatprep.subr.mxu0 0.0
    %5466 = vmatpush1.xpose.msra.mxu0 0.0
    %5467 = vmatprep.subr.mxu0 0.0
    %5468 = vmatpush1.xpose.msra.mxu0 0.0
    %5469 = vmatprep.subr.mxu0 0.0
    %5470 = vmatpush1.xpose.msra.mxu0 0.0
    %5471 = vmatprep.subr.mxu0 0.0
    %5472 = vmatpush1.xpose.msra.mxu0 0.0
    %5473 = vmatprep.subr.mxu0 0.0
    %5474 = vmatpush1.xpose.msra.mxu0 0.0
    %5475 = vmatprep.subr.mxu0 0.0
    %5476 = vmatpush1.xpose.msra.mxu0 0.0
    %5477 = vmatprep.subr.mxu0 0.0
    %5478 = vmatpush1.xpose.msra.mxu0 0.0
    %5479 = vmatprep.subr.mxu0 0.0
    %5480 = vmatpush1.xpose.msra.mxu0 0.0
    %5481 = vmatprep.subr.mxu0 0.0
    %5482 = vmatpush1.xpose.msra.mxu0 0.0
    %5483 = vmatprep.subr.mxu0 0.0
    %5484 = vmatpush1.xpose.msra.mxu0 0.0
    %5485 = vmatprep.subr.mxu0 0.0
    %5486 = vmatpush1.xpose.msra.mxu0 0.0
    %5487 = vmatprep.subr.mxu0 0.0
    %5488 = vmatpush1.xpose.msra.mxu0 0.0
    %5489 = vmatprep.subr.mxu0 0.0
    %5490 = vmatpush1.xpose.msra.mxu0 0.0
    %5491 = vmatprep.subr.mxu0 0.0
    %5492 = vmatpush1.xpose.msra.mxu0 0.0
    %5493 = vmatprep.subr.mxu0 0.0
    %5494 = vmatpush1.xpose.msra.mxu0 %v5461
    %5495 = vmatprep.subr.mxu0 0.0
    %5496 = vmatpush2.xpose.msra.mxu0 0.0
    %5497 = vmatprep.subr.mxu0 0.0
    %5498 = vmatpush2.xpose.msra.mxu0 0.0
    %5499 = vmatprep.subr.mxu0 0.0
    %5500 = vmatpush2.xpose.msra.mxu0 0.0
    %5501 = vmatprep.subr.mxu0 0.0
    %5502 = vmatpush2.xpose.msra.mxu0 0.0
    %5503 = vmatprep.subr.mxu0 0.0
    %5504 = vmatpush2.xpose.msra.mxu0 0.0
    %5505 = vmatprep.subr.mxu0 0.0
    %5506 = vmatpush2.xpose.msra.mxu0 0.0
    %5507 = vmatprep.subr.mxu0 0.0
    %5508 = vmatpush2.xpose.msra.mxu0 0.0
    %5509 = vmatprep.subr.mxu0 0.0
    %5510 = vmatpush2.xpose.msra.mxu0 0.0
    %5511 = vmatprep.subr.mxu0 0.0
    %5512 = vmatpush2.xpose.msra.mxu0 0.0
    %5513 = vmatprep.subr.mxu0 0.0
    %5514 = vmatpush2.xpose.msra.mxu0 0.0
    %5515 = vmatprep.subr.mxu0 0.0
    %5516 = vmatpush2.xpose.msra.mxu0 0.0
    %5517 = vmatprep.subr.mxu0 0.0
    %5518 = vmatpush2.xpose.msra.mxu0 0.0
    %5519 = vmatprep.subr.mxu0 0.0
    %5520 = vmatpush2.xpose.msra.mxu0 0.0
    %5521 = vmatprep.subr.mxu0 0.0
    %5522 = vmatpush2.xpose.msra.mxu0 0.0
    %5523 = vmatprep.subr.mxu0 0.0
    %5524 = vmatpush2.xpose.msra.mxu0 0.0
    %5525 = vmatprep.subr.mxu0 0.0
    %5526 = vmatpush2.xpose.msra.mxu0 0.0
    %5527 = vmatprep.mubr.f32.mxu0 0.0
    %5528 = vmatmul.mubr.f32.gmra.mxu0 %v5461
    %v5529 = vpop.f32.mrf.mxu0
    %v5530 = vadd.f32 0.0, %v5529
    %v5531 = vpop.f32.mrf.mxu0
    %5532 = vdwg.mxu0
    %v5533 = vmul.f32 %v5165, 0.125
    %v5534 = vmul.f32 %v5238, 0.125
    %v5535 = vmul.f32 %v5311, 0.125
    %v5536 = vmul.f32 %v5384, 0.125
    %v5537 = vmul.f32 %v5457, 0.125
    %v5538 = vmul.f32 %v5530, 0.125
    %vm5539 = vcmask 64512
    %v5540 = vsel %vm5539, %v5533, -inf
    %5541 = vmax.xlane.f32.xlu0 %v5540
    %v5542 = vpop.xlane.xlu0 %5541
    %v5543 = vsel %vm5539, %v5534, -inf
    %5544 = vmax.xlane.f32.xlu0 %v5543
    %v5545 = vpop.xlane.xlu0 %5544
    %v5546 = vsel %vm5539, %v5535, -inf
    %5547 = vmax.xlane.f32.xlu0 %v5546
    %v5548 = vpop.xlane.xlu0 %5547
    %v5549 = vsel %vm5539, %v5536, -inf
    %5550 = vmax.xlane.f32.xlu0 %v5549
    %v5551 = vpop.xlane.xlu0 %5550
    %v5552 = vsel %vm5539, %v5537, -inf
    %5553 = vmax.xlane.f32.xlu0 %v5552
    %v5554 = vpop.xlane.xlu0 %5553
    %v5555 = vsel %vm5539, %v5538, -inf
    %5556 = vmax.xlane.f32.xlu0 %v5555
    %v5557 = vpop.xlane.xlu0 %5556
    %v5558 = vsub.f32 %v5533, %v5542
    %v5559 = vsub.f32 %v5534, %v5545
    %v5560 = vsub.f32 %v5535, %v5548
    %v5561 = vsub.f32 %v5536, %v5551
    %v5562 = vsub.f32 %v5537, %v5554
    %v5563 = vsub.f32 %v5538, %v5557
    %v5564 = vmul.f32 %v5558, 1.442695
    %v5565 = vpow.pop %v5564
    %v5566 = vmul.f32 %v5559, 1.442695
    %v5567 = vpow.pop %v5566
    %v5568 = vmul.f32 %v5560, 1.442695
    %v5569 = vpow.pop %v5568
    %v5570 = vmul.f32 %v5561, 1.442695
    %v5571 = vpow.pop %v5570
    %v5572 = vmul.f32 %v5562, 1.442695
    %v5573 = vpow.pop %v5572
    %v5574 = vmul.f32 %v5563, 1.442695
    %v5575 = vpow.pop %v5574
    %v5576 = vsel %vm5539, %v5565, 0.0
    %5577 = vadd.xlane.f32.xlu0 %v5576
    %v5578 = vpop.xlane.xlu0 %5577
    %v5579 = vsel %vm5539, %v5567, 0.0
    %5580 = vadd.xlane.f32.xlu0 %v5579
    %v5581 = vpop.xlane.xlu0 %5580
    %v5582 = vsel %vm5539, %v5569, 0.0
    %5583 = vadd.xlane.f32.xlu0 %v5582
    %v5584 = vpop.xlane.xlu0 %5583
    %v5585 = vsel %vm5539, %v5571, 0.0
    %5586 = vadd.xlane.f32.xlu0 %v5585
    %v5587 = vpop.xlane.xlu0 %5586
    %v5588 = vsel %vm5539, %v5573, 0.0
    %5589 = vadd.xlane.f32.xlu0 %v5588
    %v5590 = vpop.xlane.xlu0 %5589
    %v5591 = vsel %vm5539, %v5575, 0.0
    %5592 = vadd.xlane.f32.xlu0 %v5591
    %v5593 = vpop.xlane.xlu0 %5592
    %v5594 = vrcp.pop %v5578
    %v5595 = vrcp.pop %v5581
    %v5596 = vrcp.pop %v5584
    %v5597 = vrcp.pop %v5587
    %v5598 = vrcp.pop %v5590
    %v5599 = vrcp.pop %v5593
    %v5600 = vmul.f32 %v5565, %v5594
    %v5601 = vmul.f32 %v5567, %v5595
    %v5602 = vmul.f32 %v5569, %v5596
    %v5603 = vmul.f32 %v5571, %v5597
    %v5604 = vmul.f32 %v5573, %v5598
    %v5605 = vmul.f32 %v5575, %v5599
    %v5606 = vsel %vm5539, %v5600, 0.0
    %v5607 = vrot.slane %v5606, 4
    %v5608 = vadd.f32 %v5606, %v5607
    %v5609 = vrot.slane %v5608, 2
    %v5610 = vadd.f32 %v5608, %v5609
    %v5611 = vrot.slane %v5610, 1
    %v5612 = vadd.f32 %v5610, %v5611
    %v5613 = vsel %vm5539, %v5601, 0.0
    %v5614 = vrot.slane %v5613, 4
    %v5615 = vadd.f32 %v5613, %v5614
    %v5616 = vrot.slane %v5615, 2
    %v5617 = vadd.f32 %v5615, %v5616
    %v5618 = vrot.slane %v5617, 1
    %v5619 = vadd.f32 %v5617, %v5618
    %v5620 = vsel %vm5539, %v5602, 0.0
    %v5621 = vrot.slane %v5620, 4
    %v5622 = vadd.f32 %v5620, %v5621
    %v5623 = vrot.slane %v5622, 2
    %v5624 = vadd.f32 %v5622, %v5623
    %v5625 = vrot.slane %v5624, 1
    %v5626 = vadd.f32 %v5624, %v5625
    %v5627 = vsel %vm5539, %v5603, 0.0
    %v5628 = vrot.slane %v5627, 4
    %v5629 = vadd.f32 %v5627, %v5628
    %v5630 = vrot.slane %v5629, 2
    %v5631 = vadd.f32 %v5629, %v5630
    %v5632 = vrot.slane %v5631, 1
    %v5633 = vadd.f32 %v5631, %v5632
    %v5634 = vsel %vm5539, %v5604, 0.0
    %v5635 = vrot.slane %v5634, 4
    %v5636 = vadd.f32 %v5634, %v5635
    %v5637 = vrot.slane %v5636, 2
    %v5638 = vadd.f32 %v5636, %v5637
    %v5639 = vrot.slane %v5638, 1
    %v5640 = vadd.f32 %v5638, %v5639
    %v5641 = vsel %vm5539, %v5605, 0.0
    %v5642 = vrot.slane %v5641, 4
    %v5643 = vadd.f32 %v5641, %v5642
    %v5644 = vrot.slane %v5643, 2
    %v5645 = vadd.f32 %v5643, %v5644
    %v5646 = vrot.slane %v5645, 1
    %v5647 = vadd.f32 %v5645, %v5646
    %5649 = vbcast.lane.b32.xlu0 %v5612, 256
    %v5650 = vpop.permute.xlu0 %5649
    %5652 = vbcast.lane.b32.xlu0 %v5619, 256
    %v5653 = vpop.permute.xlu0 %5652
    %5655 = vbcast.lane.b32.xlu0 %v5626, 256
    %v5656 = vpop.permute.xlu0 %5655
    %5658 = vbcast.lane.b32.xlu0 %v5633, 256
    %v5659 = vpop.permute.xlu0 %5658
    %5661 = vbcast.lane.b32.xlu0 %v5640, 256
    %v5662 = vpop.permute.xlu0 %5661
    %5664 = vbcast.lane.b32.xlu0 %v5647, 256
    %v5665 = vpop.permute.xlu0 %5664
    %v5666 = vmul.f32 %v5650, %v5079
    %v5667 = vmul.f32 %v5653, %v5080
    %v5668 = vmul.f32 %v5656, %v5081
    %v5669 = vmul.f32 %v5659, %v5082
    %v5670 = vmul.f32 %v5662, %v5083
    %v5671 = vmul.f32 %v5665, %v5084
    %v5672 = vsel %vm5094, %v5666, 0.0
    %v5673 = vrot.slane %v5672, 4
    %v5674 = vadd.f32 %v5672, %v5673
    %v5675 = vrot.slane %v5674, 2
    %v5676 = vadd.f32 %v5674, %v5675
    %v5677 = vrot.slane %v5676, 1
    %v5678 = vadd.f32 %v5676, %v5677
    %v5679 = vsel %vm5094, %v5667, 0.0
    %v5680 = vrot.slane %v5679, 4
    %v5681 = vadd.f32 %v5679, %v5680
    %v5682 = vrot.slane %v5681, 2
    %v5683 = vadd.f32 %v5681, %v5682
    %v5684 = vrot.slane %v5683, 1
    %v5685 = vadd.f32 %v5683, %v5684
    %v5686 = vsel %vm5094, %v5668, 0.0
    %v5687 = vrot.slane %v5686, 4
    %v5688 = vadd.f32 %v5686, %v5687
    %v5689 = vrot.slane %v5688, 2
    %v5690 = vadd.f32 %v5688, %v5689
    %v5691 = vrot.slane %v5690, 1
    %v5692 = vadd.f32 %v5690, %v5691
    %v5693 = vsel %vm5094, %v5669, 0.0
    %v5694 = vrot.slane %v5693, 4
    %v5695 = vadd.f32 %v5693, %v5694
    %v5696 = vrot.slane %v5695, 2
    %v5697 = vadd.f32 %v5695, %v5696
    %v5698 = vrot.slane %v5697, 1
    %v5699 = vadd.f32 %v5697, %v5698
    %v5700 = vsel %vm5094, %v5670, 0.0
    %v5701 = vrot.slane %v5700, 4
    %v5702 = vadd.f32 %v5700, %v5701
    %v5703 = vrot.slane %v5702, 2
    %v5704 = vadd.f32 %v5702, %v5703
    %v5705 = vrot.slane %v5704, 1
    %v5706 = vadd.f32 %v5704, %v5705
    %v5707 = vsel %vm5094, %v5671, 0.0
    %v5708 = vrot.slane %v5707, 4
    %v5709 = vadd.f32 %v5707, %v5708
    %v5710 = vrot.slane %v5709, 2
    %v5711 = vadd.f32 %v5709, %v5710
    %v5712 = vrot.slane %v5711, 1
    %v5713 = vadd.f32 %v5711, %v5712
    %v5715 = vlaneseq
    %v5716 = vshrl.u32 %v5715, 7
    %v5717 = vsub.s32 0, %v5716
    %v5718 = vrot.slane %v5093, %v5717
    %v5726 = vsel %vm939, %v5685, %v5678
    %v5727 = vsel %vm942, %v5692, %v5726
    %v5728 = vsel %vm945, %v5699, %v5727
    %v5729 = vsel %vm948, %v5706, %v5728
    %v5730 = vsel %vm951, %v5713, %v5729
    %v5731 = vsel %vm5094, %v5730, 0
    %5733 = vmatprep.subr.mxu0 0.0
    %5734 = vmatpush1.msra.mxu0 0.0
    %5735 = vmatprep.subr.mxu0 0.0
    %5736 = vmatpush1.msra.mxu0 0.0
    %5737 = vmatprep.subr.mxu0 0.0
    %5738 = vmatpush1.msra.mxu0 0.0
    %5739 = vmatprep.subr.mxu0 0.0
    %5740 = vmatpush1.msra.mxu0 0.0
    %5741 = vmatprep.subr.mxu0 0.0
    %5742 = vmatpush1.msra.mxu0 0.0
    %5743 = vmatprep.subr.mxu0 0.0
    %5744 = vmatpush1.msra.mxu0 0.0
    %5745 = vmatprep.subr.mxu0 0.0
    %5746 = vmatpush1.msra.mxu0 0.0
    %5747 = vmatprep.subr.mxu0 0.0
    %5748 = vmatpush1.msra.mxu0 0.0
    %5749 = vmatprep.subr.mxu0 0.0
    %5750 = vmatpush1.msra.mxu0 %v5092
    %5751 = vmatprep.subr.mxu0 0.0
    %5752 = vmatpush1.msra.mxu0 %v5091
    %5753 = vmatprep.subr.mxu0 0.0
    %5754 = vmatpush1.msra.mxu0 %v5090
    %5755 = vmatprep.subr.mxu0 0.0
    %5756 = vmatpush1.msra.mxu0 %v5089
    %5757 = vmatprep.subr.mxu0 0.0
    %5758 = vmatpush1.msra.mxu0 %v5088
    %5759 = vmatprep.subr.mxu0 0.0
    %5760 = vmatpush1.msra.mxu0 %v5087
    %5761 = vmatprep.subr.mxu0 0.0
    %5762 = vmatpush1.msra.mxu0 %v5086
    %5763 = vmatprep.subr.mxu0 0.0
    %5764 = vmatpush1.msra.mxu0 %v5085
    %5765 = vmatprep.subr.mxu0 0.0
    %5766 = vmatpush2.msra.mxu0 0.0
    %5767 = vmatprep.subr.mxu0 0.0
    %5768 = vmatpush2.msra.mxu0 0.0
    %5769 = vmatprep.subr.mxu0 0.0
    %5770 = vmatpush2.msra.mxu0 0.0
    %5771 = vmatprep.subr.mxu0 0.0
    %5772 = vmatpush2.msra.mxu0 0.0
    %5773 = vmatprep.subr.mxu0 0.0
    %5774 = vmatpush2.msra.mxu0 0.0
    %5775 = vmatprep.subr.mxu0 0.0
    %5776 = vmatpush2.msra.mxu0 0.0
    %5777 = vmatprep.subr.mxu0 0.0
    %5778 = vmatpush2.msra.mxu0 0.0
    %5779 = vmatprep.subr.mxu0 0.0
    %5780 = vmatpush2.msra.mxu0 0.0
    %5781 = vmatprep.subr.mxu0 0.0
    %5782 = vmatpush2.msra.mxu0 0.0
    %5783 = vmatprep.subr.mxu0 0.0
    %5784 = vmatpush2.msra.mxu0 0.0
    %5785 = vmatprep.subr.mxu0 0.0
    %5786 = vmatpush2.msra.mxu0 0.0
    %5787 = vmatprep.subr.mxu0 0.0
    %5788 = vmatpush2.msra.mxu0 0.0
    %5789 = vmatprep.subr.mxu0 0.0
    %5790 = vmatpush2.msra.mxu0 0.0
    %5791 = vmatprep.subr.mxu0 0.0
    %5792 = vmatpush2.msra.mxu0 0.0
    %5793 = vmatprep.subr.mxu0 0.0
    %5794 = vmatpush2.msra.mxu0 0.0
    %5795 = vmatprep.subr.mxu0 0.0
    %5796 = vmatpush2.msra.mxu0 0.0
    %5797 = vmatprep.mubr.f32.mxu0 0.0
    %5798 = vmatmul.mubr.f32.gmra.mxu0 %v5731
    %v5799 = vpop.f32.mrf.mxu0
    %v5800 = vadd.f32 %v5718, %v5799
    %v5801 = vpop.f32.mrf.mxu0
    %5802 = vdwg.mxu0
    %v5803 = vld [vmem:[%s8] sm:$0xff]
    %v5804 = vld [vmem:[%s8 + $0x8] sm:$0xff]
    %v5805 = vld [vmem:[%s8 + $0x10] sm:$0xff]
    %v5806 = vld [vmem:[%s8 + $0x18] sm:$0xff]
    %v5807 = vld [vmem:[%s8 + $0x20] sm:$0xff]
    %v5808 = vld [vmem:[%s8 + $0x28] sm:$0xff]
    %v5809 = vld [vmem:[%s8 + $0x30] sm:$0xff]
    %v5810 = vld [vmem:[%s8 + $0x38] sm:$0xff]
    %v5811 = vld [vmem:[%s9] sm:$0x3]
    %v5813 = vlaneseq
    %v5814 = vshrl.u32 %v5813, 7
    %v5815 = vsub.s32 0, %v5814
    %v5816 = vrot.slane %v5811, %v5815
    %v5817 = vlaneseq
    %v5818 = vshrl.u32 %v5817, 7
    %v5819 = vsub.s32 1, %v5818
    %v5820 = vrot.slane %v5811, %v5819
    %v5824 = vsel %vm407, %v5800, 0
    %5826 = vmatprep.subr.mxu0 0.0
    %5827 = vmatpush1.msra.mxu0 0.0
    %5828 = vmatprep.subr.mxu0 0.0
    %5829 = vmatpush1.msra.mxu0 0.0
    %5830 = vmatprep.subr.mxu0 0.0
    %5831 = vmatpush1.msra.mxu0 0.0
    %5832 = vmatprep.subr.mxu0 0.0
    %5833 = vmatpush1.msra.mxu0 0.0
    %5834 = vmatprep.subr.mxu0 0.0
    %5835 = vmatpush1.msra.mxu0 0.0
    %5836 = vmatprep.subr.mxu0 0.0
    %5837 = vmatpush1.msra.mxu0 0.0
    %5838 = vmatprep.subr.mxu0 0.0
    %5839 = vmatpush1.msra.mxu0 0.0
    %5840 = vmatprep.subr.mxu0 0.0
    %5841 = vmatpush1.msra.mxu0 0.0
    %5842 = vmatprep.subr.mxu0 0.0
    %5843 = vmatpush1.msra.mxu0 0.0
    %5844 = vmatprep.subr.mxu0 0.0
    %5845 = vmatpush1.msra.mxu0 0.0
    %5846 = vmatprep.subr.mxu0 0.0
    %5847 = vmatpush1.msra.mxu0 0.0
    %5848 = vmatprep.subr.mxu0 0.0
    %5849 = vmatpush1.msra.mxu0 0.0
    %5850 = vmatprep.subr.mxu0 %v5810
    %5851 = vmatpush1.msra.mxu0 %v5809
    %5852 = vmatprep.subr.mxu0 %v5808
    %5853 = vmatpush1.msra.mxu0 %v5807
    %5854 = vmatprep.subr.mxu0 %v5806
    %5855 = vmatpush1.msra.mxu0 %v5805
    %5856 = vmatprep.subr.mxu0 %v5804
    %5857 = vmatpush1.msra.mxu0 %v5803
    %5858 = vmatprep.subr.mxu0 0.0
    %5859 = vmatpush2.msra.mxu0 0.0
    %5860 = vmatprep.subr.mxu0 0.0
    %5861 = vmatpush2.msra.mxu0 0.0
    %5862 = vmatprep.subr.mxu0 0.0
    %5863 = vmatpush2.msra.mxu0 0.0
    %5864 = vmatprep.subr.mxu0 0.0
    %5865 = vmatpush2.msra.mxu0 0.0
    %5866 = vmatprep.subr.mxu0 0.0
    %5867 = vmatpush2.msra.mxu0 0.0
    %5868 = vmatprep.subr.mxu0 0.0
    %5869 = vmatpush2.msra.mxu0 0.0
    %5870 = vmatprep.subr.mxu0 0.0
    %5871 = vmatpush2.msra.mxu0 0.0
    %5872 = vmatprep.subr.mxu0 0.0
    %5873 = vmatpush2.msra.mxu0 0.0
    %5874 = vmatprep.subr.mxu0 0.0
    %5875 = vmatpush2.msra.mxu0 0.0
    %5876 = vmatprep.subr.mxu0 0.0
    %5877 = vmatpush2.msra.mxu0 0.0
    %5878 = vmatprep.subr.mxu0 0.0
    %5879 = vmatpush2.msra.mxu0 0.0
    %5880 = vmatprep.subr.mxu0 0.0
    %5881 = vmatpush2.msra.mxu0 0.0
    %5882 = vmatprep.subr.mxu0 0.0
    %5883 = vmatpush2.msra.mxu0 0.0
    %5884 = vmatprep.subr.mxu0 0.0
    %5885 = vmatpush2.msra.mxu0 0.0
    %5886 = vmatprep.subr.mxu0 0.0
    %5887 = vmatpush2.msra.mxu0 0.0
    %5888 = vmatprep.subr.mxu0 0.0
    %5889 = vmatpush2.msra.mxu0 0.0
    %5890 = vmatprep.mubr.f32.mxu0 0.0
    %5891 = vmatmul.mubr.f32.gmra.mxu0 %v5824
    %v5892 = vpop.f32.mrf.mxu0
    %v5893 = vadd.f32 %v5816, %v5892
    %v5894 = vpop.f32.mrf.mxu0
    %v5895 = vadd.f32 %v5820, %v5894
    %5896 = vdwg.mxu0
    %v5899 = vcombine.low %v5893, %v5895
    %v5900 = vcombine.high %v5893, %v5895
    %v5902 = vunpack.c.l.s4 1966171168
    %v5903 = vunpack.c.0.s8 %v5902
    %v5904 = vlaneseq
    %v5905 = vshrl.u32 %v5904, 7
    %v5906 = vsub.s32 %v5903, %v5905
    %v5907 = vrot.slane %v5899, %v5906
    %v5909 = vunpack.c.l.s4 1966171168
    %v5910 = vunpack.c.0.s8 %v5909
    %v5911 = vlaneseq
    %v5912 = vshrl.u32 %v5911, 7
    %v5913 = vsub.s32 %v5910, %v5912
    %v5914 = vrot.slane %v5900, %v5913
    %v5915 = vcombine.high %v5907, %v5907
    %v5916 = vcombine.high %v5914, %v5914
    %v5918 = vunpack.c.l.s4 1966171168
    %v5919 = vunpack.c.0.s8 %v5918
    %v5920 = vlaneseq
    %v5921 = vshrl.u32 %v5920, 7
    %v5922 = vsub.s32 %v5919, %v5921
    %v5923 = vrot.slane %v5907, %v5922
    %v5925 = vunpack.c.l.s4 1966171168
    %v5926 = vunpack.c.0.s8 %v5925
    %v5927 = vlaneseq
    %v5928 = vshrl.u32 %v5927, 7
    %v5929 = vsub.s32 %v5926, %v5928
    %v5930 = vrot.slane %v5914, %v5929
    %v5932 = vunpack.c.l.s4 1966171168
    %v5933 = vunpack.c.0.s8 %v5932
    %v5934 = vlaneseq
    %v5935 = vshrl.u32 %v5934, 7
    %v5936 = vsub.s32 %v5933, %v5935
    %v5937 = vrot.slane %v5915, %v5936
    %v5939 = vunpack.c.l.s4 1966171168
    %v5940 = vunpack.c.0.s8 %v5939
    %v5941 = vlaneseq
    %v5942 = vshrl.u32 %v5941, 7
    %v5943 = vsub.s32 %v5940, %v5942
    %v5944 = vrot.slane %v5916, %v5943
    %v5945 = vcombine.high %v5923, %v5923
    %v5946 = vcombine.high %v5937, %v5937
    %v5953 = vld [vmem:[%s10] sm:$0xff]
    %v5954 = vld [vmem:[%s10 + $0x8] sm:$0xff]
    %v5955 = vld [vmem:[%s10 + $0x10] sm:$0xff]
    %v5956 = vld [vmem:[%s10 + $0x18] sm:$0xff]
    %v5957 = vld [vmem:[%s11] sm:$0xff]
    %v5958 = vld [vmem:[%s11 + $0x8] sm:$0xff]
    %v5959 = vld [vmem:[%s11 + $0x10] sm:$0xff]
    %v5960 = vld [vmem:[%s11 + $0x18] sm:$0xff]
    %5961 = vmatprep.subr.mxu0 0.0
    %5962 = vmatpush1.msra.mxu0 0.0
    %5963 = vmatprep.subr.mxu0 0.0
    %5964 = vmatpush1.msra.mxu0 0.0
    %5965 = vmatprep.subr.mxu0 0.0
    %5966 = vmatpush1.msra.mxu0 0.0
    %5967 = vmatprep.subr.mxu0 0.0
    %5968 = vmatpush1.msra.mxu0 0.0
    %5969 = vmatprep.subr.mxu0 0.0
    %5970 = vmatpush1.msra.mxu0 0.0
    %5971 = vmatprep.subr.mxu0 0.0
    %5972 = vmatpush1.msra.mxu0 0.0
    %5973 = vmatprep.subr.mxu0 0.0
    %5974 = vmatpush1.msra.mxu0 0.0
    %5975 = vmatprep.subr.mxu0 0.0
    %5976 = vmatpush1.msra.mxu0 0.0
    %5977 = vmatprep.subr.mxu0 0.0
    %5978 = vmatpush1.msra.mxu0 0.0
    %5979 = vmatprep.subr.mxu0 0.0
    %5980 = vmatpush1.msra.mxu0 0.0
    %5981 = vmatprep.subr.mxu0 0.0
    %5982 = vmatpush1.msra.mxu0 0.0
    %5983 = vmatprep.subr.mxu0 0.0
    %5984 = vmatpush1.msra.mxu0 0.0
    %5985 = vmatprep.subr.mxu0 0.0
    %5986 = vmatpush1.msra.mxu0 %v5956
    %5987 = vmatprep.subr.mxu0 0.0
    %5988 = vmatpush1.msra.mxu0 %v5955
    %5989 = vmatprep.subr.mxu0 0.0
    %5990 = vmatpush1.msra.mxu0 %v5954
    %5991 = vmatprep.subr.mxu0 0.0
    %5992 = vmatpush1.msra.mxu0 %v5953
    %5993 = vmatprep.subr.mxu0 0.0
    %5994 = vmatpush2.msra.mxu0 0.0
    %5995 = vmatprep.subr.mxu0 0.0
    %5996 = vmatpush2.msra.mxu0 0.0
    %5997 = vmatprep.subr.mxu0 0.0
    %5998 = vmatpush2.msra.mxu0 0.0
    %5999 = vmatprep.subr.mxu0 0.0
    %6000 = vmatpush2.msra.mxu0 0.0
    %6001 = vmatprep.subr.mxu0 0.0
    %6002 = vmatpush2.msra.mxu0 0.0
    %6003 = vmatprep.subr.mxu0 0.0
    %6004 = vmatpush2.msra.mxu0 0.0
    %6005 = vmatprep.subr.mxu0 0.0
    %6006 = vmatpush2.msra.mxu0 0.0
    %6007 = vmatprep.subr.mxu0 0.0
    %6008 = vmatpush2.msra.mxu0 0.0
    %6009 = vmatprep.subr.mxu0 0.0
    %6010 = vmatpush2.msra.mxu0 0.0
    %6011 = vmatprep.subr.mxu0 0.0
    %6012 = vmatpush2.msra.mxu0 0.0
    %6013 = vmatprep.subr.mxu0 0.0
    %6014 = vmatpush2.msra.mxu0 0.0
    %6015 = vmatprep.subr.mxu0 0.0
    %6016 = vmatpush2.msra.mxu0 0.0
    %6017 = vmatprep.subr.mxu0 0.0
    %6018 = vmatpush2.msra.mxu0 0.0
    %6019 = vmatprep.subr.mxu0 0.0
    %6020 = vmatpush2.msra.mxu0 0.0
    %6021 = vmatprep.subr.mxu0 0.0
    %6022 = vmatpush2.msra.mxu0 0.0
    %6023 = vmatprep.subr.mxu0 0.0
    %6024 = vmatpush2.msra.mxu0 0.0
    %6025 = vmatprep.mubr.f32.mxu0 0.0
    %6026 = vmatmul.mubr.f32.gmra.mxu0 %v409
    %v6027 = vpop.f32.mrf.mxu0
    %v6028 = vadd.f32 0.0, %v6027
    %v6029 = vpop.f32.mrf.mxu0
    %6030 = vdwg.mxu0
    %v6033 = vunpack.c.l.s4 1966171168
    %v6034 = vunpack.c.0.s8 %v6033
    %v6035 = vlaneseq
    %v6036 = vshrl.u32 %v6035, 7
    %v6037 = vsub.s32 %v6034, %v6036
    %v6038 = vrot.slane %v6028, %v6037
    %v6039 = vcombine.high %v6038, %v6038
    %v6041 = vunpack.c.l.s4 1966171168
    %v6042 = vunpack.c.0.s8 %v6041
    %v6043 = vlaneseq
    %v6044 = vshrl.u32 %v6043, 7
    %v6045 = vsub.s32 %v6042, %v6044
    %v6046 = vrot.slane %v6038, %v6045
    %v6048 = vunpack.c.l.s4 1966171168
    %v6049 = vunpack.c.0.s8 %v6048
    %v6050 = vlaneseq
    %v6051 = vshrl.u32 %v6050, 7
    %v6052 = vsub.s32 %v6049, %v6051
    %v6053 = vrot.slane %v6039, %v6052
    %v6056 = vadd.f32 %v5923, %v6046
    %v6057 = vadd.f32 %v5946, %v6053
    %v6058 = vrot.slane %v5945, 1
    %v6059 = vrot.slane %v5944, 1
    %6062 = vmatprep.subr.mxu0 0.0
    %6063 = vmatpush1.msra.mxu0 0.0
    %6064 = vmatprep.subr.mxu0 0.0
    %6065 = vmatpush1.msra.mxu0 0.0
    %6066 = vmatprep.subr.mxu0 0.0
    %6067 = vmatpush1.msra.mxu0 0.0
    %6068 = vmatprep.subr.mxu0 0.0
    %6069 = vmatpush1.msra.mxu0 0.0
    %6070 = vmatprep.subr.mxu0 0.0
    %6071 = vmatpush1.msra.mxu0 0.0
    %6072 = vmatprep.subr.mxu0 0.0
    %6073 = vmatpush1.msra.mxu0 0.0
    %6074 = vmatprep.subr.mxu0 0.0
    %6075 = vmatpush1.msra.mxu0 0.0
    %6076 = vmatprep.subr.mxu0 0.0
    %6077 = vmatpush1.msra.mxu0 0.0
    %6078 = vmatprep.subr.mxu0 0.0
    %6079 = vmatpush1.msra.mxu0 0.0
    %6080 = vmatprep.subr.mxu0 0.0
    %6081 = vmatpush1.msra.mxu0 0.0
    %6082 = vmatprep.subr.mxu0 0.0
    %6083 = vmatpush1.msra.mxu0 0.0
    %6084 = vmatprep.subr.mxu0 0.0
    %6085 = vmatpush1.msra.mxu0 0.0
    %6086 = vmatprep.subr.mxu0 0.0
    %6087 = vmatpush1.msra.mxu0 %v5960
    %6088 = vmatprep.subr.mxu0 0.0
    %6089 = vmatpush1.msra.mxu0 %v5959
    %6090 = vmatprep.subr.mxu0 0.0
    %6091 = vmatpush1.msra.mxu0 %v5958
    %6092 = vmatprep.subr.mxu0 0.0
    %6093 = vmatpush1.msra.mxu0 %v5957
    %6094 = vmatprep.subr.mxu0 0.0
    %6095 = vmatpush2.msra.mxu0 0.0
    %6096 = vmatprep.subr.mxu0 0.0
    %6097 = vmatpush2.msra.mxu0 0.0
    %6098 = vmatprep.subr.mxu0 0.0
    %6099 = vmatpush2.msra.mxu0 0.0
    %6100 = vmatprep.subr.mxu0 0.0
    %6101 = vmatpush2.msra.mxu0 0.0
    %6102 = vmatprep.subr.mxu0 0.0
    %6103 = vmatpush2.msra.mxu0 0.0
    %6104 = vmatprep.subr.mxu0 0.0
    %6105 = vmatpush2.msra.mxu0 0.0
    %6106 = vmatprep.subr.mxu0 0.0
    %6107 = vmatpush2.msra.mxu0 0.0
    %6108 = vmatprep.subr.mxu0 0.0
    %6109 = vmatpush2.msra.mxu0 0.0
    %6110 = vmatprep.subr.mxu0 0.0
    %6111 = vmatpush2.msra.mxu0 0.0
    %6112 = vmatprep.subr.mxu0 0.0
    %6113 = vmatpush2.msra.mxu0 0.0
    %6114 = vmatprep.subr.mxu0 0.0
    %6115 = vmatpush2.msra.mxu0 0.0
    %6116 = vmatprep.subr.mxu0 0.0
    %6117 = vmatpush2.msra.mxu0 0.0
    %6118 = vmatprep.subr.mxu0 0.0
    %6119 = vmatpush2.msra.mxu0 0.0
    %6120 = vmatprep.subr.mxu0 0.0
    %6121 = vmatpush2.msra.mxu0 0.0
    %6122 = vmatprep.subr.mxu0 0.0
    %6123 = vmatpush2.msra.mxu0 0.0
    %6124 = vmatprep.subr.mxu0 0.0
    %6125 = vmatpush2.msra.mxu0 0.0
    %6126 = vmatprep.mubr.f32.mxu0 0.0
    %6127 = vmatmul.mubr.f32.gmra.mxu0 %v409
    %v6128 = vpop.f32.mrf.mxu0
    %v6129 = vadd.f32 0.0, %v6128
    %v6130 = vpop.f32.mrf.mxu0
    %6131 = vdwg.mxu0
    %v6134 = vunpack.c.l.s4 1966171168
    %v6135 = vunpack.c.0.s8 %v6134
    %v6136 = vlaneseq
    %v6137 = vshrl.u32 %v6136, 7
    %v6138 = vsub.s32 %v6135, %v6137
    %v6139 = vrot.slane %v6129, %v6138
    %v6140 = vcombine.high %v6139, %v6139
    %v6142 = vunpack.c.l.s4 1966171168
    %v6143 = vunpack.c.0.s8 %v6142
    %v6144 = vlaneseq
    %v6145 = vshrl.u32 %v6144, 7
    %v6146 = vsub.s32 %v6143, %v6145
    %v6147 = vrot.slane %v6139, %v6146
    %v6149 = vunpack.c.l.s4 1966171168
    %v6150 = vunpack.c.0.s8 %v6149
    %v6151 = vlaneseq
    %v6152 = vshrl.u32 %v6151, 7
    %v6153 = vsub.s32 %v6150, %v6152
    %v6154 = vrot.slane %v6140, %v6153
    %v6157 = vadd.f32 %v6058, %v6147
    %v6158 = vadd.f32 %v6059, %v6154
    %v6159 = vsub.f32 0.0, %v6056
    %v6160 = vsub.f32 0.0, %v6057
    %v6161 = vmul.f32 %v6159, 1.442695
    %v6162 = vpow.pop %v6161
    %v6163 = vmul.f32 %v6160, 1.442695
    %v6164 = vpow.pop %v6163
    %v6165 = vadd.f32 %v6162, 1.0
    %v6166 = vadd.f32 %v6164, 1.0
    %v6167 = vrcp.pop %v6165
    %v6168 = vmul.f32 1.0, %v6167
    %v6169 = vrcp.pop %v6166
    %v6170 = vmul.f32 1.0, %v6169
    %v6171 = vtanh.pop %v6056
    %v6172 = vtanh.pop %v6057
    %v6173 = vmul.f32 %v6168, 0.0
    %v6174 = vmul.f32 %v6170, 0.0
    %6177 = vrot.lane.b32.xlu0 %v6171, 64
    %v6178 = vpop.permute.xlu0 %6177
    %6179 = vrot.lane.b32.xlu0 %v6172, 64
    %v6180 = vpop.permute.xlu0 %6179
    %v6183 = vmul.f32 %v6168, %v6178
    %v6184 = vmul.f32 %v6170, %v6180
    %6187 = vrot.lane.b32.xlu0 %v6183, 32
    %v6188 = vpop.permute.xlu0 %6187
    %6189 = vrot.lane.b32.xlu0 %v6184, 32
    %v6190 = vpop.permute.xlu0 %6189
    %v6193 = vadd.f32 %v6173, %v6188
    %v6194 = vadd.f32 %v6174, %v6190
    %v6195 = vtanh.pop %v6193
    %v6196 = vtanh.pop %v6194
    %6199 = vrot.lane.b32.xlu0 %v6195, 64
    %v6200 = vpop.permute.xlu0 %6199
    %6201 = vrot.lane.b32.xlu0 %v6196, 64
    %v6202 = vpop.permute.xlu0 %6201
    %v6205 = vmul.f32 %v6168, %v6200
    %v6206 = vmul.f32 %v6170, %v6202
    %v6207 = vsub.f32 0.0, %v6157
    %v6208 = vsub.f32 0.0, %v6158
    %v6209 = vmul.f32 %v6207, 1.442695
    %v6210 = vpow.pop %v6209
    %v6211 = vmul.f32 %v6208, 1.442695
    %v6212 = vpow.pop %v6211
    %v6213 = vadd.f32 %v6210, 1.0
    %v6214 = vadd.f32 %v6212, 1.0
    %v6215 = vrcp.pop %v6213
    %v6216 = vmul.f32 1.0, %v6215
    %v6217 = vrcp.pop %v6214
    %v6218 = vmul.f32 1.0, %v6217
    %v6219 = vtanh.pop %v6157
    %v6220 = vtanh.pop %v6158
    %v6221 = vmul.f32 %v6216, 0.0
    %v6222 = vmul.f32 %v6218, 0.0
    %6225 = vrot.lane.b32.xlu0 %v6219, 64
    %v6226 = vpop.permute.xlu0 %6225
    %6227 = vrot.lane.b32.xlu0 %v6220, 64
    %v6228 = vpop.permute.xlu0 %6227
    %v6231 = vmul.f32 %v6216, %v6226
    %v6232 = vmul.f32 %v6218, %v6228
    %6235 = vrot.lane.b32.xlu0 %v6231, 32
    %v6236 = vpop.permute.xlu0 %6235
    %6237 = vrot.lane.b32.xlu0 %v6232, 32
    %v6238 = vpop.permute.xlu0 %6237
    %v6241 = vadd.f32 %v6221, %v6236
    %v6242 = vadd.f32 %v6222, %v6238
    %v6243 = vtanh.pop %v6241
    %v6244 = vtanh.pop %v6242
    %6247 = vrot.lane.b32.xlu0 %v6243, 64
    %v6248 = vpop.permute.xlu0 %6247
    %6249 = vrot.lane.b32.xlu0 %v6244, 64
    %v6250 = vpop.permute.xlu0 %6249
    %v6253 = vmul.f32 %v6216, %v6248
    %v6254 = vmul.f32 %v6218, %v6250
    %v6257 = vlaneseq
    %v6258 = vshrl.u32 %v6257, 7
    %v6259 = vsub.s32 0, %v6258
    %v6260 = vrot.slane %v6205, %v6259
    %v6261 = vlaneseq
    %v6262 = vshrl.u32 %v6261, 7
    %v6263 = vsub.s32 0, %v6262
    %v6264 = vrot.slane %v6206, %v6263
    %6265 = vrot.lane.b32.xlu0 %v6260, 32
    %v6266 = vpop.permute.xlu0 %6265
    %6267 = vrot.lane.b32.xlu0 %v6264, 32
    %v6268 = vpop.permute.xlu0 %6267
    %6271 = vst.msk [vmem:[#allocation3] sm:$0x1] %vm900, %v6266
    %6272 = vst.msk [vmem:[#allocation3 + $0x4] sm:$0x1] %vm900, %v6268
    %v6275 = vlaneseq
    %v6276 = vshrl.u32 %v6275, 7
    %v6277 = vsub.s32 0, %v6276
    %v6278 = vrot.slane %v6253, %v6277
    %v6279 = vlaneseq
    %v6280 = vshrl.u32 %v6279, 7
    %v6281 = vsub.s32 0, %v6280
    %v6282 = vrot.slane %v6254, %v6281
    %6283 = vrot.lane.b32.xlu0 %v6278, 64
    %v6284 = vpop.permute.xlu0 %6283
    %6285 = vrot.lane.b32.xlu0 %v6282, 64
    %v6286 = vpop.permute.xlu0 %6285
    %6289 = vst.msk [vmem:[#allocation3 + $0x2] sm:$0x1] %vm5072, %v6284
    %6290 = vst.msk [vmem:[#allocation3 + $0x6] sm:$0x1] %vm5072, %v6286
    %v6291 = vcombine.low %v6205, %v6206
    %v6293 = vunpack.c.l.s4 1966171168
    %v6294 = vunpack.c.0.s8 %v6293
    %v6295 = vlaneseq
    %v6296 = vshrl.u32 %v6295, 7
    %v6297 = vsub.s32 %v6294, %v6296
    %v6298 = vrot.slane %v6291, %v6297
    %v6300 = vunpack.c.l.s4 1966171168
    %v6301 = vunpack.c.0.s8 %v6300
    %v6302 = vlaneseq
    %v6303 = vshrl.u32 %v6302, 7
    %v6304 = vsub.s32 %v6301, %v6303
    %v6305 = vrot.slane %v6298, %v6304
    %6306 = vrot.lane.b32.xlu0 %v6305, 32
    %v6307 = vpop.permute.xlu0 %6306
    %v6308 = vsel %vm407, %v6307, 0
    %6310 = vmatprep.subr.mxu0 0.0
    %6311 = vmatpush1.msra.mxu0 0.0
    %6312 = vmatprep.subr.mxu0 0.0
    %6313 = vmatpush1.msra.mxu0 0.0
    %6314 = vmatprep.subr.mxu0 0.0
    %6315 = vmatpush1.msra.mxu0 0.0
    %6316 = vmatprep.subr.mxu0 0.0
    %6317 = vmatpush1.msra.mxu0 0.0
    %6318 = vmatprep.subr.mxu0 0.0
    %6319 = vmatpush1.msra.mxu0 0.0
    %6320 = vmatprep.subr.mxu0 0.0
    %6321 = vmatpush1.msra.mxu0 0.0
    %6322 = vmatprep.subr.mxu0 0.0
    %6323 = vmatpush1.msra.mxu0 0.0
    %6324 = vmatprep.subr.mxu0 0.0
    %6325 = vmatpush1.msra.mxu0 0.0
    %6326 = vmatprep.subr.mxu0 0.0
    %6327 = vmatpush1.msra.mxu0 0.0
    %6328 = vmatprep.subr.mxu0 0.0
    %6329 = vmatpush1.msra.mxu0 0.0
    %6330 = vmatprep.subr.mxu0 0.0
    %6331 = vmatpush1.msra.mxu0 0.0
    %6332 = vmatprep.subr.mxu0 0.0
    %6333 = vmatpush1.msra.mxu0 0.0
    %6334 = vmatprep.subr.mxu0 0.0
    %6335 = vmatpush1.msra.mxu0 %v5956
    %6336 = vmatprep.subr.mxu0 0.0
    %6337 = vmatpush1.msra.mxu0 %v5955
    %6338 = vmatprep.subr.mxu0 0.0
    %6339 = vmatpush1.msra.mxu0 %v5954
    %6340 = vmatprep.subr.mxu0 0.0
    %6341 = vmatpush1.msra.mxu0 %v5953
    %6342 = vmatprep.subr.mxu0 0.0
    %6343 = vmatpush2.msra.mxu0 0.0
    %6344 = vmatprep.subr.mxu0 0.0
    %6345 = vmatpush2.msra.mxu0 0.0
    %6346 = vmatprep.subr.mxu0 0.0
    %6347 = vmatpush2.msra.mxu0 0.0
    %6348 = vmatprep.subr.mxu0 0.0
    %6349 = vmatpush2.msra.mxu0 0.0
    %6350 = vmatprep.subr.mxu0 0.0
    %6351 = vmatpush2.msra.mxu0 0.0
    %6352 = vmatprep.subr.mxu0 0.0
    %6353 = vmatpush2.msra.mxu0 0.0
    %6354 = vmatprep.subr.mxu0 0.0
    %6355 = vmatpush2.msra.mxu0 0.0
    %6356 = vmatprep.subr.mxu0 0.0
    %6357 = vmatpush2.msra.mxu0 0.0
    %6358 = vmatprep.subr.mxu0 0.0
    %6359 = vmatpush2.msra.mxu0 0.0
    %6360 = vmatprep.subr.mxu0 0.0
    %6361 = vmatpush2.msra.mxu0 0.0
    %6362 = vmatprep.subr.mxu0 0.0
    %6363 = vmatpush2.msra.mxu0 0.0
    %6364 = vmatprep.subr.mxu0 0.0
    %6365 = vmatpush2.msra.mxu0 0.0
    %6366 = vmatprep.subr.mxu0 0.0
    %6367 = vmatpush2.msra.mxu0 0.0
    %6368 = vmatprep.subr.mxu0 0.0
    %6369 = vmatpush2.msra.mxu0 0.0
    %6370 = vmatprep.subr.mxu0 0.0
    %6371 = vmatpush2.msra.mxu0 0.0
    %6372 = vmatprep.subr.mxu0 0.0
    %6373 = vmatpush2.msra.mxu0 0.0
    %6374 = vmatprep.mubr.f32.mxu0 0.0
    %6375 = vmatmul.mubr.f32.gmra.mxu0 %v6308
    %v6376 = vpop.f32.mrf.mxu0
    %v6377 = vadd.f32 0.0, %v6376
    %v6378 = vpop.f32.mrf.mxu0
    %6379 = vdwg.mxu0
    %v6382 = vunpack.c.l.s4 1966171168
    %v6383 = vunpack.c.0.s8 %v6382
    %v6384 = vlaneseq
    %v6385 = vshrl.u32 %v6384, 7
    %v6386 = vsub.s32 %v6383, %v6385
    %v6387 = vrot.slane %v6377, %v6386
    %v6388 = vcombine.high %v6387, %v6387
    %v6390 = vunpack.c.l.s4 1966171168
    %v6391 = vunpack.c.0.s8 %v6390
    %v6392 = vlaneseq
    %v6393 = vshrl.u32 %v6392, 7
    %v6394 = vsub.s32 %v6391, %v6393
    %v6395 = vrot.slane %v6387, %v6394
    %v6397 = vunpack.c.l.s4 1966171168
    %v6398 = vunpack.c.0.s8 %v6397
    %v6399 = vlaneseq
    %v6400 = vshrl.u32 %v6399, 7
    %v6401 = vsub.s32 %v6398, %v6400
    %v6402 = vrot.slane %v6388, %v6401
    %v6405 = vadd.f32 %v5937, %v6395
    %v6406 = vadd.f32 %v5930, %v6402
    %v6407 = vrot.slane %v5937, 1
    %v6408 = vrot.slane %v5930, 1
    %v6411 = vcombine.low %v6253, %v6254
    %v6413 = vunpack.c.l.s4 1966171168
    %v6414 = vunpack.c.0.s8 %v6413
    %v6415 = vlaneseq
    %v6416 = vshrl.u32 %v6415, 7
    %v6417 = vsub.s32 %v6414, %v6416
    %v6418 = vrot.slane %v6411, %v6417
    %v6420 = vunpack.c.l.s4 1966171168
    %v6421 = vunpack.c.0.s8 %v6420
    %v6422 = vlaneseq
    %v6423 = vshrl.u32 %v6422, 7
    %v6424 = vsub.s32 %v6421, %v6423
    %v6425 = vrot.slane %v6418, %v6424
    %6426 = vrot.lane.b32.xlu0 %v6425, 32
    %v6427 = vpop.permute.xlu0 %6426
    %v6428 = vsel %vm407, %v6427, 0
    %6430 = vmatprep.subr.mxu0 0.0
    %6431 = vmatpush1.msra.mxu0 0.0
    %6432 = vmatprep.subr.mxu0 0.0
    %6433 = vmatpush1.msra.mxu0 0.0
    %6434 = vmatprep.subr.mxu0 0.0
    %6435 = vmatpush1.msra.mxu0 0.0
    %6436 = vmatprep.subr.mxu0 0.0
    %6437 = vmatpush1.msra.mxu0 0.0
    %6438 = vmatprep.subr.mxu0 0.0
    %6439 = vmatpush1.msra.mxu0 0.0
    %6440 = vmatprep.subr.mxu0 0.0
    %6441 = vmatpush1.msra.mxu0 0.0
    %6442 = vmatprep.subr.mxu0 0.0
    %6443 = vmatpush1.msra.mxu0 0.0
    %6444 = vmatprep.subr.mxu0 0.0
    %6445 = vmatpush1.msra.mxu0 0.0
    %6446 = vmatprep.subr.mxu0 0.0
    %6447 = vmatpush1.msra.mxu0 0.0
    %6448 = vmatprep.subr.mxu0 0.0
    %6449 = vmatpush1.msra.mxu0 0.0
    %6450 = vmatprep.subr.mxu0 0.0
    %6451 = vmatpush1.msra.mxu0 0.0
    %6452 = vmatprep.subr.mxu0 0.0
    %6453 = vmatpush1.msra.mxu0 0.0
    %6454 = vmatprep.subr.mxu0 0.0
    %6455 = vmatpush1.msra.mxu0 %v5960
    %6456 = vmatprep.subr.mxu0 0.0
    %6457 = vmatpush1.msra.mxu0 %v5959
    %6458 = vmatprep.subr.mxu0 0.0
    %6459 = vmatpush1.msra.mxu0 %v5958
    %6460 = vmatprep.subr.mxu0 0.0
    %6461 = vmatpush1.msra.mxu0 %v5957
    %6462 = vmatprep.subr.mxu0 0.0
    %6463 = vmatpush2.msra.mxu0 0.0
    %6464 = vmatprep.subr.mxu0 0.0
    %6465 = vmatpush2.msra.mxu0 0.0
    %6466 = vmatprep.subr.mxu0 0.0
    %6467 = vmatpush2.msra.mxu0 0.0
    %6468 = vmatprep.subr.mxu0 0.0
    %6469 = vmatpush2.msra.mxu0 0.0
    %6470 = vmatprep.subr.mxu0 0.0
    %6471 = vmatpush2.msra.mxu0 0.0
    %6472 = vmatprep.subr.mxu0 0.0
    %6473 = vmatpush2.msra.mxu0 0.0
    %6474 = vmatprep.subr.mxu0 0.0
    %6475 = vmatpush2.msra.mxu0 0.0
    %6476 = vmatprep.subr.mxu0 0.0
    %6477 = vmatpush2.msra.mxu0 0.0
    %6478 = vmatprep.subr.mxu0 0.0
    %6479 = vmatpush2.msra.mxu0 0.0
    %6480 = vmatprep.subr.mxu0 0.0
    %6481 = vmatpush2.msra.mxu0 0.0
    %6482 = vmatprep.subr.mxu0 0.0
    %6483 = vmatpush2.msra.mxu0 0.0
    %6484 = vmatprep.subr.mxu0 0.0
    %6485 = vmatpush2.msra.mxu0 0.0
    %6486 = vmatprep.subr.mxu0 0.0
    %6487 = vmatpush2.msra.mxu0 0.0
    %6488 = vmatprep.subr.mxu0 0.0
    %6489 = vmatpush2.msra.mxu0 0.0
    %6490 = vmatprep.subr.mxu0 0.0
    %6491 = vmatpush2.msra.mxu0 0.0
    %6492 = vmatprep.subr.mxu0 0.0
    %6493 = vmatpush2.msra.mxu0 0.0
    %6494 = vmatprep.mubr.f32.mxu0 0.0
    %6495 = vmatmul.mubr.f32.gmra.mxu0 %v6428
    %v6496 = vpop.f32.mrf.mxu0
    %v6497 = vadd.f32 0.0, %v6496
    %v6498 = vpop.f32.mrf.mxu0
    %6499 = vdwg.mxu0
    %v6502 = vunpack.c.l.s4 1966171168
    %v6503 = vunpack.c.0.s8 %v6502
    %v6504 = vlaneseq
    %v6505 = vshrl.u32 %v6504, 7
    %v6506 = vsub.s32 %v6503, %v6505
    %v6507 = vrot.slane %v6497, %v6506
    %v6508 = vcombine.high %v6507, %v6507
    %v6510 = vunpack.c.l.s4 1966171168
    %v6511 = vunpack.c.0.s8 %v6510
    %v6512 = vlaneseq
    %v6513 = vshrl.u32 %v6512, 7
    %v6514 = vsub.s32 %v6511, %v6513
    %v6515 = vrot.slane %v6507, %v6514
    %v6517 = vunpack.c.l.s4 1966171168
    %v6518 = vunpack.c.0.s8 %v6517
    %v6519 = vlaneseq
    %v6520 = vshrl.u32 %v6519, 7
    %v6521 = vsub.s32 %v6518, %v6520
    %v6522 = vrot.slane %v6508, %v6521
    %v6525 = vadd.f32 %v6407, %v6515
    %v6526 = vadd.f32 %v6408, %v6522
    %v6527 = vsub.f32 0.0, %v6405
    %v6528 = vsub.f32 0.0, %v6406
    %v6529 = vmul.f32 %v6527, 1.442695
    %v6530 = vpow.pop %v6529
    %v6531 = vmul.f32 %v6528, 1.442695
    %v6532 = vpow.pop %v6531
    %v6533 = vadd.f32 %v6530, 1.0
    %v6534 = vadd.f32 %v6532, 1.0
    %v6535 = vrcp.pop %v6533
    %v6536 = vmul.f32 1.0, %v6535
    %v6537 = vrcp.pop %v6534
    %v6538 = vmul.f32 1.0, %v6537
    %v6539 = vtanh.pop %v6405
    %v6540 = vtanh.pop %v6406
    %v6541 = vmul.f32 %v6536, %v6193
    %v6542 = vmul.f32 %v6538, %v6194
    %6545 = vrot.lane.b32.xlu0 %v6539, 64
    %v6546 = vpop.permute.xlu0 %6545
    %6547 = vrot.lane.b32.xlu0 %v6540, 64
    %v6548 = vpop.permute.xlu0 %6547
    %v6551 = vmul.f32 %v6536, %v6546
    %v6552 = vmul.f32 %v6538, %v6548
    %6555 = vrot.lane.b32.xlu0 %v6551, 32
    %v6556 = vpop.permute.xlu0 %6555
    %6557 = vrot.lane.b32.xlu0 %v6552, 32
    %v6558 = vpop.permute.xlu0 %6557
    %v6561 = vadd.f32 %v6541, %v6556
    %v6562 = vadd.f32 %v6542, %v6558
    %v6563 = vtanh.pop %v6561
    %v6564 = vtanh.pop %v6562
    %6567 = vrot.lane.b32.xlu0 %v6563, 64
    %v6568 = vpop.permute.xlu0 %6567
    %6569 = vrot.lane.b32.xlu0 %v6564, 64
    %v6570 = vpop.permute.xlu0 %6569
    %v6573 = vmul.f32 %v6536, %v6568
    %v6574 = vmul.f32 %v6538, %v6570
    %v6575 = vsub.f32 0.0, %v6525
    %v6576 = vsub.f32 0.0, %v6526
    %v6577 = vmul.f32 %v6575, 1.442695
    %v6578 = vpow.pop %v6577
    %v6579 = vmul.f32 %v6576, 1.442695
    %v6580 = vpow.pop %v6579
    %v6581 = vadd.f32 %v6578, 1.0
    %v6582 = vadd.f32 %v6580, 1.0
    %v6583 = vrcp.pop %v6581
    %v6584 = vmul.f32 1.0, %v6583
    %v6585 = vrcp.pop %v6582
    %v6586 = vmul.f32 1.0, %v6585
    %v6587 = vtanh.pop %v6525
    %v6588 = vtanh.pop %v6526
    %v6589 = vmul.f32 %v6584, %v6241
    %v6590 = vmul.f32 %v6586, %v6242
    %6593 = vrot.lane.b32.xlu0 %v6587, 64
    %v6594 = vpop.permute.xlu0 %6593
    %6595 = vrot.lane.b32.xlu0 %v6588, 64
    %v6596 = vpop.permute.xlu0 %6595
    %v6599 = vmul.f32 %v6584, %v6594
    %v6600 = vmul.f32 %v6586, %v6596
    %6603 = vrot.lane.b32.xlu0 %v6599, 32
    %v6604 = vpop.permute.xlu0 %6603
    %6605 = vrot.lane.b32.xlu0 %v6600, 32
    %v6606 = vpop.permute.xlu0 %6605
    %v6609 = vadd.f32 %v6589, %v6604
    %v6610 = vadd.f32 %v6590, %v6606
    %v6611 = vtanh.pop %v6609
    %v6612 = vtanh.pop %v6610
    %6615 = vrot.lane.b32.xlu0 %v6611, 64
    %v6616 = vpop.permute.xlu0 %6615
    %6617 = vrot.lane.b32.xlu0 %v6612, 64
    %v6618 = vpop.permute.xlu0 %6617
    %v6621 = vmul.f32 %v6584, %v6616
    %v6622 = vmul.f32 %v6586, %v6618
    %v6625 = vlaneseq
    %v6626 = vshrl.u32 %v6625, 7
    %v6627 = vsub.s32 0, %v6626
    %v6628 = vrot.slane %v6573, %v6627
    %v6629 = vlaneseq
    %v6630 = vshrl.u32 %v6629, 7
    %v6631 = vsub.s32 0, %v6630
    %v6632 = vrot.slane %v6574, %v6631
    %6633 = vrot.lane.b32.xlu0 %v6628, 32
    %v6634 = vpop.permute.xlu0 %6633
    %6635 = vrot.lane.b32.xlu0 %v6632, 32
    %v6636 = vpop.permute.xlu0 %6635
    %6639 = vst.msk [vmem:[#allocation3 + $0x1] sm:$0x1] %vm900, %v6634
    %6640 = vst.msk [vmem:[#allocation3 + $0x5] sm:$0x1] %vm900, %v6636
    %v6643 = vlaneseq
    %v6644 = vshrl.u32 %v6643, 7
    %v6645 = vsub.s32 0, %v6644
    %v6646 = vrot.slane %v6621, %v6645
    %v6647 = vlaneseq
    %v6648 = vshrl.u32 %v6647, 7
    %v6649 = vsub.s32 0, %v6648
    %v6650 = vrot.slane %v6622, %v6649
    %6651 = vrot.lane.b32.xlu0 %v6646, 64
    %v6652 = vpop.permute.xlu0 %6651
    %6653 = vrot.lane.b32.xlu0 %v6650, 64
    %v6654 = vpop.permute.xlu0 %6653
    %6657 = vst.msk [vmem:[#allocation3 + $0x1] sm:$0x1] %vm5072, %v6652
    %6658 = vst.msk [vmem:[#allocation3 + $0x5] sm:$0x1] %vm5072, %v6654
    %v6659 = vcombine.low %v6573, %v6574
    %v6661 = vunpack.c.l.s4 1966171168
    %v6662 = vunpack.c.0.s8 %v6661
    %v6663 = vlaneseq
    %v6664 = vshrl.u32 %v6663, 7
    %v6665 = vsub.s32 %v6662, %v6664
    %v6666 = vrot.slane %v6659, %v6665
    %v6668 = vunpack.c.l.s4 1966171168
    %v6669 = vunpack.c.0.s8 %v6668
    %v6670 = vlaneseq
    %v6671 = vshrl.u32 %v6670, 7
    %v6672 = vsub.s32 %v6669, %v6671
    %v6673 = vrot.slane %v6666, %v6672
    %6674 = vrot.lane.b32.xlu0 %v6673, 32
    %v6675 = vpop.permute.xlu0 %6674
    %v6676 = vsel %vm407, %v6675, 0
    %6678 = vmatprep.subr.mxu0 0.0
    %6679 = vmatpush1.msra.mxu0 0.0
    %6680 = vmatprep.subr.mxu0 0.0
    %6681 = vmatpush1.msra.mxu0 0.0
    %6682 = vmatprep.subr.mxu0 0.0
    %6683 = vmatpush1.msra.mxu0 0.0
    %6684 = vmatprep.subr.mxu0 0.0
    %6685 = vmatpush1.msra.mxu0 0.0
    %6686 = vmatprep.subr.mxu0 0.0
    %6687 = vmatpush1.msra.mxu0 0.0
    %6688 = vmatprep.subr.mxu0 0.0
    %6689 = vmatpush1.msra.mxu0 0.0
    %6690 = vmatprep.subr.mxu0 0.0
    %6691 = vmatpush1.msra.mxu0 0.0
    %6692 = vmatprep.subr.mxu0 0.0
    %6693 = vmatpush1.msra.mxu0 0.0
    %6694 = vmatprep.subr.mxu0 0.0
    %6695 = vmatpush1.msra.mxu0 0.0
    %6696 = vmatprep.subr.mxu0 0.0
    %6697 = vmatpush1.msra.mxu0 0.0
    %6698 = vmatprep.subr.mxu0 0.0
    %6699 = vmatpush1.msra.mxu0 0.0
    %6700 = vmatprep.subr.mxu0 0.0
    %6701 = vmatpush1.msra.mxu0 0.0
    %6702 = vmatprep.subr.mxu0 0.0
    %6703 = vmatpush1.msra.mxu0 %v5956
    %6704 = vmatprep.subr.mxu0 0.0
    %6705 = vmatpush1.msra.mxu0 %v5955
    %6706 = vmatprep.subr.mxu0 0.0
    %6707 = vmatpush1.msra.mxu0 %v5954
    %6708 = vmatprep.subr.mxu0 0.0
    %6709 = vmatpush1.msra.mxu0 %v5953
    %6710 = vmatprep.subr.mxu0 0.0
    %6711 = vmatpush2.msra.mxu0 0.0
    %6712 = vmatprep.subr.mxu0 0.0
    %6713 = vmatpush2.msra.mxu0 0.0
    %6714 = vmatprep.subr.mxu0 0.0
    %6715 = vmatpush2.msra.mxu0 0.0
    %6716 = vmatprep.subr.mxu0 0.0
    %6717 = vmatpush2.msra.mxu0 0.0
    %6718 = vmatprep.subr.mxu0 0.0
    %6719 = vmatpush2.msra.mxu0 0.0
    %6720 = vmatprep.subr.mxu0 0.0
    %6721 = vmatpush2.msra.mxu0 0.0
    %6722 = vmatprep.subr.mxu0 0.0
    %6723 = vmatpush2.msra.mxu0 0.0
    %6724 = vmatprep.subr.mxu0 0.0
    %6725 = vmatpush2.msra.mxu0 0.0
    %6726 = vmatprep.subr.mxu0 0.0
    %6727 = vmatpush2.msra.mxu0 0.0
    %6728 = vmatprep.subr.mxu0 0.0
    %6729 = vmatpush2.msra.mxu0 0.0
    %6730 = vmatprep.subr.mxu0 0.0
    %6731 = vmatpush2.msra.mxu0 0.0
    %6732 = vmatprep.subr.mxu0 0.0
    %6733 = vmatpush2.msra.mxu0 0.0
    %6734 = vmatprep.subr.mxu0 0.0
    %6735 = vmatpush2.msra.mxu0 0.0
    %6736 = vmatprep.subr.mxu0 0.0
    %6737 = vmatpush2.msra.mxu0 0.0
    %6738 = vmatprep.subr.mxu0 0.0
    %6739 = vmatpush2.msra.mxu0 0.0
    %6740 = vmatprep.subr.mxu0 0.0
    %6741 = vmatpush2.msra.mxu0 0.0
    %6742 = vmatprep.mubr.f32.mxu0 0.0
    %6743 = vmatmul.mubr.f32.gmra.mxu0 %v6676
    %v6744 = vpop.f32.mrf.mxu0
    %v6745 = vadd.f32 0.0, %v6744
    %v6746 = vpop.f32.mrf.mxu0
    %6747 = vdwg.mxu0
    %v6750 = vunpack.c.l.s4 1966171168
    %v6751 = vunpack.c.0.s8 %v6750
    %v6752 = vlaneseq
    %v6753 = vshrl.u32 %v6752, 7
    %v6754 = vsub.s32 %v6751, %v6753
    %v6755 = vrot.slane %v6745, %v6754
    %v6756 = vcombine.high %v6755, %v6755
    %v6758 = vunpack.c.l.s4 1966171168
    %v6759 = vunpack.c.0.s8 %v6758
    %v6760 = vlaneseq
    %v6761 = vshrl.u32 %v6760, 7
    %v6762 = vsub.s32 %v6759, %v6761
    %v6763 = vrot.slane %v6755, %v6762
    %v6765 = vunpack.c.l.s4 1966171168
    %v6766 = vunpack.c.0.s8 %v6765
    %v6767 = vlaneseq
    %v6768 = vshrl.u32 %v6767, 7
    %v6769 = vsub.s32 %v6766, %v6768
    %v6770 = vrot.slane %v6756, %v6769
    %v6773 = vadd.f32 %v5945, %v6763
    %v6774 = vadd.f32 %v5944, %v6770
    %v6775 = vrot.slane %v5923, 1
    %v6776 = vrot.slane %v5946, 1
    %v6779 = vcombine.low %v6621, %v6622
    %v6781 = vunpack.c.l.s4 1966171168
    %v6782 = vunpack.c.0.s8 %v6781
    %v6783 = vlaneseq
    %v6784 = vshrl.u32 %v6783, 7
    %v6785 = vsub.s32 %v6782, %v6784
    %v6786 = vrot.slane %v6779, %v6785
    %v6788 = vunpack.c.l.s4 1966171168
    %v6789 = vunpack.c.0.s8 %v6788
    %v6790 = vlaneseq
    %v6791 = vshrl.u32 %v6790, 7
    %v6792 = vsub.s32 %v6789, %v6791
    %v6793 = vrot.slane %v6786, %v6792
    %6794 = vrot.lane.b32.xlu0 %v6793, 32
    %v6795 = vpop.permute.xlu0 %6794
    %v6796 = vsel %vm407, %v6795, 0
    %6798 = vmatprep.subr.mxu0 0.0
    %6799 = vmatpush1.msra.mxu0 0.0
    %6800 = vmatprep.subr.mxu0 0.0
    %6801 = vmatpush1.msra.mxu0 0.0
    %6802 = vmatprep.subr.mxu0 0.0
    %6803 = vmatpush1.msra.mxu0 0.0
    %6804 = vmatprep.subr.mxu0 0.0
    %6805 = vmatpush1.msra.mxu0 0.0
    %6806 = vmatprep.subr.mxu0 0.0
    %6807 = vmatpush1.msra.mxu0 0.0
    %6808 = vmatprep.subr.mxu0 0.0
    %6809 = vmatpush1.msra.mxu0 0.0
    %6810 = vmatprep.subr.mxu0 0.0
    %6811 = vmatpush1.msra.mxu0 0.0
    %6812 = vmatprep.subr.mxu0 0.0
    %6813 = vmatpush1.msra.mxu0 0.0
    %6814 = vmatprep.subr.mxu0 0.0
    %6815 = vmatpush1.msra.mxu0 0.0
    %6816 = vmatprep.subr.mxu0 0.0
    %6817 = vmatpush1.msra.mxu0 0.0
    %6818 = vmatprep.subr.mxu0 0.0
    %6819 = vmatpush1.msra.mxu0 0.0
    %6820 = vmatprep.subr.mxu0 0.0
    %6821 = vmatpush1.msra.mxu0 0.0
    %6822 = vmatprep.subr.mxu0 0.0
    %6823 = vmatpush1.msra.mxu0 %v5960
    %6824 = vmatprep.subr.mxu0 0.0
    %6825 = vmatpush1.msra.mxu0 %v5959
    %6826 = vmatprep.subr.mxu0 0.0
    %6827 = vmatpush1.msra.mxu0 %v5958
    %6828 = vmatprep.subr.mxu0 0.0
    %6829 = vmatpush1.msra.mxu0 %v5957
    %6830 = vmatprep.subr.mxu0 0.0
    %6831 = vmatpush2.msra.mxu0 0.0
    %6832 = vmatprep.subr.mxu0 0.0
    %6833 = vmatpush2.msra.mxu0 0.0
    %6834 = vmatprep.subr.mxu0 0.0
    %6835 = vmatpush2.msra.mxu0 0.0
    %6836 = vmatprep.subr.mxu0 0.0
    %6837 = vmatpush2.msra.mxu0 0.0
    %6838 = vmatprep.subr.mxu0 0.0
    %6839 = vmatpush2.msra.mxu0 0.0
    %6840 = vmatprep.subr.mxu0 0.0
    %6841 = vmatpush2.msra.mxu0 0.0
    %6842 = vmatprep.subr.mxu0 0.0
    %6843 = vmatpush2.msra.mxu0 0.0
    %6844 = vmatprep.subr.mxu0 0.0
    %6845 = vmatpush2.msra.mxu0 0.0
    %6846 = vmatprep.subr.mxu0 0.0
    %6847 = vmatpush2.msra.mxu0 0.0
    %6848 = vmatprep.subr.mxu0 0.0
    %6849 = vmatpush2.msra.mxu0 0.0
    %6850 = vmatprep.subr.mxu0 0.0
    %6851 = vmatpush2.msra.mxu0 0.0
    %6852 = vmatprep.subr.mxu0 0.0
    %6853 = vmatpush2.msra.mxu0 0.0
    %6854 = vmatprep.subr.mxu0 0.0
    %6855 = vmatpush2.msra.mxu0 0.0
    %6856 = vmatprep.subr.mxu0 0.0
    %6857 = vmatpush2.msra.mxu0 0.0
    %6858 = vmatprep.subr.mxu0 0.0
    %6859 = vmatpush2.msra.mxu0 0.0
    %6860 = vmatprep.subr.mxu0 0.0
    %6861 = vmatpush2.msra.mxu0 0.0
    %6862 = vmatprep.mubr.f32.mxu0 0.0
    %6863 = vmatmul.mubr.f32.gmra.mxu0 %v6796
    %v6864 = vpop.f32.mrf.mxu0
    %v6865 = vadd.f32 0.0, %v6864
    %v6866 = vpop.f32.mrf.mxu0
    %6867 = vdwg.mxu0
    %v6870 = vunpack.c.l.s4 1966171168
    %v6871 = vunpack.c.0.s8 %v6870
    %v6872 = vlaneseq
    %v6873 = vshrl.u32 %v6872, 7
    %v6874 = vsub.s32 %v6871, %v6873
    %v6875 = vrot.slane %v6865, %v6874
    %v6876 = vcombine.high %v6875, %v6875
    %v6878 = vunpack.c.l.s4 1966171168
    %v6879 = vunpack.c.0.s8 %v6878
    %v6880 = vlaneseq
    %v6881 = vshrl.u32 %v6880, 7
    %v6882 = vsub.s32 %v6879, %v6881
    %v6883 = vrot.slane %v6875, %v6882
    %v6885 = vunpack.c.l.s4 1966171168
    %v6886 = vunpack.c.0.s8 %v6885
    %v6887 = vlaneseq
    %v6888 = vshrl.u32 %v6887, 7
    %v6889 = vsub.s32 %v6886, %v6888
    %v6890 = vrot.slane %v6876, %v6889
    %v6893 = vadd.f32 %v6775, %v6883
    %v6894 = vadd.f32 %v6776, %v6890
    %v6895 = vsub.f32 0.0, %v6773
    %v6896 = vsub.f32 0.0, %v6774
    %v6897 = vmul.f32 %v6895, 1.442695
    %v6898 = vpow.pop %v6897
    %v6899 = vmul.f32 %v6896, 1.442695
    %v6900 = vpow.pop %v6899
    %v6901 = vadd.f32 %v6898, 1.0
    %v6902 = vadd.f32 %v6900, 1.0
    %v6903 = vrcp.pop %v6901
    %v6904 = vmul.f32 1.0, %v6903
    %v6905 = vrcp.pop %v6902
    %v6906 = vmul.f32 1.0, %v6905
    %v6907 = vtanh.pop %v6773
    %v6908 = vtanh.pop %v6774
    %v6909 = vmul.f32 %v6904, %v6561
    %v6910 = vmul.f32 %v6906, %v6562
    %6913 = vrot.lane.b32.xlu0 %v6907, 64
    %v6914 = vpop.permute.xlu0 %6913
    %6915 = vrot.lane.b32.xlu0 %v6908, 64
    %v6916 = vpop.permute.xlu0 %6915
    %v6919 = vmul.f32 %v6904, %v6914
    %v6920 = vmul.f32 %v6906, %v6916
    %6923 = vrot.lane.b32.xlu0 %v6919, 32
    %v6924 = vpop.permute.xlu0 %6923
    %6925 = vrot.lane.b32.xlu0 %v6920, 32
    %v6926 = vpop.permute.xlu0 %6925
    %v6929 = vadd.f32 %v6909, %v6924
    %v6930 = vadd.f32 %v6910, %v6926
    %v6931 = vtanh.pop %v6929
    %v6932 = vtanh.pop %v6930
    %6935 = vrot.lane.b32.xlu0 %v6931, 64
    %v6936 = vpop.permute.xlu0 %6935
    %6937 = vrot.lane.b32.xlu0 %v6932, 64
    %v6938 = vpop.permute.xlu0 %6937
    %v6941 = vmul.f32 %v6904, %v6936
    %v6942 = vmul.f32 %v6906, %v6938
    %v6943 = vsub.f32 0.0, %v6893
    %v6944 = vsub.f32 0.0, %v6894
    %v6945 = vmul.f32 %v6943, 1.442695
    %v6946 = vpow.pop %v6945
    %v6947 = vmul.f32 %v6944, 1.442695
    %v6948 = vpow.pop %v6947
    %v6949 = vadd.f32 %v6946, 1.0
    %v6950 = vadd.f32 %v6948, 1.0
    %v6951 = vrcp.pop %v6949
    %v6952 = vmul.f32 1.0, %v6951
    %v6953 = vrcp.pop %v6950
    %v6954 = vmul.f32 1.0, %v6953
    %v6955 = vtanh.pop %v6893
    %v6956 = vtanh.pop %v6894
    %v6957 = vmul.f32 %v6952, %v6609
    %v6958 = vmul.f32 %v6954, %v6610
    %6961 = vrot.lane.b32.xlu0 %v6955, 64
    %v6962 = vpop.permute.xlu0 %6961
    %6963 = vrot.lane.b32.xlu0 %v6956, 64
    %v6964 = vpop.permute.xlu0 %6963
    %v6967 = vmul.f32 %v6952, %v6962
    %v6968 = vmul.f32 %v6954, %v6964
    %6971 = vrot.lane.b32.xlu0 %v6967, 32
    %v6972 = vpop.permute.xlu0 %6971
    %6973 = vrot.lane.b32.xlu0 %v6968, 32
    %v6974 = vpop.permute.xlu0 %6973
    %v6977 = vadd.f32 %v6957, %v6972
    %v6978 = vadd.f32 %v6958, %v6974
    %v6979 = vtanh.pop %v6977
    %v6980 = vtanh.pop %v6978
    %6983 = vrot.lane.b32.xlu0 %v6979, 64
    %v6984 = vpop.permute.xlu0 %6983
    %6985 = vrot.lane.b32.xlu0 %v6980, 64
    %v6986 = vpop.permute.xlu0 %6985
    %v6989 = vmul.f32 %v6952, %v6984
    %v6990 = vmul.f32 %v6954, %v6986
    %v6993 = vlaneseq
    %v6994 = vshrl.u32 %v6993, 7
    %v6995 = vsub.s32 0, %v6994
    %v6996 = vrot.slane %v6941, %v6995
    %v6997 = vlaneseq
    %v6998 = vshrl.u32 %v6997, 7
    %v6999 = vsub.s32 0, %v6998
    %v7000 = vrot.slane %v6942, %v6999
    %7001 = vrot.lane.b32.xlu0 %v6996, 32
    %v7002 = vpop.permute.xlu0 %7001
    %7003 = vrot.lane.b32.xlu0 %v7000, 32
    %v7004 = vpop.permute.xlu0 %7003
    %7007 = vst.msk [vmem:[#allocation3 + $0x2] sm:$0x1] %vm900, %v7002
    %7008 = vst.msk [vmem:[#allocation3 + $0x6] sm:$0x1] %vm900, %v7004
    %v7011 = vlaneseq
    %v7012 = vshrl.u32 %v7011, 7
    %v7013 = vsub.s32 0, %v7012
    %v7014 = vrot.slane %v6989, %v7013
    %v7015 = vlaneseq
    %v7016 = vshrl.u32 %v7015, 7
    %v7017 = vsub.s32 0, %v7016
    %v7018 = vrot.slane %v6990, %v7017
    %7019 = vrot.lane.b32.xlu0 %v7014, 64
    %v7020 = vpop.permute.xlu0 %7019
    %7021 = vrot.lane.b32.xlu0 %v7018, 64
    %v7022 = vpop.permute.xlu0 %7021
    %7025 = vst.msk [vmem:[#allocation3] sm:$0x1] %vm5072, %v7020
    %7026 = vst.msk [vmem:[#allocation3 + $0x4] sm:$0x1] %vm5072, %v7022
    %v7027 = vld [vmem:[#allocation3] sm:$0x7]
    %v7028 = vld [vmem:[#allocation3 + $0x4] sm:$0x7]
    %v7029 = vld [vmem:[%s14] sm:$0xff]
    %v7030 = vld [vmem:[%s14 + $0x8] sm:$0xff]
    %v7031 = vld [vmem:[%s14 + $0x10] sm:$0xff]
    %v7032 = vld [vmem:[%s14 + $0x18] sm:$0xff]
    %v7033 = vld [vmem:[%s14 + $0x20] sm:$0xff]
    %v7034 = vld [vmem:[%s14 + $0x28] sm:$0xff]
    %v7035 = vld [vmem:[%s14 + $0x30] sm:$0xff]
    %v7036 = vld [vmem:[%s14 + $0x38] sm:$0xff]
    %v7037 = vld [vmem:[%s15] sm:$0x1]
    %v7039 = vsel %vm5094, %v7027, 0
    %7041 = vmatprep.subr.mxu0 0.0
    %7042 = vmatpush1.xpose.msra.mxu0 0.0
    %7043 = vmatprep.subr.mxu0 0.0
    %7044 = vmatpush1.xpose.msra.mxu0 0.0
    %7045 = vmatprep.subr.mxu0 0.0
    %7046 = vmatpush1.xpose.msra.mxu0 0.0
    %7047 = vmatprep.subr.mxu0 0.0
    %7048 = vmatpush1.xpose.msra.mxu0 0.0
    %7049 = vmatprep.subr.mxu0 0.0
    %7050 = vmatpush1.xpose.msra.mxu0 0.0
    %7051 = vmatprep.subr.mxu0 0.0
    %7052 = vmatpush1.xpose.msra.mxu0 0.0
    %7053 = vmatprep.subr.mxu0 0.0
    %7054 = vmatpush1.xpose.msra.mxu0 0.0
    %7055 = vmatprep.subr.mxu0 0.0
    %7056 = vmatpush1.xpose.msra.mxu0 0.0
    %7057 = vmatprep.subr.mxu0 0.0
    %7058 = vmatpush1.xpose.msra.mxu0 0.0
    %7059 = vmatprep.subr.mxu0 0.0
    %7060 = vmatpush1.xpose.msra.mxu0 0.0
    %7061 = vmatprep.subr.mxu0 0.0
    %7062 = vmatpush1.xpose.msra.mxu0 0.0
    %7063 = vmatprep.subr.mxu0 0.0
    %7064 = vmatpush1.xpose.msra.mxu0 0.0
    %7065 = vmatprep.subr.mxu0 0.0
    %7066 = vmatpush1.xpose.msra.mxu0 0.0
    %7067 = vmatprep.subr.mxu0 0.0
    %7068 = vmatpush1.xpose.msra.mxu0 0.0
    %7069 = vmatprep.subr.mxu0 0.0
    %7070 = vmatpush1.xpose.msra.mxu0 0.0
    %7071 = vmatprep.subr.mxu0 0.0
    %7072 = vmatpush1.xpose.msra.mxu0 %v7039
    %7073 = vmatprep.subr.mxu0 0.0
    %7074 = vmatpush2.xpose.msra.mxu0 0.0
    %7075 = vmatprep.subr.mxu0 0.0
    %7076 = vmatpush2.xpose.msra.mxu0 0.0
    %7077 = vmatprep.subr.mxu0 0.0
    %7078 = vmatpush2.xpose.msra.mxu0 0.0
    %7079 = vmatprep.subr.mxu0 0.0
    %7080 = vmatpush2.xpose.msra.mxu0 0.0
    %7081 = vmatprep.subr.mxu0 0.0
    %7082 = vmatpush2.xpose.msra.mxu0 0.0
    %7083 = vmatprep.subr.mxu0 0.0
    %7084 = vmatpush2.xpose.msra.mxu0 0.0
    %7085 = vmatprep.subr.mxu0 0.0
    %7086 = vmatpush2.xpose.msra.mxu0 0.0
    %7087 = vmatprep.subr.mxu0 0.0
    %7088 = vmatpush2.xpose.msra.mxu0 0.0
    %7089 = vmatprep.subr.mxu0 0.0
    %7090 = vmatpush2.xpose.msra.mxu0 0.0
    %7091 = vmatprep.subr.mxu0 0.0
    %7092 = vmatpush2.xpose.msra.mxu0 0.0
    %7093 = vmatprep.subr.mxu0 0.0
    %7094 = vmatpush2.xpose.msra.mxu0 0.0
    %7095 = vmatprep.subr.mxu0 0.0
    %7096 = vmatpush2.xpose.msra.mxu0 0.0
    %7097 = vmatprep.subr.mxu0 0.0
    %7098 = vmatpush2.xpose.msra.mxu0 0.0
    %7099 = vmatprep.subr.mxu0 0.0
    %7100 = vmatpush2.xpose.msra.mxu0 0.0
    %7101 = vmatprep.subr.mxu0 0.0
    %7102 = vmatpush2.xpose.msra.mxu0 0.0
    %7103 = vmatprep.subr.mxu0 0.0
    %7104 = vmatpush2.xpose.msra.mxu0 0.0
    %7105 = vmatprep.mubr.f32.mxu0 0.0
    %7106 = vmatmul.mubr.f32.gmra.mxu0 %v7039
    %v7107 = vpop.f32.mrf.mxu0
    %v7108 = vadd.f32 0.0, %v7107
    %v7109 = vpop.f32.mrf.mxu0
    %7110 = vdwg.mxu0
    %v7112 = vsel %vm5094, %v7028, 0
    %7114 = vmatprep.subr.mxu0 0.0
    %7115 = vmatpush1.xpose.msra.mxu0 0.0
    %7116 = vmatprep.subr.mxu0 0.0
    %7117 = vmatpush1.xpose.msra.mxu0 0.0
    %7118 = vmatprep.subr.mxu0 0.0
    %7119 = vmatpush1.xpose.msra.mxu0 0.0
    %7120 = vmatprep.subr.mxu0 0.0
    %7121 = vmatpush1.xpose.msra.mxu0 0.0
    %7122 = vmatprep.subr.mxu0 0.0
    %7123 = vmatpush1.xpose.msra.mxu0 0.0
    %7124 = vmatprep.subr.mxu0 0.0
    %7125 = vmatpush1.xpose.msra.mxu0 0.0
    %7126 = vmatprep.subr.mxu0 0.0
    %7127 = vmatpush1.xpose.msra.mxu0 0.0
    %7128 = vmatprep.subr.mxu0 0.0
    %7129 = vmatpush1.xpose.msra.mxu0 0.0
    %7130 = vmatprep.subr.mxu0 0.0
    %7131 = vmatpush1.xpose.msra.mxu0 0.0
    %7132 = vmatprep.subr.mxu0 0.0
    %7133 = vmatpush1.xpose.msra.mxu0 0.0
    %7134 = vmatprep.subr.mxu0 0.0
    %7135 = vmatpush1.xpose.msra.mxu0 0.0
    %7136 = vmatprep.subr.mxu0 0.0
    %7137 = vmatpush1.xpose.msra.mxu0 0.0
    %7138 = vmatprep.subr.mxu0 0.0
    %7139 = vmatpush1.xpose.msra.mxu0 0.0
    %7140 = vmatprep.subr.mxu0 0.0
    %7141 = vmatpush1.xpose.msra.mxu0 0.0
    %7142 = vmatprep.subr.mxu0 0.0
    %7143 = vmatpush1.xpose.msra.mxu0 0.0
    %7144 = vmatprep.subr.mxu0 0.0
    %7145 = vmatpush1.xpose.msra.mxu0 %v7112
    %7146 = vmatprep.subr.mxu0 0.0
    %7147 = vmatpush2.xpose.msra.mxu0 0.0
    %7148 = vmatprep.subr.mxu0 0.0
    %7149 = vmatpush2.xpose.msra.mxu0 0.0
    %7150 = vmatprep.subr.mxu0 0.0
    %7151 = vmatpush2.xpose.msra.mxu0 0.0
    %7152 = vmatprep.subr.mxu0 0.0
    %7153 = vmatpush2.xpose.msra.mxu0 0.0
    %7154 = vmatprep.subr.mxu0 0.0
    %7155 = vmatpush2.xpose.msra.mxu0 0.0
    %7156 = vmatprep.subr.mxu0 0.0
    %7157 = vmatpush2.xpose.msra.mxu0 0.0
    %7158 = vmatprep.subr.mxu0 0.0
    %7159 = vmatpush2.xpose.msra.mxu0 0.0
    %7160 = vmatprep.subr.mxu0 0.0
    %7161 = vmatpush2.xpose.msra.mxu0 0.0
    %7162 = vmatprep.subr.mxu0 0.0
    %7163 = vmatpush2.xpose.msra.mxu0 0.0
    %7164 = vmatprep.subr.mxu0 0.0
    %7165 = vmatpush2.xpose.msra.mxu0 0.0
    %7166 = vmatprep.subr.mxu0 0.0
    %7167 = vmatpush2.xpose.msra.mxu0 0.0
    %7168 = vmatprep.subr.mxu0 0.0
    %7169 = vmatpush2.xpose.msra.mxu0 0.0
    %7170 = vmatprep.subr.mxu0 0.0
    %7171 = vmatpush2.xpose.msra.mxu0 0.0
    %7172 = vmatprep.subr.mxu0 0.0
    %7173 = vmatpush2.xpose.msra.mxu0 0.0
    %7174 = vmatprep.subr.mxu0 0.0
    %7175 = vmatpush2.xpose.msra.mxu0 0.0
    %7176 = vmatprep.subr.mxu0 0.0
    %7177 = vmatpush2.xpose.msra.mxu0 0.0
    %7178 = vmatprep.mubr.f32.mxu0 0.0
    %7179 = vmatmul.mubr.f32.gmra.mxu0 %v7112
    %v7180 = vpop.f32.mrf.mxu0
    %v7181 = vadd.f32 0.0, %v7180
    %v7182 = vpop.f32.mrf.mxu0
    %7183 = vdwg.mxu0
    %v7184 = vmul.f32 %v7108, 0.125
    %v7185 = vmul.f32 %v7181, 0.125
    %vm7186 = vcmask 18432
    %v7187 = vsel %vm7186, %v7184, -inf
    %7188 = vmax.xlane.f32.xlu0 %v7187
    %v7189 = vpop.xlane.xlu0 %7188
    %v7190 = vsel %vm7186, %v7185, -inf
    %7191 = vmax.xlane.f32.xlu0 %v7190
    %v7192 = vpop.xlane.xlu0 %7191
    %v7193 = vsub.f32 %v7184, %v7189
    %v7194 = vsub.f32 %v7185, %v7192
    %v7195 = vmul.f32 %v7193, 1.442695
    %v7196 = vpow.pop %v7195
    %v7197 = vmul.f32 %v7194, 1.442695
    %v7198 = vpow.pop %v7197
    %v7199 = vsel %vm7186, %v7196, 0.0
    %7200 = vadd.xlane.f32.xlu0 %v7199
    %v7201 = vpop.xlane.xlu0 %7200
    %v7202 = vsel %vm7186, %v7198, 0.0
    %7203 = vadd.xlane.f32.xlu0 %v7202
    %v7204 = vpop.xlane.xlu0 %7203
    %v7205 = vrcp.pop %v7201
    %v7206 = vrcp.pop %v7204
    %v7207 = vmul.f32 %v7196, %v7205
    %v7208 = vmul.f32 %v7198, %v7206
    %v7209 = vsel %vm7186, %v7207, 0.0
    %v7210 = vrot.slane %v7209, 4
    %v7211 = vadd.f32 %v7209, %v7210
    %v7212 = vrot.slane %v7211, 2
    %v7213 = vadd.f32 %v7211, %v7212
    %v7214 = vrot.slane %v7213, 1
    %v7215 = vadd.f32 %v7213, %v7214
    %v7216 = vsel %vm7186, %v7208, 0.0
    %v7217 = vrot.slane %v7216, 4
    %v7218 = vadd.f32 %v7216, %v7217
    %v7219 = vrot.slane %v7218, 2
    %v7220 = vadd.f32 %v7218, %v7219
    %v7221 = vrot.slane %v7220, 1
    %v7222 = vadd.f32 %v7220, %v7221
    %7224 = vbcast.lane.b32.xlu0 %v7215, 256
    %v7225 = vpop.permute.xlu0 %7224
    %7227 = vbcast.lane.b32.xlu0 %v7222, 256
    %v7228 = vpop.permute.xlu0 %7227
    %v7229 = vmul.f32 %v7225, %v7027
    %v7230 = vmul.f32 %v7228, %v7028
    %vm7231 = vcmask 518144
    %v7232 = vsel %vm7231, %v7229, 0.0
    %v7233 = vrot.slane %v7232, 4
    %v7234 = vadd.f32 %v7232, %v7233
    %v7235 = vrot.slane %v7234, 2
    %v7236 = vadd.f32 %v7234, %v7235
    %v7237 = vrot.slane %v7236, 1
    %v7238 = vadd.f32 %v7236, %v7237
    %v7239 = vsel %vm7231, %v7230, 0.0
    %v7240 = vrot.slane %v7239, 4
    %v7241 = vadd.f32 %v7239, %v7240
    %v7242 = vrot.slane %v7241, 2
    %v7243 = vadd.f32 %v7241, %v7242
    %v7244 = vrot.slane %v7243, 1
    %v7245 = vadd.f32 %v7243, %v7244
    %v7247 = vlaneseq
    %v7248 = vshrl.u32 %v7247, 7
    %v7249 = vsub.s32 0, %v7248
    %v7250 = vrot.slane %v7037, %v7249
    %v7254 = vsel %vm939, %v7245, %v7238
    %v7255 = vsel %vm5094, %v7254, 0
    %7257 = vmatprep.subr.mxu0 0.0
    %7258 = vmatpush1.msra.mxu0 0.0
    %7259 = vmatprep.subr.mxu0 0.0
    %7260 = vmatpush1.msra.mxu0 0.0
    %7261 = vmatprep.subr.mxu0 0.0
    %7262 = vmatpush1.msra.mxu0 0.0
    %7263 = vmatprep.subr.mxu0 0.0
    %7264 = vmatpush1.msra.mxu0 0.0
    %7265 = vmatprep.subr.mxu0 0.0
    %7266 = vmatpush1.msra.mxu0 0.0
    %7267 = vmatprep.subr.mxu0 0.0
    %7268 = vmatpush1.msra.mxu0 0.0
    %7269 = vmatprep.subr.mxu0 0.0
    %7270 = vmatpush1.msra.mxu0 0.0
    %7271 = vmatprep.subr.mxu0 0.0
    %7272 = vmatpush1.msra.mxu0 0.0
    %7273 = vmatprep.subr.mxu0 0.0
    %7274 = vmatpush1.msra.mxu0 %v7036
    %7275 = vmatprep.subr.mxu0 0.0
    %7276 = vmatpush1.msra.mxu0 %v7035
    %7277 = vmatprep.subr.mxu0 0.0
    %7278 = vmatpush1.msra.mxu0 %v7034
    %7279 = vmatprep.subr.mxu0 0.0
    %7280 = vmatpush1.msra.mxu0 %v7033
    %7281 = vmatprep.subr.mxu0 0.0
    %7282 = vmatpush1.msra.mxu0 %v7032
    %7283 = vmatprep.subr.mxu0 0.0
    %7284 = vmatpush1.msra.mxu0 %v7031
    %7285 = vmatprep.subr.mxu0 0.0
    %7286 = vmatpush1.msra.mxu0 %v7030
    %7287 = vmatprep.subr.mxu0 0.0
    %7288 = vmatpush1.msra.mxu0 %v7029
    %7289 = vmatprep.subr.mxu0 0.0
    %7290 = vmatpush2.msra.mxu0 0.0
    %7291 = vmatprep.subr.mxu0 0.0
    %7292 = vmatpush2.msra.mxu0 0.0
    %7293 = vmatprep.subr.mxu0 0.0
    %7294 = vmatpush2.msra.mxu0 0.0
    %7295 = vmatprep.subr.mxu0 0.0
    %7296 = vmatpush2.msra.mxu0 0.0
    %7297 = vmatprep.subr.mxu0 0.0
    %7298 = vmatpush2.msra.mxu0 0.0
    %7299 = vmatprep.subr.mxu0 0.0
    %7300 = vmatpush2.msra.mxu0 0.0
    %7301 = vmatprep.subr.mxu0 0.0
    %7302 = vmatpush2.msra.mxu0 0.0
    %7303 = vmatprep.subr.mxu0 0.0
    %7304 = vmatpush2.msra.mxu0 0.0
    %7305 = vmatprep.subr.mxu0 0.0
    %7306 = vmatpush2.msra.mxu0 0.0
    %7307 = vmatprep.subr.mxu0 0.0
    %7308 = vmatpush2.msra.mxu0 0.0
    %7309 = vmatprep.subr.mxu0 0.0
    %7310 = vmatpush2.msra.mxu0 0.0
    %7311 = vmatprep.subr.mxu0 0.0
    %7312 = vmatpush2.msra.mxu0 0.0
    %7313 = vmatprep.subr.mxu0 0.0
    %7314 = vmatpush2.msra.mxu0 0.0
    %7315 = vmatprep.subr.mxu0 0.0
    %7316 = vmatpush2.msra.mxu0 0.0
    %7317 = vmatprep.subr.mxu0 0.0
    %7318 = vmatpush2.msra.mxu0 0.0
    %7319 = vmatprep.subr.mxu0 0.0
    %7320 = vmatpush2.msra.mxu0 0.0
    %7321 = vmatprep.mubr.f32.mxu0 0.0
    %7322 = vmatmul.mubr.f32.gmra.mxu0 %v7255
    %v7323 = vpop.f32.mrf.mxu0
    %v7324 = vadd.f32 %v7250, %v7323
    %v7325 = vpop.f32.mrf.mxu0
    %7326 = vdwg.mxu0
    %v7327 = vld [vmem:[%s1] sm:$0xff]
    %v7328 = vld [vmem:[%s1 + $0x8] sm:$0xf]
    %7329 = vset.pattern.permute.xlu0 0
    %7330 = vperm.xlu0 %7329, %v7327
    %v7331 = vpop.permute.xlu0 %7330
    %7332 = vset.pattern.permute.xlu0 0
    %7333 = vperm.xlu0 %7332, %v7328
    %v7334 = vpop.permute.xlu0 %7333
    %vm7335 = vcmp.eq.s32.totalorder %v7331, %v101
    %vm7336 = vcmp.eq.s32.totalorder %v7334, %v101
    %v7337 = vsel %vm7335, 1, 0
    %v7338 = vsel %vm7336, 1, 0
    %v7339 = vcvt.s32.f32 %v7337
    %v7340 = vcvt.s32.f32 %v7338
    %v7341 = vld [vmem:[%s3] sm:$0xff]
    %v7342 = vld [vmem:[%s3 + $0x8] sm:$0xff]
    %v7343 = vld [vmem:[%s3 + $0x10] sm:$0xff]
    %v7344 = vld [vmem:[%s3 + $0x18] sm:$0x3f]
    %vm7345 = vcmask 244736
    %v7347 = vsel %vm7345, %v7339, 0
    %v7350 = vsel %vm7345, %v7340, 0
    %vm7352 = vcmask 1045504
    %v7354 = vsel %vm7352, %v7344, 0
    %7356 = vmatprep.subr.mxu0 0.0
    %7357 = vmatpush1.msra.mxu0 0.0
    %7358 = vmatprep.subr.mxu0 0.0
    %7359 = vmatpush1.msra.mxu0 0.0
    %7360 = vmatprep.subr.mxu0 0.0
    %7361 = vmatpush1.msra.mxu0 0.0
    %7362 = vmatprep.subr.mxu0 0.0
    %7363 = vmatpush1.msra.mxu0 0.0
    %7364 = vmatprep.subr.mxu0 0.0
    %7365 = vmatpush1.msra.mxu0 0.0
    %7366 = vmatprep.subr.mxu0 0.0
    %7367 = vmatpush1.msra.mxu0 0.0
    %7368 = vmatprep.subr.mxu0 0.0
    %7369 = vmatpush1.msra.mxu0 0.0
    %7370 = vmatprep.subr.mxu0 0.0
    %7371 = vmatpush1.msra.mxu0 0.0
    %7372 = vmatprep.subr.mxu0 0.0
    %7373 = vmatpush1.msra.mxu0 0.0
    %7374 = vmatprep.subr.mxu0 0.0
    %7375 = vmatpush1.msra.mxu0 0.0
    %7376 = vmatprep.subr.mxu0 0.0
    %7377 = vmatpush1.msra.mxu0 0.0
    %7378 = vmatprep.subr.mxu0 0.0
    %7379 = vmatpush1.msra.mxu0 0.0
    %7380 = vmatprep.subr.mxu0 0.0
    %7381 = vmatpush1.msra.mxu0 %v7354
    %7382 = vmatprep.subr.mxu0 0.0
    %7383 = vmatpush1.msra.mxu0 %v7343
    %7384 = vmatprep.subr.mxu0 0.0
    %7385 = vmatpush1.msra.mxu0 %v7342
    %7386 = vmatprep.subr.mxu0 0.0
    %7387 = vmatpush1.msra.mxu0 %v7341
    %7388 = vmatprep.subr.mxu0 0.0
    %7389 = vmatpush2.msra.mxu0 0.0
    %7390 = vmatprep.subr.mxu0 0.0
    %7391 = vmatpush2.msra.mxu0 0.0
    %7392 = vmatprep.subr.mxu0 0.0
    %7393 = vmatpush2.msra.mxu0 0.0
    %7394 = vmatprep.subr.mxu0 0.0
    %7395 = vmatpush2.msra.mxu0 0.0
    %7396 = vmatprep.subr.mxu0 0.0
    %7397 = vmatpush2.msra.mxu0 0.0
    %7398 = vmatprep.subr.mxu0 0.0
    %7399 = vmatpush2.msra.mxu0 0.0
    %7400 = vmatprep.subr.mxu0 0.0
    %7401 = vmatpush2.msra.mxu0 0.0
    %7402 = vmatprep.subr.mxu0 0.0
    %7403 = vmatpush2.msra.mxu0 0.0
    %7404 = vmatprep.subr.mxu0 0.0
    %7405 = vmatpush2.msra.mxu0 0.0
    %7406 = vmatprep.subr.mxu0 0.0
    %7407 = vmatpush2.msra.mxu0 0.0
    %7408 = vmatprep.subr.mxu0 0.0
    %7409 = vmatpush2.msra.mxu0 0.0
    %7410 = vmatprep.subr.mxu0 0.0
    %7411 = vmatpush2.msra.mxu0 0.0
    %7412 = vmatprep.subr.mxu0 0.0
    %7413 = vmatpush2.msra.mxu0 0.0
    %7414 = vmatprep.subr.mxu0 0.0
    %7415 = vmatpush2.msra.mxu0 0.0
    %7416 = vmatprep.subr.mxu0 0.0
    %7417 = vmatpush2.msra.mxu0 0.0
    %7418 = vmatprep.subr.mxu0 0.0
    %7419 = vmatpush2.msra.mxu0 0.0
    %7420 = vmatprep.mubr.f32.mxu0 0.0
    %7421 = vmatmul.mubr.f32.gmra.mxu0 %v7347
    %v7422 = vpop.f32.mrf.mxu0
    %v7423 = vadd.f32 0.0, %v7422
    %v7424 = vpop.f32.mrf.mxu0
    %7425 = vmatprep.mubr.f32.mxu0 0.0
    %7426 = vmatmul.mubr.f32.gmra.mxu0 %v7350
    %v7427 = vpop.f32.mrf.mxu0
    %v7428 = vadd.f32 0.0, %v7427
    %v7429 = vpop.f32.mrf.mxu0
    %7430 = vdwg.mxu0
    %v7431 = vld [vmem:[%s16] sm:$0xff]
    %v7432 = vld [vmem:[%s16 + $0x8] sm:$0xff]
    %v7433 = vld [vmem:[%s17] sm:$0x1]
    %v7435 = vlaneseq
    %v7436 = vshrl.u32 %v7435, 7
    %v7437 = vsub.s32 0, %v7436
    %v7438 = vrot.slane %v7433, %v7437
    %v7441 = vsel %vm279, %v7423, 0
    %v7444 = vsel %vm279, %v7428, 0
    %7446 = vmatprep.subr.mxu0 0.0
    %7447 = vmatpush1.msra.mxu0 0.0
    %7448 = vmatprep.subr.mxu0 0.0
    %7449 = vmatpush1.msra.mxu0 0.0
    %7450 = vmatprep.subr.mxu0 0.0
    %7451 = vmatpush1.msra.mxu0 0.0
    %7452 = vmatprep.subr.mxu0 0.0
    %7453 = vmatpush1.msra.mxu0 0.0
    %7454 = vmatprep.subr.mxu0 0.0
    %7455 = vmatpush1.msra.mxu0 0.0
    %7456 = vmatprep.subr.mxu0 0.0
    %7457 = vmatpush1.msra.mxu0 0.0
    %7458 = vmatprep.subr.mxu0 0.0
    %7459 = vmatpush1.msra.mxu0 0.0
    %7460 = vmatprep.subr.mxu0 0.0
    %7461 = vmatpush1.msra.mxu0 0.0
    %7462 = vmatprep.subr.mxu0 0.0
    %7463 = vmatpush1.msra.mxu0 0.0
    %7464 = vmatprep.subr.mxu0 0.0
    %7465 = vmatpush1.msra.mxu0 0.0
    %7466 = vmatprep.subr.mxu0 0.0
    %7467 = vmatpush1.msra.mxu0 0.0
    %7468 = vmatprep.subr.mxu0 0.0
    %7469 = vmatpush1.msra.mxu0 0.0
    %7470 = vmatprep.subr.mxu0 0.0
    %7471 = vmatpush1.msra.mxu0 0.0
    %7472 = vmatprep.subr.mxu0 0.0
    %7473 = vmatpush1.msra.mxu0 0.0
    %7474 = vmatprep.subr.mxu0 0.0
    %7475 = vmatpush1.msra.mxu0 %v7432
    %7476 = vmatprep.subr.mxu0 0.0
    %7477 = vmatpush1.msra.mxu0 %v7431
    %7478 = vmatprep.subr.mxu0 0.0
    %7479 = vmatpush2.msra.mxu0 0.0
    %7480 = vmatprep.subr.mxu0 0.0
    %7481 = vmatpush2.msra.mxu0 0.0
    %7482 = vmatprep.subr.mxu0 0.0
    %7483 = vmatpush2.msra.mxu0 0.0
    %7484 = vmatprep.subr.mxu0 0.0
    %7485 = vmatpush2.msra.mxu0 0.0
    %7486 = vmatprep.subr.mxu0 0.0
    %7487 = vmatpush2.msra.mxu0 0.0
    %7488 = vmatprep.subr.mxu0 0.0
    %7489 = vmatpush2.msra.mxu0 0.0
    %7490 = vmatprep.subr.mxu0 0.0
    %7491 = vmatpush2.msra.mxu0 0.0
    %7492 = vmatprep.subr.mxu0 0.0
    %7493 = vmatpush2.msra.mxu0 0.0
    %7494 = vmatprep.subr.mxu0 0.0
    %7495 = vmatpush2.msra.mxu0 0.0
    %7496 = vmatprep.subr.mxu0 0.0
    %7497 = vmatpush2.msra.mxu0 0.0
    %7498 = vmatprep.subr.mxu0 0.0
    %7499 = vmatpush2.msra.mxu0 0.0
    %7500 = vmatprep.subr.mxu0 0.0
    %7501 = vmatpush2.msra.mxu0 0.0
    %7502 = vmatprep.subr.mxu0 0.0
    %7503 = vmatpush2.msra.mxu0 0.0
    %7504 = vmatprep.subr.mxu0 0.0
    %7505 = vmatpush2.msra.mxu0 0.0
    %7506 = vmatprep.subr.mxu0 0.0
    %7507 = vmatpush2.msra.mxu0 0.0
    %7508 = vmatprep.subr.mxu0 0.0
    %7509 = vmatpush2.msra.mxu0 0.0
    %7510 = vmatprep.mubr.f32.mxu0 0.0
    %7511 = vmatmul.mubr.f32.gmra.mxu0 %v7441
    %v7512 = vpop.f32.mrf.mxu0
    %v7513 = vadd.f32 %v7438, %v7512
    %v7514 = vpop.f32.mrf.mxu0
    %7515 = vmatprep.mubr.f32.mxu0 0.0
    %7516 = vmatmul.mubr.f32.gmra.mxu0 %v7444
    %v7517 = vpop.f32.mrf.mxu0
    %v7518 = vadd.f32 %v7438, %v7517
    %v7519 = vpop.f32.mrf.mxu0
    %7520 = vdwg.mxu0
    %v7523 = vcombine.high %v7513, %v7513
    %v7525 = vunpack.c.l.s4 1983009808
    %v7526 = vunpack.c.0.s8 %v7525
    %v7527 = vlaneseq
    %v7528 = vshrl.u32 %v7527, 7
    %v7529 = vsub.s32 %v7526, %v7528
    %v7530 = vrot.slane %v7513, %v7529
    %v7532 = vunpack.c.l.s4 1983009808
    %v7533 = vunpack.c.0.s8 %v7532
    %v7534 = vlaneseq
    %v7535 = vshrl.u32 %v7534, 7
    %v7536 = vsub.s32 %v7533, %v7535
    %v7537 = vrot.slane %v7523, %v7536
    %v7538 = vcombine.high %v7530, %v7530
    %v7539 = vcombine.high %v7537, %v7537
    %v7541 = vunpack.c.l.s4 1983009808
    %v7542 = vunpack.c.0.s8 %v7541
    %v7543 = vlaneseq
    %v7544 = vshrl.u32 %v7543, 7
    %v7545 = vsub.s32 %v7542, %v7544
    %v7546 = vrot.slane %v7518, %v7545
    %v7547 = vcombine.high %v7546, %v7546
    %v7554 = vld [vmem:[%s18] sm:$0xff]
    %v7555 = vld [vmem:[%s18 + $0x8] sm:$0xff]
    %v7556 = vld [vmem:[%s18 + $0x10] sm:$0xff]
    %v7557 = vld [vmem:[%s18 + $0x18] sm:$0xff]
    %v7558 = vld [vmem:[%s19] sm:$0x1]
    %v7559 = vld [vmem:[%s20] sm:$0x1]
    %v7560 = vld [vmem:[#allocation4] sm:$0x1]
    %v7562 = vlaneseq
    %v7563 = vshrl.u32 %v7562, 7
    %v7564 = vsub.s32 0, %v7563
    %v7565 = vrot.slane %v7558, %v7564
    %v7567 = vsel %vm407, %v7513, 0
    %v7569 = vsel %vm407, %v7518, 0
    %7571 = vmatprep.subr.mxu0 0.0
    %7572 = vmatpush1.msra.mxu0 0.0
    %7573 = vmatprep.subr.mxu0 0.0
    %7574 = vmatpush1.msra.mxu0 0.0
    %7575 = vmatprep.subr.mxu0 0.0
    %7576 = vmatpush1.msra.mxu0 0.0
    %7577 = vmatprep.subr.mxu0 0.0
    %7578 = vmatpush1.msra.mxu0 0.0
    %7579 = vmatprep.subr.mxu0 0.0
    %7580 = vmatpush1.msra.mxu0 0.0
    %7581 = vmatprep.subr.mxu0 0.0
    %7582 = vmatpush1.msra.mxu0 0.0
    %7583 = vmatprep.subr.mxu0 0.0
    %7584 = vmatpush1.msra.mxu0 0.0
    %7585 = vmatprep.subr.mxu0 0.0
    %7586 = vmatpush1.msra.mxu0 0.0
    %7587 = vmatprep.subr.mxu0 0.0
    %7588 = vmatpush1.msra.mxu0 0.0
    %7589 = vmatprep.subr.mxu0 0.0
    %7590 = vmatpush1.msra.mxu0 0.0
    %7591 = vmatprep.subr.mxu0 0.0
    %7592 = vmatpush1.msra.mxu0 0.0
    %7593 = vmatprep.subr.mxu0 0.0
    %7594 = vmatpush1.msra.mxu0 0.0
    %7595 = vmatprep.subr.mxu0 0.0
    %7596 = vmatpush1.msra.mxu0 %v7557
    %7597 = vmatprep.subr.mxu0 0.0
    %7598 = vmatpush1.msra.mxu0 %v7556
    %7599 = vmatprep.subr.mxu0 0.0
    %7600 = vmatpush1.msra.mxu0 %v7555
    %7601 = vmatprep.subr.mxu0 0.0
    %7602 = vmatpush1.msra.mxu0 %v7554
    %7603 = vmatprep.subr.mxu0 0.0
    %7604 = vmatpush2.msra.mxu0 0.0
    %7605 = vmatprep.subr.mxu0 0.0
    %7606 = vmatpush2.msra.mxu0 0.0
    %7607 = vmatprep.subr.mxu0 0.0
    %7608 = vmatpush2.msra.mxu0 0.0
    %7609 = vmatprep.subr.mxu0 0.0
    %7610 = vmatpush2.msra.mxu0 0.0
    %7611 = vmatprep.subr.mxu0 0.0
    %7612 = vmatpush2.msra.mxu0 0.0
    %7613 = vmatprep.subr.mxu0 0.0
    %7614 = vmatpush2.msra.mxu0 0.0
    %7615 = vmatprep.subr.mxu0 0.0
    %7616 = vmatpush2.msra.mxu0 0.0
    %7617 = vmatprep.subr.mxu0 0.0
    %7618 = vmatpush2.msra.mxu0 0.0
    %7619 = vmatprep.subr.mxu0 0.0
    %7620 = vmatpush2.msra.mxu0 0.0
    %7621 = vmatprep.subr.mxu0 0.0
    %7622 = vmatpush2.msra.mxu0 0.0
    %7623 = vmatprep.subr.mxu0 0.0
    %7624 = vmatpush2.msra.mxu0 0.0
    %7625 = vmatprep.subr.mxu0 0.0
    %7626 = vmatpush2.msra.mxu0 0.0
    %7627 = vmatprep.subr.mxu0 0.0
    %7628 = vmatpush2.msra.mxu0 0.0
    %7629 = vmatprep.subr.mxu0 0.0
    %7630 = vmatpush2.msra.mxu0 0.0
    %7631 = vmatprep.subr.mxu0 0.0
    %7632 = vmatpush2.msra.mxu0 0.0
    %7633 = vmatprep.subr.mxu0 0.0
    %7634 = vmatpush2.msra.mxu0 0.0
    %7635 = vmatprep.mubr.f32.mxu0 0.0
    %7636 = vmatmul.mubr.f32.gmra.mxu0 %v7567
    %v7637 = vpop.f32.mrf.mxu0
    %v7638 = vadd.f32 %v7565, %v7637
    %v7639 = vpop.f32.mrf.mxu0
    %7640 = vmatprep.mubr.f32.mxu0 0.0
    %7641 = vmatmul.mubr.f32.gmra.mxu0 %v7569
    %v7642 = vpop.f32.mrf.mxu0
    %v7643 = vadd.f32 %v7565, %v7642
    %v7644 = vpop.f32.mrf.mxu0
    %7645 = vdwg.mxu0
    %v7646 = vmax.f32 %v7638, 0.0
    %v7647 = vmax.f32 %v7643, 0.0
    %v7650 = vcombine.high %v7646, %v7646
    %v7652 = vunpack.c.l.s4 1983009808
    %v7653 = vunpack.c.0.s8 %v7652
    %v7654 = vlaneseq
    %v7655 = vshrl.u32 %v7654, 7
    %v7656 = vsub.s32 %v7653, %v7655
    %v7657 = vrot.slane %v7646, %v7656
    %v7659 = vunpack.c.l.s4 1983009808
    %v7660 = vunpack.c.0.s8 %v7659
    %v7661 = vlaneseq
    %v7662 = vshrl.u32 %v7661, 7
    %v7663 = vsub.s32 %v7660, %v7662
    %v7664 = vrot.slane %v7650, %v7663
    %v7665 = vcombine.high %v7657, %v7657
    %v7666 = vcombine.high %v7664, %v7664
    %v7668 = vunpack.c.l.s4 1983009808
    %v7669 = vunpack.c.0.s8 %v7668
    %v7670 = vlaneseq
    %v7671 = vshrl.u32 %v7670, 7
    %v7672 = vsub.s32 %v7669, %v7671
    %v7673 = vrot.slane %v7647, %v7672
    %v7674 = vcombine.high %v7673, %v7673
    %v7682 = vlaneseq
    %v7683 = vshrl.u32 %v7682, 7
    %v7684 = vsub.s32 0, %v7683
    %v7685 = vrot.slane %v7559, %v7684
    %v7686 = vcombine.high %v7685, %v7685
    %v7688 = vunpack.c.l.s4 1983009808
    %v7689 = vunpack.c.0.s8 %v7688
    %v7690 = vlaneseq
    %v7691 = vshrl.u32 %v7690, 7
    %v7692 = vsub.s32 %v7689, %v7691
    %v7693 = vrot.slane %v7685, %v7692
    %v7695 = vunpack.c.l.s4 1983009808
    %v7696 = vunpack.c.0.s8 %v7695
    %v7697 = vlaneseq
    %v7698 = vshrl.u32 %v7697, 7
    %v7699 = vsub.s32 %v7696, %v7698
    %v7700 = vrot.slane %v7686, %v7699
    %v7701 = vcombine.high %v7693, %v7693
    %v7705 = vmul.f32 %v7657, %v7693
    %v7706 = vmul.f32 %v7665, %v7701
    %v7707 = vmul.f32 %v7664, %v7700
    %v7708 = vmul.f32 %v7666, %v7693
    %v7709 = vmul.f32 %v7673, %v7701
    %v7710 = vmul.f32 %v7674, %v7700
    %v7717 = vcombine.low %v7705, %v7706
    %v7719 = vunpack.c.l.s4 1983009808
    %v7720 = vunpack.c.0.s8 %v7719
    %v7721 = vlaneseq
    %v7722 = vshrl.u32 %v7721, 7
    %v7723 = vsub.s32 %v7720, %v7722
    %v7724 = vrot.slane %v7717, %v7723
    %v7726 = vunpack.c.l.s4 1983009808
    %v7727 = vunpack.c.0.s8 %v7726
    %v7728 = vlaneseq
    %v7729 = vshrl.u32 %v7728, 7
    %v7730 = vsub.s32 %v7727, %v7729
    %v7731 = vrot.slane %v7707, %v7730
    %v7732 = vcombine.low %v7724, %v7731
    %v7733 = vcombine.low %v7708, %v7709
    %v7735 = vunpack.c.l.s4 1983009808
    %v7736 = vunpack.c.0.s8 %v7735
    %v7737 = vlaneseq
    %v7738 = vshrl.u32 %v7737, 7
    %v7739 = vsub.s32 %v7736, %v7738
    %v7740 = vrot.slane %v7733, %v7739
    %v7742 = vunpack.c.l.s4 1983009808
    %v7743 = vunpack.c.0.s8 %v7742
    %v7744 = vlaneseq
    %v7745 = vshrl.u32 %v7744, 7
    %v7746 = vsub.s32 %v7743, %v7745
    %v7747 = vrot.slane %v7710, %v7746
    %v7748 = vcombine.low %v7740, %v7747
    %vm7751 = vcmask 46080
    %v7752 = vsel %vm7751, %v7732, 0.0
    %7753 = vadd.xlane.f32.xlu0 %v7752
    %v7754 = vpop.xlane.xlu0 %7753
    %v7755 = vsel %vm7751, %v7748, 0.0
    %7756 = vadd.xlane.f32.xlu0 %v7755
    %v7757 = vpop.xlane.xlu0 %7756
    %v7759 = vlaneseq
    %v7760 = vshrl.u32 %v7759, 7
    %v7761 = vsub.s32 0, %v7760
    %v7762 = vrot.slane %v7560, %v7761
    %7763 = vset.pattern.permute.xlu0 0
    %7764 = vperm.xlu0 %7763, %v7762
    %v7765 = vpop.permute.xlu0 %7764
    %v7767 = vadd.f32 %v7754, %v7765
    %v7768 = vadd.f32 %v7757, %v7765
    %v7771 = vlaneseq
    %v7772 = vshrl.u32 %v7771, 7
    %v7773 = vsub.s32 %v101, %v7772
    %v7774 = vrot.slane %v7767, %v7773
    %v7775 = vlaneseq
    %v7776 = vshrl.u32 %v7775, 7
    %v7777 = vsub.s32 %v101, %v7776
    %v7778 = vrot.slane %v7768, %v7777
    %v7779 = vsel %vm939, %v7778, %v7774
    %vm7781 = vcmask 41984
    %v7782 = vsel %vm7781, %v7779, -inf
    %7783 = vmax.xlane.f32.xlu0 %v7782
    %v7784 = vpop.xlane.xlu0 %7783
    %v7786 = vlaneseq
    %v7787 = vshrl.u32 %v7786, 7
    %v7788 = vsub.s32 0, %v7787
    %v7789 = vrot.slane %v7784, %v7788
    %v7790 = vlaneseq
    %v7791 = vshrl.u32 %v7790, 7
    %v7792 = vsub.s32 1, %v7791
    %v7793 = vrot.slane %v7784, %v7792
    %v7796 = vsub.f32 %v7767, %v7789
    %v7797 = vsub.f32 %v7768, %v7793
    %v7798 = vmul.f32 %v7796, 1.442695
    %v7799 = vpow.pop %v7798
    %v7800 = vmul.f32 %v7797, 1.442695
    %v7801 = vpow.pop %v7800
    %7804 = vset.pattern.permute.xlu0 0
    %7805 = vperm.xlu0 %7804, %v7799
    %v7806 = vpop.permute.xlu0 %7805
    %7807 = vset.pattern.permute.xlu0 0
    %7808 = vperm.xlu0 %7807, %v7801
    %v7809 = vpop.permute.xlu0 %7808
    %v7810 = vlaneseq
    %v7811 = vshrl.u32 %v7810, 7
    %v7812 = vsub.s32 %v101, %v7811
    %v7813 = vrot.slane %v7806, %v7812
    %v7814 = vlaneseq
    %v7815 = vshrl.u32 %v7814, 7
    %v7816 = vsub.s32 %v101, %v7815
    %v7817 = vrot.slane %v7809, %v7816
    %v7818 = vsel %vm939, %v7817, %v7813
    %v7820 = vsel %vm7781, %v7818, 0.0
    %7821 = vadd.xlane.f32.xlu0 %v7820
    %v7822 = vpop.xlane.xlu0 %7821
    %v7823 = vrcp.pop %v7822
    %v7825 = vlaneseq
    %v7826 = vshrl.u32 %v7825, 7
    %v7827 = vsub.s32 0, %v7826
    %v7828 = vrot.slane %v7823, %v7827
    %v7829 = vlaneseq
    %v7830 = vshrl.u32 %v7829, 7
    %v7831 = vsub.s32 1, %v7830
    %v7832 = vrot.slane %v7823, %v7831
    %v7835 = vmul.f32 %v7799, %v7828
    %v7836 = vmul.f32 %v7801, %v7832
    %7838 = vset.pattern.permute.xlu0 0
    %7839 = vperm.xlu0 %7838, %v7835
    %v7840 = vpop.permute.xlu0 %7839
    %7842 = vset.pattern.permute.xlu0 0
    %7843 = vperm.xlu0 %7842, %v7836
    %v7844 = vpop.permute.xlu0 %7843
    %v7846 = vunpack.c.l.s4 269488144
    %v7847 = vunpack.c.0.s8 %v7846
    %v7848 = vlaneseq
    %v7849 = vshrl.u32 %v7848, 7
    %v7850 = vsub.s32 %v7847, %v7849
    %v7851 = vrot.slane %v7840, %v7850
    %v7853 = vunpack.c.l.s4 842150450
    %v7854 = vunpack.c.0.s8 %v7853
    %v7855 = vlaneseq
    %v7856 = vshrl.u32 %v7855, 7
    %v7857 = vsub.s32 %v7854, %v7856
    %v7858 = vrot.slane %v7840, %v7857
    %v7860 = vunpack.c.l.s4 1414812756
    %v7861 = vunpack.c.0.s8 %v7860
    %v7862 = vlaneseq
    %v7863 = vshrl.u32 %v7862, 7
    %v7864 = vsub.s32 %v7861, %v7863
    %v7865 = vrot.slane %v7840, %v7864
    %v7867 = vunpack.c.l.s4 269488144
    %v7868 = vunpack.c.0.s8 %v7867
    %v7869 = vlaneseq
    %v7870 = vshrl.u32 %v7869, 7
    %v7871 = vsub.s32 %v7868, %v7870
    %v7872 = vrot.slane %v7844, %v7871
    %v7874 = vunpack.c.l.s4 842150450
    %v7875 = vunpack.c.0.s8 %v7874
    %v7876 = vlaneseq
    %v7877 = vshrl.u32 %v7876, 7
    %v7878 = vsub.s32 %v7875, %v7877
    %v7879 = vrot.slane %v7844, %v7878
    %v7881 = vunpack.c.l.s4 1414812756
    %v7882 = vunpack.c.0.s8 %v7881
    %v7883 = vlaneseq
    %v7884 = vshrl.u32 %v7883, 7
    %v7885 = vsub.s32 %v7882, %v7884
    %v7886 = vrot.slane %v7844, %v7885
    %v7893 = vmul.f32 %v7530, %v7851
    %v7894 = vmul.f32 %v7538, %v7858
    %v7895 = vmul.f32 %v7537, %v7865
    %v7896 = vmul.f32 %v7539, %v7872
    %v7897 = vmul.f32 %v7546, %v7879
    %v7898 = vmul.f32 %v7547, %v7886
    %v7905 = vcombine.low %v7893, %v7894
    %v7907 = vunpack.c.l.s4 1983009808
    %v7908 = vunpack.c.0.s8 %v7907
    %v7909 = vlaneseq
    %v7910 = vshrl.u32 %v7909, 7
    %v7911 = vsub.s32 %v7908, %v7910
    %v7912 = vrot.slane %v7905, %v7911
    %v7914 = vunpack.c.l.s4 1983009808
    %v7915 = vunpack.c.0.s8 %v7914
    %v7916 = vlaneseq
    %v7917 = vshrl.u32 %v7916, 7
    %v7918 = vsub.s32 %v7915, %v7917
    %v7919 = vrot.slane %v7895, %v7918
    %v7920 = vcombine.low %v7912, %v7919
    %v7921 = vcombine.low %v7896, %v7897
    %v7923 = vunpack.c.l.s4 1983009808
    %v7924 = vunpack.c.0.s8 %v7923
    %v7925 = vlaneseq
    %v7926 = vshrl.u32 %v7925, 7
    %v7927 = vsub.s32 %v7924, %v7926
    %v7928 = vrot.slane %v7921, %v7927
    %v7930 = vunpack.c.l.s4 1983009808
    %v7931 = vunpack.c.0.s8 %v7930
    %v7932 = vlaneseq
    %v7933 = vshrl.u32 %v7932, 7
    %v7934 = vsub.s32 %v7931, %v7933
    %v7935 = vrot.slane %v7898, %v7934
    %v7936 = vcombine.low %v7928, %v7935
    %vm7939 = vcmask 259072
    %v7940 = vsel %vm7939, %v7920, 0.0
    %v7941 = vrot.slane %v7940, 4
    %v7942 = vadd.f32 %v7940, %v7941
    %v7943 = vrot.slane %v7942, 2
    %v7944 = vadd.f32 %v7942, %v7943
    %v7945 = vrot.slane %v7944, 1
    %v7946 = vadd.f32 %v7944, %v7945
    %v7947 = vsel %vm7939, %v7936, 0.0
    %v7948 = vrot.slane %v7947, 4
    %v7949 = vadd.f32 %v7947, %v7948
    %v7950 = vrot.slane %v7949, 2
    %v7951 = vadd.f32 %v7949, %v7950
    %v7952 = vrot.slane %v7951, 1
    %v7953 = vadd.f32 %v7951, %v7952
    %v7954 = vld [vmem:[%s22] sm:$0xff]
    %v7955 = vld [vmem:[%s22 + $0x8] sm:$0xff]
    %v7956 = vld [vmem:[%s22 + $0x10] sm:$0xff]
    %v7957 = vld [vmem:[%s22 + $0x18] sm:$0xff]
    %v7958 = vld [vmem:[%s23] sm:$0x1]
    %v7959 = vld [vmem:[%s24] sm:$0x1]
    %v7960 = vld [vmem:[#allocation5] sm:$0x1]
    %v7962 = vlaneseq
    %v7963 = vshrl.u32 %v7962, 7
    %v7964 = vsub.s32 0, %v7963
    %v7965 = vrot.slane %v7958, %v7964
    %v7968 = vsel %vm407, %v7324, 0
    %7970 = vmatprep.subr.mxu0 0.0
    %7971 = vmatpush1.msra.mxu0 0.0
    %7972 = vmatprep.subr.mxu0 0.0
    %7973 = vmatpush1.msra.mxu0 0.0
    %7974 = vmatprep.subr.mxu0 0.0
    %7975 = vmatpush1.msra.mxu0 0.0
    %7976 = vmatprep.subr.mxu0 0.0
    %7977 = vmatpush1.msra.mxu0 0.0
    %7978 = vmatprep.subr.mxu0 0.0
    %7979 = vmatpush1.msra.mxu0 0.0
    %7980 = vmatprep.subr.mxu0 0.0
    %7981 = vmatpush1.msra.mxu0 0.0
    %7982 = vmatprep.subr.mxu0 0.0
    %7983 = vmatpush1.msra.mxu0 0.0
    %7984 = vmatprep.subr.mxu0 0.0
    %7985 = vmatpush1.msra.mxu0 0.0
    %7986 = vmatprep.subr.mxu0 0.0
    %7987 = vmatpush1.msra.mxu0 0.0
    %7988 = vmatprep.subr.mxu0 0.0
    %7989 = vmatpush1.msra.mxu0 0.0
    %7990 = vmatprep.subr.mxu0 0.0
    %7991 = vmatpush1.msra.mxu0 0.0
    %7992 = vmatprep.subr.mxu0 0.0
    %7993 = vmatpush1.msra.mxu0 0.0
    %7994 = vmatprep.subr.mxu0 0.0
    %7995 = vmatpush1.msra.mxu0 %v7957
    %7996 = vmatprep.subr.mxu0 0.0
    %7997 = vmatpush1.msra.mxu0 %v7956
    %7998 = vmatprep.subr.mxu0 0.0
    %7999 = vmatpush1.msra.mxu0 %v7955
    %8000 = vmatprep.subr.mxu0 0.0
    %8001 = vmatpush1.msra.mxu0 %v7954
    %8002 = vmatprep.subr.mxu0 0.0
    %8003 = vmatpush2.msra.mxu0 0.0
    %8004 = vmatprep.subr.mxu0 0.0
    %8005 = vmatpush2.msra.mxu0 0.0
    %8006 = vmatprep.subr.mxu0 0.0
    %8007 = vmatpush2.msra.mxu0 0.0
    %8008 = vmatprep.subr.mxu0 0.0
    %8009 = vmatpush2.msra.mxu0 0.0
    %8010 = vmatprep.subr.mxu0 0.0
    %8011 = vmatpush2.msra.mxu0 0.0
    %8012 = vmatprep.subr.mxu0 0.0
    %8013 = vmatpush2.msra.mxu0 0.0
    %8014 = vmatprep.subr.mxu0 0.0
    %8015 = vmatpush2.msra.mxu0 0.0
    %8016 = vmatprep.subr.mxu0 0.0
    %8017 = vmatpush2.msra.mxu0 0.0
    %8018 = vmatprep.subr.mxu0 0.0
    %8019 = vmatpush2.msra.mxu0 0.0
    %8020 = vmatprep.subr.mxu0 0.0
    %8021 = vmatpush2.msra.mxu0 0.0
    %8022 = vmatprep.subr.mxu0 0.0
    %8023 = vmatpush2.msra.mxu0 0.0
    %8024 = vmatprep.subr.mxu0 0.0
    %8025 = vmatpush2.msra.mxu0 0.0
    %8026 = vmatprep.subr.mxu0 0.0
    %8027 = vmatpush2.msra.mxu0 0.0
    %8028 = vmatprep.subr.mxu0 0.0
    %8029 = vmatpush2.msra.mxu0 0.0
    %8030 = vmatprep.subr.mxu0 0.0
    %8031 = vmatpush2.msra.mxu0 0.0
    %8032 = vmatprep.subr.mxu0 0.0
    %8033 = vmatpush2.msra.mxu0 0.0
    %8034 = vmatprep.mubr.f32.mxu0 0.0
    %8035 = vmatmul.mubr.f32.gmra.mxu0 %v7968
    %v8036 = vpop.f32.mrf.mxu0
    %v8037 = vadd.f32 %v7965, %v8036
    %v8038 = vpop.f32.mrf.mxu0
    %8039 = vdwg.mxu0
    %v8040 = vmax.f32 %v8037, 0.0
    %v8042 = vlaneseq
    %v8043 = vshrl.u32 %v8042, 7
    %v8044 = vsub.s32 0, %v8043
    %v8045 = vrot.slane %v7959, %v8044
    %v8047 = vmul.f32 %v8040, %v8045
    %v8048 = vsel %vm7781, %v8047, 0.0
    %8049 = vadd.xlane.f32.xlu0 %v8048
    %v8050 = vpop.xlane.xlu0 %8049
    %v8052 = vlaneseq
    %v8053 = vshrl.u32 %v8052, 7
    %v8054 = vsub.s32 0, %v8053
    %v8055 = vrot.slane %v7960, %v8054
    %v8057 = vadd.f32 %v8050, %v8055
    %v8060 = vsel %vm939, %v7953, %v7946
    %v8061 = vsel %vm407, %v8060, 0
    %8063 = vmatprep.subr.mxu0 0.0
    %8064 = vmatpush1.msra.mxu0 0.0
    %8065 = vmatprep.subr.mxu0 0.0
    %8066 = vmatpush1.msra.mxu0 0.0
    %8067 = vmatprep.subr.mxu0 0.0
    %8068 = vmatpush1.msra.mxu0 0.0
    %8069 = vmatprep.subr.mxu0 0.0
    %8070 = vmatpush1.msra.mxu0 0.0
    %8071 = vmatprep.subr.mxu0 0.0
    %8072 = vmatpush1.msra.mxu0 0.0
    %8073 = vmatprep.subr.mxu0 0.0
    %8074 = vmatpush1.msra.mxu0 0.0
    %8075 = vmatprep.subr.mxu0 0.0
    %8076 = vmatpush1.msra.mxu0 0.0
    %8077 = vmatprep.subr.mxu0 0.0
    %8078 = vmatpush1.msra.mxu0 0.0
    %8079 = vmatprep.subr.mxu0 0.0
    %8080 = vmatpush1.msra.mxu0 0.0
    %8081 = vmatprep.subr.mxu0 0.0
    %8082 = vmatpush1.msra.mxu0 0.0
    %8083 = vmatprep.subr.mxu0 0.0
    %8084 = vmatpush1.msra.mxu0 0.0
    %8085 = vmatprep.subr.mxu0 0.0
    %8086 = vmatpush1.msra.mxu0 0.0
    %8087 = vmatprep.subr.mxu0 0.0
    %8088 = vmatpush1.msra.mxu0 %v7957
    %8089 = vmatprep.subr.mxu0 0.0
    %8090 = vmatpush1.msra.mxu0 %v7956
    %8091 = vmatprep.subr.mxu0 0.0
    %8092 = vmatpush1.msra.mxu0 %v7955
    %8093 = vmatprep.subr.mxu0 0.0
    %8094 = vmatpush1.msra.mxu0 %v7954
    %8095 = vmatprep.subr.mxu0 0.0
    %8096 = vmatpush2.msra.mxu0 0.0
    %8097 = vmatprep.subr.mxu0 0.0
    %8098 = vmatpush2.msra.mxu0 0.0
    %8099 = vmatprep.subr.mxu0 0.0
    %8100 = vmatpush2.msra.mxu0 0.0
    %8101 = vmatprep.subr.mxu0 0.0
    %8102 = vmatpush2.msra.mxu0 0.0
    %8103 = vmatprep.subr.mxu0 0.0
    %8104 = vmatpush2.msra.mxu0 0.0
    %8105 = vmatprep.subr.mxu0 0.0
    %8106 = vmatpush2.msra.mxu0 0.0
    %8107 = vmatprep.subr.mxu0 0.0
    %8108 = vmatpush2.msra.mxu0 0.0
    %8109 = vmatprep.subr.mxu0 0.0
    %8110 = vmatpush2.msra.mxu0 0.0
    %8111 = vmatprep.subr.mxu0 0.0
    %8112 = vmatpush2.msra.mxu0 0.0
    %8113 = vmatprep.subr.mxu0 0.0
    %8114 = vmatpush2.msra.mxu0 0.0
    %8115 = vmatprep.subr.mxu0 0.0
    %8116 = vmatpush2.msra.mxu0 0.0
    %8117 = vmatprep.subr.mxu0 0.0
    %8118 = vmatpush2.msra.mxu0 0.0
    %8119 = vmatprep.subr.mxu0 0.0
    %8120 = vmatpush2.msra.mxu0 0.0
    %8121 = vmatprep.subr.mxu0 0.0
    %8122 = vmatpush2.msra.mxu0 0.0
    %8123 = vmatprep.subr.mxu0 0.0
    %8124 = vmatpush2.msra.mxu0 0.0
    %8125 = vmatprep.subr.mxu0 0.0
    %8126 = vmatpush2.msra.mxu0 0.0
    %8127 = vmatprep.mubr.f32.mxu0 0.0
    %8128 = vmatmul.mubr.f32.gmra.mxu0 %v8061
    %v8129 = vpop.f32.mrf.mxu0
    %v8130 = vadd.f32 %v7965, %v8129
    %v8131 = vpop.f32.mrf.mxu0
    %8132 = vdwg.mxu0
    %v8133 = vmax.f32 %v8130, 0.0
    %v8134 = vmul.f32 %v8133, %v8045
    %v8135 = vsel %vm7781, %v8134, 0.0
    %8136 = vadd.xlane.f32.xlu0 %v8135
    %v8137 = vpop.xlane.xlu0 %8136
    %v8138 = vadd.f32 %v8137, %v8055
    %v8139 = vmax.f32 %v8057, %v8138
    %v8140 = vsub.f32 %v8057, %v8139
    %v8141 = vmul.f32 %v8140, 1.442695
    %v8142 = vpow.pop %v8141
    %v8143 = vsub.f32 %v8138, %v8139
    %v8144 = vmul.f32 %v8143, 1.442695
    %v8145 = vpow.pop %v8144
    %v8146 = vadd.f32 %v8142, %v8145
    %v8147 = vrcp.pop %v8146
    %v8148 = vmul.f32 %v8142, %v8147
    %8150 = vset.pattern.permute.xlu0 0
    %8151 = vperm.xlu0 %8150, %v8148
    %v8152 = vpop.permute.xlu0 %8151
    %v8154 = vmul.f32 %v8152, %v7324
    %v8155 = vmul.f32 %v8145, %v8147
    %8157 = vset.pattern.permute.xlu0 0
    %8158 = vperm.xlu0 %8157, %v8155
    %v8159 = vpop.permute.xlu0 %8158
    %v8162 = vmul.f32 %v8159, %v8060
    %v8163 = vadd.f32 %v8154, %v8162
    %v8164 = vld [vmem:[%s26] sm:$0xff]
    %v8165 = vld [vmem:[%s26 + $0x8] sm:$0xff]
    %v8166 = vld [vmem:[%s26 + $0x10] sm:$0xff]
    %v8167 = vld [vmem:[%s26 + $0x18] sm:$0xff]
    %v8168 = vld [vmem:[%s27] sm:$0x1]
    %v8170 = vlaneseq
    %v8171 = vshrl.u32 %v8170, 7
    %v8172 = vsub.s32 0, %v8171
    %v8173 = vrot.slane %v8168, %v8172
    %v8176 = vsel %vm407, %v8163, 0
    %8178 = vmatprep.subr.mxu0 0.0
    %8179 = vmatpush1.msra.mxu0 0.0
    %8180 = vmatprep.subr.mxu0 0.0
    %8181 = vmatpush1.msra.mxu0 0.0
    %8182 = vmatprep.subr.mxu0 0.0
    %8183 = vmatpush1.msra.mxu0 0.0
    %8184 = vmatprep.subr.mxu0 0.0
    %8185 = vmatpush1.msra.mxu0 0.0
    %8186 = vmatprep.subr.mxu0 0.0
    %8187 = vmatpush1.msra.mxu0 0.0
    %8188 = vmatprep.subr.mxu0 0.0
    %8189 = vmatpush1.msra.mxu0 0.0
    %8190 = vmatprep.subr.mxu0 0.0
    %8191 = vmatpush1.msra.mxu0 0.0
    %8192 = vmatprep.subr.mxu0 0.0
    %8193 = vmatpush1.msra.mxu0 0.0
    %8194 = vmatprep.subr.mxu0 0.0
    %8195 = vmatpush1.msra.mxu0 0.0
    %8196 = vmatprep.subr.mxu0 0.0
    %8197 = vmatpush1.msra.mxu0 0.0
    %8198 = vmatprep.subr.mxu0 0.0
    %8199 = vmatpush1.msra.mxu0 0.0
    %8200 = vmatprep.subr.mxu0 0.0
    %8201 = vmatpush1.msra.mxu0 0.0
    %8202 = vmatprep.subr.mxu0 0.0
    %8203 = vmatpush1.msra.mxu0 %v8167
    %8204 = vmatprep.subr.mxu0 0.0
    %8205 = vmatpush1.msra.mxu0 %v8166
    %8206 = vmatprep.subr.mxu0 0.0
    %8207 = vmatpush1.msra.mxu0 %v8165
    %8208 = vmatprep.subr.mxu0 0.0
    %8209 = vmatpush1.msra.mxu0 %v8164
    %8210 = vmatprep.subr.mxu0 0.0
    %8211 = vmatpush2.msra.mxu0 0.0
    %8212 = vmatprep.subr.mxu0 0.0
    %8213 = vmatpush2.msra.mxu0 0.0
    %8214 = vmatprep.subr.mxu0 0.0
    %8215 = vmatpush2.msra.mxu0 0.0
    %8216 = vmatprep.subr.mxu0 0.0
    %8217 = vmatpush2.msra.mxu0 0.0
    %8218 = vmatprep.subr.mxu0 0.0
    %8219 = vmatpush2.msra.mxu0 0.0
    %8220 = vmatprep.subr.mxu0 0.0
    %8221 = vmatpush2.msra.mxu0 0.0
    %8222 = vmatprep.subr.mxu0 0.0
    %8223 = vmatpush2.msra.mxu0 0.0
    %8224 = vmatprep.subr.mxu0 0.0
    %8225 = vmatpush2.msra.mxu0 0.0
    %8226 = vmatprep.subr.mxu0 0.0
    %8227 = vmatpush2.msra.mxu0 0.0
    %8228 = vmatprep.subr.mxu0 0.0
    %8229 = vmatpush2.msra.mxu0 0.0
    %8230 = vmatprep.subr.mxu0 0.0
    %8231 = vmatpush2.msra.mxu0 0.0
    %8232 = vmatprep.subr.mxu0 0.0
    %8233 = vmatpush2.msra.mxu0 0.0
    %8234 = vmatprep.subr.mxu0 0.0
    %8235 = vmatpush2.msra.mxu0 0.0
    %8236 = vmatprep.subr.mxu0 0.0
    %8237 = vmatpush2.msra.mxu0 0.0
    %8238 = vmatprep.subr.mxu0 0.0
    %8239 = vmatpush2.msra.mxu0 0.0
    %8240 = vmatprep.subr.mxu0 0.0
    %8241 = vmatpush2.msra.mxu0 0.0
    %8242 = vmatprep.mubr.f32.mxu0 0.0
    %8243 = vmatmul.mubr.f32.gmra.mxu0 %v8176
    %v8244 = vpop.f32.mrf.mxu0
    %v8245 = vadd.f32 %v8173, %v8244
    %v8246 = vpop.f32.mrf.mxu0
    %8247 = vdwg.mxu0
    %vm8248 = vcmask 33792
    %8249 = vst.msk [vmem:[#allocation6] sm:$0x3] %vm8248, %v8245
    // Predicated region
    $region114: #{basic_type_classifier.1} parent=1 // pred_check
      _
    $region115: #{basic_type_classifier.1} parent=1 // pred_check_branch
      %8251 = sbr.rel (0) target = $region117
    $region116: #{basic_type_classifier.1} parent=1 // pred_region
      %s8253 = ssub.s32 32, 32
      %8254 = vsyncadd [#allocation7], %s8253
      %s8256 = sshll.u32 [#allocation6], 4
      %s8257 = int_to_ptr.vmem [resolvable:$true] %s8256
      %8259 = dma.vmem_to_hbm [thread:$0]  %s8257, 32, %s28, [#allocation7]
    $region117: #{basic_type_classifier.1} parent=1 // pred_fallthru
      _
    // Predicated region
    $region118: #{basic_type_classifier.1} parent=1 // pred_check
      _
    $region119: #{basic_type_classifier.1} parent=1 // pred_check_branch
      %8261 = sbr.rel (0) target = $region121
    $region120: #{basic_type_classifier.1} parent=1 // pred_region
      %8262 = dma.done [#allocation7], 32
    $region121: #{basic_type_classifier.1} parent=1 // pred_fallthru
      _
    %8263 = vsyncpa [#allocation7], 1

</llo_original>
